<compile_context>
chip_gen: v5e
topology: v5e:2x2
jax: 0.10.0
libtpu: 0.0.40
codegen_flags: <defaults>
</compile_context>

<pallas_src>
import functools

import jax
import jax.numpy as jnp
from jax.experimental import pallas as pl
from jax.experimental.pallas import tpu as pltpu


def _decoder_kernel(em_ref, feat_ref, lat_ref, wp_ref, wfa_ref, ba_ref,
                    wop_ref, out_ref, *, num_layers, hidden, compute_dtype):
    # em_ref:   (3,      TN) f32            emission, transposed
    # feat_ref: (BV,     TN) compute_dtype  buffer/variable features, transposed
    # lat_ref:  (H,      TN) compute_dtype  latent features, transposed
    # wp_ref:   (L, H, H)    compute_dtype  per-layer weights on `prev` (transposed)
    # wfa_ref:  (L*H+3, BV)  compute_dtype  stacked feat-weights for all hidden
    #                                       layers AND the output layer (transposed)
    # ba_ref:   (L*H+3, 1)   f32            stacked biases (hidden layers + output)
    # wop_ref:  (3, H)       compute_dtype  output-layer weight on `prev` (transposed)
    feat = feat_ref[...]                      # (BV, TN)
    prev = lat_ref[...]                       # (H,  TN)

    # ONE MXU call for the layer-invariant feature contribution of every hidden
    # layer and of the output layer, with all biases folded in.
    # Rows [l*H:(l+1)*H] belong to hidden layer l; rows [L*H:] to the output.
    # (On v7x with very large tile_n this (L*H+3, TN) f32 buffer is the main
    #  VMEM consumer; the per-layer-matmul alternative only pays off there.)
    feat_c = (jnp.dot(wfa_ref[...], feat, preferred_element_type=jnp.float32)
              + ba_ref[...])                  # (L*H+3, TN) f32

    for l in range(num_layers):
        h = (jnp.dot(wp_ref[l], prev.astype(compute_dtype),
                     preferred_element_type=jnp.float32)
             + feat_c[l * hidden:(l + 1) * hidden, :])
        # LeakyReLU (slope 0.01) == max(h, 0.01*h); kept in f32 on the VPU.
        prev = jnp.maximum(h, 0.01 * h)

    out = (jnp.dot(wop_ref[...], prev.astype(compute_dtype),
                   preferred_element_type=jnp.float32)
           + feat_c[num_layers * hidden:, :])  # (3, TN) f32

    em = em_ref[...]                          # (3, TN) f32
    # Lane-dense (3, tile_n) store.
    out_ref[...] = jnp.where(em > 1.0, em, out + em)


def _vmem_limit_bytes(tile_n, bv, hidden, layers, compute_dtype):
    """Explicit VMEM budget: double-buffered streaming blocks + weights +
    the hoisted f32 intermediate + activation temporaries, with headroom."""
    cb = jnp.dtype(compute_dtype).itemsize
    f32 = 4
    stream = 2 * tile_n * (3 * f32 + bv * cb + hidden * cb + 3 * f32)
    weights = 2 * ((layers * hidden * hidden + (layers * hidden + 3) * bv
                    + 3 * hidden) * cb + (layers * hidden + 3) * f32)
    interm = (layers * hidden + 3) * tile_n * f32          # hoisted feat_c
    interm += 4 * hidden * tile_n * f32                    # prev / h temporaries
    est = int(1.5 * (stream + weights + interm)) + (8 << 20)
    return min(128 << 20, max(32 << 20, est))


def moe_positional_pixel_decoder(x, latent, params, *, tile_n=4096,
                                 compute_dtype=jnp.bfloat16):
    """x: [N, 3 + buffers+variables] f32, latent: [N, hidden] f32 -> [N, 3] f32."""
    wp, wi, bh, wop, woi, bo = params
    N, C = x.shape
    H = latent.shape[1]
    L = wp.shape[0]
    BV = C - 3
    assert tile_n % 128 == 0, "tile_n must be a multiple of 128 (lane width)"

    n_tiles = pl.cdiv(N, tile_n)
    n_pad = n_tiles * tile_n

    # Channels-major (transposed) operands: big pixel axis -> TPU lanes.
    # slice + transpose + cast written as one expression each so XLA fuses them
    # into a single pass; padding (pixels are independent, padded columns are
    # discarded after the call) is applied to the small transposed views only.
    em_t = x[:, 0:3].T                                    # (3, N) f32
    feat_t = x[:, 3:].T.astype(compute_dtype)             # (BV, N)
    lat_t = latent.T.astype(compute_dtype)                # (H, N)
    if n_pad != N:
        pad = ((0, 0), (0, n_pad - N))
        em_t = jnp.pad(em_t, pad)
        feat_t = jnp.pad(feat_t, pad)
        lat_t = jnp.pad(lat_t, pad)

    # Weight prep (stored [in, out]; kernel wants transposed / stacked forms).
    wp_t = jnp.transpose(wp, (0, 2, 1)).astype(compute_dtype)          # (L, H, H)
    wih_t = jnp.transpose(wi, (0, 2, 1)).reshape(L * H, BV)            # (L*H, BV) f32
    # Fuse the output-layer feat weights + all biases into the hoisted operand.
    wfa = jnp.concatenate([wih_t, woi.T], axis=0).astype(compute_dtype)  # (L*H+3, BV)
    ba = jnp.concatenate([bh.reshape(L * H), bo.reshape(3)],
                         axis=0).reshape(L * H + 3, 1)                 # f32
    wop_t = wop.T.astype(compute_dtype)                                # (3, H)

    kernel = functools.partial(_decoder_kernel, num_layers=L, hidden=H,
                               compute_dtype=compute_dtype)
    out_t = pl.pallas_call(
        kernel,
        out_shape=jax.ShapeDtypeStruct((3, n_pad), jnp.float32),
        grid_spec=pltpu.PrefetchScalarGridSpec(
            num_scalar_prefetch=0,
            grid=(n_tiles,),
            in_specs=[
                pl.BlockSpec((3, tile_n), lambda i: (0, i)),       # emission^T
                pl.BlockSpec((BV, tile_n), lambda i: (0, i)),      # feat^T
                pl.BlockSpec((H, tile_n), lambda i: (0, i)),       # latent^T
                # Constant-index weight operands (could be single-buffered via
                # pipeline_mode=pl.Buffered(1) to free VMEM headroom at very
                # large tile_n; negligible at these shapes).
                pl.BlockSpec((L, H, H), lambda i: (0, 0, 0)),      # hidden W_prev^T
                pl.BlockSpec((L * H + 3, BV), lambda i: (0, 0)),   # stacked W_feat^T
                pl.BlockSpec((L * H + 3, 1), lambda i: (0, 0)),    # stacked biases
                pl.BlockSpec((3, H), lambda i: (0, 0)),            # outer W_prev^T
            ],
            out_specs=pl.BlockSpec((3, tile_n), lambda i: (0, i)),
        ),
        compiler_params=pltpu.CompilerParams(
            dimension_semantics=("parallel",),   # megacore-shardable on v7x
            vmem_limit_bytes=_vmem_limit_bytes(tile_n, BV, H, L, compute_dtype)),
    )(em_t, feat_t, lat_t, wp_t, wfa, ba, wop_t)

    return out_t[:, :N].T


def init_params(key, *, hidden_features, buffers_features, variables_features,
                hidden_layers, out_features=3):
    """Deterministic synthetic parameters (stored in [in, out] layout)."""
    BV = buffers_features + variables_features
    H = hidden_features
    L = hidden_layers
    ks = jax.random.split(key, 6)
    scale = 1.0 / jnp.sqrt(jnp.float32(H + BV))
    wp = jax.random.normal(ks[0], (L, H, H), jnp.float32) * scale
    wi = jax.random.normal(ks[1], (L, BV, H), jnp.float32) * scale
    bh = jax.random.normal(ks[2], (L, H), jnp.float32) * 0.01
    wop = jax.random.normal(ks[3], (H, out_features), jnp.float32) * scale
    woi = jax.random.normal(ks[4], (BV, out_features), jnp.float32) * scale
    bo = jax.random.normal(ks[5], (1, out_features), jnp.float32) * 0.01
    return wp, wi, bh, wop, woi, bo


def reference_forward(x, latent, params):
    """Pure-JAX reference mirroring the PyTorch forward."""
    wp, wi, bh, wop, woi, bo = params
    emission = x[:, 0:3]
    feat = x[:, 3:]
    prev = latent
    for l in range(wp.shape[0]):
        x2 = jnp.concatenate([prev, feat], axis=1)
        h = x2 @ jnp.concatenate([wp[l], wi[l]], axis=0) + bh[l]
        prev = jnp.where(h >= 0.0, h, 0.01 * h)
    x2 = jnp.concatenate([prev, feat], axis=1)
    out = x2 @ jnp.concatenate([wop, woi], axis=0) + bo
    return jnp.where(emission > 1.0, emission, out + emission)


if __name__ == "__main__":
    # Small, decoder-consistent shapes.  N is not a multiple of tile_n so the
    # padded tail path is exercised; the second call uses a small tile_n to
    # exercise a multi-tile grid.
    N = 2000                   # number of pixels
    buffers_features = 4
    variables_features = 4
    hidden_features = 32
    hidden_layers = 4
    out_features = 3
    BV = buffers_features + variables_features

    key = jax.random.PRNGKey(0)
    kx, kl, kp = jax.random.split(key, 3)
    # input: first 3 cols are emission (some > 1 to exercise the where),
    # remaining BV cols are buffer/variable features.
    x = jax.random.uniform(kx, (N, 3 + BV), jnp.float32, minval=0.0, maxval=2.0)
    latent = jax.random.normal(kl, (N, hidden_features), jnp.float32)

    params = init_params(kp,
                         hidden_features=hidden_features,
                         buffers_features=buffers_features,
                         variables_features=variables_features,
                         hidden_layers=hidden_layers,
                         out_features=out_features)

    ref = reference_forward(x, latent, params)

    # Default (recommended) path: bf16 matmul operands, tile_n=4096.
    out = moe_positional_pixel_decoder(x, latent, params)
    out = jax.block_until_ready(out)
    assert out.shape == (N, out_features)
    # TODO(synk): confirm the bf16 error budget is acceptable for the
    # application; fall back to compute_dtype=jnp.float32 otherwise.
    assert jnp.allclose(out, ref, atol=2.5e-1, rtol=5e-2), "bf16 mismatch vs reference"

    # f32 path with a small tile_n: tight tolerance + multi-tile grid + padding.
    out_f32 = moe_positional_pixel_decoder(x, latent, params, tile_n=512,
                                           compute_dtype=jnp.float32)
    out_f32 = jax.block_until_ready(out_f32)
    assert jnp.allclose(out_f32, ref, atol=1e-4, rtol=1e-4), "f32 mismatch vs reference"

    print("KERNEL_OK")
</pallas_src>

<mosaic_0001>
module attributes {stable_mosaic.version = 11 : i64} {
  func.func @_decoder_kernel(%arg0: i32, %arg1: memref<3x4096xf32, #tpu.memory_space<vmem>>, %arg2: memref<8x4096xbf16, #tpu.memory_space<vmem>>, %arg3: memref<32x4096xbf16, #tpu.memory_space<vmem>>, %arg4: memref<4x32x32xbf16, #tpu.memory_space<vmem>>, %arg5: memref<131x8xbf16, #tpu.memory_space<vmem>>, %arg6: memref<131x1xf32, #tpu.memory_space<vmem>>, %arg7: memref<3x32xbf16, #tpu.memory_space<vmem>>, %arg8: memref<3x4096xf32, #tpu.memory_space<vmem>>) attributes {dimension_semantics = [#tpu.dimension_semantics<parallel>], iteration_bounds = array<i64: 1>, scalar_prefetch = 0 : i64, scratch_operands = 0 : i64, tpu.core_type = #tpu.core_type<tc>, window_params = [{transform_indices = @transform_0, window_bounds = array<i64: 3, 4096>}, {transform_indices = @transform_1, window_bounds = array<i64: 8, 4096>}, {transform_indices = @transform_2, window_bounds = array<i64: 32, 4096>}, {pipeline_mode = #tpu.pipeline_mode<synchronous>, transform_indices = @transform_3, window_bounds = array<i64: 4, 32, 32>}, {pipeline_mode = #tpu.pipeline_mode<synchronous>, transform_indices = @transform_4, window_bounds = array<i64: 131, 8>}, {pipeline_mode = #tpu.pipeline_mode<synchronous>, transform_indices = @transform_5, window_bounds = array<i64: 131, 1>}, {pipeline_mode = #tpu.pipeline_mode<synchronous>, transform_indices = @transform_6, window_bounds = array<i64: 3, 32>}, {transform_indices = @transform_7, window_bounds = array<i64: 3, 4096>}]} {
    %c0 = arith.constant 0 : index
    %c0_0 = arith.constant 0 : index
    %0 = vector.load %arg2[%c0, %c0_0] : memref<8x4096xbf16, #tpu.memory_space<vmem>>, vector<8x4096xbf16>
    %c0_1 = arith.constant 0 : index
    %c0_2 = arith.constant 0 : index
    %1 = vector.load %arg3[%c0_1, %c0_2] : memref<32x4096xbf16, #tpu.memory_space<vmem>>, vector<32x4096xbf16>
    %c0_3 = arith.constant 0 : index
    %c0_4 = arith.constant 0 : index
    %2 = vector.load %arg5[%c0_3, %c0_4] : memref<131x8xbf16, #tpu.memory_space<vmem>>, vector<131x8xbf16>
    %cst = arith.constant dense<0.000000e+00> : vector<131x4096xf32>
    %3 = tpu.matmul %2, %0, %cst {dimension_numbers = #tpu.dot_dimension_numbers<[1], [0], [0], [1], [0, 0, 1, 1], [], []>} : vector<131x8xbf16>, vector<8x4096xbf16>, vector<131x4096xf32> -> vector<131x4096xf32>
    %c0_5 = arith.constant 0 : index
    %c0_6 = arith.constant 0 : index
    %4 = vector.load %arg6[%c0_5, %c0_6] : memref<131x1xf32, #tpu.memory_space<vmem>>, vector<131x1xf32>
    %5 = vector.broadcast %4 : vector<131x1xf32> to vector<131x4096xf32>
    %6 = arith.addf %3, %5 : vector<131x4096xf32>
    %c0_7 = arith.constant 0 : index
    %c0_8 = arith.constant 0 : index
    %c0_9 = arith.constant 0 : index
    %7 = vector.load %arg4[%c0_7, %c0_8, %c0_9] : memref<4x32x32xbf16, #tpu.memory_space<vmem>>, vector<1x32x32xbf16>
    %8 = vector.shape_cast %7 : vector<1x32x32xbf16> to vector<32x32xbf16>
    %cst_10 = arith.constant dense<0.000000e+00> : vector<32x4096xf32>
    %9 = tpu.matmul %8, %1, %cst_10 {dimension_numbers = #tpu.dot_dimension_numbers<[1], [0], [0], [1], [0, 0, 1, 1], [], []>} : vector<32x32xbf16>, vector<32x4096xbf16>, vector<32x4096xf32> -> vector<32x4096xf32>
    %10 = vector.extract_strided_slice %6 {offsets = [0, 0], sizes = [32, 4096], strides = [1, 1]} : vector<131x4096xf32> to vector<32x4096xf32>
    %11 = arith.addf %9, %10 : vector<32x4096xf32>
    %cst_11 = arith.constant 0.00999999977 : f32
    %12 = vector.broadcast %cst_11 : f32 to vector<32x4096xf32>
    %13 = arith.mulf %12, %11 : vector<32x4096xf32>
    %14 = arith.maximumf %11, %13 : vector<32x4096xf32>
    %c1 = arith.constant 1 : index
    %c0_12 = arith.constant 0 : index
    %c0_13 = arith.constant 0 : index
    %15 = vector.load %arg4[%c1, %c0_12, %c0_13] : memref<4x32x32xbf16, #tpu.memory_space<vmem>>, vector<1x32x32xbf16>
    %16 = vector.shape_cast %15 : vector<1x32x32xbf16> to vector<32x32xbf16>
    %17 = arith.truncf %14 : vector<32x4096xf32> to vector<32x4096xbf16>
    %cst_14 = arith.constant dense<0.000000e+00> : vector<32x4096xf32>
    %18 = tpu.matmul %16, %17, %cst_14 {dimension_numbers = #tpu.dot_dimension_numbers<[1], [0], [0], [1], [0, 0, 1, 1], [], []>} : vector<32x32xbf16>, vector<32x4096xbf16>, vector<32x4096xf32> -> vector<32x4096xf32>
    %19 = vector.extract_strided_slice %6 {offsets = [32, 0], sizes = [32, 4096], strides = [1, 1]} : vector<131x4096xf32> to vector<32x4096xf32>
    %20 = arith.addf %18, %19 : vector<32x4096xf32>
    %cst_15 = arith.constant 0.00999999977 : f32
    %21 = vector.broadcast %cst_15 : f32 to vector<32x4096xf32>
    %22 = arith.mulf %21, %20 : vector<32x4096xf32>
    %23 = arith.maximumf %20, %22 : vector<32x4096xf32>
    %c2 = arith.constant 2 : index
    %c0_16 = arith.constant 0 : index
    %c0_17 = arith.constant 0 : index
    %24 = vector.load %arg4[%c2, %c0_16, %c0_17] : memref<4x32x32xbf16, #tpu.memory_space<vmem>>, vector<1x32x32xbf16>
    %25 = vector.shape_cast %24 : vector<1x32x32xbf16> to vector<32x32xbf16>
    %26 = arith.truncf %23 : vector<32x4096xf32> to vector<32x4096xbf16>
    %cst_18 = arith.constant dense<0.000000e+00> : vector<32x4096xf32>
    %27 = tpu.matmul %25, %26, %cst_18 {dimension_numbers = #tpu.dot_dimension_numbers<[1], [0], [0], [1], [0, 0, 1, 1], [], []>} : vector<32x32xbf16>, vector<32x4096xbf16>, vector<32x4096xf32> -> vector<32x4096xf32>
    %28 = vector.extract_strided_slice %6 {offsets = [64, 0], sizes = [32, 4096], strides = [1, 1]} : vector<131x4096xf32> to vector<32x4096xf32>
    %29 = arith.addf %27, %28 : vector<32x4096xf32>
    %cst_19 = arith.constant 0.00999999977 : f32
    %30 = vector.broadcast %cst_19 : f32 to vector<32x4096xf32>
    %31 = arith.mulf %30, %29 : vector<32x4096xf32>
    %32 = arith.maximumf %29, %31 : vector<32x4096xf32>
    %c3 = arith.constant 3 : index
    %c0_20 = arith.constant 0 : index
    %c0_21 = arith.constant 0 : index
    %33 = vector.load %arg4[%c3, %c0_20, %c0_21] : memref<4x32x32xbf16, #tpu.memory_space<vmem>>, vector<1x32x32xbf16>
    %34 = vector.shape_cast %33 : vector<1x32x32xbf16> to vector<32x32xbf16>
    %35 = arith.truncf %32 : vector<32x4096xf32> to vector<32x4096xbf16>
    %cst_22 = arith.constant dense<0.000000e+00> : vector<32x4096xf32>
    %36 = tpu.matmul %34, %35, %cst_22 {dimension_numbers = #tpu.dot_dimension_numbers<[1], [0], [0], [1], [0, 0, 1, 1], [], []>} : vector<32x32xbf16>, vector<32x4096xbf16>, vector<32x4096xf32> -> vector<32x4096xf32>
    %37 = vector.extract_strided_slice %6 {offsets = [96, 0], sizes = [32, 4096], strides = [1, 1]} : vector<131x4096xf32> to vector<32x4096xf32>
    %38 = arith.addf %36, %37 : vector<32x4096xf32>
    %cst_23 = arith.constant 0.00999999977 : f32
    %39 = vector.broadcast %cst_23 : f32 to vector<32x4096xf32>
    %40 = arith.mulf %39, %38 : vector<32x4096xf32>
    %41 = arith.maximumf %38, %40 : vector<32x4096xf32>
    %c0_24 = arith.constant 0 : index
    %c0_25 = arith.constant 0 : index
    %42 = vector.load %arg7[%c0_24, %c0_25] : memref<3x32xbf16, #tpu.memory_space<vmem>>, vector<3x32xbf16>
    %43 = arith.truncf %41 : vector<32x4096xf32> to vector<32x4096xbf16>
    %cst_26 = arith.constant dense<0.000000e+00> : vector<3x4096xf32>
    %44 = tpu.matmul %42, %43, %cst_26 {dimension_numbers = #tpu.dot_dimension_numbers<[1], [0], [0], [1], [0, 0, 1, 1], [], []>} : vector<3x32xbf16>, vector<32x4096xbf16>, vector<3x4096xf32> -> vector<3x4096xf32>
    %45 = vector.extract_strided_slice %6 {offsets = [128, 0], sizes = [3, 4096], strides = [1, 1]} : vector<131x4096xf32> to vector<3x4096xf32>
    %46 = arith.addf %44, %45 : vector<3x4096xf32>
    %c0_27 = arith.constant 0 : index
    %c0_28 = arith.constant 0 : index
    %47 = vector.load %arg1[%c0_27, %c0_28] : memref<3x4096xf32, #tpu.memory_space<vmem>>, vector<3x4096xf32>
    %cst_29 = arith.constant 1.000000e+00 : f32
    %48 = vector.broadcast %cst_29 : f32 to vector<3x4096xf32>
    %49 = arith.cmpf ogt, %47, %48 : vector<3x4096xf32>
    %50 = arith.addf %46, %47 : vector<3x4096xf32>
    %51 = arith.select %49, %47, %50 : vector<3x4096xi1>, vector<3x4096xf32>
    %c0_30 = arith.constant 0 : index
    %c0_31 = arith.constant 0 : index
    %52 = vector.load %arg8[%c0_30, %c0_31] : memref<3x4096xf32, #tpu.memory_space<vmem>>, vector<3x4096xf32>
    tpu.vector_store %arg8[%c0_30, %c0_31], %51 {strides = array<i32>} : memref<3x4096xf32, #tpu.memory_space<vmem>>, vector<3x4096xf32>,
    return
  }
  func.func @transform_0(%arg0: i32) -> (i32, i32) {
    %c0_i32 = arith.constant 0 : i32
    %c0_i32_0 = arith.constant 0 : i32
    return %c0_i32, %arg0 : i32, i32
  }
  func.func @transform_1(%arg0: i32) -> (i32, i32) {
    %c0_i32 = arith.constant 0 : i32
    %c0_i32_0 = arith.constant 0 : i32
    return %c0_i32, %arg0 : i32, i32
  }
  func.func @transform_2(%arg0: i32) -> (i32, i32) {
    %c0_i32 = arith.constant 0 : i32
    %c0_i32_0 = arith.constant 0 : i32
    return %c0_i32, %arg0 : i32, i32
  }
  func.func @transform_3(%arg0: i32) -> (i32, i32, i32) {
    %c0_i32 = arith.constant 0 : i32
    %c0_i32_0 = arith.constant 0 : i32
    %c0_i32_1 = arith.constant 0 : i32
    %c0_i32_2 = arith.constant 0 : i32
    return %c0_i32, %c0_i32_0, %c0_i32_1 : i32, i32, i32
  }
  func.func @transform_4(%arg0: i32) -> (i32, i32) {
    %c0_i32 = arith.constant 0 : i32
    %c0_i32_0 = arith.constant 0 : i32
    %c0_i32_1 = arith.constant 0 : i32
    return %c0_i32, %c0_i32_0 : i32, i32
  }
  func.func @transform_5(%arg0: i32) -> (i32, i32) {
    %c0_i32 = arith.constant 0 : i32
    %c0_i32_0 = arith.constant 0 : i32
    %c0_i32_1 = arith.constant 0 : i32
    return %c0_i32, %c0_i32_0 : i32, i32
  }
  func.func @transform_6(%arg0: i32) -> (i32, i32) {
    %c0_i32 = arith.constant 0 : i32
    %c0_i32_0 = arith.constant 0 : i32
    %c0_i32_1 = arith.constant 0 : i32
    return %c0_i32, %c0_i32_0 : i32, i32
  }
  func.func @transform_7(%arg0: i32) -> (i32, i32) {
    %c0_i32 = arith.constant 0 : i32
    %c0_i32_0 = arith.constant 0 : i32
    return %c0_i32, %arg0 : i32, i32
  }
}

</mosaic_0001>

<llo_original>
// kernel: tpu_custom_call.1
$region0: #{tpu_custom_call.1}
  #allocation0 [shape = 'u32[]', space=smem, size = 0x4, offset = 0x4, fixed_abs, tag = 'smem constant byte address 0x4 - core index']
  #allocation1 [shape = 'u32[72,128]{1,0:T(1,128)}', space=vmem, size = 0x9000, scoped, tag = 'internal scratch']
  %s0 = inlined_call_operand.vmem [shape: f32[3,4096], index: 0, kind: input, shape index: {}]
  %s1 = inlined_call_operand.hbm [shape: bf16[8,4096], index: 1, kind: input, shape index: {}]
  %s2 = inlined_call_operand.hbm [shape: bf16[32,4096], index: 2, kind: input, shape index: {}]
  %s3 = inlined_call_operand.vmem [shape: bf16[4,32,32], index: 3, kind: input, shape index: {}]
  %s4 = inlined_call_operand.vmem [shape: bf16[131,8], index: 4, kind: input, shape index: {}]
  %s5 = inlined_call_operand.vmem [shape: f32[131,1], index: 5, kind: input, shape index: {}]
  %s6 = inlined_call_operand.vmem [shape: bf16[3,32], index: 6, kind: input, shape index: {}]
  %s7 = inlined_call_operand.hbm [shape: f32[3,4096], index: 7, kind: output, shape index: {}]
  %s8 = sld [smem:[#allocation0]]
  $region46: #{tpu_custom_call.1} parent=0
    _
  %s10 = ssub.s32 1, %s8
  %s11 = scalar_select 0, %s10, %s8
  $region1: #{tpu_custom_call.1} parent=0
    #allocation2 [shape = 'u8[65536]{0}', space=vmem, size = 0x10000, scoped, tag = 'input window, operand 1, single buffered']
    #allocation3 [shape = 's32[1]{0}', space=sflag, size = 0x4, scoped, tag = 'scoped memory for tpu_custom_call.1']
    #allocation4 [shape = 's32[1]{0}', space=sflag, size = 0x4, scoped, tag = 'scoped memory for tpu_custom_call.1']
    #allocation5 [shape = 'u8[262144]{0}', space=vmem, size = 0x40000, scoped, tag = 'input window, operand 2, single buffered']
    #allocation6 [shape = 's32[1]{0}', space=sflag, size = 0x4, scoped, tag = 'scoped memory for tpu_custom_call.1']
    #allocation7 [shape = 'u8[65536]{0}', space=vmem, size = 0x10000, scoped, tag = 'output window, operand 0, single buffered']
    %12 = vsyncpa [#allocation3], 0
    %13 = vsyncpa [#allocation6], 0
    %14 = vsyncpa [#allocation4], 0
    // Predicated region
    $region2: #{tpu_custom_call.1} parent=1 // pred_check
      _
    $region3: #{tpu_custom_call.1} parent=1 // pred_check_branch
      %16 = sbr.rel (0) target = $region5
    $region4: #{tpu_custom_call.1} parent=1 // pred_region
      _
    $region5: #{tpu_custom_call.1} parent=1 // pred_fallthru
      _
    // Predicated region
    $region6: #{tpu_custom_call.1} parent=1 // pred_check
      _
    $region7: #{tpu_custom_call.1} parent=1 // pred_check_branch
      %18 = sbr.rel (0) target = $region9
    $region8: #{tpu_custom_call.1} parent=1 // pred_region
      %20 = vsyncadd [#allocation3], 0
      %s22 = sshll.u32 %s1, 4
      %s23 = int_to_ptr.hbm [resolvable:$true] %s22
      %s24 = sshll.u32 [#allocation2], 4
      %s25 = int_to_ptr.vmem [resolvable:$true] %s24
      %27 = dma.hbm_to_vmem [thread:$0]  %s23, 2048, %s25, [#allocation3]
    $region9: #{tpu_custom_call.1} parent=1 // pred_fallthru
      _
    // Predicated region
    $region10: #{tpu_custom_call.1} parent=1 // pred_check
      _
    $region11: #{tpu_custom_call.1} parent=1 // pred_check_branch
      %29 = sbr.rel (0) target = $region13
    $region12: #{tpu_custom_call.1} parent=1 // pred_region
      %31 = vsyncadd [#allocation6], 0
      %s32 = sshll.u32 %s2, 4
      %s33 = int_to_ptr.hbm [resolvable:$true] %s32
      %s34 = sshll.u32 [#allocation5], 4
      %s35 = int_to_ptr.vmem [resolvable:$true] %s34
      %40 = dma.hbm_to_vmem [thread:$0]  %s33, 8192, %s35, [#allocation6], 2048, 2048, 128
    $region13: #{tpu_custom_call.1} parent=1 // pred_fallthru
      _
    // Predicated region
    $region14: #{tpu_custom_call.1} parent=1 // pred_check
      _
    $region15: #{tpu_custom_call.1} parent=1 // pred_check_branch
      %42 = sbr.rel (0) target = $region17
    $region16: #{tpu_custom_call.1} parent=1 // pred_region
      _
    $region17: #{tpu_custom_call.1} parent=1 // pred_fallthru
      _
    // Predicated region
    $region18: #{tpu_custom_call.1} parent=1 // pred_check
      _
    $region19: #{tpu_custom_call.1} parent=1 // pred_check_branch
      %44 = sbr.rel (0) target = $region21
    $region20: #{tpu_custom_call.1} parent=1 // pred_region
      _
    $region21: #{tpu_custom_call.1} parent=1 // pred_fallthru
      _
    // Predicated region
    $region22: #{tpu_custom_call.1} parent=1 // pred_check
      _
    $region23: #{tpu_custom_call.1} parent=1 // pred_check_branch
      %46 = sbr.rel (0) target = $region25
    $region24: #{tpu_custom_call.1} parent=1 // pred_region
      _
    $region25: #{tpu_custom_call.1} parent=1 // pred_fallthru
      _
    // Predicated region
    $region26: #{tpu_custom_call.1} parent=1 // pred_check
      _
    $region27: #{tpu_custom_call.1} parent=1 // pred_check_branch
      %48 = sbr.rel (0) target = $region29
    $region28: #{tpu_custom_call.1} parent=1 // pred_region
      _
    $region29: #{tpu_custom_call.1} parent=1 // pred_fallthru
      _
    // Predicated region
    $region30: #{tpu_custom_call.1} parent=1 // pred_check
      _
    $region31: #{tpu_custom_call.1} parent=1 // pred_check_branch
      %50 = sbr.rel (0) target = $region33
    $region32: #{tpu_custom_call.1} parent=1 // pred_region
      %52 = dma.done [#allocation3], 2048
    $region33: #{tpu_custom_call.1} parent=1 // pred_fallthru
      _
    // Predicated region
    $region34: #{tpu_custom_call.1} parent=1 // pred_check
      _
    $region35: #{tpu_custom_call.1} parent=1 // pred_check_branch
      %54 = sbr.rel (0) target = $region37
    $region36: #{tpu_custom_call.1} parent=1 // pred_region
      %56 = dma.done [#allocation6], 8192
    $region37: #{tpu_custom_call.1} parent=1 // pred_fallthru
      _
    %v58 = vld [vmem:[#allocation2] sm:$0xff]
    %v59 = vld [vmem:[#allocation2 + $0x8] sm:$0xff]
    %v60 = vld [vmem:[#allocation2 + $0x10] sm:$0xff]
    %v61 = vld [vmem:[#allocation2 + $0x18] sm:$0xff]
    %v62 = vld [vmem:[#allocation2 + $0x20] sm:$0xff]
    %v63 = vld [vmem:[#allocation2 + $0x28] sm:$0xff]
    %v64 = vld [vmem:[#allocation2 + $0x30] sm:$0xff]
    %v65 = vld [vmem:[#allocation2 + $0x38] sm:$0xff]
    %v66 = vld [vmem:[#allocation2 + $0x40] sm:$0xff]
    %v67 = vld [vmem:[#allocation2 + $0x48] sm:$0xff]
    %v68 = vld [vmem:[#allocation2 + $0x50] sm:$0xff]
    %v69 = vld [vmem:[#allocation2 + $0x58] sm:$0xff]
    %v70 = vld [vmem:[#allocation2 + $0x60] sm:$0xff]
    %v71 = vld [vmem:[#allocation2 + $0x68] sm:$0xff]
    %v72 = vld [vmem:[#allocation2 + $0x70] sm:$0xff]
    %v73 = vld [vmem:[#allocation2 + $0x78] sm:$0xff]
    %v74 = vld [vmem:[#allocation5] sm:$0xff]
    %v75 = vld [vmem:[#allocation5 + $0x8] sm:$0xff]
    %v76 = vld [vmem:[#allocation5 + $0x10] sm:$0xff]
    %v77 = vld [vmem:[#allocation5 + $0x18] sm:$0xff]
    %v78 = vld [vmem:[#allocation5 + $0x20] sm:$0xff]
    %v79 = vld [vmem:[#allocation5 + $0x28] sm:$0xff]
    %v80 = vld [vmem:[#allocation5 + $0x30] sm:$0xff]
    %v81 = vld [vmem:[#allocation5 + $0x38] sm:$0xff]
    %v82 = vld [vmem:[#allocation5 + $0x40] sm:$0xff]
    %v83 = vld [vmem:[#allocation5 + $0x48] sm:$0xff]
    %v84 = vld [vmem:[#allocation5 + $0x50] sm:$0xff]
    %v85 = vld [vmem:[#allocation5 + $0x58] sm:$0xff]
    %v86 = vld [vmem:[#allocation5 + $0x60] sm:$0xff]
    %v87 = vld [vmem:[#allocation5 + $0x68] sm:$0xff]
    %v88 = vld [vmem:[#allocation5 + $0x70] sm:$0xff]
    %v89 = vld [vmem:[#allocation5 + $0x78] sm:$0xff]
    %v90 = vld [vmem:[#allocation5 + $0x80] sm:$0xff]
    %v91 = vld [vmem:[#allocation5 + $0x88] sm:$0xff]
    %v92 = vld [vmem:[#allocation5 + $0x90] sm:$0xff]
    %v93 = vld [vmem:[#allocation5 + $0x98] sm:$0xff]
    %v94 = vld [vmem:[#allocation5 + $0xa0] sm:$0xff]
    %v95 = vld [vmem:[#allocation5 + $0xa8] sm:$0xff]
    %v96 = vld [vmem:[#allocation5 + $0xb0] sm:$0xff]
    %v97 = vld [vmem:[#allocation5 + $0xb8] sm:$0xff]
    %v98 = vld [vmem:[#allocation5 + $0xc0] sm:$0xff]
    %v99 = vld [vmem:[#allocation5 + $0xc8] sm:$0xff]
    %v100 = vld [vmem:[#allocation5 + $0xd0] sm:$0xff]
    %v101 = vld [vmem:[#allocation5 + $0xd8] sm:$0xff]
    %v102 = vld [vmem:[#allocation5 + $0xe0] sm:$0xff]
    %v103 = vld [vmem:[#allocation5 + $0xe8] sm:$0xff]
    %v104 = vld [vmem:[#allocation5 + $0xf0] sm:$0xff]
    %v105 = vld [vmem:[#allocation5 + $0xf8] sm:$0xff]
    %v106 = vld [vmem:[#allocation5 + $0x100] sm:$0xff]
    %v107 = vld [vmem:[#allocation5 + $0x108] sm:$0xff]
    %v108 = vld [vmem:[#allocation5 + $0x110] sm:$0xff]
    %v109 = vld [vmem:[#allocation5 + $0x118] sm:$0xff]
    %v110 = vld [vmem:[#allocation5 + $0x120] sm:$0xff]
    %v111 = vld [vmem:[#allocation5 + $0x128] sm:$0xff]
    %v112 = vld [vmem:[#allocation5 + $0x130] sm:$0xff]
    %v113 = vld [vmem:[#allocation5 + $0x138] sm:$0xff]
    %v114 = vld [vmem:[#allocation5 + $0x140] sm:$0xff]
    %v115 = vld [vmem:[#allocation5 + $0x148] sm:$0xff]
    %v116 = vld [vmem:[#allocation5 + $0x150] sm:$0xff]
    %v117 = vld [vmem:[#allocation5 + $0x158] sm:$0xff]
    %v118 = vld [vmem:[#allocation5 + $0x160] sm:$0xff]
    %v119 = vld [vmem:[#allocation5 + $0x168] sm:$0xff]
    %v120 = vld [vmem:[#allocation5 + $0x170] sm:$0xff]
    %v121 = vld [vmem:[#allocation5 + $0x178] sm:$0xff]
    %v122 = vld [vmem:[#allocation5 + $0x180] sm:$0xff]
    %v123 = vld [vmem:[#allocation5 + $0x188] sm:$0xff]
    %v124 = vld [vmem:[#allocation5 + $0x190] sm:$0xff]
    %v125 = vld [vmem:[#allocation5 + $0x198] sm:$0xff]
    %v126 = vld [vmem:[#allocation5 + $0x1a0] sm:$0xff]
    %v127 = vld [vmem:[#allocation5 + $0x1a8] sm:$0xff]
    %v128 = vld [vmem:[#allocation5 + $0x1b0] sm:$0xff]
    %v129 = vld [vmem:[#allocation5 + $0x1b8] sm:$0xff]
    %v130 = vld [vmem:[#allocation5 + $0x1c0] sm:$0xff]
    %v131 = vld [vmem:[#allocation5 + $0x1c8] sm:$0xff]
    %v132 = vld [vmem:[#allocation5 + $0x1d0] sm:$0xff]
    %v133 = vld [vmem:[#allocation5 + $0x1d8] sm:$0xff]
    %v134 = vld [vmem:[#allocation5 + $0x1e0] sm:$0xff]
    %v135 = vld [vmem:[#allocation5 + $0x1e8] sm:$0xff]
    %v136 = vld [vmem:[#allocation5 + $0x1f0] sm:$0xff]
    %v137 = vld [vmem:[#allocation5 + $0x1f8] sm:$0xff]
    %v138 = vld [vmem:[%s4] sm:$0xf]
    %v139 = vld [vmem:[%s4 + $0x4] sm:$0xf]
    %v140 = vld [vmem:[%s4 + $0x8] sm:$0xf]
    %v141 = vld [vmem:[%s4 + $0xc] sm:$0xf]
    %v142 = vld [vmem:[%s4 + $0x10] sm:$0xf]
    %v143 = vld [vmem:[%s4 + $0x14] sm:$0xf]
    %v144 = vld [vmem:[%s4 + $0x18] sm:$0xf]
    %v145 = vld [vmem:[%s4 + $0x1c] sm:$0xf]
    %v146 = vld [vmem:[%s4 + $0x20] sm:$0xf]
    %v147 = vld [vmem:[%s4 + $0x24] sm:$0xf]
    %v148 = vld [vmem:[%s4 + $0x28] sm:$0xf]
    %v149 = vld [vmem:[%s4 + $0x2c] sm:$0xf]
    %v150 = vld [vmem:[%s4 + $0x30] sm:$0xf]
    %v151 = vld [vmem:[%s4 + $0x34] sm:$0xf]
    %v152 = vld [vmem:[%s4 + $0x38] sm:$0xf]
    %v153 = vld [vmem:[%s4 + $0x3c] sm:$0xf]
    %v154 = vld [vmem:[%s4 + $0x40] sm:$0x3]
    %v155 = vld [vmem:[%s5] sm:$0xff]
    %v156 = vld [vmem:[%s5 + $0x8] sm:$0xff]
    %v157 = vld [vmem:[%s5 + $0x10] sm:$0xff]
    %v158 = vld [vmem:[%s5 + $0x18] sm:$0xff]
    %v159 = vld [vmem:[%s5 + $0x20] sm:$0xff]
    %v160 = vld [vmem:[%s5 + $0x28] sm:$0xff]
    %v161 = vld [vmem:[%s5 + $0x30] sm:$0xff]
    %v162 = vld [vmem:[%s5 + $0x38] sm:$0xff]
    %v163 = vld [vmem:[%s5 + $0x40] sm:$0xff]
    %v164 = vld [vmem:[%s5 + $0x48] sm:$0xff]
    %v165 = vld [vmem:[%s5 + $0x50] sm:$0xff]
    %v166 = vld [vmem:[%s5 + $0x58] sm:$0xff]
    %v167 = vld [vmem:[%s5 + $0x60] sm:$0xff]
    %v168 = vld [vmem:[%s5 + $0x68] sm:$0xff]
    %v169 = vld [vmem:[%s5 + $0x70] sm:$0xff]
    %v170 = vld [vmem:[%s5 + $0x78] sm:$0xff]
    %v171 = vld [vmem:[%s5 + $0x80] sm:$0x7]
    %173 = vset.pattern.permute.xlu0 0
    %174 = vperm.xlu0 %173, %v155
    %v175 = vpop.permute.xlu0 %174
    %178 = vset.pattern.permute.xlu0 0
    %179 = vperm.xlu0 %178, %v156
    %v180 = vpop.permute.xlu0 %179
    %183 = vset.pattern.permute.xlu0 0
    %184 = vperm.xlu0 %183, %v157
    %v185 = vpop.permute.xlu0 %184
    %188 = vset.pattern.permute.xlu0 0
    %189 = vperm.xlu0 %188, %v158
    %v190 = vpop.permute.xlu0 %189
    %193 = vset.pattern.permute.xlu0 0
    %194 = vperm.xlu0 %193, %v159
    %v195 = vpop.permute.xlu0 %194
    %198 = vset.pattern.permute.xlu0 0
    %199 = vperm.xlu0 %198, %v160
    %v200 = vpop.permute.xlu0 %199
    %203 = vset.pattern.permute.xlu0 0
    %204 = vperm.xlu0 %203, %v161
    %v205 = vpop.permute.xlu0 %204
    %208 = vset.pattern.permute.xlu0 0
    %209 = vperm.xlu0 %208, %v162
    %v210 = vpop.permute.xlu0 %209
    %213 = vset.pattern.permute.xlu0 0
    %214 = vperm.xlu0 %213, %v163
    %v215 = vpop.permute.xlu0 %214
    %218 = vset.pattern.permute.xlu0 0
    %219 = vperm.xlu0 %218, %v164
    %v220 = vpop.permute.xlu0 %219
    %223 = vset.pattern.permute.xlu0 0
    %224 = vperm.xlu0 %223, %v165
    %v225 = vpop.permute.xlu0 %224
    %228 = vset.pattern.permute.xlu0 0
    %229 = vperm.xlu0 %228, %v166
    %v230 = vpop.permute.xlu0 %229
    %233 = vset.pattern.permute.xlu0 0
    %234 = vperm.xlu0 %233, %v167
    %v235 = vpop.permute.xlu0 %234
    %238 = vset.pattern.permute.xlu0 0
    %239 = vperm.xlu0 %238, %v168
    %v240 = vpop.permute.xlu0 %239
    %243 = vset.pattern.permute.xlu0 0
    %244 = vperm.xlu0 %243, %v169
    %v245 = vpop.permute.xlu0 %244
    %248 = vset.pattern.permute.xlu0 0
    %249 = vperm.xlu0 %248, %v170
    %v250 = vpop.permute.xlu0 %249
    %253 = vset.pattern.permute.xlu0 0
    %254 = vperm.xlu0 %253, %v171
    %v255 = vpop.permute.xlu0 %254
    %v274 = vunpack.c.l.b16 %v138
    %v275 = vunpack.c.l.b16 %v139
    %v276 = vunpack.c.l.b16 %v140
    %v277 = vunpack.c.l.b16 %v141
    %v278 = vunpack.c.l.b16 %v142
    %v279 = vunpack.c.l.b16 %v143
    %v280 = vunpack.c.l.b16 %v144
    %v281 = vunpack.c.l.b16 %v145
    %v282 = vunpack.c.l.b16 %v146
    %v283 = vunpack.c.l.b16 %v147
    %v284 = vunpack.c.l.b16 %v148
    %v285 = vunpack.c.l.b16 %v149
    %v286 = vunpack.c.l.b16 %v150
    %v287 = vunpack.c.l.b16 %v151
    %v288 = vunpack.c.l.b16 %v152
    %v289 = vunpack.c.l.b16 %v153
    %v290 = vunpack.c.l.b16 %v154
    %v291 = vpack.c.b16 %v275, %v274
    %v292 = vpack.c.b16 %v277, %v276
    %v293 = vpack.c.b16 %v279, %v278
    %v294 = vpack.c.b16 %v281, %v280
    %v295 = vpack.c.b16 %v283, %v282
    %v296 = vpack.c.b16 %v285, %v284
    %v297 = vpack.c.b16 %v287, %v286
    %v298 = vpack.c.b16 %v289, %v288
    %v299 = vpack.c.b16 %v290, %v290
    %v316 = vunpack.c.l.b16 %v58
    %v317 = vunpack.c.h.b16 %v58
    %v318 = vunpack.c.l.b16 %v59
    %v319 = vunpack.c.h.b16 %v59
    %v320 = vunpack.c.l.b16 %v60
    %v321 = vunpack.c.h.b16 %v60
    %v322 = vunpack.c.l.b16 %v61
    %v323 = vunpack.c.h.b16 %v61
    %v324 = vunpack.c.l.b16 %v62
    %v325 = vunpack.c.h.b16 %v62
    %v326 = vunpack.c.l.b16 %v63
    %v327 = vunpack.c.h.b16 %v63
    %v328 = vunpack.c.l.b16 %v64
    %v329 = vunpack.c.h.b16 %v64
    %v330 = vunpack.c.l.b16 %v65
    %v331 = vunpack.c.h.b16 %v65
    %v332 = vunpack.c.l.b16 %v66
    %v333 = vunpack.c.h.b16 %v66
    %v334 = vunpack.c.l.b16 %v67
    %v335 = vunpack.c.h.b16 %v67
    %v336 = vunpack.c.l.b16 %v68
    %v337 = vunpack.c.h.b16 %v68
    %v338 = vunpack.c.l.b16 %v69
    %v339 = vunpack.c.h.b16 %v69
    %v340 = vunpack.c.l.b16 %v70
    %v341 = vunpack.c.h.b16 %v70
    %v342 = vunpack.c.l.b16 %v71
    %v343 = vunpack.c.h.b16 %v71
    %v344 = vunpack.c.l.b16 %v72
    %v345 = vunpack.c.h.b16 %v72
    %v346 = vunpack.c.l.b16 %v73
    %v347 = vunpack.c.h.b16 %v73
    %v348 = vpack.c.b16 %v316, %v316
    %v349 = vpack.c.b16 %v317, %v317
    %v350 = vpack.c.b16 %v318, %v318
    %v351 = vpack.c.b16 %v319, %v319
    %v352 = vpack.c.b16 %v320, %v320
    %v353 = vpack.c.b16 %v321, %v321
    %v354 = vpack.c.b16 %v322, %v322
    %v355 = vpack.c.b16 %v323, %v323
    %v356 = vpack.c.b16 %v324, %v324
    %v357 = vpack.c.b16 %v325, %v325
    %v358 = vpack.c.b16 %v326, %v326
    %v359 = vpack.c.b16 %v327, %v327
    %v360 = vpack.c.b16 %v328, %v328
    %v361 = vpack.c.b16 %v329, %v329
    %v362 = vpack.c.b16 %v330, %v330
    %v363 = vpack.c.b16 %v331, %v331
    %v364 = vpack.c.b16 %v332, %v332
    %v365 = vpack.c.b16 %v333, %v333
    %v366 = vpack.c.b16 %v334, %v334
    %v367 = vpack.c.b16 %v335, %v335
    %v368 = vpack.c.b16 %v336, %v336
    %v369 = vpack.c.b16 %v337, %v337
    %v370 = vpack.c.b16 %v338, %v338
    %v371 = vpack.c.b16 %v339, %v339
    %v372 = vpack.c.b16 %v340, %v340
    %v373 = vpack.c.b16 %v341, %v341
    %v374 = vpack.c.b16 %v342, %v342
    %v375 = vpack.c.b16 %v343, %v343
    %v376 = vpack.c.b16 %v344, %v344
    %v377 = vpack.c.b16 %v345, %v345
    %v378 = vpack.c.b16 %v346, %v346
    %v379 = vpack.c.b16 %v347, %v347
    %vm380 = vcmask 64512
    %v382 = vsel %vm380, %v291, 0
    %v385 = vsel %vm380, %v292, 0
    %v388 = vsel %vm380, %v293, 0
    %v391 = vsel %vm380, %v294, 0
    %v394 = vsel %vm380, %v295, 0
    %v397 = vsel %vm380, %v296, 0
    %v400 = vsel %vm380, %v297, 0
    %v403 = vsel %vm380, %v298, 0
    %v406 = vsel %vm380, %v299, 0
    %vm408 = vcmask 1043456
    %v410 = vsel %vm408, %v348, 0
    %v413 = vsel %vm408, %v349, 0
    %v416 = vsel %vm408, %v350, 0
    %v419 = vsel %vm408, %v351, 0
    %v422 = vsel %vm408, %v352, 0
    %v425 = vsel %vm408, %v353, 0
    %v428 = vsel %vm408, %v354, 0
    %v431 = vsel %vm408, %v355, 0
    %v434 = vsel %vm408, %v356, 0
    %v437 = vsel %vm408, %v357, 0
    %v440 = vsel %vm408, %v358, 0
    %v443 = vsel %vm408, %v359, 0
    %v446 = vsel %vm408, %v360, 0
    %v449 = vsel %vm408, %v361, 0
    %v452 = vsel %vm408, %v362, 0
    %v455 = vsel %vm408, %v363, 0
    %v458 = vsel %vm408, %v364, 0
    %v461 = vsel %vm408, %v365, 0
    %v464 = vsel %vm408, %v366, 0
    %v467 = vsel %vm408, %v367, 0
    %v470 = vsel %vm408, %v368, 0
    %v473 = vsel %vm408, %v369, 0
    %v476 = vsel %vm408, %v370, 0
    %v479 = vsel %vm408, %v371, 0
    %v482 = vsel %vm408, %v372, 0
    %v485 = vsel %vm408, %v373, 0
    %v488 = vsel %vm408, %v374, 0
    %v491 = vsel %vm408, %v375, 0
    %v494 = vsel %vm408, %v376, 0
    %v497 = vsel %vm408, %v377, 0
    %v500 = vsel %vm408, %v378, 0
    %v503 = vsel %vm408, %v379, 0
    %505 = vmatpush.bf16.msra.mxu0 0
    %506 = vmatpush.bf16.msra.mxu0 0
    %507 = vmatpush.bf16.msra.mxu0 0
    %508 = vmatpush.bf16.msra.mxu0 0
    %509 = vmatpush.bf16.msra.mxu0 0
    %510 = vmatpush.bf16.msra.mxu0 0
    %511 = vmatpush.bf16.msra.mxu0 0
    %512 = vmatpush.bf16.msra.mxu0 %v410
    %513 = vmatmul.bf16.gmra.mxu0 %v382
    %v514 = vpop.f32.mrf.mxu0
    %v515 = vadd.f32 %v175, %v514
    %v516 = vpop.f32.mrf.mxu0
    %v517 = vadd.f32 %v180, %v516
    %518 = vmatmul.bf16.gmra.mxu0 %v385
    %v519 = vpop.f32.mrf.mxu0
    %v520 = vadd.f32 %v185, %v519
    %v521 = vpop.f32.mrf.mxu0
    %v522 = vadd.f32 %v190, %v521
    %523 = vmatmul.bf16.gmra.mxu0 %v388
    %v524 = vpop.f32.mrf.mxu0
    %v525 = vadd.f32 %v195, %v524
    %v526 = vpop.f32.mrf.mxu0
    %v527 = vadd.f32 %v200, %v526
    %528 = vmatmul.bf16.gmra.mxu0 %v391
    %v529 = vpop.f32.mrf.mxu0
    %v530 = vadd.f32 %v205, %v529
    %v531 = vpop.f32.mrf.mxu0
    %v532 = vadd.f32 %v210, %v531
    %533 = vmatmul.bf16.gmra.mxu0 %v394
    %v534 = vpop.f32.mrf.mxu0
    %v535 = vadd.f32 %v215, %v534
    %v536 = vpop.f32.mrf.mxu0
    %v537 = vadd.f32 %v220, %v536
    %538 = vmatmul.bf16.gmra.mxu0 %v397
    %v539 = vpop.f32.mrf.mxu0
    %v540 = vadd.f32 %v225, %v539
    %v541 = vpop.f32.mrf.mxu0
    %v542 = vadd.f32 %v230, %v541
    %543 = vmatmul.bf16.gmra.mxu0 %v400
    %v544 = vpop.f32.mrf.mxu0
    %v545 = vadd.f32 %v235, %v544
    %v546 = vpop.f32.mrf.mxu0
    %v547 = vadd.f32 %v240, %v546
    %548 = vmatmul.bf16.gmra.mxu0 %v403
    %v549 = vpop.f32.mrf.mxu0
    %v550 = vadd.f32 %v245, %v549
    %v551 = vpop.f32.mrf.mxu0
    %v552 = vadd.f32 %v250, %v551
    %553 = vmatmul.bf16.gmra.mxu0 %v406
    %v554 = vpop.f32.mrf.mxu0
    %v555 = vadd.f32 %v255, %v554
    %v556 = vpop.f32.mrf.mxu0
    %557 = vdwg.mxu0
    %558 = vmatpush.bf16.msra.mxu0 0
    %559 = vmatpush.bf16.msra.mxu0 0
    %560 = vmatpush.bf16.msra.mxu0 0
    %561 = vmatpush.bf16.msra.mxu0 0
    %562 = vmatpush.bf16.msra.mxu0 0
    %563 = vmatpush.bf16.msra.mxu0 0
    %564 = vmatpush.bf16.msra.mxu0 0
    %565 = vmatpush.bf16.msra.mxu0 %v413
    %566 = vmatmul.bf16.gmra.mxu0 %v382
    %v567 = vpop.f32.mrf.mxu0
    %v568 = vadd.f32 %v175, %v567
    %v569 = vpop.f32.mrf.mxu0
    %v570 = vadd.f32 %v180, %v569
    %571 = vmatmul.bf16.gmra.mxu0 %v385
    %v572 = vpop.f32.mrf.mxu0
    %v573 = vadd.f32 %v185, %v572
    %v574 = vpop.f32.mrf.mxu0
    %v575 = vadd.f32 %v190, %v574
    %576 = vmatmul.bf16.gmra.mxu0 %v388
    %v577 = vpop.f32.mrf.mxu0
    %v578 = vadd.f32 %v195, %v577
    %v579 = vpop.f32.mrf.mxu0
    %v580 = vadd.f32 %v200, %v579
    %581 = vmatmul.bf16.gmra.mxu0 %v391
    %v582 = vpop.f32.mrf.mxu0
    %v583 = vadd.f32 %v205, %v582
    %v584 = vpop.f32.mrf.mxu0
    %v585 = vadd.f32 %v210, %v584
    %586 = vmatmul.bf16.gmra.mxu0 %v394
    %v587 = vpop.f32.mrf.mxu0
    %v588 = vadd.f32 %v215, %v587
    %v589 = vpop.f32.mrf.mxu0
    %v590 = vadd.f32 %v220, %v589
    %591 = vmatmul.bf16.gmra.mxu0 %v397
    %v592 = vpop.f32.mrf.mxu0
    %v593 = vadd.f32 %v225, %v592
    %v594 = vpop.f32.mrf.mxu0
    %v595 = vadd.f32 %v230, %v594
    %596 = vmatmul.bf16.gmra.mxu0 %v400
    %v597 = vpop.f32.mrf.mxu0
    %v598 = vadd.f32 %v235, %v597
    %v599 = vpop.f32.mrf.mxu0
    %v600 = vadd.f32 %v240, %v599
    %601 = vmatmul.bf16.gmra.mxu0 %v403
    %v602 = vpop.f32.mrf.mxu0
    %v603 = vadd.f32 %v245, %v602
    %v604 = vpop.f32.mrf.mxu0
    %v605 = vadd.f32 %v250, %v604
    %606 = vmatmul.bf16.gmra.mxu0 %v406
    %v607 = vpop.f32.mrf.mxu0
    %v608 = vadd.f32 %v255, %v607
    %v609 = vpop.f32.mrf.mxu0
    %610 = vdwg.mxu0
    %611 = vmatpush.bf16.msra.mxu0 0
    %612 = vmatpush.bf16.msra.mxu0 0
    %613 = vmatpush.bf16.msra.mxu0 0
    %614 = vmatpush.bf16.msra.mxu0 0
    %615 = vmatpush.bf16.msra.mxu0 0
    %616 = vmatpush.bf16.msra.mxu0 0
    %617 = vmatpush.bf16.msra.mxu0 0
    %618 = vmatpush.bf16.msra.mxu0 %v416
    %619 = vmatmul.bf16.gmra.mxu0 %v382
    %v620 = vpop.f32.mrf.mxu0
    %v621 = vadd.f32 %v175, %v620
    %v622 = vpop.f32.mrf.mxu0
    %v623 = vadd.f32 %v180, %v622
    %624 = vmatmul.bf16.gmra.mxu0 %v385
    %v625 = vpop.f32.mrf.mxu0
    %v626 = vadd.f32 %v185, %v625
    %v627 = vpop.f32.mrf.mxu0
    %v628 = vadd.f32 %v190, %v627
    %629 = vmatmul.bf16.gmra.mxu0 %v388
    %v630 = vpop.f32.mrf.mxu0
    %v631 = vadd.f32 %v195, %v630
    %v632 = vpop.f32.mrf.mxu0
    %v633 = vadd.f32 %v200, %v632
    %634 = vmatmul.bf16.gmra.mxu0 %v391
    %v635 = vpop.f32.mrf.mxu0
    %v636 = vadd.f32 %v205, %v635
    %v637 = vpop.f32.mrf.mxu0
    %v638 = vadd.f32 %v210, %v637
    %639 = vmatmul.bf16.gmra.mxu0 %v394
    %v640 = vpop.f32.mrf.mxu0
    %v641 = vadd.f32 %v215, %v640
    %v642 = vpop.f32.mrf.mxu0
    %v643 = vadd.f32 %v220, %v642
    %644 = vmatmul.bf16.gmra.mxu0 %v397
    %v645 = vpop.f32.mrf.mxu0
    %v646 = vadd.f32 %v225, %v645
    %v647 = vpop.f32.mrf.mxu0
    %v648 = vadd.f32 %v230, %v647
    %649 = vmatmul.bf16.gmra.mxu0 %v400
    %v650 = vpop.f32.mrf.mxu0
    %v651 = vadd.f32 %v235, %v650
    %v652 = vpop.f32.mrf.mxu0
    %v653 = vadd.f32 %v240, %v652
    %654 = vmatmul.bf16.gmra.mxu0 %v403
    %v655 = vpop.f32.mrf.mxu0
    %v656 = vadd.f32 %v245, %v655
    %v657 = vpop.f32.mrf.mxu0
    %v658 = vadd.f32 %v250, %v657
    %659 = vmatmul.bf16.gmra.mxu0 %v406
    %v660 = vpop.f32.mrf.mxu0
    %v661 = vadd.f32 %v255, %v660
    %v662 = vpop.f32.mrf.mxu0
    %663 = vdwg.mxu0
    %664 = vmatpush.bf16.msra.mxu0 0
    %665 = vmatpush.bf16.msra.mxu0 0
    %666 = vmatpush.bf16.msra.mxu0 0
    %667 = vmatpush.bf16.msra.mxu0 0
    %668 = vmatpush.bf16.msra.mxu0 0
    %669 = vmatpush.bf16.msra.mxu0 0
    %670 = vmatpush.bf16.msra.mxu0 0
    %671 = vmatpush.bf16.msra.mxu0 %v419
    %672 = vmatmul.bf16.gmra.mxu0 %v382
    %v673 = vpop.f32.mrf.mxu0
    %v674 = vadd.f32 %v175, %v673
    %v675 = vpop.f32.mrf.mxu0
    %v676 = vadd.f32 %v180, %v675
    %677 = vmatmul.bf16.gmra.mxu0 %v385
    %v678 = vpop.f32.mrf.mxu0
    %v679 = vadd.f32 %v185, %v678
    %v680 = vpop.f32.mrf.mxu0
    %v681 = vadd.f32 %v190, %v680
    %682 = vmatmul.bf16.gmra.mxu0 %v388
    %v683 = vpop.f32.mrf.mxu0
    %v684 = vadd.f32 %v195, %v683
    %v685 = vpop.f32.mrf.mxu0
    %v686 = vadd.f32 %v200, %v685
    %687 = vmatmul.bf16.gmra.mxu0 %v391
    %v688 = vpop.f32.mrf.mxu0
    %v689 = vadd.f32 %v205, %v688
    %v690 = vpop.f32.mrf.mxu0
    %v691 = vadd.f32 %v210, %v690
    %692 = vmatmul.bf16.gmra.mxu0 %v394
    %v693 = vpop.f32.mrf.mxu0
    %v694 = vadd.f32 %v215, %v693
    %v695 = vpop.f32.mrf.mxu0
    %v696 = vadd.f32 %v220, %v695
    %697 = vmatmul.bf16.gmra.mxu0 %v397
    %v698 = vpop.f32.mrf.mxu0
    %v699 = vadd.f32 %v225, %v698
    %v700 = vpop.f32.mrf.mxu0
    %v701 = vadd.f32 %v230, %v700
    %702 = vmatmul.bf16.gmra.mxu0 %v400
    %v703 = vpop.f32.mrf.mxu0
    %v704 = vadd.f32 %v235, %v703
    %v705 = vpop.f32.mrf.mxu0
    %v706 = vadd.f32 %v240, %v705
    %707 = vmatmul.bf16.gmra.mxu0 %v403
    %v708 = vpop.f32.mrf.mxu0
    %v709 = vadd.f32 %v245, %v708
    %v710 = vpop.f32.mrf.mxu0
    %v711 = vadd.f32 %v250, %v710
    %712 = vmatmul.bf16.gmra.mxu0 %v406
    %v713 = vpop.f32.mrf.mxu0
    %v714 = vadd.f32 %v255, %v713
    %v715 = vpop.f32.mrf.mxu0
    %716 = vdwg.mxu0
    %717 = vmatpush.bf16.msra.mxu0 0
    %718 = vmatpush.bf16.msra.mxu0 0
    %719 = vmatpush.bf16.msra.mxu0 0
    %720 = vmatpush.bf16.msra.mxu0 0
    %721 = vmatpush.bf16.msra.mxu0 0
    %722 = vmatpush.bf16.msra.mxu0 0
    %723 = vmatpush.bf16.msra.mxu0 0
    %724 = vmatpush.bf16.msra.mxu0 %v422
    %725 = vmatmul.bf16.gmra.mxu0 %v382
    %v726 = vpop.f32.mrf.mxu0
    %v727 = vadd.f32 %v175, %v726
    %v728 = vpop.f32.mrf.mxu0
    %v729 = vadd.f32 %v180, %v728
    %730 = vmatmul.bf16.gmra.mxu0 %v385
    %v731 = vpop.f32.mrf.mxu0
    %v732 = vadd.f32 %v185, %v731
    %v733 = vpop.f32.mrf.mxu0
    %v734 = vadd.f32 %v190, %v733
    %735 = vmatmul.bf16.gmra.mxu0 %v388
    %v736 = vpop.f32.mrf.mxu0
    %v737 = vadd.f32 %v195, %v736
    %v738 = vpop.f32.mrf.mxu0
    %v739 = vadd.f32 %v200, %v738
    %740 = vmatmul.bf16.gmra.mxu0 %v391
    %v741 = vpop.f32.mrf.mxu0
    %v742 = vadd.f32 %v205, %v741
    %v743 = vpop.f32.mrf.mxu0
    %v744 = vadd.f32 %v210, %v743
    %745 = vmatmul.bf16.gmra.mxu0 %v394
    %v746 = vpop.f32.mrf.mxu0
    %v747 = vadd.f32 %v215, %v746
    %v748 = vpop.f32.mrf.mxu0
    %v749 = vadd.f32 %v220, %v748
    %750 = vmatmul.bf16.gmra.mxu0 %v397
    %v751 = vpop.f32.mrf.mxu0
    %v752 = vadd.f32 %v225, %v751
    %v753 = vpop.f32.mrf.mxu0
    %v754 = vadd.f32 %v230, %v753
    %755 = vmatmul.bf16.gmra.mxu0 %v400
    %v756 = vpop.f32.mrf.mxu0
    %v757 = vadd.f32 %v235, %v756
    %v758 = vpop.f32.mrf.mxu0
    %v759 = vadd.f32 %v240, %v758
    %760 = vmatmul.bf16.gmra.mxu0 %v403
    %v761 = vpop.f32.mrf.mxu0
    %v762 = vadd.f32 %v245, %v761
    %v763 = vpop.f32.mrf.mxu0
    %v764 = vadd.f32 %v250, %v763
    %765 = vmatmul.bf16.gmra.mxu0 %v406
    %v766 = vpop.f32.mrf.mxu0
    %v767 = vadd.f32 %v255, %v766
    %v768 = vpop.f32.mrf.mxu0
    %769 = vdwg.mxu0
    %770 = vmatpush.bf16.msra.mxu0 0
    %771 = vmatpush.bf16.msra.mxu0 0
    %772 = vmatpush.bf16.msra.mxu0 0
    %773 = vmatpush.bf16.msra.mxu0 0
    %774 = vmatpush.bf16.msra.mxu0 0
    %775 = vmatpush.bf16.msra.mxu0 0
    %776 = vmatpush.bf16.msra.mxu0 0
    %777 = vmatpush.bf16.msra.mxu0 %v425
    %778 = vmatmul.bf16.gmra.mxu0 %v382
    %v779 = vpop.f32.mrf.mxu0
    %v780 = vadd.f32 %v175, %v779
    %v781 = vpop.f32.mrf.mxu0
    %v782 = vadd.f32 %v180, %v781
    %783 = vmatmul.bf16.gmra.mxu0 %v385
    %v784 = vpop.f32.mrf.mxu0
    %v785 = vadd.f32 %v185, %v784
    %v786 = vpop.f32.mrf.mxu0
    %v787 = vadd.f32 %v190, %v786
    %788 = vmatmul.bf16.gmra.mxu0 %v388
    %v789 = vpop.f32.mrf.mxu0
    %v790 = vadd.f32 %v195, %v789
    %v791 = vpop.f32.mrf.mxu0
    %v792 = vadd.f32 %v200, %v791
    %793 = vmatmul.bf16.gmra.mxu0 %v391
    %v794 = vpop.f32.mrf.mxu0
    %v795 = vadd.f32 %v205, %v794
    %v796 = vpop.f32.mrf.mxu0
    %v797 = vadd.f32 %v210, %v796
    %798 = vmatmul.bf16.gmra.mxu0 %v394
    %v799 = vpop.f32.mrf.mxu0
    %v800 = vadd.f32 %v215, %v799
    %v801 = vpop.f32.mrf.mxu0
    %v802 = vadd.f32 %v220, %v801
    %803 = vmatmul.bf16.gmra.mxu0 %v397
    %v804 = vpop.f32.mrf.mxu0
    %v805 = vadd.f32 %v225, %v804
    %v806 = vpop.f32.mrf.mxu0
    %v807 = vadd.f32 %v230, %v806
    %808 = vmatmul.bf16.gmra.mxu0 %v400
    %v809 = vpop.f32.mrf.mxu0
    %v810 = vadd.f32 %v235, %v809
    %v811 = vpop.f32.mrf.mxu0
    %v812 = vadd.f32 %v240, %v811
    %813 = vmatmul.bf16.gmra.mxu0 %v403
    %v814 = vpop.f32.mrf.mxu0
    %v815 = vadd.f32 %v245, %v814
    %v816 = vpop.f32.mrf.mxu0
    %v817 = vadd.f32 %v250, %v816
    %818 = vmatmul.bf16.gmra.mxu0 %v406
    %v819 = vpop.f32.mrf.mxu0
    %v820 = vadd.f32 %v255, %v819
    %v821 = vpop.f32.mrf.mxu0
    %822 = vdwg.mxu0
    %823 = vmatpush.bf16.msra.mxu0 0
    %824 = vmatpush.bf16.msra.mxu0 0
    %825 = vmatpush.bf16.msra.mxu0 0
    %826 = vmatpush.bf16.msra.mxu0 0
    %827 = vmatpush.bf16.msra.mxu0 0
    %828 = vmatpush.bf16.msra.mxu0 0
    %829 = vmatpush.bf16.msra.mxu0 0
    %830 = vmatpush.bf16.msra.mxu0 %v428
    %831 = vmatmul.bf16.gmra.mxu0 %v382
    %v832 = vpop.f32.mrf.mxu0
    %v833 = vadd.f32 %v175, %v832
    %v834 = vpop.f32.mrf.mxu0
    %v835 = vadd.f32 %v180, %v834
    %836 = vmatmul.bf16.gmra.mxu0 %v385
    %v837 = vpop.f32.mrf.mxu0
    %v838 = vadd.f32 %v185, %v837
    %v839 = vpop.f32.mrf.mxu0
    %v840 = vadd.f32 %v190, %v839
    %841 = vmatmul.bf16.gmra.mxu0 %v388
    %v842 = vpop.f32.mrf.mxu0
    %v843 = vadd.f32 %v195, %v842
    %v844 = vpop.f32.mrf.mxu0
    %v845 = vadd.f32 %v200, %v844
    %846 = vmatmul.bf16.gmra.mxu0 %v391
    %v847 = vpop.f32.mrf.mxu0
    %v848 = vadd.f32 %v205, %v847
    %v849 = vpop.f32.mrf.mxu0
    %v850 = vadd.f32 %v210, %v849
    %851 = vmatmul.bf16.gmra.mxu0 %v394
    %v852 = vpop.f32.mrf.mxu0
    %v853 = vadd.f32 %v215, %v852
    %v854 = vpop.f32.mrf.mxu0
    %v855 = vadd.f32 %v220, %v854
    %856 = vmatmul.bf16.gmra.mxu0 %v397
    %v857 = vpop.f32.mrf.mxu0
    %v858 = vadd.f32 %v225, %v857
    %v859 = vpop.f32.mrf.mxu0
    %v860 = vadd.f32 %v230, %v859
    %861 = vmatmul.bf16.gmra.mxu0 %v400
    %v862 = vpop.f32.mrf.mxu0
    %v863 = vadd.f32 %v235, %v862
    %v864 = vpop.f32.mrf.mxu0
    %v865 = vadd.f32 %v240, %v864
    %866 = vmatmul.bf16.gmra.mxu0 %v403
    %v867 = vpop.f32.mrf.mxu0
    %v868 = vadd.f32 %v245, %v867
    %v869 = vpop.f32.mrf.mxu0
    %v870 = vadd.f32 %v250, %v869
    %871 = vmatmul.bf16.gmra.mxu0 %v406
    %v872 = vpop.f32.mrf.mxu0
    %v873 = vadd.f32 %v255, %v872
    %v874 = vpop.f32.mrf.mxu0
    %875 = vdwg.mxu0
    %876 = vmatpush.bf16.msra.mxu0 0
    %877 = vmatpush.bf16.msra.mxu0 0
    %878 = vmatpush.bf16.msra.mxu0 0
    %879 = vmatpush.bf16.msra.mxu0 0
    %880 = vmatpush.bf16.msra.mxu0 0
    %881 = vmatpush.bf16.msra.mxu0 0
    %882 = vmatpush.bf16.msra.mxu0 0
    %883 = vmatpush.bf16.msra.mxu0 %v431
    %884 = vmatmul.bf16.gmra.mxu0 %v382
    %v885 = vpop.f32.mrf.mxu0
    %v886 = vadd.f32 %v175, %v885
    %v887 = vpop.f32.mrf.mxu0
    %v888 = vadd.f32 %v180, %v887
    %889 = vmatmul.bf16.gmra.mxu0 %v385
    %v890 = vpop.f32.mrf.mxu0
    %v891 = vadd.f32 %v185, %v890
    %v892 = vpop.f32.mrf.mxu0
    %v893 = vadd.f32 %v190, %v892
    %894 = vmatmul.bf16.gmra.mxu0 %v388
    %v895 = vpop.f32.mrf.mxu0
    %v896 = vadd.f32 %v195, %v895
    %v897 = vpop.f32.mrf.mxu0
    %v898 = vadd.f32 %v200, %v897
    %899 = vmatmul.bf16.gmra.mxu0 %v391
    %v900 = vpop.f32.mrf.mxu0
    %v901 = vadd.f32 %v205, %v900
    %v902 = vpop.f32.mrf.mxu0
    %v903 = vadd.f32 %v210, %v902
    %904 = vmatmul.bf16.gmra.mxu0 %v394
    %v905 = vpop.f32.mrf.mxu0
    %v906 = vadd.f32 %v215, %v905
    %v907 = vpop.f32.mrf.mxu0
    %v908 = vadd.f32 %v220, %v907
    %909 = vmatmul.bf16.gmra.mxu0 %v397
    %v910 = vpop.f32.mrf.mxu0
    %v911 = vadd.f32 %v225, %v910
    %v912 = vpop.f32.mrf.mxu0
    %v913 = vadd.f32 %v230, %v912
    %914 = vmatmul.bf16.gmra.mxu0 %v400
    %v915 = vpop.f32.mrf.mxu0
    %v916 = vadd.f32 %v235, %v915
    %v917 = vpop.f32.mrf.mxu0
    %v918 = vadd.f32 %v240, %v917
    %919 = vmatmul.bf16.gmra.mxu0 %v403
    %v920 = vpop.f32.mrf.mxu0
    %v921 = vadd.f32 %v245, %v920
    %v922 = vpop.f32.mrf.mxu0
    %v923 = vadd.f32 %v250, %v922
    %924 = vmatmul.bf16.gmra.mxu0 %v406
    %v925 = vpop.f32.mrf.mxu0
    %v926 = vadd.f32 %v255, %v925
    %v927 = vpop.f32.mrf.mxu0
    %928 = vdwg.mxu0
    %929 = vmatpush.bf16.msra.mxu0 0
    %930 = vmatpush.bf16.msra.mxu0 0
    %931 = vmatpush.bf16.msra.mxu0 0
    %932 = vmatpush.bf16.msra.mxu0 0
    %933 = vmatpush.bf16.msra.mxu0 0
    %934 = vmatpush.bf16.msra.mxu0 0
    %935 = vmatpush.bf16.msra.mxu0 0
    %936 = vmatpush.bf16.msra.mxu0 %v434
    %937 = vmatmul.bf16.gmra.mxu0 %v382
    %v938 = vpop.f32.mrf.mxu0
    %v939 = vadd.f32 %v175, %v938
    %v940 = vpop.f32.mrf.mxu0
    %v941 = vadd.f32 %v180, %v940
    %942 = vmatmul.bf16.gmra.mxu0 %v385
    %v943 = vpop.f32.mrf.mxu0
    %v944 = vadd.f32 %v185, %v943
    %v945 = vpop.f32.mrf.mxu0
    %v946 = vadd.f32 %v190, %v945
    %947 = vmatmul.bf16.gmra.mxu0 %v388
    %v948 = vpop.f32.mrf.mxu0
    %v949 = vadd.f32 %v195, %v948
    %v950 = vpop.f32.mrf.mxu0
    %v951 = vadd.f32 %v200, %v950
    %952 = vmatmul.bf16.gmra.mxu0 %v391
    %v953 = vpop.f32.mrf.mxu0
    %v954 = vadd.f32 %v205, %v953
    %v955 = vpop.f32.mrf.mxu0
    %v956 = vadd.f32 %v210, %v955
    %957 = vmatmul.bf16.gmra.mxu0 %v394
    %v958 = vpop.f32.mrf.mxu0
    %v959 = vadd.f32 %v215, %v958
    %v960 = vpop.f32.mrf.mxu0
    %v961 = vadd.f32 %v220, %v960
    %962 = vmatmul.bf16.gmra.mxu0 %v397
    %v963 = vpop.f32.mrf.mxu0
    %v964 = vadd.f32 %v225, %v963
    %v965 = vpop.f32.mrf.mxu0
    %v966 = vadd.f32 %v230, %v965
    %967 = vmatmul.bf16.gmra.mxu0 %v400
    %v968 = vpop.f32.mrf.mxu0
    %v969 = vadd.f32 %v235, %v968
    %v970 = vpop.f32.mrf.mxu0
    %v971 = vadd.f32 %v240, %v970
    %972 = vmatmul.bf16.gmra.mxu0 %v403
    %v973 = vpop.f32.mrf.mxu0
    %v974 = vadd.f32 %v245, %v973
    %v975 = vpop.f32.mrf.mxu0
    %v976 = vadd.f32 %v250, %v975
    %977 = vmatmul.bf16.gmra.mxu0 %v406
    %v978 = vpop.f32.mrf.mxu0
    %v979 = vadd.f32 %v255, %v978
    %v980 = vpop.f32.mrf.mxu0
    %981 = vdwg.mxu0
    %982 = vmatpush.bf16.msra.mxu0 0
    %983 = vmatpush.bf16.msra.mxu0 0
    %984 = vmatpush.bf16.msra.mxu0 0
    %985 = vmatpush.bf16.msra.mxu0 0
    %986 = vmatpush.bf16.msra.mxu0 0
    %987 = vmatpush.bf16.msra.mxu0 0
    %988 = vmatpush.bf16.msra.mxu0 0
    %989 = vmatpush.bf16.msra.mxu0 %v437
    %990 = vmatmul.bf16.gmra.mxu0 %v382
    %v991 = vpop.f32.mrf.mxu0
    %v992 = vadd.f32 %v175, %v991
    %v993 = vpop.f32.mrf.mxu0
    %v994 = vadd.f32 %v180, %v993
    %995 = vmatmul.bf16.gmra.mxu0 %v385
    %v996 = vpop.f32.mrf.mxu0
    %v997 = vadd.f32 %v185, %v996
    %v998 = vpop.f32.mrf.mxu0
    %v999 = vadd.f32 %v190, %v998
    %1000 = vmatmul.bf16.gmra.mxu0 %v388
    %v1001 = vpop.f32.mrf.mxu0
    %v1002 = vadd.f32 %v195, %v1001
    %v1003 = vpop.f32.mrf.mxu0
    %v1004 = vadd.f32 %v200, %v1003
    %1005 = vmatmul.bf16.gmra.mxu0 %v391
    %v1006 = vpop.f32.mrf.mxu0
    %v1007 = vadd.f32 %v205, %v1006
    %v1008 = vpop.f32.mrf.mxu0
    %v1009 = vadd.f32 %v210, %v1008
    %1010 = vmatmul.bf16.gmra.mxu0 %v394
    %v1011 = vpop.f32.mrf.mxu0
    %v1012 = vadd.f32 %v215, %v1011
    %v1013 = vpop.f32.mrf.mxu0
    %v1014 = vadd.f32 %v220, %v1013
    %1015 = vmatmul.bf16.gmra.mxu0 %v397
    %v1016 = vpop.f32.mrf.mxu0
    %v1017 = vadd.f32 %v225, %v1016
    %v1018 = vpop.f32.mrf.mxu0
    %v1019 = vadd.f32 %v230, %v1018
    %1020 = vmatmul.bf16.gmra.mxu0 %v400
    %v1021 = vpop.f32.mrf.mxu0
    %v1022 = vadd.f32 %v235, %v1021
    %v1023 = vpop.f32.mrf.mxu0
    %v1024 = vadd.f32 %v240, %v1023
    %1025 = vmatmul.bf16.gmra.mxu0 %v403
    %v1026 = vpop.f32.mrf.mxu0
    %v1027 = vadd.f32 %v245, %v1026
    %v1028 = vpop.f32.mrf.mxu0
    %v1029 = vadd.f32 %v250, %v1028
    %1030 = vmatmul.bf16.gmra.mxu0 %v406
    %v1031 = vpop.f32.mrf.mxu0
    %v1032 = vadd.f32 %v255, %v1031
    %v1033 = vpop.f32.mrf.mxu0
    %1034 = vdwg.mxu0
    %1035 = vmatpush.bf16.msra.mxu0 0
    %1036 = vmatpush.bf16.msra.mxu0 0
    %1037 = vmatpush.bf16.msra.mxu0 0
    %1038 = vmatpush.bf16.msra.mxu0 0
    %1039 = vmatpush.bf16.msra.mxu0 0
    %1040 = vmatpush.bf16.msra.mxu0 0
    %1041 = vmatpush.bf16.msra.mxu0 0
    %1042 = vmatpush.bf16.msra.mxu0 %v440
    %1043 = vmatmul.bf16.gmra.mxu0 %v382
    %v1044 = vpop.f32.mrf.mxu0
    %v1045 = vadd.f32 %v175, %v1044
    %v1046 = vpop.f32.mrf.mxu0
    %v1047 = vadd.f32 %v180, %v1046
    %1048 = vmatmul.bf16.gmra.mxu0 %v385
    %v1049 = vpop.f32.mrf.mxu0
    %v1050 = vadd.f32 %v185, %v1049
    %v1051 = vpop.f32.mrf.mxu0
    %v1052 = vadd.f32 %v190, %v1051
    %1053 = vmatmul.bf16.gmra.mxu0 %v388
    %v1054 = vpop.f32.mrf.mxu0
    %v1055 = vadd.f32 %v195, %v1054
    %v1056 = vpop.f32.mrf.mxu0
    %v1057 = vadd.f32 %v200, %v1056
    %1058 = vmatmul.bf16.gmra.mxu0 %v391
    %v1059 = vpop.f32.mrf.mxu0
    %v1060 = vadd.f32 %v205, %v1059
    %v1061 = vpop.f32.mrf.mxu0
    %v1062 = vadd.f32 %v210, %v1061
    %1063 = vmatmul.bf16.gmra.mxu0 %v394
    %v1064 = vpop.f32.mrf.mxu0
    %v1065 = vadd.f32 %v215, %v1064
    %v1066 = vpop.f32.mrf.mxu0
    %v1067 = vadd.f32 %v220, %v1066
    %1068 = vmatmul.bf16.gmra.mxu0 %v397
    %v1069 = vpop.f32.mrf.mxu0
    %v1070 = vadd.f32 %v225, %v1069
    %v1071 = vpop.f32.mrf.mxu0
    %v1072 = vadd.f32 %v230, %v1071
    %1073 = vmatmul.bf16.gmra.mxu0 %v400
    %v1074 = vpop.f32.mrf.mxu0
    %v1075 = vadd.f32 %v235, %v1074
    %v1076 = vpop.f32.mrf.mxu0
    %v1077 = vadd.f32 %v240, %v1076
    %1078 = vmatmul.bf16.gmra.mxu0 %v403
    %v1079 = vpop.f32.mrf.mxu0
    %v1080 = vadd.f32 %v245, %v1079
    %v1081 = vpop.f32.mrf.mxu0
    %v1082 = vadd.f32 %v250, %v1081
    %1083 = vmatmul.bf16.gmra.mxu0 %v406
    %v1084 = vpop.f32.mrf.mxu0
    %v1085 = vadd.f32 %v255, %v1084
    %v1086 = vpop.f32.mrf.mxu0
    %1087 = vdwg.mxu0
    %1088 = vmatpush.bf16.msra.mxu0 0
    %1089 = vmatpush.bf16.msra.mxu0 0
    %1090 = vmatpush.bf16.msra.mxu0 0
    %1091 = vmatpush.bf16.msra.mxu0 0
    %1092 = vmatpush.bf16.msra.mxu0 0
    %1093 = vmatpush.bf16.msra.mxu0 0
    %1094 = vmatpush.bf16.msra.mxu0 0
    %1095 = vmatpush.bf16.msra.mxu0 %v443
    %1096 = vmatmul.bf16.gmra.mxu0 %v382
    %v1097 = vpop.f32.mrf.mxu0
    %v1098 = vadd.f32 %v175, %v1097
    %v1099 = vpop.f32.mrf.mxu0
    %v1100 = vadd.f32 %v180, %v1099
    %1101 = vmatmul.bf16.gmra.mxu0 %v385
    %v1102 = vpop.f32.mrf.mxu0
    %v1103 = vadd.f32 %v185, %v1102
    %v1104 = vpop.f32.mrf.mxu0
    %v1105 = vadd.f32 %v190, %v1104
    %1106 = vmatmul.bf16.gmra.mxu0 %v388
    %v1107 = vpop.f32.mrf.mxu0
    %v1108 = vadd.f32 %v195, %v1107
    %v1109 = vpop.f32.mrf.mxu0
    %v1110 = vadd.f32 %v200, %v1109
    %1111 = vmatmul.bf16.gmra.mxu0 %v391
    %v1112 = vpop.f32.mrf.mxu0
    %v1113 = vadd.f32 %v205, %v1112
    %v1114 = vpop.f32.mrf.mxu0
    %v1115 = vadd.f32 %v210, %v1114
    %1116 = vmatmul.bf16.gmra.mxu0 %v394
    %v1117 = vpop.f32.mrf.mxu0
    %v1118 = vadd.f32 %v215, %v1117
    %v1119 = vpop.f32.mrf.mxu0
    %v1120 = vadd.f32 %v220, %v1119
    %1121 = vmatmul.bf16.gmra.mxu0 %v397
    %v1122 = vpop.f32.mrf.mxu0
    %v1123 = vadd.f32 %v225, %v1122
    %v1124 = vpop.f32.mrf.mxu0
    %v1125 = vadd.f32 %v230, %v1124
    %1126 = vmatmul.bf16.gmra.mxu0 %v400
    %v1127 = vpop.f32.mrf.mxu0
    %v1128 = vadd.f32 %v235, %v1127
    %v1129 = vpop.f32.mrf.mxu0
    %v1130 = vadd.f32 %v240, %v1129
    %1131 = vmatmul.bf16.gmra.mxu0 %v403
    %v1132 = vpop.f32.mrf.mxu0
    %v1133 = vadd.f32 %v245, %v1132
    %v1134 = vpop.f32.mrf.mxu0
    %v1135 = vadd.f32 %v250, %v1134
    %1136 = vmatmul.bf16.gmra.mxu0 %v406
    %v1137 = vpop.f32.mrf.mxu0
    %v1138 = vadd.f32 %v255, %v1137
    %v1139 = vpop.f32.mrf.mxu0
    %1140 = vdwg.mxu0
    %1141 = vmatpush.bf16.msra.mxu0 0
    %1142 = vmatpush.bf16.msra.mxu0 0
    %1143 = vmatpush.bf16.msra.mxu0 0
    %1144 = vmatpush.bf16.msra.mxu0 0
    %1145 = vmatpush.bf16.msra.mxu0 0
    %1146 = vmatpush.bf16.msra.mxu0 0
    %1147 = vmatpush.bf16.msra.mxu0 0
    %1148 = vmatpush.bf16.msra.mxu0 %v446
    %1149 = vmatmul.bf16.gmra.mxu0 %v382
    %v1150 = vpop.f32.mrf.mxu0
    %v1151 = vadd.f32 %v175, %v1150
    %v1152 = vpop.f32.mrf.mxu0
    %v1153 = vadd.f32 %v180, %v1152
    %1154 = vmatmul.bf16.gmra.mxu0 %v385
    %v1155 = vpop.f32.mrf.mxu0
    %v1156 = vadd.f32 %v185, %v1155
    %v1157 = vpop.f32.mrf.mxu0
    %v1158 = vadd.f32 %v190, %v1157
    %1159 = vmatmul.bf16.gmra.mxu0 %v388
    %v1160 = vpop.f32.mrf.mxu0
    %v1161 = vadd.f32 %v195, %v1160
    %v1162 = vpop.f32.mrf.mxu0
    %v1163 = vadd.f32 %v200, %v1162
    %1164 = vmatmul.bf16.gmra.mxu0 %v391
    %v1165 = vpop.f32.mrf.mxu0
    %v1166 = vadd.f32 %v205, %v1165
    %v1167 = vpop.f32.mrf.mxu0
    %v1168 = vadd.f32 %v210, %v1167
    %1169 = vmatmul.bf16.gmra.mxu0 %v394
    %v1170 = vpop.f32.mrf.mxu0
    %v1171 = vadd.f32 %v215, %v1170
    %v1172 = vpop.f32.mrf.mxu0
    %v1173 = vadd.f32 %v220, %v1172
    %1174 = vmatmul.bf16.gmra.mxu0 %v397
    %v1175 = vpop.f32.mrf.mxu0
    %v1176 = vadd.f32 %v225, %v1175
    %v1177 = vpop.f32.mrf.mxu0
    %v1178 = vadd.f32 %v230, %v1177
    %1179 = vmatmul.bf16.gmra.mxu0 %v400
    %v1180 = vpop.f32.mrf.mxu0
    %v1181 = vadd.f32 %v235, %v1180
    %v1182 = vpop.f32.mrf.mxu0
    %v1183 = vadd.f32 %v240, %v1182
    %1184 = vmatmul.bf16.gmra.mxu0 %v403
    %v1185 = vpop.f32.mrf.mxu0
    %v1186 = vadd.f32 %v245, %v1185
    %v1187 = vpop.f32.mrf.mxu0
    %v1188 = vadd.f32 %v250, %v1187
    %1189 = vmatmul.bf16.gmra.mxu0 %v406
    %v1190 = vpop.f32.mrf.mxu0
    %v1191 = vadd.f32 %v255, %v1190
    %v1192 = vpop.f32.mrf.mxu0
    %1193 = vdwg.mxu0
    %1194 = vmatpush.bf16.msra.mxu0 0
    %1195 = vmatpush.bf16.msra.mxu0 0
    %1196 = vmatpush.bf16.msra.mxu0 0
    %1197 = vmatpush.bf16.msra.mxu0 0
    %1198 = vmatpush.bf16.msra.mxu0 0
    %1199 = vmatpush.bf16.msra.mxu0 0
    %1200 = vmatpush.bf16.msra.mxu0 0
    %1201 = vmatpush.bf16.msra.mxu0 %v449
    %1202 = vmatmul.bf16.gmra.mxu0 %v382
    %v1203 = vpop.f32.mrf.mxu0
    %v1204 = vadd.f32 %v175, %v1203
    %v1205 = vpop.f32.mrf.mxu0
    %v1206 = vadd.f32 %v180, %v1205
    %1207 = vmatmul.bf16.gmra.mxu0 %v385
    %v1208 = vpop.f32.mrf.mxu0
    %v1209 = vadd.f32 %v185, %v1208
    %v1210 = vpop.f32.mrf.mxu0
    %v1211 = vadd.f32 %v190, %v1210
    %1212 = vmatmul.bf16.gmra.mxu0 %v388
    %v1213 = vpop.f32.mrf.mxu0
    %v1214 = vadd.f32 %v195, %v1213
    %v1215 = vpop.f32.mrf.mxu0
    %v1216 = vadd.f32 %v200, %v1215
    %1217 = vmatmul.bf16.gmra.mxu0 %v391
    %v1218 = vpop.f32.mrf.mxu0
    %v1219 = vadd.f32 %v205, %v1218
    %v1220 = vpop.f32.mrf.mxu0
    %v1221 = vadd.f32 %v210, %v1220
    %1222 = vmatmul.bf16.gmra.mxu0 %v394
    %v1223 = vpop.f32.mrf.mxu0
    %v1224 = vadd.f32 %v215, %v1223
    %v1225 = vpop.f32.mrf.mxu0
    %v1226 = vadd.f32 %v220, %v1225
    %1227 = vmatmul.bf16.gmra.mxu0 %v397
    %v1228 = vpop.f32.mrf.mxu0
    %v1229 = vadd.f32 %v225, %v1228
    %v1230 = vpop.f32.mrf.mxu0
    %v1231 = vadd.f32 %v230, %v1230
    %1232 = vmatmul.bf16.gmra.mxu0 %v400
    %v1233 = vpop.f32.mrf.mxu0
    %v1234 = vadd.f32 %v235, %v1233
    %v1235 = vpop.f32.mrf.mxu0
    %v1236 = vadd.f32 %v240, %v1235
    %1237 = vmatmul.bf16.gmra.mxu0 %v403
    %v1238 = vpop.f32.mrf.mxu0
    %v1239 = vadd.f32 %v245, %v1238
    %v1240 = vpop.f32.mrf.mxu0
    %v1241 = vadd.f32 %v250, %v1240
    %1242 = vmatmul.bf16.gmra.mxu0 %v406
    %v1243 = vpop.f32.mrf.mxu0
    %v1244 = vadd.f32 %v255, %v1243
    %v1245 = vpop.f32.mrf.mxu0
    %1246 = vdwg.mxu0
    %1247 = vmatpush.bf16.msra.mxu0 0
    %1248 = vmatpush.bf16.msra.mxu0 0
    %1249 = vmatpush.bf16.msra.mxu0 0
    %1250 = vmatpush.bf16.msra.mxu0 0
    %1251 = vmatpush.bf16.msra.mxu0 0
    %1252 = vmatpush.bf16.msra.mxu0 0
    %1253 = vmatpush.bf16.msra.mxu0 0
    %1254 = vmatpush.bf16.msra.mxu0 %v452
    %1255 = vmatmul.bf16.gmra.mxu0 %v382
    %v1256 = vpop.f32.mrf.mxu0
    %v1257 = vadd.f32 %v175, %v1256
    %v1258 = vpop.f32.mrf.mxu0
    %v1259 = vadd.f32 %v180, %v1258
    %1260 = vmatmul.bf16.gmra.mxu0 %v385
    %v1261 = vpop.f32.mrf.mxu0
    %v1262 = vadd.f32 %v185, %v1261
    %v1263 = vpop.f32.mrf.mxu0
    %v1264 = vadd.f32 %v190, %v1263
    %1265 = vmatmul.bf16.gmra.mxu0 %v388
    %v1266 = vpop.f32.mrf.mxu0
    %v1267 = vadd.f32 %v195, %v1266
    %v1268 = vpop.f32.mrf.mxu0
    %v1269 = vadd.f32 %v200, %v1268
    %1270 = vmatmul.bf16.gmra.mxu0 %v391
    %v1271 = vpop.f32.mrf.mxu0
    %v1272 = vadd.f32 %v205, %v1271
    %v1273 = vpop.f32.mrf.mxu0
    %v1274 = vadd.f32 %v210, %v1273
    %1275 = vmatmul.bf16.gmra.mxu0 %v394
    %v1276 = vpop.f32.mrf.mxu0
    %v1277 = vadd.f32 %v215, %v1276
    %v1278 = vpop.f32.mrf.mxu0
    %v1279 = vadd.f32 %v220, %v1278
    %1280 = vmatmul.bf16.gmra.mxu0 %v397
    %v1281 = vpop.f32.mrf.mxu0
    %v1282 = vadd.f32 %v225, %v1281
    %v1283 = vpop.f32.mrf.mxu0
    %v1284 = vadd.f32 %v230, %v1283
    %1285 = vmatmul.bf16.gmra.mxu0 %v400
    %v1286 = vpop.f32.mrf.mxu0
    %v1287 = vadd.f32 %v235, %v1286
    %v1288 = vpop.f32.mrf.mxu0
    %v1289 = vadd.f32 %v240, %v1288
    %1290 = vmatmul.bf16.gmra.mxu0 %v403
    %v1291 = vpop.f32.mrf.mxu0
    %v1292 = vadd.f32 %v245, %v1291
    %v1293 = vpop.f32.mrf.mxu0
    %v1294 = vadd.f32 %v250, %v1293
    %1295 = vmatmul.bf16.gmra.mxu0 %v406
    %v1296 = vpop.f32.mrf.mxu0
    %v1297 = vadd.f32 %v255, %v1296
    %v1298 = vpop.f32.mrf.mxu0
    %1299 = vdwg.mxu0
    %1300 = vmatpush.bf16.msra.mxu0 0
    %1301 = vmatpush.bf16.msra.mxu0 0
    %1302 = vmatpush.bf16.msra.mxu0 0
    %1303 = vmatpush.bf16.msra.mxu0 0
    %1304 = vmatpush.bf16.msra.mxu0 0
    %1305 = vmatpush.bf16.msra.mxu0 0
    %1306 = vmatpush.bf16.msra.mxu0 0
    %1307 = vmatpush.bf16.msra.mxu0 %v455
    %1308 = vmatmul.bf16.gmra.mxu0 %v382
    %v1309 = vpop.f32.mrf.mxu0
    %v1310 = vadd.f32 %v175, %v1309
    %v1311 = vpop.f32.mrf.mxu0
    %v1312 = vadd.f32 %v180, %v1311
    %1313 = vmatmul.bf16.gmra.mxu0 %v385
    %v1314 = vpop.f32.mrf.mxu0
    %v1315 = vadd.f32 %v185, %v1314
    %v1316 = vpop.f32.mrf.mxu0
    %v1317 = vadd.f32 %v190, %v1316
    %1318 = vmatmul.bf16.gmra.mxu0 %v388
    %v1319 = vpop.f32.mrf.mxu0
    %v1320 = vadd.f32 %v195, %v1319
    %v1321 = vpop.f32.mrf.mxu0
    %v1322 = vadd.f32 %v200, %v1321
    %1323 = vmatmul.bf16.gmra.mxu0 %v391
    %v1324 = vpop.f32.mrf.mxu0
    %v1325 = vadd.f32 %v205, %v1324
    %v1326 = vpop.f32.mrf.mxu0
    %v1327 = vadd.f32 %v210, %v1326
    %1328 = vmatmul.bf16.gmra.mxu0 %v394
    %v1329 = vpop.f32.mrf.mxu0
    %v1330 = vadd.f32 %v215, %v1329
    %v1331 = vpop.f32.mrf.mxu0
    %v1332 = vadd.f32 %v220, %v1331
    %1333 = vmatmul.bf16.gmra.mxu0 %v397
    %v1334 = vpop.f32.mrf.mxu0
    %v1335 = vadd.f32 %v225, %v1334
    %v1336 = vpop.f32.mrf.mxu0
    %v1337 = vadd.f32 %v230, %v1336
    %1338 = vmatmul.bf16.gmra.mxu0 %v400
    %v1339 = vpop.f32.mrf.mxu0
    %v1340 = vadd.f32 %v235, %v1339
    %v1341 = vpop.f32.mrf.mxu0
    %v1342 = vadd.f32 %v240, %v1341
    %1343 = vmatmul.bf16.gmra.mxu0 %v403
    %v1344 = vpop.f32.mrf.mxu0
    %v1345 = vadd.f32 %v245, %v1344
    %v1346 = vpop.f32.mrf.mxu0
    %v1347 = vadd.f32 %v250, %v1346
    %1348 = vmatmul.bf16.gmra.mxu0 %v406
    %v1349 = vpop.f32.mrf.mxu0
    %v1350 = vadd.f32 %v255, %v1349
    %v1351 = vpop.f32.mrf.mxu0
    %1352 = vdwg.mxu0
    %1353 = vmatpush.bf16.msra.mxu0 0
    %1354 = vmatpush.bf16.msra.mxu0 0
    %1355 = vmatpush.bf16.msra.mxu0 0
    %1356 = vmatpush.bf16.msra.mxu0 0
    %1357 = vmatpush.bf16.msra.mxu0 0
    %1358 = vmatpush.bf16.msra.mxu0 0
    %1359 = vmatpush.bf16.msra.mxu0 0
    %1360 = vmatpush.bf16.msra.mxu0 %v458
    %1361 = vmatmul.bf16.gmra.mxu0 %v382
    %v1362 = vpop.f32.mrf.mxu0
    %v1363 = vadd.f32 %v175, %v1362
    %v1364 = vpop.f32.mrf.mxu0
    %v1365 = vadd.f32 %v180, %v1364
    %1366 = vmatmul.bf16.gmra.mxu0 %v385
    %v1367 = vpop.f32.mrf.mxu0
    %v1368 = vadd.f32 %v185, %v1367
    %v1369 = vpop.f32.mrf.mxu0
    %v1370 = vadd.f32 %v190, %v1369
    %1371 = vmatmul.bf16.gmra.mxu0 %v388
    %v1372 = vpop.f32.mrf.mxu0
    %v1373 = vadd.f32 %v195, %v1372
    %v1374 = vpop.f32.mrf.mxu0
    %v1375 = vadd.f32 %v200, %v1374
    %1376 = vmatmul.bf16.gmra.mxu0 %v391
    %v1377 = vpop.f32.mrf.mxu0
    %v1378 = vadd.f32 %v205, %v1377
    %v1379 = vpop.f32.mrf.mxu0
    %v1380 = vadd.f32 %v210, %v1379
    %1381 = vmatmul.bf16.gmra.mxu0 %v394
    %v1382 = vpop.f32.mrf.mxu0
    %v1383 = vadd.f32 %v215, %v1382
    %v1384 = vpop.f32.mrf.mxu0
    %v1385 = vadd.f32 %v220, %v1384
    %1386 = vmatmul.bf16.gmra.mxu0 %v397
    %v1387 = vpop.f32.mrf.mxu0
    %v1388 = vadd.f32 %v225, %v1387
    %v1389 = vpop.f32.mrf.mxu0
    %v1390 = vadd.f32 %v230, %v1389
    %1391 = vmatmul.bf16.gmra.mxu0 %v400
    %v1392 = vpop.f32.mrf.mxu0
    %v1393 = vadd.f32 %v235, %v1392
    %v1394 = vpop.f32.mrf.mxu0
    %v1395 = vadd.f32 %v240, %v1394
    %1396 = vmatmul.bf16.gmra.mxu0 %v403
    %v1397 = vpop.f32.mrf.mxu0
    %v1398 = vadd.f32 %v245, %v1397
    %v1399 = vpop.f32.mrf.mxu0
    %v1400 = vadd.f32 %v250, %v1399
    %1401 = vmatmul.bf16.gmra.mxu0 %v406
    %v1402 = vpop.f32.mrf.mxu0
    %v1403 = vadd.f32 %v255, %v1402
    %v1404 = vpop.f32.mrf.mxu0
    %1405 = vdwg.mxu0
    %1406 = vmatpush.bf16.msra.mxu0 0
    %1407 = vmatpush.bf16.msra.mxu0 0
    %1408 = vmatpush.bf16.msra.mxu0 0
    %1409 = vmatpush.bf16.msra.mxu0 0
    %1410 = vmatpush.bf16.msra.mxu0 0
    %1411 = vmatpush.bf16.msra.mxu0 0
    %1412 = vmatpush.bf16.msra.mxu0 0
    %1413 = vmatpush.bf16.msra.mxu0 %v461
    %1414 = vmatmul.bf16.gmra.mxu0 %v382
    %v1415 = vpop.f32.mrf.mxu0
    %v1416 = vadd.f32 %v175, %v1415
    %v1417 = vpop.f32.mrf.mxu0
    %v1418 = vadd.f32 %v180, %v1417
    %1419 = vmatmul.bf16.gmra.mxu0 %v385
    %v1420 = vpop.f32.mrf.mxu0
    %v1421 = vadd.f32 %v185, %v1420
    %v1422 = vpop.f32.mrf.mxu0
    %v1423 = vadd.f32 %v190, %v1422
    %1424 = vmatmul.bf16.gmra.mxu0 %v388
    %v1425 = vpop.f32.mrf.mxu0
    %v1426 = vadd.f32 %v195, %v1425
    %v1427 = vpop.f32.mrf.mxu0
    %v1428 = vadd.f32 %v200, %v1427
    %1429 = vmatmul.bf16.gmra.mxu0 %v391
    %v1430 = vpop.f32.mrf.mxu0
    %v1431 = vadd.f32 %v205, %v1430
    %v1432 = vpop.f32.mrf.mxu0
    %v1433 = vadd.f32 %v210, %v1432
    %1434 = vmatmul.bf16.gmra.mxu0 %v394
    %v1435 = vpop.f32.mrf.mxu0
    %v1436 = vadd.f32 %v215, %v1435
    %v1437 = vpop.f32.mrf.mxu0
    %v1438 = vadd.f32 %v220, %v1437
    %1439 = vmatmul.bf16.gmra.mxu0 %v397
    %v1440 = vpop.f32.mrf.mxu0
    %v1441 = vadd.f32 %v225, %v1440
    %v1442 = vpop.f32.mrf.mxu0
    %v1443 = vadd.f32 %v230, %v1442
    %1444 = vmatmul.bf16.gmra.mxu0 %v400
    %v1445 = vpop.f32.mrf.mxu0
    %v1446 = vadd.f32 %v235, %v1445
    %v1447 = vpop.f32.mrf.mxu0
    %v1448 = vadd.f32 %v240, %v1447
    %1449 = vmatmul.bf16.gmra.mxu0 %v403
    %v1450 = vpop.f32.mrf.mxu0
    %v1451 = vadd.f32 %v245, %v1450
    %v1452 = vpop.f32.mrf.mxu0
    %v1453 = vadd.f32 %v250, %v1452
    %1454 = vmatmul.bf16.gmra.mxu0 %v406
    %v1455 = vpop.f32.mrf.mxu0
    %v1456 = vadd.f32 %v255, %v1455
    %v1457 = vpop.f32.mrf.mxu0
    %1458 = vdwg.mxu0
    %1459 = vmatpush.bf16.msra.mxu0 0
    %1460 = vmatpush.bf16.msra.mxu0 0
    %1461 = vmatpush.bf16.msra.mxu0 0
    %1462 = vmatpush.bf16.msra.mxu0 0
    %1463 = vmatpush.bf16.msra.mxu0 0
    %1464 = vmatpush.bf16.msra.mxu0 0
    %1465 = vmatpush.bf16.msra.mxu0 0
    %1466 = vmatpush.bf16.msra.mxu0 %v464
    %1467 = vmatmul.bf16.gmra.mxu0 %v382
    %v1468 = vpop.f32.mrf.mxu0
    %v1469 = vadd.f32 %v175, %v1468
    %v1470 = vpop.f32.mrf.mxu0
    %v1471 = vadd.f32 %v180, %v1470
    %1472 = vmatmul.bf16.gmra.mxu0 %v385
    %v1473 = vpop.f32.mrf.mxu0
    %v1474 = vadd.f32 %v185, %v1473
    %v1475 = vpop.f32.mrf.mxu0
    %v1476 = vadd.f32 %v190, %v1475
    %1477 = vmatmul.bf16.gmra.mxu0 %v388
    %v1478 = vpop.f32.mrf.mxu0
    %v1479 = vadd.f32 %v195, %v1478
    %v1480 = vpop.f32.mrf.mxu0
    %v1481 = vadd.f32 %v200, %v1480
    %1482 = vmatmul.bf16.gmra.mxu0 %v391
    %v1483 = vpop.f32.mrf.mxu0
    %v1484 = vadd.f32 %v205, %v1483
    %v1485 = vpop.f32.mrf.mxu0
    %v1486 = vadd.f32 %v210, %v1485
    %1487 = vmatmul.bf16.gmra.mxu0 %v394
    %v1488 = vpop.f32.mrf.mxu0
    %v1489 = vadd.f32 %v215, %v1488
    %v1490 = vpop.f32.mrf.mxu0
    %v1491 = vadd.f32 %v220, %v1490
    %1492 = vmatmul.bf16.gmra.mxu0 %v397
    %v1493 = vpop.f32.mrf.mxu0
    %v1494 = vadd.f32 %v225, %v1493
    %v1495 = vpop.f32.mrf.mxu0
    %v1496 = vadd.f32 %v230, %v1495
    %1497 = vmatmul.bf16.gmra.mxu0 %v400
    %v1498 = vpop.f32.mrf.mxu0
    %v1499 = vadd.f32 %v235, %v1498
    %v1500 = vpop.f32.mrf.mxu0
    %v1501 = vadd.f32 %v240, %v1500
    %1502 = vmatmul.bf16.gmra.mxu0 %v403
    %v1503 = vpop.f32.mrf.mxu0
    %v1504 = vadd.f32 %v245, %v1503
    %v1505 = vpop.f32.mrf.mxu0
    %v1506 = vadd.f32 %v250, %v1505
    %1507 = vmatmul.bf16.gmra.mxu0 %v406
    %v1508 = vpop.f32.mrf.mxu0
    %v1509 = vadd.f32 %v255, %v1508
    %v1510 = vpop.f32.mrf.mxu0
    %1511 = vdwg.mxu0
    %1512 = vmatpush.bf16.msra.mxu0 0
    %1513 = vmatpush.bf16.msra.mxu0 0
    %1514 = vmatpush.bf16.msra.mxu0 0
    %1515 = vmatpush.bf16.msra.mxu0 0
    %1516 = vmatpush.bf16.msra.mxu0 0
    %1517 = vmatpush.bf16.msra.mxu0 0
    %1518 = vmatpush.bf16.msra.mxu0 0
    %1519 = vmatpush.bf16.msra.mxu0 %v467
    %1520 = vmatmul.bf16.gmra.mxu0 %v382
    %v1521 = vpop.f32.mrf.mxu0
    %v1522 = vadd.f32 %v175, %v1521
    %v1523 = vpop.f32.mrf.mxu0
    %v1524 = vadd.f32 %v180, %v1523
    %1525 = vmatmul.bf16.gmra.mxu0 %v385
    %v1526 = vpop.f32.mrf.mxu0
    %v1527 = vadd.f32 %v185, %v1526
    %v1528 = vpop.f32.mrf.mxu0
    %v1529 = vadd.f32 %v190, %v1528
    %1530 = vmatmul.bf16.gmra.mxu0 %v388
    %v1531 = vpop.f32.mrf.mxu0
    %v1532 = vadd.f32 %v195, %v1531
    %v1533 = vpop.f32.mrf.mxu0
    %v1534 = vadd.f32 %v200, %v1533
    %1535 = vmatmul.bf16.gmra.mxu0 %v391
    %v1536 = vpop.f32.mrf.mxu0
    %v1537 = vadd.f32 %v205, %v1536
    %v1538 = vpop.f32.mrf.mxu0
    %v1539 = vadd.f32 %v210, %v1538
    %1540 = vmatmul.bf16.gmra.mxu0 %v394
    %v1541 = vpop.f32.mrf.mxu0
    %v1542 = vadd.f32 %v215, %v1541
    %v1543 = vpop.f32.mrf.mxu0
    %v1544 = vadd.f32 %v220, %v1543
    %1545 = vmatmul.bf16.gmra.mxu0 %v397
    %v1546 = vpop.f32.mrf.mxu0
    %v1547 = vadd.f32 %v225, %v1546
    %v1548 = vpop.f32.mrf.mxu0
    %v1549 = vadd.f32 %v230, %v1548
    %1550 = vmatmul.bf16.gmra.mxu0 %v400
    %v1551 = vpop.f32.mrf.mxu0
    %v1552 = vadd.f32 %v235, %v1551
    %v1553 = vpop.f32.mrf.mxu0
    %v1554 = vadd.f32 %v240, %v1553
    %1555 = vmatmul.bf16.gmra.mxu0 %v403
    %v1556 = vpop.f32.mrf.mxu0
    %v1557 = vadd.f32 %v245, %v1556
    %v1558 = vpop.f32.mrf.mxu0
    %v1559 = vadd.f32 %v250, %v1558
    %1560 = vmatmul.bf16.gmra.mxu0 %v406
    %v1561 = vpop.f32.mrf.mxu0
    %v1562 = vadd.f32 %v255, %v1561
    %v1563 = vpop.f32.mrf.mxu0
    %1564 = vdwg.mxu0
    %1565 = vmatpush.bf16.msra.mxu0 0
    %1566 = vmatpush.bf16.msra.mxu0 0
    %1567 = vmatpush.bf16.msra.mxu0 0
    %1568 = vmatpush.bf16.msra.mxu0 0
    %1569 = vmatpush.bf16.msra.mxu0 0
    %1570 = vmatpush.bf16.msra.mxu0 0
    %1571 = vmatpush.bf16.msra.mxu0 0
    %1572 = vmatpush.bf16.msra.mxu0 %v470
    %1573 = vmatmul.bf16.gmra.mxu0 %v382
    %v1574 = vpop.f32.mrf.mxu0
    %v1575 = vadd.f32 %v175, %v1574
    %v1576 = vpop.f32.mrf.mxu0
    %v1577 = vadd.f32 %v180, %v1576
    %1578 = vmatmul.bf16.gmra.mxu0 %v385
    %v1579 = vpop.f32.mrf.mxu0
    %v1580 = vadd.f32 %v185, %v1579
    %v1581 = vpop.f32.mrf.mxu0
    %v1582 = vadd.f32 %v190, %v1581
    %1583 = vmatmul.bf16.gmra.mxu0 %v388
    %v1584 = vpop.f32.mrf.mxu0
    %v1585 = vadd.f32 %v195, %v1584
    %v1586 = vpop.f32.mrf.mxu0
    %v1587 = vadd.f32 %v200, %v1586
    %1588 = vmatmul.bf16.gmra.mxu0 %v391
    %v1589 = vpop.f32.mrf.mxu0
    %v1590 = vadd.f32 %v205, %v1589
    %v1591 = vpop.f32.mrf.mxu0
    %v1592 = vadd.f32 %v210, %v1591
    %1593 = vmatmul.bf16.gmra.mxu0 %v394
    %v1594 = vpop.f32.mrf.mxu0
    %v1595 = vadd.f32 %v215, %v1594
    %v1596 = vpop.f32.mrf.mxu0
    %v1597 = vadd.f32 %v220, %v1596
    %1598 = vmatmul.bf16.gmra.mxu0 %v397
    %v1599 = vpop.f32.mrf.mxu0
    %v1600 = vadd.f32 %v225, %v1599
    %v1601 = vpop.f32.mrf.mxu0
    %v1602 = vadd.f32 %v230, %v1601
    %1603 = vmatmul.bf16.gmra.mxu0 %v400
    %v1604 = vpop.f32.mrf.mxu0
    %v1605 = vadd.f32 %v235, %v1604
    %v1606 = vpop.f32.mrf.mxu0
    %v1607 = vadd.f32 %v240, %v1606
    %1608 = vmatmul.bf16.gmra.mxu0 %v403
    %v1609 = vpop.f32.mrf.mxu0
    %v1610 = vadd.f32 %v245, %v1609
    %v1611 = vpop.f32.mrf.mxu0
    %v1612 = vadd.f32 %v250, %v1611
    %1613 = vmatmul.bf16.gmra.mxu0 %v406
    %v1614 = vpop.f32.mrf.mxu0
    %v1615 = vadd.f32 %v255, %v1614
    %v1616 = vpop.f32.mrf.mxu0
    %1617 = vdwg.mxu0
    %1618 = vmatpush.bf16.msra.mxu0 0
    %1619 = vmatpush.bf16.msra.mxu0 0
    %1620 = vmatpush.bf16.msra.mxu0 0
    %1621 = vmatpush.bf16.msra.mxu0 0
    %1622 = vmatpush.bf16.msra.mxu0 0
    %1623 = vmatpush.bf16.msra.mxu0 0
    %1624 = vmatpush.bf16.msra.mxu0 0
    %1625 = vmatpush.bf16.msra.mxu0 %v473
    %1626 = vmatmul.bf16.gmra.mxu0 %v382
    %v1627 = vpop.f32.mrf.mxu0
    %v1628 = vadd.f32 %v175, %v1627
    %v1629 = vpop.f32.mrf.mxu0
    %v1630 = vadd.f32 %v180, %v1629
    %1631 = vmatmul.bf16.gmra.mxu0 %v385
    %v1632 = vpop.f32.mrf.mxu0
    %v1633 = vadd.f32 %v185, %v1632
    %v1634 = vpop.f32.mrf.mxu0
    %v1635 = vadd.f32 %v190, %v1634
    %1636 = vmatmul.bf16.gmra.mxu0 %v388
    %v1637 = vpop.f32.mrf.mxu0
    %v1638 = vadd.f32 %v195, %v1637
    %v1639 = vpop.f32.mrf.mxu0
    %v1640 = vadd.f32 %v200, %v1639
    %1641 = vmatmul.bf16.gmra.mxu0 %v391
    %v1642 = vpop.f32.mrf.mxu0
    %v1643 = vadd.f32 %v205, %v1642
    %v1644 = vpop.f32.mrf.mxu0
    %v1645 = vadd.f32 %v210, %v1644
    %1646 = vmatmul.bf16.gmra.mxu0 %v394
    %v1647 = vpop.f32.mrf.mxu0
    %v1648 = vadd.f32 %v215, %v1647
    %v1649 = vpop.f32.mrf.mxu0
    %v1650 = vadd.f32 %v220, %v1649
    %1651 = vmatmul.bf16.gmra.mxu0 %v397
    %v1652 = vpop.f32.mrf.mxu0
    %v1653 = vadd.f32 %v225, %v1652
    %v1654 = vpop.f32.mrf.mxu0
    %v1655 = vadd.f32 %v230, %v1654
    %1656 = vmatmul.bf16.gmra.mxu0 %v400
    %v1657 = vpop.f32.mrf.mxu0
    %v1658 = vadd.f32 %v235, %v1657
    %v1659 = vpop.f32.mrf.mxu0
    %v1660 = vadd.f32 %v240, %v1659
    %1661 = vmatmul.bf16.gmra.mxu0 %v403
    %v1662 = vpop.f32.mrf.mxu0
    %v1663 = vadd.f32 %v245, %v1662
    %v1664 = vpop.f32.mrf.mxu0
    %v1665 = vadd.f32 %v250, %v1664
    %1666 = vmatmul.bf16.gmra.mxu0 %v406
    %v1667 = vpop.f32.mrf.mxu0
    %v1668 = vadd.f32 %v255, %v1667
    %v1669 = vpop.f32.mrf.mxu0
    %1670 = vdwg.mxu0
    %1671 = vmatpush.bf16.msra.mxu0 0
    %1672 = vmatpush.bf16.msra.mxu0 0
    %1673 = vmatpush.bf16.msra.mxu0 0
    %1674 = vmatpush.bf16.msra.mxu0 0
    %1675 = vmatpush.bf16.msra.mxu0 0
    %1676 = vmatpush.bf16.msra.mxu0 0
    %1677 = vmatpush.bf16.msra.mxu0 0
    %1678 = vmatpush.bf16.msra.mxu0 %v476
    %1679 = vmatmul.bf16.gmra.mxu0 %v382
    %v1680 = vpop.f32.mrf.mxu0
    %v1681 = vadd.f32 %v175, %v1680
    %v1682 = vpop.f32.mrf.mxu0
    %v1683 = vadd.f32 %v180, %v1682
    %1684 = vmatmul.bf16.gmra.mxu0 %v385
    %v1685 = vpop.f32.mrf.mxu0
    %v1686 = vadd.f32 %v185, %v1685
    %v1687 = vpop.f32.mrf.mxu0
    %v1688 = vadd.f32 %v190, %v1687
    %1689 = vmatmul.bf16.gmra.mxu0 %v388
    %v1690 = vpop.f32.mrf.mxu0
    %v1691 = vadd.f32 %v195, %v1690
    %v1692 = vpop.f32.mrf.mxu0
    %v1693 = vadd.f32 %v200, %v1692
    %1694 = vmatmul.bf16.gmra.mxu0 %v391
    %v1695 = vpop.f32.mrf.mxu0
    %v1696 = vadd.f32 %v205, %v1695
    %v1697 = vpop.f32.mrf.mxu0
    %v1698 = vadd.f32 %v210, %v1697
    %1699 = vmatmul.bf16.gmra.mxu0 %v394
    %v1700 = vpop.f32.mrf.mxu0
    %v1701 = vadd.f32 %v215, %v1700
    %v1702 = vpop.f32.mrf.mxu0
    %v1703 = vadd.f32 %v220, %v1702
    %1704 = vmatmul.bf16.gmra.mxu0 %v397
    %v1705 = vpop.f32.mrf.mxu0
    %v1706 = vadd.f32 %v225, %v1705
    %v1707 = vpop.f32.mrf.mxu0
    %v1708 = vadd.f32 %v230, %v1707
    %1709 = vmatmul.bf16.gmra.mxu0 %v400
    %v1710 = vpop.f32.mrf.mxu0
    %v1711 = vadd.f32 %v235, %v1710
    %v1712 = vpop.f32.mrf.mxu0
    %v1713 = vadd.f32 %v240, %v1712
    %1714 = vmatmul.bf16.gmra.mxu0 %v403
    %v1715 = vpop.f32.mrf.mxu0
    %v1716 = vadd.f32 %v245, %v1715
    %v1717 = vpop.f32.mrf.mxu0
    %v1718 = vadd.f32 %v250, %v1717
    %1719 = vmatmul.bf16.gmra.mxu0 %v406
    %v1720 = vpop.f32.mrf.mxu0
    %v1721 = vadd.f32 %v255, %v1720
    %v1722 = vpop.f32.mrf.mxu0
    %1723 = vdwg.mxu0
    %1724 = vmatpush.bf16.msra.mxu0 0
    %1725 = vmatpush.bf16.msra.mxu0 0
    %1726 = vmatpush.bf16.msra.mxu0 0
    %1727 = vmatpush.bf16.msra.mxu0 0
    %1728 = vmatpush.bf16.msra.mxu0 0
    %1729 = vmatpush.bf16.msra.mxu0 0
    %1730 = vmatpush.bf16.msra.mxu0 0
    %1731 = vmatpush.bf16.msra.mxu0 %v479
    %1732 = vmatmul.bf16.gmra.mxu0 %v382
    %v1733 = vpop.f32.mrf.mxu0
    %v1734 = vadd.f32 %v175, %v1733
    %v1735 = vpop.f32.mrf.mxu0
    %v1736 = vadd.f32 %v180, %v1735
    %1737 = vmatmul.bf16.gmra.mxu0 %v385
    %v1738 = vpop.f32.mrf.mxu0
    %v1739 = vadd.f32 %v185, %v1738
    %v1740 = vpop.f32.mrf.mxu0
    %v1741 = vadd.f32 %v190, %v1740
    %1742 = vmatmul.bf16.gmra.mxu0 %v388
    %v1743 = vpop.f32.mrf.mxu0
    %v1744 = vadd.f32 %v195, %v1743
    %v1745 = vpop.f32.mrf.mxu0
    %v1746 = vadd.f32 %v200, %v1745
    %1747 = vmatmul.bf16.gmra.mxu0 %v391
    %v1748 = vpop.f32.mrf.mxu0
    %v1749 = vadd.f32 %v205, %v1748
    %v1750 = vpop.f32.mrf.mxu0
    %v1751 = vadd.f32 %v210, %v1750
    %1752 = vmatmul.bf16.gmra.mxu0 %v394
    %v1753 = vpop.f32.mrf.mxu0
    %v1754 = vadd.f32 %v215, %v1753
    %v1755 = vpop.f32.mrf.mxu0
    %v1756 = vadd.f32 %v220, %v1755
    %1757 = vmatmul.bf16.gmra.mxu0 %v397
    %v1758 = vpop.f32.mrf.mxu0
    %v1759 = vadd.f32 %v225, %v1758
    %v1760 = vpop.f32.mrf.mxu0
    %v1761 = vadd.f32 %v230, %v1760
    %1762 = vmatmul.bf16.gmra.mxu0 %v400
    %v1763 = vpop.f32.mrf.mxu0
    %v1764 = vadd.f32 %v235, %v1763
    %v1765 = vpop.f32.mrf.mxu0
    %v1766 = vadd.f32 %v240, %v1765
    %1767 = vmatmul.bf16.gmra.mxu0 %v403
    %v1768 = vpop.f32.mrf.mxu0
    %v1769 = vadd.f32 %v245, %v1768
    %v1770 = vpop.f32.mrf.mxu0
    %v1771 = vadd.f32 %v250, %v1770
    %1772 = vmatmul.bf16.gmra.mxu0 %v406
    %v1773 = vpop.f32.mrf.mxu0
    %v1774 = vadd.f32 %v255, %v1773
    %v1775 = vpop.f32.mrf.mxu0
    %1776 = vdwg.mxu0
    %1777 = vmatpush.bf16.msra.mxu0 0
    %1778 = vmatpush.bf16.msra.mxu0 0
    %1779 = vmatpush.bf16.msra.mxu0 0
    %1780 = vmatpush.bf16.msra.mxu0 0
    %1781 = vmatpush.bf16.msra.mxu0 0
    %1782 = vmatpush.bf16.msra.mxu0 0
    %1783 = vmatpush.bf16.msra.mxu0 0
    %1784 = vmatpush.bf16.msra.mxu0 %v482
    %1785 = vmatmul.bf16.gmra.mxu0 %v382
    %v1786 = vpop.f32.mrf.mxu0
    %v1787 = vadd.f32 %v175, %v1786
    %v1788 = vpop.f32.mrf.mxu0
    %v1789 = vadd.f32 %v180, %v1788
    %1790 = vmatmul.bf16.gmra.mxu0 %v385
    %v1791 = vpop.f32.mrf.mxu0
    %v1792 = vadd.f32 %v185, %v1791
    %v1793 = vpop.f32.mrf.mxu0
    %v1794 = vadd.f32 %v190, %v1793
    %1795 = vmatmul.bf16.gmra.mxu0 %v388
    %v1796 = vpop.f32.mrf.mxu0
    %v1797 = vadd.f32 %v195, %v1796
    %v1798 = vpop.f32.mrf.mxu0
    %v1799 = vadd.f32 %v200, %v1798
    %1800 = vmatmul.bf16.gmra.mxu0 %v391
    %v1801 = vpop.f32.mrf.mxu0
    %v1802 = vadd.f32 %v205, %v1801
    %v1803 = vpop.f32.mrf.mxu0
    %v1804 = vadd.f32 %v210, %v1803
    %1805 = vmatmul.bf16.gmra.mxu0 %v394
    %v1806 = vpop.f32.mrf.mxu0
    %v1807 = vadd.f32 %v215, %v1806
    %v1808 = vpop.f32.mrf.mxu0
    %v1809 = vadd.f32 %v220, %v1808
    %1810 = vmatmul.bf16.gmra.mxu0 %v397
    %v1811 = vpop.f32.mrf.mxu0
    %v1812 = vadd.f32 %v225, %v1811
    %v1813 = vpop.f32.mrf.mxu0
    %v1814 = vadd.f32 %v230, %v1813
    %1815 = vmatmul.bf16.gmra.mxu0 %v400
    %v1816 = vpop.f32.mrf.mxu0
    %v1817 = vadd.f32 %v235, %v1816
    %v1818 = vpop.f32.mrf.mxu0
    %v1819 = vadd.f32 %v240, %v1818
    %1820 = vmatmul.bf16.gmra.mxu0 %v403
    %v1821 = vpop.f32.mrf.mxu0
    %v1822 = vadd.f32 %v245, %v1821
    %v1823 = vpop.f32.mrf.mxu0
    %v1824 = vadd.f32 %v250, %v1823
    %1825 = vmatmul.bf16.gmra.mxu0 %v406
    %v1826 = vpop.f32.mrf.mxu0
    %v1827 = vadd.f32 %v255, %v1826
    %v1828 = vpop.f32.mrf.mxu0
    %1829 = vdwg.mxu0
    %1830 = vmatpush.bf16.msra.mxu0 0
    %1831 = vmatpush.bf16.msra.mxu0 0
    %1832 = vmatpush.bf16.msra.mxu0 0
    %1833 = vmatpush.bf16.msra.mxu0 0
    %1834 = vmatpush.bf16.msra.mxu0 0
    %1835 = vmatpush.bf16.msra.mxu0 0
    %1836 = vmatpush.bf16.msra.mxu0 0
    %1837 = vmatpush.bf16.msra.mxu0 %v485
    %1838 = vmatmul.bf16.gmra.mxu0 %v382
    %v1839 = vpop.f32.mrf.mxu0
    %v1840 = vadd.f32 %v175, %v1839
    %v1841 = vpop.f32.mrf.mxu0
    %v1842 = vadd.f32 %v180, %v1841
    %1843 = vmatmul.bf16.gmra.mxu0 %v385
    %v1844 = vpop.f32.mrf.mxu0
    %v1845 = vadd.f32 %v185, %v1844
    %v1846 = vpop.f32.mrf.mxu0
    %v1847 = vadd.f32 %v190, %v1846
    %1848 = vmatmul.bf16.gmra.mxu0 %v388
    %v1849 = vpop.f32.mrf.mxu0
    %v1850 = vadd.f32 %v195, %v1849
    %v1851 = vpop.f32.mrf.mxu0
    %v1852 = vadd.f32 %v200, %v1851
    %1853 = vmatmul.bf16.gmra.mxu0 %v391
    %v1854 = vpop.f32.mrf.mxu0
    %v1855 = vadd.f32 %v205, %v1854
    %v1856 = vpop.f32.mrf.mxu0
    %v1857 = vadd.f32 %v210, %v1856
    %1858 = vmatmul.bf16.gmra.mxu0 %v394
    %v1859 = vpop.f32.mrf.mxu0
    %v1860 = vadd.f32 %v215, %v1859
    %v1861 = vpop.f32.mrf.mxu0
    %v1862 = vadd.f32 %v220, %v1861
    %1863 = vmatmul.bf16.gmra.mxu0 %v397
    %v1864 = vpop.f32.mrf.mxu0
    %v1865 = vadd.f32 %v225, %v1864
    %v1866 = vpop.f32.mrf.mxu0
    %v1867 = vadd.f32 %v230, %v1866
    %1868 = vmatmul.bf16.gmra.mxu0 %v400
    %v1869 = vpop.f32.mrf.mxu0
    %v1870 = vadd.f32 %v235, %v1869
    %v1871 = vpop.f32.mrf.mxu0
    %v1872 = vadd.f32 %v240, %v1871
    %1873 = vmatmul.bf16.gmra.mxu0 %v403
    %v1874 = vpop.f32.mrf.mxu0
    %v1875 = vadd.f32 %v245, %v1874
    %v1876 = vpop.f32.mrf.mxu0
    %v1877 = vadd.f32 %v250, %v1876
    %1878 = vmatmul.bf16.gmra.mxu0 %v406
    %v1879 = vpop.f32.mrf.mxu0
    %v1880 = vadd.f32 %v255, %v1879
    %v1881 = vpop.f32.mrf.mxu0
    %1882 = vdwg.mxu0
    %1883 = vmatpush.bf16.msra.mxu0 0
    %1884 = vmatpush.bf16.msra.mxu0 0
    %1885 = vmatpush.bf16.msra.mxu0 0
    %1886 = vmatpush.bf16.msra.mxu0 0
    %1887 = vmatpush.bf16.msra.mxu0 0
    %1888 = vmatpush.bf16.msra.mxu0 0
    %1889 = vmatpush.bf16.msra.mxu0 0
    %1890 = vmatpush.bf16.msra.mxu0 %v488
    %1891 = vmatmul.bf16.gmra.mxu0 %v382
    %v1892 = vpop.f32.mrf.mxu0
    %v1893 = vadd.f32 %v175, %v1892
    %v1894 = vpop.f32.mrf.mxu0
    %v1895 = vadd.f32 %v180, %v1894
    %1896 = vmatmul.bf16.gmra.mxu0 %v385
    %v1897 = vpop.f32.mrf.mxu0
    %v1898 = vadd.f32 %v185, %v1897
    %v1899 = vpop.f32.mrf.mxu0
    %v1900 = vadd.f32 %v190, %v1899
    %1901 = vmatmul.bf16.gmra.mxu0 %v388
    %v1902 = vpop.f32.mrf.mxu0
    %v1903 = vadd.f32 %v195, %v1902
    %v1904 = vpop.f32.mrf.mxu0
    %v1905 = vadd.f32 %v200, %v1904
    %1906 = vmatmul.bf16.gmra.mxu0 %v391
    %v1907 = vpop.f32.mrf.mxu0
    %v1908 = vadd.f32 %v205, %v1907
    %v1909 = vpop.f32.mrf.mxu0
    %v1910 = vadd.f32 %v210, %v1909
    %1911 = vmatmul.bf16.gmra.mxu0 %v394
    %v1912 = vpop.f32.mrf.mxu0
    %v1913 = vadd.f32 %v215, %v1912
    %v1914 = vpop.f32.mrf.mxu0
    %v1915 = vadd.f32 %v220, %v1914
    %1916 = vmatmul.bf16.gmra.mxu0 %v397
    %v1917 = vpop.f32.mrf.mxu0
    %v1918 = vadd.f32 %v225, %v1917
    %v1919 = vpop.f32.mrf.mxu0
    %v1920 = vadd.f32 %v230, %v1919
    %1921 = vmatmul.bf16.gmra.mxu0 %v400
    %v1922 = vpop.f32.mrf.mxu0
    %v1923 = vadd.f32 %v235, %v1922
    %v1924 = vpop.f32.mrf.mxu0
    %v1925 = vadd.f32 %v240, %v1924
    %1926 = vmatmul.bf16.gmra.mxu0 %v403
    %v1927 = vpop.f32.mrf.mxu0
    %v1928 = vadd.f32 %v245, %v1927
    %v1929 = vpop.f32.mrf.mxu0
    %v1930 = vadd.f32 %v250, %v1929
    %1931 = vmatmul.bf16.gmra.mxu0 %v406
    %v1932 = vpop.f32.mrf.mxu0
    %v1933 = vadd.f32 %v255, %v1932
    %v1934 = vpop.f32.mrf.mxu0
    %1935 = vdwg.mxu0
    %1936 = vmatpush.bf16.msra.mxu0 0
    %1937 = vmatpush.bf16.msra.mxu0 0
    %1938 = vmatpush.bf16.msra.mxu0 0
    %1939 = vmatpush.bf16.msra.mxu0 0
    %1940 = vmatpush.bf16.msra.mxu0 0
    %1941 = vmatpush.bf16.msra.mxu0 0
    %1942 = vmatpush.bf16.msra.mxu0 0
    %1943 = vmatpush.bf16.msra.mxu0 %v491
    %1944 = vmatmul.bf16.gmra.mxu0 %v382
    %v1945 = vpop.f32.mrf.mxu0
    %v1946 = vadd.f32 %v175, %v1945
    %v1947 = vpop.f32.mrf.mxu0
    %v1948 = vadd.f32 %v180, %v1947
    %1949 = vmatmul.bf16.gmra.mxu0 %v385
    %v1950 = vpop.f32.mrf.mxu0
    %v1951 = vadd.f32 %v185, %v1950
    %v1952 = vpop.f32.mrf.mxu0
    %v1953 = vadd.f32 %v190, %v1952
    %1954 = vmatmul.bf16.gmra.mxu0 %v388
    %v1955 = vpop.f32.mrf.mxu0
    %v1956 = vadd.f32 %v195, %v1955
    %v1957 = vpop.f32.mrf.mxu0
    %v1958 = vadd.f32 %v200, %v1957
    %1959 = vmatmul.bf16.gmra.mxu0 %v391
    %v1960 = vpop.f32.mrf.mxu0
    %v1961 = vadd.f32 %v205, %v1960
    %v1962 = vpop.f32.mrf.mxu0
    %v1963 = vadd.f32 %v210, %v1962
    %1964 = vmatmul.bf16.gmra.mxu0 %v394
    %v1965 = vpop.f32.mrf.mxu0
    %v1966 = vadd.f32 %v215, %v1965
    %v1967 = vpop.f32.mrf.mxu0
    %v1968 = vadd.f32 %v220, %v1967
    %1969 = vmatmul.bf16.gmra.mxu0 %v397
    %v1970 = vpop.f32.mrf.mxu0
    %v1971 = vadd.f32 %v225, %v1970
    %v1972 = vpop.f32.mrf.mxu0
    %v1973 = vadd.f32 %v230, %v1972
    %1974 = vmatmul.bf16.gmra.mxu0 %v400
    %v1975 = vpop.f32.mrf.mxu0
    %v1976 = vadd.f32 %v235, %v1975
    %v1977 = vpop.f32.mrf.mxu0
    %v1978 = vadd.f32 %v240, %v1977
    %1979 = vmatmul.bf16.gmra.mxu0 %v403
    %v1980 = vpop.f32.mrf.mxu0
    %v1981 = vadd.f32 %v245, %v1980
    %v1982 = vpop.f32.mrf.mxu0
    %v1983 = vadd.f32 %v250, %v1982
    %1984 = vmatmul.bf16.gmra.mxu0 %v406
    %v1985 = vpop.f32.mrf.mxu0
    %v1986 = vadd.f32 %v255, %v1985
    %v1987 = vpop.f32.mrf.mxu0
    %1988 = vdwg.mxu0
    %1989 = vmatpush.bf16.msra.mxu0 0
    %1990 = vmatpush.bf16.msra.mxu0 0
    %1991 = vmatpush.bf16.msra.mxu0 0
    %1992 = vmatpush.bf16.msra.mxu0 0
    %1993 = vmatpush.bf16.msra.mxu0 0
    %1994 = vmatpush.bf16.msra.mxu0 0
    %1995 = vmatpush.bf16.msra.mxu0 0
    %1996 = vmatpush.bf16.msra.mxu0 %v494
    %1997 = vmatmul.bf16.gmra.mxu0 %v382
    %v1998 = vpop.f32.mrf.mxu0
    %v1999 = vadd.f32 %v175, %v1998
    %v2000 = vpop.f32.mrf.mxu0
    %v2001 = vadd.f32 %v180, %v2000
    %2002 = vmatmul.bf16.gmra.mxu0 %v385
    %v2003 = vpop.f32.mrf.mxu0
    %v2004 = vadd.f32 %v185, %v2003
    %v2005 = vpop.f32.mrf.mxu0
    %v2006 = vadd.f32 %v190, %v2005
    %2007 = vmatmul.bf16.gmra.mxu0 %v388
    %v2008 = vpop.f32.mrf.mxu0
    %v2009 = vadd.f32 %v195, %v2008
    %v2010 = vpop.f32.mrf.mxu0
    %v2011 = vadd.f32 %v200, %v2010
    %2012 = vmatmul.bf16.gmra.mxu0 %v391
    %v2013 = vpop.f32.mrf.mxu0
    %v2014 = vadd.f32 %v205, %v2013
    %v2015 = vpop.f32.mrf.mxu0
    %v2016 = vadd.f32 %v210, %v2015
    %2017 = vmatmul.bf16.gmra.mxu0 %v394
    %v2018 = vpop.f32.mrf.mxu0
    %v2019 = vadd.f32 %v215, %v2018
    %v2020 = vpop.f32.mrf.mxu0
    %v2021 = vadd.f32 %v220, %v2020
    %2022 = vmatmul.bf16.gmra.mxu0 %v397
    %v2023 = vpop.f32.mrf.mxu0
    %v2024 = vadd.f32 %v225, %v2023
    %v2025 = vpop.f32.mrf.mxu0
    %v2026 = vadd.f32 %v230, %v2025
    %2027 = vmatmul.bf16.gmra.mxu0 %v400
    %v2028 = vpop.f32.mrf.mxu0
    %v2029 = vadd.f32 %v235, %v2028
    %v2030 = vpop.f32.mrf.mxu0
    %v2031 = vadd.f32 %v240, %v2030
    %2032 = vmatmul.bf16.gmra.mxu0 %v403
    %v2033 = vpop.f32.mrf.mxu0
    %v2034 = vadd.f32 %v245, %v2033
    %v2035 = vpop.f32.mrf.mxu0
    %v2036 = vadd.f32 %v250, %v2035
    %2037 = vmatmul.bf16.gmra.mxu0 %v406
    %v2038 = vpop.f32.mrf.mxu0
    %v2039 = vadd.f32 %v255, %v2038
    %v2040 = vpop.f32.mrf.mxu0
    %2041 = vdwg.mxu0
    %2042 = vmatpush.bf16.msra.mxu0 0
    %2043 = vmatpush.bf16.msra.mxu0 0
    %2044 = vmatpush.bf16.msra.mxu0 0
    %2045 = vmatpush.bf16.msra.mxu0 0
    %2046 = vmatpush.bf16.msra.mxu0 0
    %2047 = vmatpush.bf16.msra.mxu0 0
    %2048 = vmatpush.bf16.msra.mxu0 0
    %2049 = vmatpush.bf16.msra.mxu0 %v497
    %2050 = vmatmul.bf16.gmra.mxu0 %v382
    %v2051 = vpop.f32.mrf.mxu0
    %v2052 = vadd.f32 %v175, %v2051
    %v2053 = vpop.f32.mrf.mxu0
    %v2054 = vadd.f32 %v180, %v2053
    %2055 = vmatmul.bf16.gmra.mxu0 %v385
    %v2056 = vpop.f32.mrf.mxu0
    %v2057 = vadd.f32 %v185, %v2056
    %v2058 = vpop.f32.mrf.mxu0
    %v2059 = vadd.f32 %v190, %v2058
    %2060 = vmatmul.bf16.gmra.mxu0 %v388
    %v2061 = vpop.f32.mrf.mxu0
    %v2062 = vadd.f32 %v195, %v2061
    %v2063 = vpop.f32.mrf.mxu0
    %v2064 = vadd.f32 %v200, %v2063
    %2065 = vmatmul.bf16.gmra.mxu0 %v391
    %v2066 = vpop.f32.mrf.mxu0
    %v2067 = vadd.f32 %v205, %v2066
    %v2068 = vpop.f32.mrf.mxu0
    %v2069 = vadd.f32 %v210, %v2068
    %2070 = vmatmul.bf16.gmra.mxu0 %v394
    %v2071 = vpop.f32.mrf.mxu0
    %v2072 = vadd.f32 %v215, %v2071
    %v2073 = vpop.f32.mrf.mxu0
    %v2074 = vadd.f32 %v220, %v2073
    %2075 = vmatmul.bf16.gmra.mxu0 %v397
    %v2076 = vpop.f32.mrf.mxu0
    %v2077 = vadd.f32 %v225, %v2076
    %v2078 = vpop.f32.mrf.mxu0
    %v2079 = vadd.f32 %v230, %v2078
    %2080 = vmatmul.bf16.gmra.mxu0 %v400
    %v2081 = vpop.f32.mrf.mxu0
    %v2082 = vadd.f32 %v235, %v2081
    %v2083 = vpop.f32.mrf.mxu0
    %v2084 = vadd.f32 %v240, %v2083
    %2085 = vmatmul.bf16.gmra.mxu0 %v403
    %v2086 = vpop.f32.mrf.mxu0
    %v2087 = vadd.f32 %v245, %v2086
    %v2088 = vpop.f32.mrf.mxu0
    %v2089 = vadd.f32 %v250, %v2088
    %2090 = vmatmul.bf16.gmra.mxu0 %v406
    %v2091 = vpop.f32.mrf.mxu0
    %v2092 = vadd.f32 %v255, %v2091
    %v2093 = vpop.f32.mrf.mxu0
    %2094 = vdwg.mxu0
    %2095 = vmatpush.bf16.msra.mxu0 0
    %2096 = vmatpush.bf16.msra.mxu0 0
    %2097 = vmatpush.bf16.msra.mxu0 0
    %2098 = vmatpush.bf16.msra.mxu0 0
    %2099 = vmatpush.bf16.msra.mxu0 0
    %2100 = vmatpush.bf16.msra.mxu0 0
    %2101 = vmatpush.bf16.msra.mxu0 0
    %2102 = vmatpush.bf16.msra.mxu0 %v500
    %2103 = vmatmul.bf16.gmra.mxu0 %v382
    %v2104 = vpop.f32.mrf.mxu0
    %v2105 = vadd.f32 %v175, %v2104
    %v2106 = vpop.f32.mrf.mxu0
    %v2107 = vadd.f32 %v180, %v2106
    %2108 = vmatmul.bf16.gmra.mxu0 %v385
    %v2109 = vpop.f32.mrf.mxu0
    %v2110 = vadd.f32 %v185, %v2109
    %v2111 = vpop.f32.mrf.mxu0
    %v2112 = vadd.f32 %v190, %v2111
    %2113 = vmatmul.bf16.gmra.mxu0 %v388
    %v2114 = vpop.f32.mrf.mxu0
    %v2115 = vadd.f32 %v195, %v2114
    %v2116 = vpop.f32.mrf.mxu0
    %v2117 = vadd.f32 %v200, %v2116
    %2118 = vmatmul.bf16.gmra.mxu0 %v391
    %v2119 = vpop.f32.mrf.mxu0
    %v2120 = vadd.f32 %v205, %v2119
    %v2121 = vpop.f32.mrf.mxu0
    %v2122 = vadd.f32 %v210, %v2121
    %2123 = vmatmul.bf16.gmra.mxu0 %v394
    %v2124 = vpop.f32.mrf.mxu0
    %v2125 = vadd.f32 %v215, %v2124
    %v2126 = vpop.f32.mrf.mxu0
    %v2127 = vadd.f32 %v220, %v2126
    %2128 = vmatmul.bf16.gmra.mxu0 %v397
    %v2129 = vpop.f32.mrf.mxu0
    %v2130 = vadd.f32 %v225, %v2129
    %v2131 = vpop.f32.mrf.mxu0
    %v2132 = vadd.f32 %v230, %v2131
    %2133 = vmatmul.bf16.gmra.mxu0 %v400
    %v2134 = vpop.f32.mrf.mxu0
    %v2135 = vadd.f32 %v235, %v2134
    %v2136 = vpop.f32.mrf.mxu0
    %v2137 = vadd.f32 %v240, %v2136
    %2138 = vmatmul.bf16.gmra.mxu0 %v403
    %v2139 = vpop.f32.mrf.mxu0
    %v2140 = vadd.f32 %v245, %v2139
    %v2141 = vpop.f32.mrf.mxu0
    %v2142 = vadd.f32 %v250, %v2141
    %2143 = vmatmul.bf16.gmra.mxu0 %v406
    %v2144 = vpop.f32.mrf.mxu0
    %v2145 = vadd.f32 %v255, %v2144
    %v2146 = vpop.f32.mrf.mxu0
    %2147 = vdwg.mxu0
    %2148 = vmatpush.bf16.msra.mxu0 0
    %2149 = vmatpush.bf16.msra.mxu0 0
    %2150 = vmatpush.bf16.msra.mxu0 0
    %2151 = vmatpush.bf16.msra.mxu0 0
    %2152 = vmatpush.bf16.msra.mxu0 0
    %2153 = vmatpush.bf16.msra.mxu0 0
    %2154 = vmatpush.bf16.msra.mxu0 0
    %2155 = vmatpush.bf16.msra.mxu0 %v503
    %2156 = vmatmul.bf16.gmra.mxu0 %v382
    %v2157 = vpop.f32.mrf.mxu0
    %v2158 = vadd.f32 %v175, %v2157
    %v2159 = vpop.f32.mrf.mxu0
    %v2160 = vadd.f32 %v180, %v2159
    %2161 = vmatmul.bf16.gmra.mxu0 %v385
    %v2162 = vpop.f32.mrf.mxu0
    %v2163 = vadd.f32 %v185, %v2162
    %v2164 = vpop.f32.mrf.mxu0
    %v2165 = vadd.f32 %v190, %v2164
    %2166 = vmatmul.bf16.gmra.mxu0 %v388
    %v2167 = vpop.f32.mrf.mxu0
    %v2168 = vadd.f32 %v195, %v2167
    %v2169 = vpop.f32.mrf.mxu0
    %v2170 = vadd.f32 %v200, %v2169
    %2171 = vmatmul.bf16.gmra.mxu0 %v391
    %v2172 = vpop.f32.mrf.mxu0
    %v2173 = vadd.f32 %v205, %v2172
    %v2174 = vpop.f32.mrf.mxu0
    %v2175 = vadd.f32 %v210, %v2174
    %2176 = vmatmul.bf16.gmra.mxu0 %v394
    %v2177 = vpop.f32.mrf.mxu0
    %v2178 = vadd.f32 %v215, %v2177
    %v2179 = vpop.f32.mrf.mxu0
    %v2180 = vadd.f32 %v220, %v2179
    %2181 = vmatmul.bf16.gmra.mxu0 %v397
    %v2182 = vpop.f32.mrf.mxu0
    %v2183 = vadd.f32 %v225, %v2182
    %v2184 = vpop.f32.mrf.mxu0
    %v2185 = vadd.f32 %v230, %v2184
    %2186 = vmatmul.bf16.gmra.mxu0 %v400
    %v2187 = vpop.f32.mrf.mxu0
    %v2188 = vadd.f32 %v235, %v2187
    %v2189 = vpop.f32.mrf.mxu0
    %v2190 = vadd.f32 %v240, %v2189
    %2191 = vmatmul.bf16.gmra.mxu0 %v403
    %v2192 = vpop.f32.mrf.mxu0
    %v2193 = vadd.f32 %v245, %v2192
    %v2194 = vpop.f32.mrf.mxu0
    %v2195 = vadd.f32 %v250, %v2194
    %2196 = vmatmul.bf16.gmra.mxu0 %v406
    %v2197 = vpop.f32.mrf.mxu0
    %v2198 = vadd.f32 %v255, %v2197
    %v2199 = vpop.f32.mrf.mxu0
    %2200 = vdwg.mxu0
    %v2201 = vld [vmem:[%s3] sm:$0xf]
    %v2202 = vld [vmem:[%s3 + $0x4] sm:$0xf]
    %v2203 = vld [vmem:[%s3 + $0x8] sm:$0xf]
    %v2204 = vld [vmem:[%s3 + $0xc] sm:$0xf]
    %v2209 = vunpack.c.l.b16 %v2201
    %v2210 = vunpack.c.l.b16 %v2202
    %v2211 = vunpack.c.l.b16 %v2203
    %v2212 = vunpack.c.l.b16 %v2204
    %v2213 = vpack.c.b16 %v2210, %v2209
    %v2214 = vpack.c.b16 %v2212, %v2211
    %v2279 = vunpack.c.l.b16 %v74
    %v2280 = vunpack.c.h.b16 %v74
    %v2281 = vunpack.c.l.b16 %v75
    %v2282 = vunpack.c.h.b16 %v75
    %v2283 = vunpack.c.l.b16 %v76
    %v2284 = vunpack.c.h.b16 %v76
    %v2285 = vunpack.c.l.b16 %v77
    %v2286 = vunpack.c.h.b16 %v77
    %v2287 = vunpack.c.l.b16 %v78
    %v2288 = vunpack.c.h.b16 %v78
    %v2289 = vunpack.c.l.b16 %v79
    %v2290 = vunpack.c.h.b16 %v79
    %v2291 = vunpack.c.l.b16 %v80
    %v2292 = vunpack.c.h.b16 %v80
    %v2293 = vunpack.c.l.b16 %v81
    %v2294 = vunpack.c.h.b16 %v81
    %v2295 = vunpack.c.l.b16 %v82
    %v2296 = vunpack.c.h.b16 %v82
    %v2297 = vunpack.c.l.b16 %v83
    %v2298 = vunpack.c.h.b16 %v83
    %v2299 = vunpack.c.l.b16 %v84
    %v2300 = vunpack.c.h.b16 %v84
    %v2301 = vunpack.c.l.b16 %v85
    %v2302 = vunpack.c.h.b16 %v85
    %v2303 = vunpack.c.l.b16 %v86
    %v2304 = vunpack.c.h.b16 %v86
    %v2305 = vunpack.c.l.b16 %v87
    %v2306 = vunpack.c.h.b16 %v87
    %v2307 = vunpack.c.l.b16 %v88
    %v2308 = vunpack.c.h.b16 %v88
    %v2309 = vunpack.c.l.b16 %v89
    %v2310 = vunpack.c.h.b16 %v89
    %v2311 = vunpack.c.l.b16 %v90
    %v2312 = vunpack.c.h.b16 %v90
    %v2313 = vunpack.c.l.b16 %v91
    %v2314 = vunpack.c.h.b16 %v91
    %v2315 = vunpack.c.l.b16 %v92
    %v2316 = vunpack.c.h.b16 %v92
    %v2317 = vunpack.c.l.b16 %v93
    %v2318 = vunpack.c.h.b16 %v93
    %v2319 = vunpack.c.l.b16 %v94
    %v2320 = vunpack.c.h.b16 %v94
    %v2321 = vunpack.c.l.b16 %v95
    %v2322 = vunpack.c.h.b16 %v95
    %v2323 = vunpack.c.l.b16 %v96
    %v2324 = vunpack.c.h.b16 %v96
    %v2325 = vunpack.c.l.b16 %v97
    %v2326 = vunpack.c.h.b16 %v97
    %v2327 = vunpack.c.l.b16 %v98
    %v2328 = vunpack.c.h.b16 %v98
    %v2329 = vunpack.c.l.b16 %v99
    %v2330 = vunpack.c.h.b16 %v99
    %v2331 = vunpack.c.l.b16 %v100
    %v2332 = vunpack.c.h.b16 %v100
    %v2333 = vunpack.c.l.b16 %v101
    %v2334 = vunpack.c.h.b16 %v101
    %v2335 = vunpack.c.l.b16 %v102
    %v2336 = vunpack.c.h.b16 %v102
    %v2337 = vunpack.c.l.b16 %v103
    %v2338 = vunpack.c.h.b16 %v103
    %v2339 = vunpack.c.l.b16 %v104
    %v2340 = vunpack.c.h.b16 %v104
    %v2341 = vunpack.c.l.b16 %v105
    %v2342 = vunpack.c.h.b16 %v105
    %v2343 = vunpack.c.l.b16 %v106
    %v2344 = vunpack.c.h.b16 %v106
    %v2345 = vunpack.c.l.b16 %v107
    %v2346 = vunpack.c.h.b16 %v107
    %v2347 = vunpack.c.l.b16 %v108
    %v2348 = vunpack.c.h.b16 %v108
    %v2349 = vunpack.c.l.b16 %v109
    %v2350 = vunpack.c.h.b16 %v109
    %v2351 = vunpack.c.l.b16 %v110
    %v2352 = vunpack.c.h.b16 %v110
    %v2353 = vunpack.c.l.b16 %v111
    %v2354 = vunpack.c.h.b16 %v111
    %v2355 = vunpack.c.l.b16 %v112
    %v2356 = vunpack.c.h.b16 %v112
    %v2357 = vunpack.c.l.b16 %v113
    %v2358 = vunpack.c.h.b16 %v113
    %v2359 = vunpack.c.l.b16 %v114
    %v2360 = vunpack.c.h.b16 %v114
    %v2361 = vunpack.c.l.b16 %v115
    %v2362 = vunpack.c.h.b16 %v115
    %v2363 = vunpack.c.l.b16 %v116
    %v2364 = vunpack.c.h.b16 %v116
    %v2365 = vunpack.c.l.b16 %v117
    %v2366 = vunpack.c.h.b16 %v117
    %v2367 = vunpack.c.l.b16 %v118
    %v2368 = vunpack.c.h.b16 %v118
    %v2369 = vunpack.c.l.b16 %v119
    %v2370 = vunpack.c.h.b16 %v119
    %v2371 = vunpack.c.l.b16 %v120
    %v2372 = vunpack.c.h.b16 %v120
    %v2373 = vunpack.c.l.b16 %v121
    %v2374 = vunpack.c.h.b16 %v121
    %v2375 = vunpack.c.l.b16 %v122
    %v2376 = vunpack.c.h.b16 %v122
    %v2377 = vunpack.c.l.b16 %v123
    %v2378 = vunpack.c.h.b16 %v123
    %v2379 = vunpack.c.l.b16 %v124
    %v2380 = vunpack.c.h.b16 %v124
    %v2381 = vunpack.c.l.b16 %v125
    %v2382 = vunpack.c.h.b16 %v125
    %v2383 = vunpack.c.l.b16 %v126
    %v2384 = vunpack.c.h.b16 %v126
    %v2385 = vunpack.c.l.b16 %v127
    %v2386 = vunpack.c.h.b16 %v127
    %v2387 = vunpack.c.l.b16 %v128
    %v2388 = vunpack.c.h.b16 %v128
    %v2389 = vunpack.c.l.b16 %v129
    %v2390 = vunpack.c.h.b16 %v129
    %v2391 = vunpack.c.l.b16 %v130
    %v2392 = vunpack.c.h.b16 %v130
    %v2393 = vunpack.c.l.b16 %v131
    %v2394 = vunpack.c.h.b16 %v131
    %v2395 = vunpack.c.l.b16 %v132
    %v2396 = vunpack.c.h.b16 %v132
    %v2397 = vunpack.c.l.b16 %v133
    %v2398 = vunpack.c.h.b16 %v133
    %v2399 = vunpack.c.l.b16 %v134
    %v2400 = vunpack.c.h.b16 %v134
    %v2401 = vunpack.c.l.b16 %v135
    %v2402 = vunpack.c.h.b16 %v135
    %v2403 = vunpack.c.l.b16 %v136
    %v2404 = vunpack.c.h.b16 %v136
    %v2405 = vunpack.c.l.b16 %v137
    %v2406 = vunpack.c.h.b16 %v137
    %v2407 = vpack.c.b16 %v2311, %v2279
    %v2408 = vpack.c.b16 %v2312, %v2280
    %v2409 = vpack.c.b16 %v2313, %v2281
    %v2410 = vpack.c.b16 %v2314, %v2282
    %v2411 = vpack.c.b16 %v2315, %v2283
    %v2412 = vpack.c.b16 %v2316, %v2284
    %v2413 = vpack.c.b16 %v2317, %v2285
    %v2414 = vpack.c.b16 %v2318, %v2286
    %v2415 = vpack.c.b16 %v2319, %v2287
    %v2416 = vpack.c.b16 %v2320, %v2288
    %v2417 = vpack.c.b16 %v2321, %v2289
    %v2418 = vpack.c.b16 %v2322, %v2290
    %v2419 = vpack.c.b16 %v2323, %v2291
    %v2420 = vpack.c.b16 %v2324, %v2292
    %v2421 = vpack.c.b16 %v2325, %v2293
    %v2422 = vpack.c.b16 %v2326, %v2294
    %v2423 = vpack.c.b16 %v2327, %v2295
    %v2424 = vpack.c.b16 %v2328, %v2296
    %v2425 = vpack.c.b16 %v2329, %v2297
    %v2426 = vpack.c.b16 %v2330, %v2298
    %v2427 = vpack.c.b16 %v2331, %v2299
    %v2428 = vpack.c.b16 %v2332, %v2300
    %v2429 = vpack.c.b16 %v2333, %v2301
    %v2430 = vpack.c.b16 %v2334, %v2302
    %v2431 = vpack.c.b16 %v2335, %v2303
    %v2432 = vpack.c.b16 %v2336, %v2304
    %v2433 = vpack.c.b16 %v2337, %v2305
    %v2434 = vpack.c.b16 %v2338, %v2306
    %v2435 = vpack.c.b16 %v2339, %v2307
    %v2436 = vpack.c.b16 %v2340, %v2308
    %v2437 = vpack.c.b16 %v2341, %v2309
    %v2438 = vpack.c.b16 %v2342, %v2310
    %v2439 = vpack.c.b16 %v2375, %v2343
    %v2440 = vpack.c.b16 %v2376, %v2344
    %v2441 = vpack.c.b16 %v2377, %v2345
    %v2442 = vpack.c.b16 %v2378, %v2346
    %v2443 = vpack.c.b16 %v2379, %v2347
    %v2444 = vpack.c.b16 %v2380, %v2348
    %v2445 = vpack.c.b16 %v2381, %v2349
    %v2446 = vpack.c.b16 %v2382, %v2350
    %v2447 = vpack.c.b16 %v2383, %v2351
    %v2448 = vpack.c.b16 %v2384, %v2352
    %v2449 = vpack.c.b16 %v2385, %v2353
    %v2450 = vpack.c.b16 %v2386, %v2354
    %v2451 = vpack.c.b16 %v2387, %v2355
    %v2452 = vpack.c.b16 %v2388, %v2356
    %v2453 = vpack.c.b16 %v2389, %v2357
    %v2454 = vpack.c.b16 %v2390, %v2358
    %v2455 = vpack.c.b16 %v2391, %v2359
    %v2456 = vpack.c.b16 %v2392, %v2360
    %v2457 = vpack.c.b16 %v2393, %v2361
    %v2458 = vpack.c.b16 %v2394, %v2362
    %v2459 = vpack.c.b16 %v2395, %v2363
    %v2460 = vpack.c.b16 %v2396, %v2364
    %v2461 = vpack.c.b16 %v2397, %v2365
    %v2462 = vpack.c.b16 %v2398, %v2366
    %v2463 = vpack.c.b16 %v2399, %v2367
    %v2464 = vpack.c.b16 %v2400, %v2368
    %v2465 = vpack.c.b16 %v2401, %v2369
    %v2466 = vpack.c.b16 %v2402, %v2370
    %v2467 = vpack.c.b16 %v2403, %v2371
    %v2468 = vpack.c.b16 %v2404, %v2372
    %v2469 = vpack.c.b16 %v2405, %v2373
    %v2470 = vpack.c.b16 %v2406, %v2374
    %vm2535 = vcmask 261120
    %v2537 = vsel %vm2535, %v2213, 0
    %v2540 = vsel %vm2535, %v2214, 0
    %2542 = vmatpush.bf16.msra.mxu0 0
    %2543 = vmatpush.bf16.msra.mxu0 0
    %2544 = vmatpush.bf16.msra.mxu0 0
    %2545 = vmatpush.bf16.msra.mxu0 0
    %2546 = vmatpush.bf16.msra.mxu0 0
    %2547 = vmatpush.bf16.msra.mxu0 0
    %2548 = vmatpush.bf16.msra.mxu0 %v2439
    %2549 = vmatpush.bf16.msra.mxu0 %v2407
    %2550 = vmatmul.bf16.gmra.mxu0 %v2537
    %v2551 = vpop.f32.mrf.mxu0
    %v2552 = vadd.f32 %v515, %v2551
    %v2553 = vpop.f32.mrf.mxu0
    %v2554 = vadd.f32 %v517, %v2553
    %2555 = vmatmul.bf16.gmra.mxu0 %v2540
    %v2556 = vpop.f32.mrf.mxu0
    %v2557 = vadd.f32 %v520, %v2556
    %v2558 = vpop.f32.mrf.mxu0
    %v2559 = vadd.f32 %v522, %v2558
    %2560 = vdwg.mxu0
    %2561 = vmatpush.bf16.msra.mxu0 0
    %2562 = vmatpush.bf16.msra.mxu0 0
    %2563 = vmatpush.bf16.msra.mxu0 0
    %2564 = vmatpush.bf16.msra.mxu0 0
    %2565 = vmatpush.bf16.msra.mxu0 0
    %2566 = vmatpush.bf16.msra.mxu0 0
    %2567 = vmatpush.bf16.msra.mxu0 %v2440
    %2568 = vmatpush.bf16.msra.mxu0 %v2408
    %2569 = vmatmul.bf16.gmra.mxu0 %v2537
    %v2570 = vpop.f32.mrf.mxu0
    %v2571 = vadd.f32 %v568, %v2570
    %v2572 = vpop.f32.mrf.mxu0
    %v2573 = vadd.f32 %v570, %v2572
    %2574 = vmatmul.bf16.gmra.mxu0 %v2540
    %v2575 = vpop.f32.mrf.mxu0
    %v2576 = vadd.f32 %v573, %v2575
    %v2577 = vpop.f32.mrf.mxu0
    %v2578 = vadd.f32 %v575, %v2577
    %2579 = vdwg.mxu0
    %2580 = vmatpush.bf16.msra.mxu0 0
    %2581 = vmatpush.bf16.msra.mxu0 0
    %2582 = vmatpush.bf16.msra.mxu0 0
    %2583 = vmatpush.bf16.msra.mxu0 0
    %2584 = vmatpush.bf16.msra.mxu0 0
    %2585 = vmatpush.bf16.msra.mxu0 0
    %2586 = vmatpush.bf16.msra.mxu0 %v2441
    %2587 = vmatpush.bf16.msra.mxu0 %v2409
    %2588 = vmatmul.bf16.gmra.mxu0 %v2537
    %v2589 = vpop.f32.mrf.mxu0
    %v2590 = vadd.f32 %v621, %v2589
    %v2591 = vpop.f32.mrf.mxu0
    %v2592 = vadd.f32 %v623, %v2591
    %2593 = vmatmul.bf16.gmra.mxu0 %v2540
    %v2594 = vpop.f32.mrf.mxu0
    %v2595 = vadd.f32 %v626, %v2594
    %v2596 = vpop.f32.mrf.mxu0
    %v2597 = vadd.f32 %v628, %v2596
    %2598 = vdwg.mxu0
    %2599 = vmatpush.bf16.msra.mxu0 0
    %2600 = vmatpush.bf16.msra.mxu0 0
    %2601 = vmatpush.bf16.msra.mxu0 0
    %2602 = vmatpush.bf16.msra.mxu0 0
    %2603 = vmatpush.bf16.msra.mxu0 0
    %2604 = vmatpush.bf16.msra.mxu0 0
    %2605 = vmatpush.bf16.msra.mxu0 %v2442
    %2606 = vmatpush.bf16.msra.mxu0 %v2410
    %2607 = vmatmul.bf16.gmra.mxu0 %v2537
    %v2608 = vpop.f32.mrf.mxu0
    %v2609 = vadd.f32 %v674, %v2608
    %v2610 = vpop.f32.mrf.mxu0
    %v2611 = vadd.f32 %v676, %v2610
    %2612 = vmatmul.bf16.gmra.mxu0 %v2540
    %v2613 = vpop.f32.mrf.mxu0
    %v2614 = vadd.f32 %v679, %v2613
    %v2615 = vpop.f32.mrf.mxu0
    %v2616 = vadd.f32 %v681, %v2615
    %2617 = vdwg.mxu0
    %2618 = vmatpush.bf16.msra.mxu0 0
    %2619 = vmatpush.bf16.msra.mxu0 0
    %2620 = vmatpush.bf16.msra.mxu0 0
    %2621 = vmatpush.bf16.msra.mxu0 0
    %2622 = vmatpush.bf16.msra.mxu0 0
    %2623 = vmatpush.bf16.msra.mxu0 0
    %2624 = vmatpush.bf16.msra.mxu0 %v2443
    %2625 = vmatpush.bf16.msra.mxu0 %v2411
    %2626 = vmatmul.bf16.gmra.mxu0 %v2537
    %v2627 = vpop.f32.mrf.mxu0
    %v2628 = vadd.f32 %v727, %v2627
    %v2629 = vpop.f32.mrf.mxu0
    %v2630 = vadd.f32 %v729, %v2629
    %2631 = vmatmul.bf16.gmra.mxu0 %v2540
    %v2632 = vpop.f32.mrf.mxu0
    %v2633 = vadd.f32 %v732, %v2632
    %v2634 = vpop.f32.mrf.mxu0
    %v2635 = vadd.f32 %v734, %v2634
    %2636 = vdwg.mxu0
    %2637 = vmatpush.bf16.msra.mxu0 0
    %2638 = vmatpush.bf16.msra.mxu0 0
    %2639 = vmatpush.bf16.msra.mxu0 0
    %2640 = vmatpush.bf16.msra.mxu0 0
    %2641 = vmatpush.bf16.msra.mxu0 0
    %2642 = vmatpush.bf16.msra.mxu0 0
    %2643 = vmatpush.bf16.msra.mxu0 %v2444
    %2644 = vmatpush.bf16.msra.mxu0 %v2412
    %2645 = vmatmul.bf16.gmra.mxu0 %v2537
    %v2646 = vpop.f32.mrf.mxu0
    %v2647 = vadd.f32 %v780, %v2646
    %v2648 = vpop.f32.mrf.mxu0
    %v2649 = vadd.f32 %v782, %v2648
    %2650 = vmatmul.bf16.gmra.mxu0 %v2540
    %v2651 = vpop.f32.mrf.mxu0
    %v2652 = vadd.f32 %v785, %v2651
    %v2653 = vpop.f32.mrf.mxu0
    %v2654 = vadd.f32 %v787, %v2653
    %2655 = vdwg.mxu0
    %2656 = vmatpush.bf16.msra.mxu0 0
    %2657 = vmatpush.bf16.msra.mxu0 0
    %2658 = vmatpush.bf16.msra.mxu0 0
    %2659 = vmatpush.bf16.msra.mxu0 0
    %2660 = vmatpush.bf16.msra.mxu0 0
    %2661 = vmatpush.bf16.msra.mxu0 0
    %2662 = vmatpush.bf16.msra.mxu0 %v2445
    %2663 = vmatpush.bf16.msra.mxu0 %v2413
    %2664 = vmatmul.bf16.gmra.mxu0 %v2537
    %v2665 = vpop.f32.mrf.mxu0
    %v2666 = vadd.f32 %v833, %v2665
    %v2667 = vpop.f32.mrf.mxu0
    %v2668 = vadd.f32 %v835, %v2667
    %2669 = vmatmul.bf16.gmra.mxu0 %v2540
    %v2670 = vpop.f32.mrf.mxu0
    %v2671 = vadd.f32 %v838, %v2670
    %v2672 = vpop.f32.mrf.mxu0
    %v2673 = vadd.f32 %v840, %v2672
    %2674 = vdwg.mxu0
    %2675 = vmatpush.bf16.msra.mxu0 0
    %2676 = vmatpush.bf16.msra.mxu0 0
    %2677 = vmatpush.bf16.msra.mxu0 0
    %2678 = vmatpush.bf16.msra.mxu0 0
    %2679 = vmatpush.bf16.msra.mxu0 0
    %2680 = vmatpush.bf16.msra.mxu0 0
    %2681 = vmatpush.bf16.msra.mxu0 %v2446
    %2682 = vmatpush.bf16.msra.mxu0 %v2414
    %2683 = vmatmul.bf16.gmra.mxu0 %v2537
    %v2684 = vpop.f32.mrf.mxu0
    %v2685 = vadd.f32 %v886, %v2684
    %v2686 = vpop.f32.mrf.mxu0
    %v2687 = vadd.f32 %v888, %v2686
    %2688 = vmatmul.bf16.gmra.mxu0 %v2540
    %v2689 = vpop.f32.mrf.mxu0
    %v2690 = vadd.f32 %v891, %v2689
    %v2691 = vpop.f32.mrf.mxu0
    %v2692 = vadd.f32 %v893, %v2691
    %2693 = vdwg.mxu0
    %2694 = vmatpush.bf16.msra.mxu0 0
    %2695 = vmatpush.bf16.msra.mxu0 0
    %2696 = vmatpush.bf16.msra.mxu0 0
    %2697 = vmatpush.bf16.msra.mxu0 0
    %2698 = vmatpush.bf16.msra.mxu0 0
    %2699 = vmatpush.bf16.msra.mxu0 0
    %2700 = vmatpush.bf16.msra.mxu0 %v2447
    %2701 = vmatpush.bf16.msra.mxu0 %v2415
    %2702 = vmatmul.bf16.gmra.mxu0 %v2537
    %v2703 = vpop.f32.mrf.mxu0
    %v2704 = vadd.f32 %v939, %v2703
    %v2705 = vpop.f32.mrf.mxu0
    %v2706 = vadd.f32 %v941, %v2705
    %2707 = vmatmul.bf16.gmra.mxu0 %v2540
    %v2708 = vpop.f32.mrf.mxu0
    %v2709 = vadd.f32 %v944, %v2708
    %v2710 = vpop.f32.mrf.mxu0
    %v2711 = vadd.f32 %v946, %v2710
    %2712 = vdwg.mxu0
    %2713 = vmatpush.bf16.msra.mxu0 0
    %2714 = vmatpush.bf16.msra.mxu0 0
    %2715 = vmatpush.bf16.msra.mxu0 0
    %2716 = vmatpush.bf16.msra.mxu0 0
    %2717 = vmatpush.bf16.msra.mxu0 0
    %2718 = vmatpush.bf16.msra.mxu0 0
    %2719 = vmatpush.bf16.msra.mxu0 %v2448
    %2720 = vmatpush.bf16.msra.mxu0 %v2416
    %2721 = vmatmul.bf16.gmra.mxu0 %v2537
    %v2722 = vpop.f32.mrf.mxu0
    %v2723 = vadd.f32 %v992, %v2722
    %v2724 = vpop.f32.mrf.mxu0
    %v2725 = vadd.f32 %v994, %v2724
    %2726 = vmatmul.bf16.gmra.mxu0 %v2540
    %v2727 = vpop.f32.mrf.mxu0
    %v2728 = vadd.f32 %v997, %v2727
    %v2729 = vpop.f32.mrf.mxu0
    %v2730 = vadd.f32 %v999, %v2729
    %2731 = vdwg.mxu0
    %2732 = vmatpush.bf16.msra.mxu0 0
    %2733 = vmatpush.bf16.msra.mxu0 0
    %2734 = vmatpush.bf16.msra.mxu0 0
    %2735 = vmatpush.bf16.msra.mxu0 0
    %2736 = vmatpush.bf16.msra.mxu0 0
    %2737 = vmatpush.bf16.msra.mxu0 0
    %2738 = vmatpush.bf16.msra.mxu0 %v2449
    %2739 = vmatpush.bf16.msra.mxu0 %v2417
    %2740 = vmatmul.bf16.gmra.mxu0 %v2537
    %v2741 = vpop.f32.mrf.mxu0
    %v2742 = vadd.f32 %v1045, %v2741
    %v2743 = vpop.f32.mrf.mxu0
    %v2744 = vadd.f32 %v1047, %v2743
    %2745 = vmatmul.bf16.gmra.mxu0 %v2540
    %v2746 = vpop.f32.mrf.mxu0
    %v2747 = vadd.f32 %v1050, %v2746
    %v2748 = vpop.f32.mrf.mxu0
    %v2749 = vadd.f32 %v1052, %v2748
    %2750 = vdwg.mxu0
    %2751 = vmatpush.bf16.msra.mxu0 0
    %2752 = vmatpush.bf16.msra.mxu0 0
    %2753 = vmatpush.bf16.msra.mxu0 0
    %2754 = vmatpush.bf16.msra.mxu0 0
    %2755 = vmatpush.bf16.msra.mxu0 0
    %2756 = vmatpush.bf16.msra.mxu0 0
    %2757 = vmatpush.bf16.msra.mxu0 %v2450
    %2758 = vmatpush.bf16.msra.mxu0 %v2418
    %2759 = vmatmul.bf16.gmra.mxu0 %v2537
    %v2760 = vpop.f32.mrf.mxu0
    %v2761 = vadd.f32 %v1098, %v2760
    %v2762 = vpop.f32.mrf.mxu0
    %v2763 = vadd.f32 %v1100, %v2762
    %2764 = vmatmul.bf16.gmra.mxu0 %v2540
    %v2765 = vpop.f32.mrf.mxu0
    %v2766 = vadd.f32 %v1103, %v2765
    %v2767 = vpop.f32.mrf.mxu0
    %v2768 = vadd.f32 %v1105, %v2767
    %2769 = vdwg.mxu0
    %2770 = vmatpush.bf16.msra.mxu0 0
    %2771 = vmatpush.bf16.msra.mxu0 0
    %2772 = vmatpush.bf16.msra.mxu0 0
    %2773 = vmatpush.bf16.msra.mxu0 0
    %2774 = vmatpush.bf16.msra.mxu0 0
    %2775 = vmatpush.bf16.msra.mxu0 0
    %2776 = vmatpush.bf16.msra.mxu0 %v2451
    %2777 = vmatpush.bf16.msra.mxu0 %v2419
    %2778 = vmatmul.bf16.gmra.mxu0 %v2537
    %v2779 = vpop.f32.mrf.mxu0
    %v2780 = vadd.f32 %v1151, %v2779
    %v2781 = vpop.f32.mrf.mxu0
    %v2782 = vadd.f32 %v1153, %v2781
    %2783 = vmatmul.bf16.gmra.mxu0 %v2540
    %v2784 = vpop.f32.mrf.mxu0
    %v2785 = vadd.f32 %v1156, %v2784
    %v2786 = vpop.f32.mrf.mxu0
    %v2787 = vadd.f32 %v1158, %v2786
    %2788 = vdwg.mxu0
    %2789 = vmatpush.bf16.msra.mxu0 0
    %2790 = vmatpush.bf16.msra.mxu0 0
    %2791 = vmatpush.bf16.msra.mxu0 0
    %2792 = vmatpush.bf16.msra.mxu0 0
    %2793 = vmatpush.bf16.msra.mxu0 0
    %2794 = vmatpush.bf16.msra.mxu0 0
    %2795 = vmatpush.bf16.msra.mxu0 %v2452
    %2796 = vmatpush.bf16.msra.mxu0 %v2420
    %2797 = vmatmul.bf16.gmra.mxu0 %v2537
    %v2798 = vpop.f32.mrf.mxu0
    %v2799 = vadd.f32 %v1204, %v2798
    %v2800 = vpop.f32.mrf.mxu0
    %v2801 = vadd.f32 %v1206, %v2800
    %2802 = vmatmul.bf16.gmra.mxu0 %v2540
    %v2803 = vpop.f32.mrf.mxu0
    %v2804 = vadd.f32 %v1209, %v2803
    %v2805 = vpop.f32.mrf.mxu0
    %v2806 = vadd.f32 %v1211, %v2805
    %2807 = vdwg.mxu0
    %2808 = vmatpush.bf16.msra.mxu0 0
    %2809 = vmatpush.bf16.msra.mxu0 0
    %2810 = vmatpush.bf16.msra.mxu0 0
    %2811 = vmatpush.bf16.msra.mxu0 0
    %2812 = vmatpush.bf16.msra.mxu0 0
    %2813 = vmatpush.bf16.msra.mxu0 0
    %2814 = vmatpush.bf16.msra.mxu0 %v2453
    %2815 = vmatpush.bf16.msra.mxu0 %v2421
    %2816 = vmatmul.bf16.gmra.mxu0 %v2537
    %v2817 = vpop.f32.mrf.mxu0
    %v2818 = vadd.f32 %v1257, %v2817
    %v2819 = vpop.f32.mrf.mxu0
    %v2820 = vadd.f32 %v1259, %v2819
    %2821 = vmatmul.bf16.gmra.mxu0 %v2540
    %v2822 = vpop.f32.mrf.mxu0
    %v2823 = vadd.f32 %v1262, %v2822
    %v2824 = vpop.f32.mrf.mxu0
    %v2825 = vadd.f32 %v1264, %v2824
    %2826 = vdwg.mxu0
    %2827 = vmatpush.bf16.msra.mxu0 0
    %2828 = vmatpush.bf16.msra.mxu0 0
    %2829 = vmatpush.bf16.msra.mxu0 0
    %2830 = vmatpush.bf16.msra.mxu0 0
    %2831 = vmatpush.bf16.msra.mxu0 0
    %2832 = vmatpush.bf16.msra.mxu0 0
    %2833 = vmatpush.bf16.msra.mxu0 %v2454
    %2834 = vmatpush.bf16.msra.mxu0 %v2422
    %2835 = vmatmul.bf16.gmra.mxu0 %v2537
    %v2836 = vpop.f32.mrf.mxu0
    %v2837 = vadd.f32 %v1310, %v2836
    %v2838 = vpop.f32.mrf.mxu0
    %v2839 = vadd.f32 %v1312, %v2838
    %2840 = vmatmul.bf16.gmra.mxu0 %v2540
    %v2841 = vpop.f32.mrf.mxu0
    %v2842 = vadd.f32 %v1315, %v2841
    %v2843 = vpop.f32.mrf.mxu0
    %v2844 = vadd.f32 %v1317, %v2843
    %2845 = vdwg.mxu0
    %2846 = vmatpush.bf16.msra.mxu0 0
    %2847 = vmatpush.bf16.msra.mxu0 0
    %2848 = vmatpush.bf16.msra.mxu0 0
    %2849 = vmatpush.bf16.msra.mxu0 0
    %2850 = vmatpush.bf16.msra.mxu0 0
    %2851 = vmatpush.bf16.msra.mxu0 0
    %2852 = vmatpush.bf16.msra.mxu0 %v2455
    %2853 = vmatpush.bf16.msra.mxu0 %v2423
    %2854 = vmatmul.bf16.gmra.mxu0 %v2537
    %v2855 = vpop.f32.mrf.mxu0
    %v2856 = vadd.f32 %v1363, %v2855
    %v2857 = vpop.f32.mrf.mxu0
    %v2858 = vadd.f32 %v1365, %v2857
    %2859 = vmatmul.bf16.gmra.mxu0 %v2540
    %v2860 = vpop.f32.mrf.mxu0
    %v2861 = vadd.f32 %v1368, %v2860
    %v2862 = vpop.f32.mrf.mxu0
    %v2863 = vadd.f32 %v1370, %v2862
    %2864 = vdwg.mxu0
    %2865 = vmatpush.bf16.msra.mxu0 0
    %2866 = vmatpush.bf16.msra.mxu0 0
    %2867 = vmatpush.bf16.msra.mxu0 0
    %2868 = vmatpush.bf16.msra.mxu0 0
    %2869 = vmatpush.bf16.msra.mxu0 0
    %2870 = vmatpush.bf16.msra.mxu0 0
    %2871 = vmatpush.bf16.msra.mxu0 %v2456
    %2872 = vmatpush.bf16.msra.mxu0 %v2424
    %2873 = vmatmul.bf16.gmra.mxu0 %v2537
    %v2874 = vpop.f32.mrf.mxu0
    %v2875 = vadd.f32 %v1416, %v2874
    %v2876 = vpop.f32.mrf.mxu0
    %v2877 = vadd.f32 %v1418, %v2876
    %2878 = vmatmul.bf16.gmra.mxu0 %v2540
    %v2879 = vpop.f32.mrf.mxu0
    %v2880 = vadd.f32 %v1421, %v2879
    %v2881 = vpop.f32.mrf.mxu0
    %v2882 = vadd.f32 %v1423, %v2881
    %2883 = vdwg.mxu0
    %2884 = vmatpush.bf16.msra.mxu0 0
    %2885 = vmatpush.bf16.msra.mxu0 0
    %2886 = vmatpush.bf16.msra.mxu0 0
    %2887 = vmatpush.bf16.msra.mxu0 0
    %2888 = vmatpush.bf16.msra.mxu0 0
    %2889 = vmatpush.bf16.msra.mxu0 0
    %2890 = vmatpush.bf16.msra.mxu0 %v2457
    %2891 = vmatpush.bf16.msra.mxu0 %v2425
    %2892 = vmatmul.bf16.gmra.mxu0 %v2537
    %v2893 = vpop.f32.mrf.mxu0
    %v2894 = vadd.f32 %v1469, %v2893
    %v2895 = vpop.f32.mrf.mxu0
    %v2896 = vadd.f32 %v1471, %v2895
    %2897 = vmatmul.bf16.gmra.mxu0 %v2540
    %v2898 = vpop.f32.mrf.mxu0
    %v2899 = vadd.f32 %v1474, %v2898
    %v2900 = vpop.f32.mrf.mxu0
    %v2901 = vadd.f32 %v1476, %v2900
    %2902 = vdwg.mxu0
    %2903 = vmatpush.bf16.msra.mxu0 0
    %2904 = vmatpush.bf16.msra.mxu0 0
    %2905 = vmatpush.bf16.msra.mxu0 0
    %2906 = vmatpush.bf16.msra.mxu0 0
    %2907 = vmatpush.bf16.msra.mxu0 0
    %2908 = vmatpush.bf16.msra.mxu0 0
    %2909 = vmatpush.bf16.msra.mxu0 %v2458
    %2910 = vmatpush.bf16.msra.mxu0 %v2426
    %2911 = vmatmul.bf16.gmra.mxu0 %v2537
    %v2912 = vpop.f32.mrf.mxu0
    %v2913 = vadd.f32 %v1522, %v2912
    %v2914 = vpop.f32.mrf.mxu0
    %v2915 = vadd.f32 %v1524, %v2914
    %2916 = vmatmul.bf16.gmra.mxu0 %v2540
    %v2917 = vpop.f32.mrf.mxu0
    %v2918 = vadd.f32 %v1527, %v2917
    %v2919 = vpop.f32.mrf.mxu0
    %v2920 = vadd.f32 %v1529, %v2919
    %2921 = vdwg.mxu0
    %2922 = vmatpush.bf16.msra.mxu0 0
    %2923 = vmatpush.bf16.msra.mxu0 0
    %2924 = vmatpush.bf16.msra.mxu0 0
    %2925 = vmatpush.bf16.msra.mxu0 0
    %2926 = vmatpush.bf16.msra.mxu0 0
    %2927 = vmatpush.bf16.msra.mxu0 0
    %2928 = vmatpush.bf16.msra.mxu0 %v2459
    %2929 = vmatpush.bf16.msra.mxu0 %v2427
    %2930 = vmatmul.bf16.gmra.mxu0 %v2537
    %v2931 = vpop.f32.mrf.mxu0
    %v2932 = vadd.f32 %v1575, %v2931
    %v2933 = vpop.f32.mrf.mxu0
    %v2934 = vadd.f32 %v1577, %v2933
    %2935 = vmatmul.bf16.gmra.mxu0 %v2540
    %v2936 = vpop.f32.mrf.mxu0
    %v2937 = vadd.f32 %v1580, %v2936
    %v2938 = vpop.f32.mrf.mxu0
    %v2939 = vadd.f32 %v1582, %v2938
    %2940 = vdwg.mxu0
    %2941 = vmatpush.bf16.msra.mxu0 0
    %2942 = vmatpush.bf16.msra.mxu0 0
    %2943 = vmatpush.bf16.msra.mxu0 0
    %2944 = vmatpush.bf16.msra.mxu0 0
    %2945 = vmatpush.bf16.msra.mxu0 0
    %2946 = vmatpush.bf16.msra.mxu0 0
    %2947 = vmatpush.bf16.msra.mxu0 %v2460
    %2948 = vmatpush.bf16.msra.mxu0 %v2428
    %2949 = vmatmul.bf16.gmra.mxu0 %v2537
    %v2950 = vpop.f32.mrf.mxu0
    %v2951 = vadd.f32 %v1628, %v2950
    %v2952 = vpop.f32.mrf.mxu0
    %v2953 = vadd.f32 %v1630, %v2952
    %2954 = vmatmul.bf16.gmra.mxu0 %v2540
    %v2955 = vpop.f32.mrf.mxu0
    %v2956 = vadd.f32 %v1633, %v2955
    %v2957 = vpop.f32.mrf.mxu0
    %v2958 = vadd.f32 %v1635, %v2957
    %2959 = vdwg.mxu0
    %2960 = vmatpush.bf16.msra.mxu0 0
    %2961 = vmatpush.bf16.msra.mxu0 0
    %2962 = vmatpush.bf16.msra.mxu0 0
    %2963 = vmatpush.bf16.msra.mxu0 0
    %2964 = vmatpush.bf16.msra.mxu0 0
    %2965 = vmatpush.bf16.msra.mxu0 0
    %2966 = vmatpush.bf16.msra.mxu0 %v2461
    %2967 = vmatpush.bf16.msra.mxu0 %v2429
    %2968 = vmatmul.bf16.gmra.mxu0 %v2537
    %v2969 = vpop.f32.mrf.mxu0
    %v2970 = vadd.f32 %v1681, %v2969
    %v2971 = vpop.f32.mrf.mxu0
    %v2972 = vadd.f32 %v1683, %v2971
    %2973 = vmatmul.bf16.gmra.mxu0 %v2540
    %v2974 = vpop.f32.mrf.mxu0
    %v2975 = vadd.f32 %v1686, %v2974
    %v2976 = vpop.f32.mrf.mxu0
    %v2977 = vadd.f32 %v1688, %v2976
    %2978 = vdwg.mxu0
    %2979 = vmatpush.bf16.msra.mxu0 0
    %2980 = vmatpush.bf16.msra.mxu0 0
    %2981 = vmatpush.bf16.msra.mxu0 0
    %2982 = vmatpush.bf16.msra.mxu0 0
    %2983 = vmatpush.bf16.msra.mxu0 0
    %2984 = vmatpush.bf16.msra.mxu0 0
    %2985 = vmatpush.bf16.msra.mxu0 %v2462
    %2986 = vmatpush.bf16.msra.mxu0 %v2430
    %2987 = vmatmul.bf16.gmra.mxu0 %v2537
    %v2988 = vpop.f32.mrf.mxu0
    %v2989 = vadd.f32 %v1734, %v2988
    %v2990 = vpop.f32.mrf.mxu0
    %v2991 = vadd.f32 %v1736, %v2990
    %2992 = vmatmul.bf16.gmra.mxu0 %v2540
    %v2993 = vpop.f32.mrf.mxu0
    %v2994 = vadd.f32 %v1739, %v2993
    %v2995 = vpop.f32.mrf.mxu0
    %v2996 = vadd.f32 %v1741, %v2995
    %2997 = vdwg.mxu0
    %2998 = vmatpush.bf16.msra.mxu0 0
    %2999 = vmatpush.bf16.msra.mxu0 0
    %3000 = vmatpush.bf16.msra.mxu0 0
    %3001 = vmatpush.bf16.msra.mxu0 0
    %3002 = vmatpush.bf16.msra.mxu0 0
    %3003 = vmatpush.bf16.msra.mxu0 0
    %3004 = vmatpush.bf16.msra.mxu0 %v2463
    %3005 = vmatpush.bf16.msra.mxu0 %v2431
    %3006 = vmatmul.bf16.gmra.mxu0 %v2537
    %v3007 = vpop.f32.mrf.mxu0
    %v3008 = vadd.f32 %v1787, %v3007
    %v3009 = vpop.f32.mrf.mxu0
    %v3010 = vadd.f32 %v1789, %v3009
    %3011 = vmatmul.bf16.gmra.mxu0 %v2540
    %v3012 = vpop.f32.mrf.mxu0
    %v3013 = vadd.f32 %v1792, %v3012
    %v3014 = vpop.f32.mrf.mxu0
    %v3015 = vadd.f32 %v1794, %v3014
    %3016 = vdwg.mxu0
    %3017 = vmatpush.bf16.msra.mxu0 0
    %3018 = vmatpush.bf16.msra.mxu0 0
    %3019 = vmatpush.bf16.msra.mxu0 0
    %3020 = vmatpush.bf16.msra.mxu0 0
    %3021 = vmatpush.bf16.msra.mxu0 0
    %3022 = vmatpush.bf16.msra.mxu0 0
    %3023 = vmatpush.bf16.msra.mxu0 %v2464
    %3024 = vmatpush.bf16.msra.mxu0 %v2432
    %3025 = vmatmul.bf16.gmra.mxu0 %v2537
    %v3026 = vpop.f32.mrf.mxu0
    %v3027 = vadd.f32 %v1840, %v3026
    %v3028 = vpop.f32.mrf.mxu0
    %v3029 = vadd.f32 %v1842, %v3028
    %3030 = vmatmul.bf16.gmra.mxu0 %v2540
    %v3031 = vpop.f32.mrf.mxu0
    %v3032 = vadd.f32 %v1845, %v3031
    %v3033 = vpop.f32.mrf.mxu0
    %v3034 = vadd.f32 %v1847, %v3033
    %3035 = vdwg.mxu0
    %3036 = vmatpush.bf16.msra.mxu0 0
    %3037 = vmatpush.bf16.msra.mxu0 0
    %3038 = vmatpush.bf16.msra.mxu0 0
    %3039 = vmatpush.bf16.msra.mxu0 0
    %3040 = vmatpush.bf16.msra.mxu0 0
    %3041 = vmatpush.bf16.msra.mxu0 0
    %3042 = vmatpush.bf16.msra.mxu0 %v2465
    %3043 = vmatpush.bf16.msra.mxu0 %v2433
    %3044 = vmatmul.bf16.gmra.mxu0 %v2537
    %v3045 = vpop.f32.mrf.mxu0
    %v3046 = vadd.f32 %v1893, %v3045
    %v3047 = vpop.f32.mrf.mxu0
    %v3048 = vadd.f32 %v1895, %v3047
    %3049 = vmatmul.bf16.gmra.mxu0 %v2540
    %v3050 = vpop.f32.mrf.mxu0
    %v3051 = vadd.f32 %v1898, %v3050
    %v3052 = vpop.f32.mrf.mxu0
    %v3053 = vadd.f32 %v1900, %v3052
    %3054 = vdwg.mxu0
    %3055 = vmatpush.bf16.msra.mxu0 0
    %3056 = vmatpush.bf16.msra.mxu0 0
    %3057 = vmatpush.bf16.msra.mxu0 0
    %3058 = vmatpush.bf16.msra.mxu0 0
    %3059 = vmatpush.bf16.msra.mxu0 0
    %3060 = vmatpush.bf16.msra.mxu0 0
    %3061 = vmatpush.bf16.msra.mxu0 %v2466
    %3062 = vmatpush.bf16.msra.mxu0 %v2434
    %3063 = vmatmul.bf16.gmra.mxu0 %v2537
    %v3064 = vpop.f32.mrf.mxu0
    %v3065 = vadd.f32 %v1946, %v3064
    %v3066 = vpop.f32.mrf.mxu0
    %v3067 = vadd.f32 %v1948, %v3066
    %3068 = vmatmul.bf16.gmra.mxu0 %v2540
    %v3069 = vpop.f32.mrf.mxu0
    %v3070 = vadd.f32 %v1951, %v3069
    %v3071 = vpop.f32.mrf.mxu0
    %v3072 = vadd.f32 %v1953, %v3071
    %3073 = vdwg.mxu0
    %3074 = vmatpush.bf16.msra.mxu0 0
    %3075 = vmatpush.bf16.msra.mxu0 0
    %3076 = vmatpush.bf16.msra.mxu0 0
    %3077 = vmatpush.bf16.msra.mxu0 0
    %3078 = vmatpush.bf16.msra.mxu0 0
    %3079 = vmatpush.bf16.msra.mxu0 0
    %3080 = vmatpush.bf16.msra.mxu0 %v2467
    %3081 = vmatpush.bf16.msra.mxu0 %v2435
    %3082 = vmatmul.bf16.gmra.mxu0 %v2537
    %v3083 = vpop.f32.mrf.mxu0
    %v3084 = vadd.f32 %v1999, %v3083
    %v3085 = vpop.f32.mrf.mxu0
    %v3086 = vadd.f32 %v2001, %v3085
    %3087 = vmatmul.bf16.gmra.mxu0 %v2540
    %v3088 = vpop.f32.mrf.mxu0
    %v3089 = vadd.f32 %v2004, %v3088
    %v3090 = vpop.f32.mrf.mxu0
    %v3091 = vadd.f32 %v2006, %v3090
    %3092 = vdwg.mxu0
    %3093 = vmatpush.bf16.msra.mxu0 0
    %3094 = vmatpush.bf16.msra.mxu0 0
    %3095 = vmatpush.bf16.msra.mxu0 0
    %3096 = vmatpush.bf16.msra.mxu0 0
    %3097 = vmatpush.bf16.msra.mxu0 0
    %3098 = vmatpush.bf16.msra.mxu0 0
    %3099 = vmatpush.bf16.msra.mxu0 %v2468
    %3100 = vmatpush.bf16.msra.mxu0 %v2436
    %3101 = vmatmul.bf16.gmra.mxu0 %v2537
    %v3102 = vpop.f32.mrf.mxu0
    %v3103 = vadd.f32 %v2052, %v3102
    %v3104 = vpop.f32.mrf.mxu0
    %v3105 = vadd.f32 %v2054, %v3104
    %3106 = vmatmul.bf16.gmra.mxu0 %v2540
    %v3107 = vpop.f32.mrf.mxu0
    %v3108 = vadd.f32 %v2057, %v3107
    %v3109 = vpop.f32.mrf.mxu0
    %v3110 = vadd.f32 %v2059, %v3109
    %3111 = vdwg.mxu0
    %3112 = vmatpush.bf16.msra.mxu0 0
    %3113 = vmatpush.bf16.msra.mxu0 0
    %3114 = vmatpush.bf16.msra.mxu0 0
    %3115 = vmatpush.bf16.msra.mxu0 0
    %3116 = vmatpush.bf16.msra.mxu0 0
    %3117 = vmatpush.bf16.msra.mxu0 0
    %3118 = vmatpush.bf16.msra.mxu0 %v2469
    %3119 = vmatpush.bf16.msra.mxu0 %v2437
    %3120 = vmatmul.bf16.gmra.mxu0 %v2537
    %v3121 = vpop.f32.mrf.mxu0
    %v3122 = vadd.f32 %v2105, %v3121
    %v3123 = vpop.f32.mrf.mxu0
    %v3124 = vadd.f32 %v2107, %v3123
    %3125 = vmatmul.bf16.gmra.mxu0 %v2540
    %v3126 = vpop.f32.mrf.mxu0
    %v3127 = vadd.f32 %v2110, %v3126
    %v3128 = vpop.f32.mrf.mxu0
    %v3129 = vadd.f32 %v2112, %v3128
    %3130 = vdwg.mxu0
    %3131 = vmatpush.bf16.msra.mxu0 0
    %3132 = vmatpush.bf16.msra.mxu0 0
    %3133 = vmatpush.bf16.msra.mxu0 0
    %3134 = vmatpush.bf16.msra.mxu0 0
    %3135 = vmatpush.bf16.msra.mxu0 0
    %3136 = vmatpush.bf16.msra.mxu0 0
    %3137 = vmatpush.bf16.msra.mxu0 %v2470
    %3138 = vmatpush.bf16.msra.mxu0 %v2438
    %3139 = vmatmul.bf16.gmra.mxu0 %v2537
    %v3140 = vpop.f32.mrf.mxu0
    %v3141 = vadd.f32 %v2158, %v3140
    %v3142 = vpop.f32.mrf.mxu0
    %v3143 = vadd.f32 %v2160, %v3142
    %3144 = vmatmul.bf16.gmra.mxu0 %v2540
    %v3145 = vpop.f32.mrf.mxu0
    %v3146 = vadd.f32 %v2163, %v3145
    %v3147 = vpop.f32.mrf.mxu0
    %v3148 = vadd.f32 %v2165, %v3147
    %3149 = vdwg.mxu0
    %v3150 = vmul.f32 %v2552, 0.01
    %v3151 = vmul.f32 %v2571, 0.01
    %v3152 = vmul.f32 %v2590, 0.01
    %v3153 = vmul.f32 %v2609, 0.01
    %v3154 = vmul.f32 %v2628, 0.01
    %v3155 = vmul.f32 %v2647, 0.01
    %v3156 = vmul.f32 %v2666, 0.01
    %v3157 = vmul.f32 %v2685, 0.01
    %v3158 = vmul.f32 %v2704, 0.01
    %v3159 = vmul.f32 %v2723, 0.01
    %v3160 = vmul.f32 %v2742, 0.01
    %v3161 = vmul.f32 %v2761, 0.01
    %v3162 = vmul.f32 %v2780, 0.01
    %v3163 = vmul.f32 %v2799, 0.01
    %v3164 = vmul.f32 %v2818, 0.01
    %v3165 = vmul.f32 %v2837, 0.01
    %v3166 = vmul.f32 %v2856, 0.01
    %v3167 = vmul.f32 %v2875, 0.01
    %v3168 = vmul.f32 %v2894, 0.01
    %v3169 = vmul.f32 %v2913, 0.01
    %v3170 = vmul.f32 %v2932, 0.01
    %v3171 = vmul.f32 %v2951, 0.01
    %v3172 = vmul.f32 %v2970, 0.01
    %v3173 = vmul.f32 %v2989, 0.01
    %v3174 = vmul.f32 %v3008, 0.01
    %v3175 = vmul.f32 %v3027, 0.01
    %v3176 = vmul.f32 %v3046, 0.01
    %v3177 = vmul.f32 %v3065, 0.01
    %v3178 = vmul.f32 %v3084, 0.01
    %v3179 = vmul.f32 %v3103, 0.01
    %v3180 = vmul.f32 %v3122, 0.01
    %v3181 = vmul.f32 %v3141, 0.01
    %v3182 = vmul.f32 %v2554, 0.01
    %v3183 = vmul.f32 %v2573, 0.01
    %v3184 = vmul.f32 %v2592, 0.01
    %v3185 = vmul.f32 %v2611, 0.01
    %v3186 = vmul.f32 %v2630, 0.01
    %v3187 = vmul.f32 %v2649, 0.01
    %v3188 = vmul.f32 %v2668, 0.01
    %v3189 = vmul.f32 %v2687, 0.01
    %v3190 = vmul.f32 %v2706, 0.01
    %v3191 = vmul.f32 %v2725, 0.01
    %v3192 = vmul.f32 %v2744, 0.01
    %v3193 = vmul.f32 %v2763, 0.01
    %v3194 = vmul.f32 %v2782, 0.01
    %v3195 = vmul.f32 %v2801, 0.01
    %v3196 = vmul.f32 %v2820, 0.01
    %v3197 = vmul.f32 %v2839, 0.01
    %v3198 = vmul.f32 %v2858, 0.01
    %v3199 = vmul.f32 %v2877, 0.01
    %v3200 = vmul.f32 %v2896, 0.01
    %v3201 = vmul.f32 %v2915, 0.01
    %v3202 = vmul.f32 %v2934, 0.01
    %v3203 = vmul.f32 %v2953, 0.01
    %v3204 = vmul.f32 %v2972, 0.01
    %v3205 = vmul.f32 %v2991, 0.01
    %v3206 = vmul.f32 %v3010, 0.01
    %v3207 = vmul.f32 %v3029, 0.01
    %v3208 = vmul.f32 %v3048, 0.01
    %v3209 = vmul.f32 %v3067, 0.01
    %v3210 = vmul.f32 %v3086, 0.01
    %v3211 = vmul.f32 %v3105, 0.01
    %v3212 = vmul.f32 %v3124, 0.01
    %v3213 = vmul.f32 %v3143, 0.01
    %v3214 = vmul.f32 %v2557, 0.01
    %v3215 = vmul.f32 %v2576, 0.01
    %v3216 = vmul.f32 %v2595, 0.01
    %v3217 = vmul.f32 %v2614, 0.01
    %v3218 = vmul.f32 %v2633, 0.01
    %v3219 = vmul.f32 %v2652, 0.01
    %v3220 = vmul.f32 %v2671, 0.01
    %v3221 = vmul.f32 %v2690, 0.01
    %v3222 = vmul.f32 %v2709, 0.01
    %v3223 = vmul.f32 %v2728, 0.01
    %v3224 = vmul.f32 %v2747, 0.01
    %v3225 = vmul.f32 %v2766, 0.01
    %v3226 = vmul.f32 %v2785, 0.01
    %v3227 = vmul.f32 %v2804, 0.01
    %v3228 = vmul.f32 %v2823, 0.01
    %v3229 = vmul.f32 %v2842, 0.01
    %v3230 = vmul.f32 %v2861, 0.01
    %v3231 = vmul.f32 %v2880, 0.01
    %v3232 = vmul.f32 %v2899, 0.01
    %v3233 = vmul.f32 %v2918, 0.01
    %v3234 = vmul.f32 %v2937, 0.01
    %v3235 = vmul.f32 %v2956, 0.01
    %v3236 = vmul.f32 %v2975, 0.01
    %v3237 = vmul.f32 %v2994, 0.01
    %v3238 = vmul.f32 %v3013, 0.01
    %v3239 = vmul.f32 %v3032, 0.01
    %v3240 = vmul.f32 %v3051, 0.01
    %v3241 = vmul.f32 %v3070, 0.01
    %v3242 = vmul.f32 %v3089, 0.01
    %v3243 = vmul.f32 %v3108, 0.01
    %v3244 = vmul.f32 %v3127, 0.01
    %v3245 = vmul.f32 %v3146, 0.01
    %v3246 = vmul.f32 %v2559, 0.01
    %v3247 = vmul.f32 %v2578, 0.01
    %v3248 = vmul.f32 %v2597, 0.01
    %v3249 = vmul.f32 %v2616, 0.01
    %v3250 = vmul.f32 %v2635, 0.01
    %v3251 = vmul.f32 %v2654, 0.01
    %v3252 = vmul.f32 %v2673, 0.01
    %v3253 = vmul.f32 %v2692, 0.01
    %v3254 = vmul.f32 %v2711, 0.01
    %v3255 = vmul.f32 %v2730, 0.01
    %v3256 = vmul.f32 %v2749, 0.01
    %v3257 = vmul.f32 %v2768, 0.01
    %v3258 = vmul.f32 %v2787, 0.01
    %v3259 = vmul.f32 %v2806, 0.01
    %v3260 = vmul.f32 %v2825, 0.01
    %v3261 = vmul.f32 %v2844, 0.01
    %v3262 = vmul.f32 %v2863, 0.01
    %v3263 = vmul.f32 %v2882, 0.01
    %v3264 = vmul.f32 %v2901, 0.01
    %v3265 = vmul.f32 %v2920, 0.01
    %v3266 = vmul.f32 %v2939, 0.01
    %v3267 = vmul.f32 %v2958, 0.01
    %v3268 = vmul.f32 %v2977, 0.01
    %v3269 = vmul.f32 %v2996, 0.01
    %v3270 = vmul.f32 %v3015, 0.01
    %v3271 = vmul.f32 %v3034, 0.01
    %v3272 = vmul.f32 %v3053, 0.01
    %v3273 = vmul.f32 %v3072, 0.01
    %v3274 = vmul.f32 %v3091, 0.01
    %v3275 = vmul.f32 %v3110, 0.01
    %v3276 = vmul.f32 %v3129, 0.01
    %v3277 = vmul.f32 %v3148, 0.01
    %v3278 = vmax.f32 %v2552, %v3150
    %v3279 = vmax.f32 %v2571, %v3151
    %v3280 = vmax.f32 %v2590, %v3152
    %v3281 = vmax.f32 %v2609, %v3153
    %v3282 = vmax.f32 %v2628, %v3154
    %v3283 = vmax.f32 %v2647, %v3155
    %v3284 = vmax.f32 %v2666, %v3156
    %v3285 = vmax.f32 %v2685, %v3157
    %v3286 = vmax.f32 %v2704, %v3158
    %v3287 = vmax.f32 %v2723, %v3159
    %v3288 = vmax.f32 %v2742, %v3160
    %v3289 = vmax.f32 %v2761, %v3161
    %v3290 = vmax.f32 %v2780, %v3162
    %v3291 = vmax.f32 %v2799, %v3163
    %v3292 = vmax.f32 %v2818, %v3164
    %v3293 = vmax.f32 %v2837, %v3165
    %v3294 = vmax.f32 %v2856, %v3166
    %v3295 = vmax.f32 %v2875, %v3167
    %v3296 = vmax.f32 %v2894, %v3168
    %v3297 = vmax.f32 %v2913, %v3169
    %v3298 = vmax.f32 %v2932, %v3170
    %v3299 = vmax.f32 %v2951, %v3171
    %v3300 = vmax.f32 %v2970, %v3172
    %v3301 = vmax.f32 %v2989, %v3173
    %v3302 = vmax.f32 %v3008, %v3174
    %v3303 = vmax.f32 %v3027, %v3175
    %v3304 = vmax.f32 %v3046, %v3176
    %v3305 = vmax.f32 %v3065, %v3177
    %v3306 = vmax.f32 %v3084, %v3178
    %v3307 = vmax.f32 %v3103, %v3179
    %v3308 = vmax.f32 %v3122, %v3180
    %v3309 = vmax.f32 %v3141, %v3181
    %v3310 = vmax.f32 %v2554, %v3182
    %v3311 = vmax.f32 %v2573, %v3183
    %v3312 = vmax.f32 %v2592, %v3184
    %v3313 = vmax.f32 %v2611, %v3185
    %v3314 = vmax.f32 %v2630, %v3186
    %v3315 = vmax.f32 %v2649, %v3187
    %v3316 = vmax.f32 %v2668, %v3188
    %v3317 = vmax.f32 %v2687, %v3189
    %v3318 = vmax.f32 %v2706, %v3190
    %v3319 = vmax.f32 %v2725, %v3191
    %v3320 = vmax.f32 %v2744, %v3192
    %v3321 = vmax.f32 %v2763, %v3193
    %v3322 = vmax.f32 %v2782, %v3194
    %v3323 = vmax.f32 %v2801, %v3195
    %v3324 = vmax.f32 %v2820, %v3196
    %v3325 = vmax.f32 %v2839, %v3197
    %v3326 = vmax.f32 %v2858, %v3198
    %v3327 = vmax.f32 %v2877, %v3199
    %v3328 = vmax.f32 %v2896, %v3200
    %v3329 = vmax.f32 %v2915, %v3201
    %v3330 = vmax.f32 %v2934, %v3202
    %v3331 = vmax.f32 %v2953, %v3203
    %v3332 = vmax.f32 %v2972, %v3204
    %v3333 = vmax.f32 %v2991, %v3205
    %v3334 = vmax.f32 %v3010, %v3206
    %v3335 = vmax.f32 %v3029, %v3207
    %v3336 = vmax.f32 %v3048, %v3208
    %v3337 = vmax.f32 %v3067, %v3209
    %v3338 = vmax.f32 %v3086, %v3210
    %v3339 = vmax.f32 %v3105, %v3211
    %v3340 = vmax.f32 %v3124, %v3212
    %v3341 = vmax.f32 %v3143, %v3213
    %v3342 = vmax.f32 %v2557, %v3214
    %v3343 = vmax.f32 %v2576, %v3215
    %v3344 = vmax.f32 %v2595, %v3216
    %v3345 = vmax.f32 %v2614, %v3217
    %v3346 = vmax.f32 %v2633, %v3218
    %v3347 = vmax.f32 %v2652, %v3219
    %v3348 = vmax.f32 %v2671, %v3220
    %v3349 = vmax.f32 %v2690, %v3221
    %v3350 = vmax.f32 %v2709, %v3222
    %v3351 = vmax.f32 %v2728, %v3223
    %v3352 = vmax.f32 %v2747, %v3224
    %v3353 = vmax.f32 %v2766, %v3225
    %v3354 = vmax.f32 %v2785, %v3226
    %v3355 = vmax.f32 %v2804, %v3227
    %v3356 = vmax.f32 %v2823, %v3228
    %v3357 = vmax.f32 %v2842, %v3229
    %v3358 = vmax.f32 %v2861, %v3230
    %v3359 = vmax.f32 %v2880, %v3231
    %v3360 = vmax.f32 %v2899, %v3232
    %v3361 = vmax.f32 %v2918, %v3233
    %v3362 = vmax.f32 %v2937, %v3234
    %v3363 = vmax.f32 %v2956, %v3235
    %v3364 = vmax.f32 %v2975, %v3236
    %v3365 = vmax.f32 %v2994, %v3237
    %v3366 = vmax.f32 %v3013, %v3238
    %v3367 = vmax.f32 %v3032, %v3239
    %v3368 = vmax.f32 %v3051, %v3240
    %v3369 = vmax.f32 %v3070, %v3241
    %v3370 = vmax.f32 %v3089, %v3242
    %v3371 = vmax.f32 %v3108, %v3243
    %v3372 = vmax.f32 %v3127, %v3244
    %v3373 = vmax.f32 %v3146, %v3245
    %v3374 = vmax.f32 %v2559, %v3246
    %v3375 = vmax.f32 %v2578, %v3247
    %v3376 = vmax.f32 %v2597, %v3248
    %v3377 = vmax.f32 %v2616, %v3249
    %v3378 = vmax.f32 %v2635, %v3250
    %v3379 = vmax.f32 %v2654, %v3251
    %v3380 = vmax.f32 %v2673, %v3252
    %v3381 = vmax.f32 %v2692, %v3253
    %v3382 = vmax.f32 %v2711, %v3254
    %v3383 = vmax.f32 %v2730, %v3255
    %v3384 = vmax.f32 %v2749, %v3256
    %v3385 = vmax.f32 %v2768, %v3257
    %v3386 = vmax.f32 %v2787, %v3258
    %v3387 = vmax.f32 %v2806, %v3259
    %v3388 = vmax.f32 %v2825, %v3260
    %v3389 = vmax.f32 %v2844, %v3261
    %v3390 = vmax.f32 %v2863, %v3262
    %v3391 = vmax.f32 %v2882, %v3263
    %v3392 = vmax.f32 %v2901, %v3264
    %v3393 = vmax.f32 %v2920, %v3265
    %v3394 = vmax.f32 %v2939, %v3266
    %v3395 = vmax.f32 %v2958, %v3267
    %v3396 = vmax.f32 %v2977, %v3268
    %v3397 = vmax.f32 %v2996, %v3269
    %v3398 = vmax.f32 %v3015, %v3270
    %v3399 = vmax.f32 %v3034, %v3271
    %v3400 = vmax.f32 %v3053, %v3272
    %v3401 = vmax.f32 %v3072, %v3273
    %v3402 = vmax.f32 %v3091, %v3274
    %v3403 = vmax.f32 %v3110, %v3275
    %v3404 = vmax.f32 %v3129, %v3276
    %v3405 = vmax.f32 %v3148, %v3277
    %s3406 = scalar_lea.vmem %s3, 16
    %v3407 = vld [vmem:[%s3406] sm:$0xf]
    %v3408 = vld [vmem:[%s3406 + $0x4] sm:$0xf]
    %v3409 = vld [vmem:[%s3406 + $0x8] sm:$0xf]
    %v3410 = vld [vmem:[%s3406 + $0xc] sm:$0xf]
    %v3411 = vpack.c.bf16 %v3310, %v3278
    %v3412 = vpack.c.bf16 %v3311, %v3279
    %v3413 = vpack.c.bf16 %v3312, %v3280
    %v3414 = vpack.c.bf16 %v3313, %v3281
    %v3415 = vpack.c.bf16 %v3314, %v3282
    %v3416 = vpack.c.bf16 %v3315, %v3283
    %v3417 = vpack.c.bf16 %v3316, %v3284
    %v3418 = vpack.c.bf16 %v3317, %v3285
    %v3419 = vpack.c.bf16 %v3318, %v3286
    %v3420 = vpack.c.bf16 %v3319, %v3287
    %v3421 = vpack.c.bf16 %v3320, %v3288
    %v3422 = vpack.c.bf16 %v3321, %v3289
    %v3423 = vpack.c.bf16 %v3322, %v3290
    %v3424 = vpack.c.bf16 %v3323, %v3291
    %v3425 = vpack.c.bf16 %v3324, %v3292
    %v3426 = vpack.c.bf16 %v3325, %v3293
    %v3427 = vpack.c.bf16 %v3326, %v3294
    %v3428 = vpack.c.bf16 %v3327, %v3295
    %v3429 = vpack.c.bf16 %v3328, %v3296
    %v3430 = vpack.c.bf16 %v3329, %v3297
    %v3431 = vpack.c.bf16 %v3330, %v3298
    %v3432 = vpack.c.bf16 %v3331, %v3299
    %v3433 = vpack.c.bf16 %v3332, %v3300
    %v3434 = vpack.c.bf16 %v3333, %v3301
    %v3435 = vpack.c.bf16 %v3334, %v3302
    %v3436 = vpack.c.bf16 %v3335, %v3303
    %v3437 = vpack.c.bf16 %v3336, %v3304
    %v3438 = vpack.c.bf16 %v3337, %v3305
    %v3439 = vpack.c.bf16 %v3338, %v3306
    %v3440 = vpack.c.bf16 %v3339, %v3307
    %v3441 = vpack.c.bf16 %v3340, %v3308
    %v3442 = vpack.c.bf16 %v3341, %v3309
    %v3443 = vpack.c.bf16 %v3374, %v3342
    %v3444 = vpack.c.bf16 %v3375, %v3343
    %v3445 = vpack.c.bf16 %v3376, %v3344
    %v3446 = vpack.c.bf16 %v3377, %v3345
    %v3447 = vpack.c.bf16 %v3378, %v3346
    %v3448 = vpack.c.bf16 %v3379, %v3347
    %v3449 = vpack.c.bf16 %v3380, %v3348
    %v3450 = vpack.c.bf16 %v3381, %v3349
    %v3451 = vpack.c.bf16 %v3382, %v3350
    %v3452 = vpack.c.bf16 %v3383, %v3351
    %v3453 = vpack.c.bf16 %v3384, %v3352
    %v3454 = vpack.c.bf16 %v3385, %v3353
    %v3455 = vpack.c.bf16 %v3386, %v3354
    %v3456 = vpack.c.bf16 %v3387, %v3355
    %v3457 = vpack.c.bf16 %v3388, %v3356
    %v3458 = vpack.c.bf16 %v3389, %v3357
    %v3459 = vpack.c.bf16 %v3390, %v3358
    %v3460 = vpack.c.bf16 %v3391, %v3359
    %v3461 = vpack.c.bf16 %v3392, %v3360
    %v3462 = vpack.c.bf16 %v3393, %v3361
    %v3463 = vpack.c.bf16 %v3394, %v3362
    %v3464 = vpack.c.bf16 %v3395, %v3363
    %v3465 = vpack.c.bf16 %v3396, %v3364
    %v3466 = vpack.c.bf16 %v3397, %v3365
    %v3467 = vpack.c.bf16 %v3398, %v3366
    %v3468 = vpack.c.bf16 %v3399, %v3367
    %v3469 = vpack.c.bf16 %v3400, %v3368
    %v3470 = vpack.c.bf16 %v3401, %v3369
    %v3471 = vpack.c.bf16 %v3402, %v3370
    %v3472 = vpack.c.bf16 %v3403, %v3371
    %v3473 = vpack.c.bf16 %v3404, %v3372
    %v3474 = vpack.c.bf16 %v3405, %v3373
    %v3479 = vunpack.c.l.b16 %v3407
    %v3480 = vunpack.c.l.b16 %v3408
    %v3481 = vunpack.c.l.b16 %v3409
    %v3482 = vunpack.c.l.b16 %v3410
    %v3483 = vpack.c.b16 %v3480, %v3479
    %v3484 = vpack.c.b16 %v3482, %v3481
    %v3486 = vsel %vm2535, %v3483, 0
    %v3489 = vsel %vm2535, %v3484, 0
    %3491 = vmatpush.bf16.msra.mxu0 0
    %3492 = vmatpush.bf16.msra.mxu0 0
    %3493 = vmatpush.bf16.msra.mxu0 0
    %3494 = vmatpush.bf16.msra.mxu0 0
    %3495 = vmatpush.bf16.msra.mxu0 0
    %3496 = vmatpush.bf16.msra.mxu0 0
    %3497 = vmatpush.bf16.msra.mxu0 %v3443
    %3498 = vmatpush.bf16.msra.mxu0 %v3411
    %3499 = vmatmul.bf16.gmra.mxu0 %v3486
    %v3500 = vpop.f32.mrf.mxu0
    %v3501 = vadd.f32 %v525, %v3500
    %v3502 = vpop.f32.mrf.mxu0
    %v3503 = vadd.f32 %v527, %v3502
    %3504 = vmatmul.bf16.gmra.mxu0 %v3489
    %v3505 = vpop.f32.mrf.mxu0
    %v3506 = vadd.f32 %v530, %v3505
    %v3507 = vpop.f32.mrf.mxu0
    %v3508 = vadd.f32 %v532, %v3507
    %3509 = vdwg.mxu0
    %3510 = vmatpush.bf16.msra.mxu0 0
    %3511 = vmatpush.bf16.msra.mxu0 0
    %3512 = vmatpush.bf16.msra.mxu0 0
    %3513 = vmatpush.bf16.msra.mxu0 0
    %3514 = vmatpush.bf16.msra.mxu0 0
    %3515 = vmatpush.bf16.msra.mxu0 0
    %3516 = vmatpush.bf16.msra.mxu0 %v3444
    %3517 = vmatpush.bf16.msra.mxu0 %v3412
    %3518 = vmatmul.bf16.gmra.mxu0 %v3486
    %v3519 = vpop.f32.mrf.mxu0
    %v3520 = vadd.f32 %v578, %v3519
    %v3521 = vpop.f32.mrf.mxu0
    %v3522 = vadd.f32 %v580, %v3521
    %3523 = vmatmul.bf16.gmra.mxu0 %v3489
    %v3524 = vpop.f32.mrf.mxu0
    %v3525 = vadd.f32 %v583, %v3524
    %v3526 = vpop.f32.mrf.mxu0
    %v3527 = vadd.f32 %v585, %v3526
    %3528 = vdwg.mxu0
    %3529 = vmatpush.bf16.msra.mxu0 0
    %3530 = vmatpush.bf16.msra.mxu0 0
    %3531 = vmatpush.bf16.msra.mxu0 0
    %3532 = vmatpush.bf16.msra.mxu0 0
    %3533 = vmatpush.bf16.msra.mxu0 0
    %3534 = vmatpush.bf16.msra.mxu0 0
    %3535 = vmatpush.bf16.msra.mxu0 %v3445
    %3536 = vmatpush.bf16.msra.mxu0 %v3413
    %3537 = vmatmul.bf16.gmra.mxu0 %v3486
    %v3538 = vpop.f32.mrf.mxu0
    %v3539 = vadd.f32 %v631, %v3538
    %v3540 = vpop.f32.mrf.mxu0
    %v3541 = vadd.f32 %v633, %v3540
    %3542 = vmatmul.bf16.gmra.mxu0 %v3489
    %v3543 = vpop.f32.mrf.mxu0
    %v3544 = vadd.f32 %v636, %v3543
    %v3545 = vpop.f32.mrf.mxu0
    %v3546 = vadd.f32 %v638, %v3545
    %3547 = vdwg.mxu0
    %3548 = vmatpush.bf16.msra.mxu0 0
    %3549 = vmatpush.bf16.msra.mxu0 0
    %3550 = vmatpush.bf16.msra.mxu0 0
    %3551 = vmatpush.bf16.msra.mxu0 0
    %3552 = vmatpush.bf16.msra.mxu0 0
    %3553 = vmatpush.bf16.msra.mxu0 0
    %3554 = vmatpush.bf16.msra.mxu0 %v3446
    %3555 = vmatpush.bf16.msra.mxu0 %v3414
    %3556 = vmatmul.bf16.gmra.mxu0 %v3486
    %v3557 = vpop.f32.mrf.mxu0
    %v3558 = vadd.f32 %v684, %v3557
    %v3559 = vpop.f32.mrf.mxu0
    %v3560 = vadd.f32 %v686, %v3559
    %3561 = vmatmul.bf16.gmra.mxu0 %v3489
    %v3562 = vpop.f32.mrf.mxu0
    %v3563 = vadd.f32 %v689, %v3562
    %v3564 = vpop.f32.mrf.mxu0
    %v3565 = vadd.f32 %v691, %v3564
    %3566 = vdwg.mxu0
    %3567 = vmatpush.bf16.msra.mxu0 0
    %3568 = vmatpush.bf16.msra.mxu0 0
    %3569 = vmatpush.bf16.msra.mxu0 0
    %3570 = vmatpush.bf16.msra.mxu0 0
    %3571 = vmatpush.bf16.msra.mxu0 0
    %3572 = vmatpush.bf16.msra.mxu0 0
    %3573 = vmatpush.bf16.msra.mxu0 %v3447
    %3574 = vmatpush.bf16.msra.mxu0 %v3415
    %3575 = vmatmul.bf16.gmra.mxu0 %v3486
    %v3576 = vpop.f32.mrf.mxu0
    %v3577 = vadd.f32 %v737, %v3576
    %v3578 = vpop.f32.mrf.mxu0
    %v3579 = vadd.f32 %v739, %v3578
    %3580 = vmatmul.bf16.gmra.mxu0 %v3489
    %v3581 = vpop.f32.mrf.mxu0
    %v3582 = vadd.f32 %v742, %v3581
    %v3583 = vpop.f32.mrf.mxu0
    %v3584 = vadd.f32 %v744, %v3583
    %3585 = vdwg.mxu0
    %3586 = vmatpush.bf16.msra.mxu0 0
    %3587 = vmatpush.bf16.msra.mxu0 0
    %3588 = vmatpush.bf16.msra.mxu0 0
    %3589 = vmatpush.bf16.msra.mxu0 0
    %3590 = vmatpush.bf16.msra.mxu0 0
    %3591 = vmatpush.bf16.msra.mxu0 0
    %3592 = vmatpush.bf16.msra.mxu0 %v3448
    %3593 = vmatpush.bf16.msra.mxu0 %v3416
    %3594 = vmatmul.bf16.gmra.mxu0 %v3486
    %v3595 = vpop.f32.mrf.mxu0
    %v3596 = vadd.f32 %v790, %v3595
    %v3597 = vpop.f32.mrf.mxu0
    %v3598 = vadd.f32 %v792, %v3597
    %3599 = vmatmul.bf16.gmra.mxu0 %v3489
    %v3600 = vpop.f32.mrf.mxu0
    %v3601 = vadd.f32 %v795, %v3600
    %v3602 = vpop.f32.mrf.mxu0
    %v3603 = vadd.f32 %v797, %v3602
    %3604 = vdwg.mxu0
    %3605 = vmatpush.bf16.msra.mxu0 0
    %3606 = vmatpush.bf16.msra.mxu0 0
    %3607 = vmatpush.bf16.msra.mxu0 0
    %3608 = vmatpush.bf16.msra.mxu0 0
    %3609 = vmatpush.bf16.msra.mxu0 0
    %3610 = vmatpush.bf16.msra.mxu0 0
    %3611 = vmatpush.bf16.msra.mxu0 %v3449
    %3612 = vmatpush.bf16.msra.mxu0 %v3417
    %3613 = vmatmul.bf16.gmra.mxu0 %v3486
    %v3614 = vpop.f32.mrf.mxu0
    %v3615 = vadd.f32 %v843, %v3614
    %v3616 = vpop.f32.mrf.mxu0
    %v3617 = vadd.f32 %v845, %v3616
    %3618 = vmatmul.bf16.gmra.mxu0 %v3489
    %v3619 = vpop.f32.mrf.mxu0
    %v3620 = vadd.f32 %v848, %v3619
    %v3621 = vpop.f32.mrf.mxu0
    %v3622 = vadd.f32 %v850, %v3621
    %3623 = vdwg.mxu0
    %3624 = vmatpush.bf16.msra.mxu0 0
    %3625 = vmatpush.bf16.msra.mxu0 0
    %3626 = vmatpush.bf16.msra.mxu0 0
    %3627 = vmatpush.bf16.msra.mxu0 0
    %3628 = vmatpush.bf16.msra.mxu0 0
    %3629 = vmatpush.bf16.msra.mxu0 0
    %3630 = vmatpush.bf16.msra.mxu0 %v3450
    %3631 = vmatpush.bf16.msra.mxu0 %v3418
    %3632 = vmatmul.bf16.gmra.mxu0 %v3486
    %v3633 = vpop.f32.mrf.mxu0
    %v3634 = vadd.f32 %v896, %v3633
    %v3635 = vpop.f32.mrf.mxu0
    %v3636 = vadd.f32 %v898, %v3635
    %3637 = vmatmul.bf16.gmra.mxu0 %v3489
    %v3638 = vpop.f32.mrf.mxu0
    %v3639 = vadd.f32 %v901, %v3638
    %v3640 = vpop.f32.mrf.mxu0
    %v3641 = vadd.f32 %v903, %v3640
    %3642 = vdwg.mxu0
    %3643 = vmatpush.bf16.msra.mxu0 0
    %3644 = vmatpush.bf16.msra.mxu0 0
    %3645 = vmatpush.bf16.msra.mxu0 0
    %3646 = vmatpush.bf16.msra.mxu0 0
    %3647 = vmatpush.bf16.msra.mxu0 0
    %3648 = vmatpush.bf16.msra.mxu0 0
    %3649 = vmatpush.bf16.msra.mxu0 %v3451
    %3650 = vmatpush.bf16.msra.mxu0 %v3419
    %3651 = vmatmul.bf16.gmra.mxu0 %v3486
    %v3652 = vpop.f32.mrf.mxu0
    %v3653 = vadd.f32 %v949, %v3652
    %v3654 = vpop.f32.mrf.mxu0
    %v3655 = vadd.f32 %v951, %v3654
    %3656 = vmatmul.bf16.gmra.mxu0 %v3489
    %v3657 = vpop.f32.mrf.mxu0
    %v3658 = vadd.f32 %v954, %v3657
    %v3659 = vpop.f32.mrf.mxu0
    %v3660 = vadd.f32 %v956, %v3659
    %3661 = vdwg.mxu0
    %3662 = vmatpush.bf16.msra.mxu0 0
    %3663 = vmatpush.bf16.msra.mxu0 0
    %3664 = vmatpush.bf16.msra.mxu0 0
    %3665 = vmatpush.bf16.msra.mxu0 0
    %3666 = vmatpush.bf16.msra.mxu0 0
    %3667 = vmatpush.bf16.msra.mxu0 0
    %3668 = vmatpush.bf16.msra.mxu0 %v3452
    %3669 = vmatpush.bf16.msra.mxu0 %v3420
    %3670 = vmatmul.bf16.gmra.mxu0 %v3486
    %v3671 = vpop.f32.mrf.mxu0
    %v3672 = vadd.f32 %v1002, %v3671
    %v3673 = vpop.f32.mrf.mxu0
    %v3674 = vadd.f32 %v1004, %v3673
    %3675 = vmatmul.bf16.gmra.mxu0 %v3489
    %v3676 = vpop.f32.mrf.mxu0
    %v3677 = vadd.f32 %v1007, %v3676
    %v3678 = vpop.f32.mrf.mxu0
    %v3679 = vadd.f32 %v1009, %v3678
    %3680 = vdwg.mxu0
    %3681 = vmatpush.bf16.msra.mxu0 0
    %3682 = vmatpush.bf16.msra.mxu0 0
    %3683 = vmatpush.bf16.msra.mxu0 0
    %3684 = vmatpush.bf16.msra.mxu0 0
    %3685 = vmatpush.bf16.msra.mxu0 0
    %3686 = vmatpush.bf16.msra.mxu0 0
    %3687 = vmatpush.bf16.msra.mxu0 %v3453
    %3688 = vmatpush.bf16.msra.mxu0 %v3421
    %3689 = vmatmul.bf16.gmra.mxu0 %v3486
    %v3690 = vpop.f32.mrf.mxu0
    %v3691 = vadd.f32 %v1055, %v3690
    %v3692 = vpop.f32.mrf.mxu0
    %v3693 = vadd.f32 %v1057, %v3692
    %3694 = vmatmul.bf16.gmra.mxu0 %v3489
    %v3695 = vpop.f32.mrf.mxu0
    %v3696 = vadd.f32 %v1060, %v3695
    %v3697 = vpop.f32.mrf.mxu0
    %v3698 = vadd.f32 %v1062, %v3697
    %3699 = vdwg.mxu0
    %3700 = vmatpush.bf16.msra.mxu0 0
    %3701 = vmatpush.bf16.msra.mxu0 0
    %3702 = vmatpush.bf16.msra.mxu0 0
    %3703 = vmatpush.bf16.msra.mxu0 0
    %3704 = vmatpush.bf16.msra.mxu0 0
    %3705 = vmatpush.bf16.msra.mxu0 0
    %3706 = vmatpush.bf16.msra.mxu0 %v3454
    %3707 = vmatpush.bf16.msra.mxu0 %v3422
    %3708 = vmatmul.bf16.gmra.mxu0 %v3486
    %v3709 = vpop.f32.mrf.mxu0
    %v3710 = vadd.f32 %v1108, %v3709
    %v3711 = vpop.f32.mrf.mxu0
    %v3712 = vadd.f32 %v1110, %v3711
    %3713 = vmatmul.bf16.gmra.mxu0 %v3489
    %v3714 = vpop.f32.mrf.mxu0
    %v3715 = vadd.f32 %v1113, %v3714
    %v3716 = vpop.f32.mrf.mxu0
    %v3717 = vadd.f32 %v1115, %v3716
    %3718 = vdwg.mxu0
    %3719 = vmatpush.bf16.msra.mxu0 0
    %3720 = vmatpush.bf16.msra.mxu0 0
    %3721 = vmatpush.bf16.msra.mxu0 0
    %3722 = vmatpush.bf16.msra.mxu0 0
    %3723 = vmatpush.bf16.msra.mxu0 0
    %3724 = vmatpush.bf16.msra.mxu0 0
    %3725 = vmatpush.bf16.msra.mxu0 %v3455
    %3726 = vmatpush.bf16.msra.mxu0 %v3423
    %3727 = vmatmul.bf16.gmra.mxu0 %v3486
    %v3728 = vpop.f32.mrf.mxu0
    %v3729 = vadd.f32 %v1161, %v3728
    %v3730 = vpop.f32.mrf.mxu0
    %v3731 = vadd.f32 %v1163, %v3730
    %3732 = vmatmul.bf16.gmra.mxu0 %v3489
    %v3733 = vpop.f32.mrf.mxu0
    %v3734 = vadd.f32 %v1166, %v3733
    %v3735 = vpop.f32.mrf.mxu0
    %v3736 = vadd.f32 %v1168, %v3735
    %3737 = vdwg.mxu0
    %3738 = vmatpush.bf16.msra.mxu0 0
    %3739 = vmatpush.bf16.msra.mxu0 0
    %3740 = vmatpush.bf16.msra.mxu0 0
    %3741 = vmatpush.bf16.msra.mxu0 0
    %3742 = vmatpush.bf16.msra.mxu0 0
    %3743 = vmatpush.bf16.msra.mxu0 0
    %3744 = vmatpush.bf16.msra.mxu0 %v3456
    %3745 = vmatpush.bf16.msra.mxu0 %v3424
    %3746 = vmatmul.bf16.gmra.mxu0 %v3486
    %v3747 = vpop.f32.mrf.mxu0
    %v3748 = vadd.f32 %v1214, %v3747
    %v3749 = vpop.f32.mrf.mxu0
    %v3750 = vadd.f32 %v1216, %v3749
    %3751 = vmatmul.bf16.gmra.mxu0 %v3489
    %v3752 = vpop.f32.mrf.mxu0
    %v3753 = vadd.f32 %v1219, %v3752
    %v3754 = vpop.f32.mrf.mxu0
    %v3755 = vadd.f32 %v1221, %v3754
    %3756 = vdwg.mxu0
    %3757 = vmatpush.bf16.msra.mxu0 0
    %3758 = vmatpush.bf16.msra.mxu0 0
    %3759 = vmatpush.bf16.msra.mxu0 0
    %3760 = vmatpush.bf16.msra.mxu0 0
    %3761 = vmatpush.bf16.msra.mxu0 0
    %3762 = vmatpush.bf16.msra.mxu0 0
    %3763 = vmatpush.bf16.msra.mxu0 %v3457
    %3764 = vmatpush.bf16.msra.mxu0 %v3425
    %3765 = vmatmul.bf16.gmra.mxu0 %v3486
    %v3766 = vpop.f32.mrf.mxu0
    %v3767 = vadd.f32 %v1267, %v3766
    %v3768 = vpop.f32.mrf.mxu0
    %v3769 = vadd.f32 %v1269, %v3768
    %3770 = vmatmul.bf16.gmra.mxu0 %v3489
    %v3771 = vpop.f32.mrf.mxu0
    %v3772 = vadd.f32 %v1272, %v3771
    %v3773 = vpop.f32.mrf.mxu0
    %v3774 = vadd.f32 %v1274, %v3773
    %3775 = vdwg.mxu0
    %3776 = vmatpush.bf16.msra.mxu0 0
    %3777 = vmatpush.bf16.msra.mxu0 0
    %3778 = vmatpush.bf16.msra.mxu0 0
    %3779 = vmatpush.bf16.msra.mxu0 0
    %3780 = vmatpush.bf16.msra.mxu0 0
    %3781 = vmatpush.bf16.msra.mxu0 0
    %3782 = vmatpush.bf16.msra.mxu0 %v3458
    %3783 = vmatpush.bf16.msra.mxu0 %v3426
    %3784 = vmatmul.bf16.gmra.mxu0 %v3486
    %v3785 = vpop.f32.mrf.mxu0
    %v3786 = vadd.f32 %v1320, %v3785
    %v3787 = vpop.f32.mrf.mxu0
    %v3788 = vadd.f32 %v1322, %v3787
    %3789 = vmatmul.bf16.gmra.mxu0 %v3489
    %v3790 = vpop.f32.mrf.mxu0
    %v3791 = vadd.f32 %v1325, %v3790
    %v3792 = vpop.f32.mrf.mxu0
    %v3793 = vadd.f32 %v1327, %v3792
    %3794 = vdwg.mxu0
    %3795 = vmatpush.bf16.msra.mxu0 0
    %3796 = vmatpush.bf16.msra.mxu0 0
    %3797 = vmatpush.bf16.msra.mxu0 0
    %3798 = vmatpush.bf16.msra.mxu0 0
    %3799 = vmatpush.bf16.msra.mxu0 0
    %3800 = vmatpush.bf16.msra.mxu0 0
    %3801 = vmatpush.bf16.msra.mxu0 %v3459
    %3802 = vmatpush.bf16.msra.mxu0 %v3427
    %3803 = vmatmul.bf16.gmra.mxu0 %v3486
    %v3804 = vpop.f32.mrf.mxu0
    %v3805 = vadd.f32 %v1373, %v3804
    %v3806 = vpop.f32.mrf.mxu0
    %v3807 = vadd.f32 %v1375, %v3806
    %3808 = vmatmul.bf16.gmra.mxu0 %v3489
    %v3809 = vpop.f32.mrf.mxu0
    %v3810 = vadd.f32 %v1378, %v3809
    %v3811 = vpop.f32.mrf.mxu0
    %v3812 = vadd.f32 %v1380, %v3811
    %3813 = vdwg.mxu0
    %3814 = vmatpush.bf16.msra.mxu0 0
    %3815 = vmatpush.bf16.msra.mxu0 0
    %3816 = vmatpush.bf16.msra.mxu0 0
    %3817 = vmatpush.bf16.msra.mxu0 0
    %3818 = vmatpush.bf16.msra.mxu0 0
    %3819 = vmatpush.bf16.msra.mxu0 0
    %3820 = vmatpush.bf16.msra.mxu0 %v3460
    %3821 = vmatpush.bf16.msra.mxu0 %v3428
    %3822 = vmatmul.bf16.gmra.mxu0 %v3486
    %v3823 = vpop.f32.mrf.mxu0
    %v3824 = vadd.f32 %v1426, %v3823
    %v3825 = vpop.f32.mrf.mxu0
    %v3826 = vadd.f32 %v1428, %v3825
    %3827 = vmatmul.bf16.gmra.mxu0 %v3489
    %v3828 = vpop.f32.mrf.mxu0
    %v3829 = vadd.f32 %v1431, %v3828
    %v3830 = vpop.f32.mrf.mxu0
    %v3831 = vadd.f32 %v1433, %v3830
    %3832 = vdwg.mxu0
    %3833 = vmatpush.bf16.msra.mxu0 0
    %3834 = vmatpush.bf16.msra.mxu0 0
    %3835 = vmatpush.bf16.msra.mxu0 0
    %3836 = vmatpush.bf16.msra.mxu0 0
    %3837 = vmatpush.bf16.msra.mxu0 0
    %3838 = vmatpush.bf16.msra.mxu0 0
    %3839 = vmatpush.bf16.msra.mxu0 %v3461
    %3840 = vmatpush.bf16.msra.mxu0 %v3429
    %3841 = vmatmul.bf16.gmra.mxu0 %v3486
    %v3842 = vpop.f32.mrf.mxu0
    %v3843 = vadd.f32 %v1479, %v3842
    %v3844 = vpop.f32.mrf.mxu0
    %v3845 = vadd.f32 %v1481, %v3844
    %3846 = vmatmul.bf16.gmra.mxu0 %v3489
    %v3847 = vpop.f32.mrf.mxu0
    %v3848 = vadd.f32 %v1484, %v3847
    %v3849 = vpop.f32.mrf.mxu0
    %v3850 = vadd.f32 %v1486, %v3849
    %3851 = vdwg.mxu0
    %3852 = vmatpush.bf16.msra.mxu0 0
    %3853 = vmatpush.bf16.msra.mxu0 0
    %3854 = vmatpush.bf16.msra.mxu0 0
    %3855 = vmatpush.bf16.msra.mxu0 0
    %3856 = vmatpush.bf16.msra.mxu0 0
    %3857 = vmatpush.bf16.msra.mxu0 0
    %3858 = vmatpush.bf16.msra.mxu0 %v3462
    %3859 = vmatpush.bf16.msra.mxu0 %v3430
    %3860 = vmatmul.bf16.gmra.mxu0 %v3486
    %v3861 = vpop.f32.mrf.mxu0
    %v3862 = vadd.f32 %v1532, %v3861
    %v3863 = vpop.f32.mrf.mxu0
    %v3864 = vadd.f32 %v1534, %v3863
    %3865 = vmatmul.bf16.gmra.mxu0 %v3489
    %v3866 = vpop.f32.mrf.mxu0
    %v3867 = vadd.f32 %v1537, %v3866
    %v3868 = vpop.f32.mrf.mxu0
    %v3869 = vadd.f32 %v1539, %v3868
    %3870 = vdwg.mxu0
    %3871 = vmatpush.bf16.msra.mxu0 0
    %3872 = vmatpush.bf16.msra.mxu0 0
    %3873 = vmatpush.bf16.msra.mxu0 0
    %3874 = vmatpush.bf16.msra.mxu0 0
    %3875 = vmatpush.bf16.msra.mxu0 0
    %3876 = vmatpush.bf16.msra.mxu0 0
    %3877 = vmatpush.bf16.msra.mxu0 %v3463
    %3878 = vmatpush.bf16.msra.mxu0 %v3431
    %3879 = vmatmul.bf16.gmra.mxu0 %v3486
    %v3880 = vpop.f32.mrf.mxu0
    %v3881 = vadd.f32 %v1585, %v3880
    %v3882 = vpop.f32.mrf.mxu0
    %v3883 = vadd.f32 %v1587, %v3882
    %3884 = vmatmul.bf16.gmra.mxu0 %v3489
    %v3885 = vpop.f32.mrf.mxu0
    %v3886 = vadd.f32 %v1590, %v3885
    %v3887 = vpop.f32.mrf.mxu0
    %v3888 = vadd.f32 %v1592, %v3887
    %3889 = vdwg.mxu0
    %3890 = vmatpush.bf16.msra.mxu0 0
    %3891 = vmatpush.bf16.msra.mxu0 0
    %3892 = vmatpush.bf16.msra.mxu0 0
    %3893 = vmatpush.bf16.msra.mxu0 0
    %3894 = vmatpush.bf16.msra.mxu0 0
    %3895 = vmatpush.bf16.msra.mxu0 0
    %3896 = vmatpush.bf16.msra.mxu0 %v3464
    %3897 = vmatpush.bf16.msra.mxu0 %v3432
    %3898 = vmatmul.bf16.gmra.mxu0 %v3486
    %v3899 = vpop.f32.mrf.mxu0
    %v3900 = vadd.f32 %v1638, %v3899
    %v3901 = vpop.f32.mrf.mxu0
    %v3902 = vadd.f32 %v1640, %v3901
    %3903 = vmatmul.bf16.gmra.mxu0 %v3489
    %v3904 = vpop.f32.mrf.mxu0
    %v3905 = vadd.f32 %v1643, %v3904
    %v3906 = vpop.f32.mrf.mxu0
    %v3907 = vadd.f32 %v1645, %v3906
    %3908 = vdwg.mxu0
    %3909 = vmatpush.bf16.msra.mxu0 0
    %3910 = vmatpush.bf16.msra.mxu0 0
    %3911 = vmatpush.bf16.msra.mxu0 0
    %3912 = vmatpush.bf16.msra.mxu0 0
    %3913 = vmatpush.bf16.msra.mxu0 0
    %3914 = vmatpush.bf16.msra.mxu0 0
    %3915 = vmatpush.bf16.msra.mxu0 %v3465
    %3916 = vmatpush.bf16.msra.mxu0 %v3433
    %3917 = vmatmul.bf16.gmra.mxu0 %v3486
    %v3918 = vpop.f32.mrf.mxu0
    %v3919 = vadd.f32 %v1691, %v3918
    %v3920 = vpop.f32.mrf.mxu0
    %v3921 = vadd.f32 %v1693, %v3920
    %3922 = vmatmul.bf16.gmra.mxu0 %v3489
    %v3923 = vpop.f32.mrf.mxu0
    %v3924 = vadd.f32 %v1696, %v3923
    %v3925 = vpop.f32.mrf.mxu0
    %v3926 = vadd.f32 %v1698, %v3925
    %3927 = vdwg.mxu0
    %3928 = vmatpush.bf16.msra.mxu0 0
    %3929 = vmatpush.bf16.msra.mxu0 0
    %3930 = vmatpush.bf16.msra.mxu0 0
    %3931 = vmatpush.bf16.msra.mxu0 0
    %3932 = vmatpush.bf16.msra.mxu0 0
    %3933 = vmatpush.bf16.msra.mxu0 0
    %3934 = vmatpush.bf16.msra.mxu0 %v3466
    %3935 = vmatpush.bf16.msra.mxu0 %v3434
    %3936 = vmatmul.bf16.gmra.mxu0 %v3486
    %v3937 = vpop.f32.mrf.mxu0
    %v3938 = vadd.f32 %v1744, %v3937
    %v3939 = vpop.f32.mrf.mxu0
    %v3940 = vadd.f32 %v1746, %v3939
    %3941 = vmatmul.bf16.gmra.mxu0 %v3489
    %v3942 = vpop.f32.mrf.mxu0
    %v3943 = vadd.f32 %v1749, %v3942
    %v3944 = vpop.f32.mrf.mxu0
    %v3945 = vadd.f32 %v1751, %v3944
    %3946 = vdwg.mxu0
    %3947 = vmatpush.bf16.msra.mxu0 0
    %3948 = vmatpush.bf16.msra.mxu0 0
    %3949 = vmatpush.bf16.msra.mxu0 0
    %3950 = vmatpush.bf16.msra.mxu0 0
    %3951 = vmatpush.bf16.msra.mxu0 0
    %3952 = vmatpush.bf16.msra.mxu0 0
    %3953 = vmatpush.bf16.msra.mxu0 %v3467
    %3954 = vmatpush.bf16.msra.mxu0 %v3435
    %3955 = vmatmul.bf16.gmra.mxu0 %v3486
    %v3956 = vpop.f32.mrf.mxu0
    %v3957 = vadd.f32 %v1797, %v3956
    %v3958 = vpop.f32.mrf.mxu0
    %v3959 = vadd.f32 %v1799, %v3958
    %3960 = vmatmul.bf16.gmra.mxu0 %v3489
    %v3961 = vpop.f32.mrf.mxu0
    %v3962 = vadd.f32 %v1802, %v3961
    %v3963 = vpop.f32.mrf.mxu0
    %v3964 = vadd.f32 %v1804, %v3963
    %3965 = vdwg.mxu0
    %3966 = vmatpush.bf16.msra.mxu0 0
    %3967 = vmatpush.bf16.msra.mxu0 0
    %3968 = vmatpush.bf16.msra.mxu0 0
    %3969 = vmatpush.bf16.msra.mxu0 0
    %3970 = vmatpush.bf16.msra.mxu0 0
    %3971 = vmatpush.bf16.msra.mxu0 0
    %3972 = vmatpush.bf16.msra.mxu0 %v3468
    %3973 = vmatpush.bf16.msra.mxu0 %v3436
    %3974 = vmatmul.bf16.gmra.mxu0 %v3486
    %v3975 = vpop.f32.mrf.mxu0
    %v3976 = vadd.f32 %v1850, %v3975
    %v3977 = vpop.f32.mrf.mxu0
    %v3978 = vadd.f32 %v1852, %v3977
    %3979 = vmatmul.bf16.gmra.mxu0 %v3489
    %v3980 = vpop.f32.mrf.mxu0
    %v3981 = vadd.f32 %v1855, %v3980
    %v3982 = vpop.f32.mrf.mxu0
    %v3983 = vadd.f32 %v1857, %v3982
    %3984 = vdwg.mxu0
    %3985 = vmatpush.bf16.msra.mxu0 0
    %3986 = vmatpush.bf16.msra.mxu0 0
    %3987 = vmatpush.bf16.msra.mxu0 0
    %3988 = vmatpush.bf16.msra.mxu0 0
    %3989 = vmatpush.bf16.msra.mxu0 0
    %3990 = vmatpush.bf16.msra.mxu0 0
    %3991 = vmatpush.bf16.msra.mxu0 %v3469
    %3992 = vmatpush.bf16.msra.mxu0 %v3437
    %3993 = vmatmul.bf16.gmra.mxu0 %v3486
    %v3994 = vpop.f32.mrf.mxu0
    %v3995 = vadd.f32 %v1903, %v3994
    %v3996 = vpop.f32.mrf.mxu0
    %v3997 = vadd.f32 %v1905, %v3996
    %3998 = vmatmul.bf16.gmra.mxu0 %v3489
    %v3999 = vpop.f32.mrf.mxu0
    %v4000 = vadd.f32 %v1908, %v3999
    %v4001 = vpop.f32.mrf.mxu0
    %v4002 = vadd.f32 %v1910, %v4001
    %4003 = vdwg.mxu0
    %4004 = vmatpush.bf16.msra.mxu0 0
    %4005 = vmatpush.bf16.msra.mxu0 0
    %4006 = vmatpush.bf16.msra.mxu0 0
    %4007 = vmatpush.bf16.msra.mxu0 0
    %4008 = vmatpush.bf16.msra.mxu0 0
    %4009 = vmatpush.bf16.msra.mxu0 0
    %4010 = vmatpush.bf16.msra.mxu0 %v3470
    %4011 = vmatpush.bf16.msra.mxu0 %v3438
    %4012 = vmatmul.bf16.gmra.mxu0 %v3486
    %v4013 = vpop.f32.mrf.mxu0
    %v4014 = vadd.f32 %v1956, %v4013
    %v4015 = vpop.f32.mrf.mxu0
    %v4016 = vadd.f32 %v1958, %v4015
    %4017 = vmatmul.bf16.gmra.mxu0 %v3489
    %v4018 = vpop.f32.mrf.mxu0
    %v4019 = vadd.f32 %v1961, %v4018
    %v4020 = vpop.f32.mrf.mxu0
    %v4021 = vadd.f32 %v1963, %v4020
    %4022 = vdwg.mxu0
    %4023 = vmatpush.bf16.msra.mxu0 0
    %4024 = vmatpush.bf16.msra.mxu0 0
    %4025 = vmatpush.bf16.msra.mxu0 0
    %4026 = vmatpush.bf16.msra.mxu0 0
    %4027 = vmatpush.bf16.msra.mxu0 0
    %4028 = vmatpush.bf16.msra.mxu0 0
    %4029 = vmatpush.bf16.msra.mxu0 %v3471
    %4030 = vmatpush.bf16.msra.mxu0 %v3439
    %4031 = vmatmul.bf16.gmra.mxu0 %v3486
    %v4032 = vpop.f32.mrf.mxu0
    %v4033 = vadd.f32 %v2009, %v4032
    %v4034 = vpop.f32.mrf.mxu0
    %v4035 = vadd.f32 %v2011, %v4034
    %4036 = vmatmul.bf16.gmra.mxu0 %v3489
    %v4037 = vpop.f32.mrf.mxu0
    %v4038 = vadd.f32 %v2014, %v4037
    %v4039 = vpop.f32.mrf.mxu0
    %v4040 = vadd.f32 %v2016, %v4039
    %4041 = vdwg.mxu0
    %4042 = vmatpush.bf16.msra.mxu0 0
    %4043 = vmatpush.bf16.msra.mxu0 0
    %4044 = vmatpush.bf16.msra.mxu0 0
    %4045 = vmatpush.bf16.msra.mxu0 0
    %4046 = vmatpush.bf16.msra.mxu0 0
    %4047 = vmatpush.bf16.msra.mxu0 0
    %4048 = vmatpush.bf16.msra.mxu0 %v3472
    %4049 = vmatpush.bf16.msra.mxu0 %v3440
    %4050 = vmatmul.bf16.gmra.mxu0 %v3486
    %v4051 = vpop.f32.mrf.mxu0
    %v4052 = vadd.f32 %v2062, %v4051
    %v4053 = vpop.f32.mrf.mxu0
    %v4054 = vadd.f32 %v2064, %v4053
    %4055 = vmatmul.bf16.gmra.mxu0 %v3489
    %v4056 = vpop.f32.mrf.mxu0
    %v4057 = vadd.f32 %v2067, %v4056
    %v4058 = vpop.f32.mrf.mxu0
    %v4059 = vadd.f32 %v2069, %v4058
    %4060 = vdwg.mxu0
    %4061 = vmatpush.bf16.msra.mxu0 0
    %4062 = vmatpush.bf16.msra.mxu0 0
    %4063 = vmatpush.bf16.msra.mxu0 0
    %4064 = vmatpush.bf16.msra.mxu0 0
    %4065 = vmatpush.bf16.msra.mxu0 0
    %4066 = vmatpush.bf16.msra.mxu0 0
    %4067 = vmatpush.bf16.msra.mxu0 %v3473
    %4068 = vmatpush.bf16.msra.mxu0 %v3441
    %4069 = vmatmul.bf16.gmra.mxu0 %v3486
    %v4070 = vpop.f32.mrf.mxu0
    %v4071 = vadd.f32 %v2115, %v4070
    %v4072 = vpop.f32.mrf.mxu0
    %v4073 = vadd.f32 %v2117, %v4072
    %4074 = vmatmul.bf16.gmra.mxu0 %v3489
    %v4075 = vpop.f32.mrf.mxu0
    %v4076 = vadd.f32 %v2120, %v4075
    %v4077 = vpop.f32.mrf.mxu0
    %v4078 = vadd.f32 %v2122, %v4077
    %4079 = vdwg.mxu0
    %4080 = vmatpush.bf16.msra.mxu0 0
    %4081 = vmatpush.bf16.msra.mxu0 0
    %4082 = vmatpush.bf16.msra.mxu0 0
    %4083 = vmatpush.bf16.msra.mxu0 0
    %4084 = vmatpush.bf16.msra.mxu0 0
    %4085 = vmatpush.bf16.msra.mxu0 0
    %4086 = vmatpush.bf16.msra.mxu0 %v3474
    %4087 = vmatpush.bf16.msra.mxu0 %v3442
    %4088 = vmatmul.bf16.gmra.mxu0 %v3486
    %v4089 = vpop.f32.mrf.mxu0
    %v4090 = vadd.f32 %v2168, %v4089
    %v4091 = vpop.f32.mrf.mxu0
    %v4092 = vadd.f32 %v2170, %v4091
    %4093 = vmatmul.bf16.gmra.mxu0 %v3489
    %v4094 = vpop.f32.mrf.mxu0
    %v4095 = vadd.f32 %v2173, %v4094
    %v4096 = vpop.f32.mrf.mxu0
    %v4097 = vadd.f32 %v2175, %v4096
    %4098 = vdwg.mxu0
    %v4099 = vmul.f32 %v3501, 0.01
    %v4100 = vmul.f32 %v3520, 0.01
    %v4101 = vmul.f32 %v3539, 0.01
    %v4102 = vmul.f32 %v3558, 0.01
    %v4103 = vmul.f32 %v3577, 0.01
    %v4104 = vmul.f32 %v3596, 0.01
    %v4105 = vmul.f32 %v3615, 0.01
    %v4106 = vmul.f32 %v3634, 0.01
    %v4107 = vmul.f32 %v3653, 0.01
    %v4108 = vmul.f32 %v3672, 0.01
    %v4109 = vmul.f32 %v3691, 0.01
    %v4110 = vmul.f32 %v3710, 0.01
    %v4111 = vmul.f32 %v3729, 0.01
    %v4112 = vmul.f32 %v3748, 0.01
    %v4113 = vmul.f32 %v3767, 0.01
    %v4114 = vmul.f32 %v3786, 0.01
    %v4115 = vmul.f32 %v3805, 0.01
    %v4116 = vmul.f32 %v3824, 0.01
    %v4117 = vmul.f32 %v3843, 0.01
    %v4118 = vmul.f32 %v3862, 0.01
    %v4119 = vmul.f32 %v3881, 0.01
    %v4120 = vmul.f32 %v3900, 0.01
    %v4121 = vmul.f32 %v3919, 0.01
    %v4122 = vmul.f32 %v3938, 0.01
    %v4123 = vmul.f32 %v3957, 0.01
    %v4124 = vmul.f32 %v3976, 0.01
    %v4125 = vmul.f32 %v3995, 0.01
    %v4126 = vmul.f32 %v4014, 0.01
    %v4127 = vmul.f32 %v4033, 0.01
    %v4128 = vmul.f32 %v4052, 0.01
    %v4129 = vmul.f32 %v4071, 0.01
    %v4130 = vmul.f32 %v4090, 0.01
    %v4131 = vmul.f32 %v3503, 0.01
    %v4132 = vmul.f32 %v3522, 0.01
    %v4133 = vmul.f32 %v3541, 0.01
    %v4134 = vmul.f32 %v3560, 0.01
    %v4135 = vmul.f32 %v3579, 0.01
    %v4136 = vmul.f32 %v3598, 0.01
    %v4137 = vmul.f32 %v3617, 0.01
    %v4138 = vmul.f32 %v3636, 0.01
    %v4139 = vmul.f32 %v3655, 0.01
    %v4140 = vmul.f32 %v3674, 0.01
    %v4141 = vmul.f32 %v3693, 0.01
    %v4142 = vmul.f32 %v3712, 0.01
    %v4143 = vmul.f32 %v3731, 0.01
    %v4144 = vmul.f32 %v3750, 0.01
    %v4145 = vmul.f32 %v3769, 0.01
    %v4146 = vmul.f32 %v3788, 0.01
    %v4147 = vmul.f32 %v3807, 0.01
    %v4148 = vmul.f32 %v3826, 0.01
    %v4149 = vmul.f32 %v3845, 0.01
    %v4150 = vmul.f32 %v3864, 0.01
    %v4151 = vmul.f32 %v3883, 0.01
    %v4152 = vmul.f32 %v3902, 0.01
    %v4153 = vmul.f32 %v3921, 0.01
    %v4154 = vmul.f32 %v3940, 0.01
    %v4155 = vmul.f32 %v3959, 0.01
    %v4156 = vmul.f32 %v3978, 0.01
    %v4157 = vmul.f32 %v3997, 0.01
    %v4158 = vmul.f32 %v4016, 0.01
    %v4159 = vmul.f32 %v4035, 0.01
    %v4160 = vmul.f32 %v4054, 0.01
    %v4161 = vmul.f32 %v4073, 0.01
    %v4162 = vmul.f32 %v4092, 0.01
    %v4163 = vmul.f32 %v3506, 0.01
    %v4164 = vmul.f32 %v3525, 0.01
    %v4165 = vmul.f32 %v3544, 0.01
    %v4166 = vmul.f32 %v3563, 0.01
    %v4167 = vmul.f32 %v3582, 0.01
    %v4168 = vmul.f32 %v3601, 0.01
    %v4169 = vmul.f32 %v3620, 0.01
    %v4170 = vmul.f32 %v3639, 0.01
    %v4171 = vmul.f32 %v3658, 0.01
    %v4172 = vmul.f32 %v3677, 0.01
    %v4173 = vmul.f32 %v3696, 0.01
    %v4174 = vmul.f32 %v3715, 0.01
    %v4175 = vmul.f32 %v3734, 0.01
    %v4176 = vmul.f32 %v3753, 0.01
    %v4177 = vmul.f32 %v3772, 0.01
    %v4178 = vmul.f32 %v3791, 0.01
    %v4179 = vmul.f32 %v3810, 0.01
    %v4180 = vmul.f32 %v3829, 0.01
    %v4181 = vmul.f32 %v3848, 0.01
    %v4182 = vmul.f32 %v3867, 0.01
    %v4183 = vmul.f32 %v3886, 0.01
    %v4184 = vmul.f32 %v3905, 0.01
    %v4185 = vmul.f32 %v3924, 0.01
    %v4186 = vmul.f32 %v3943, 0.01
    %v4187 = vmul.f32 %v3962, 0.01
    %v4188 = vmul.f32 %v3981, 0.01
    %v4189 = vmul.f32 %v4000, 0.01
    %v4190 = vmul.f32 %v4019, 0.01
    %v4191 = vmul.f32 %v4038, 0.01
    %v4192 = vmul.f32 %v4057, 0.01
    %v4193 = vmul.f32 %v4076, 0.01
    %v4194 = vmul.f32 %v4095, 0.01
    %v4195 = vmul.f32 %v3508, 0.01
    %v4196 = vmul.f32 %v3527, 0.01
    %v4197 = vmul.f32 %v3546, 0.01
    %v4198 = vmul.f32 %v3565, 0.01
    %v4199 = vmul.f32 %v3584, 0.01
    %v4200 = vmul.f32 %v3603, 0.01
    %v4201 = vmul.f32 %v3622, 0.01
    %v4202 = vmul.f32 %v3641, 0.01
    %v4203 = vmul.f32 %v3660, 0.01
    %v4204 = vmul.f32 %v3679, 0.01
    %v4205 = vmul.f32 %v3698, 0.01
    %v4206 = vmul.f32 %v3717, 0.01
    %v4207 = vmul.f32 %v3736, 0.01
    %v4208 = vmul.f32 %v3755, 0.01
    %v4209 = vmul.f32 %v3774, 0.01
    %v4210 = vmul.f32 %v3793, 0.01
    %v4211 = vmul.f32 %v3812, 0.01
    %v4212 = vmul.f32 %v3831, 0.01
    %v4213 = vmul.f32 %v3850, 0.01
    %v4214 = vmul.f32 %v3869, 0.01
    %v4215 = vmul.f32 %v3888, 0.01
    %v4216 = vmul.f32 %v3907, 0.01
    %v4217 = vmul.f32 %v3926, 0.01
    %v4218 = vmul.f32 %v3945, 0.01
    %v4219 = vmul.f32 %v3964, 0.01
    %v4220 = vmul.f32 %v3983, 0.01
    %v4221 = vmul.f32 %v4002, 0.01
    %v4222 = vmul.f32 %v4021, 0.01
    %v4223 = vmul.f32 %v4040, 0.01
    %v4224 = vmul.f32 %v4059, 0.01
    %v4225 = vmul.f32 %v4078, 0.01
    %v4226 = vmul.f32 %v4097, 0.01
    %v4227 = vmax.f32 %v3501, %v4099
    %v4228 = vmax.f32 %v3520, %v4100
    %v4229 = vmax.f32 %v3539, %v4101
    %v4230 = vmax.f32 %v3558, %v4102
    %v4231 = vmax.f32 %v3577, %v4103
    %v4232 = vmax.f32 %v3596, %v4104
    %v4233 = vmax.f32 %v3615, %v4105
    %v4234 = vmax.f32 %v3634, %v4106
    %v4235 = vmax.f32 %v3653, %v4107
    %v4236 = vmax.f32 %v3672, %v4108
    %v4237 = vmax.f32 %v3691, %v4109
    %v4238 = vmax.f32 %v3710, %v4110
    %v4239 = vmax.f32 %v3729, %v4111
    %v4240 = vmax.f32 %v3748, %v4112
    %v4241 = vmax.f32 %v3767, %v4113
    %v4242 = vmax.f32 %v3786, %v4114
    %v4243 = vmax.f32 %v3805, %v4115
    %v4244 = vmax.f32 %v3824, %v4116
    %v4245 = vmax.f32 %v3843, %v4117
    %v4246 = vmax.f32 %v3862, %v4118
    %v4247 = vmax.f32 %v3881, %v4119
    %v4248 = vmax.f32 %v3900, %v4120
    %v4249 = vmax.f32 %v3919, %v4121
    %v4250 = vmax.f32 %v3938, %v4122
    %v4251 = vmax.f32 %v3957, %v4123
    %v4252 = vmax.f32 %v3976, %v4124
    %v4253 = vmax.f32 %v3995, %v4125
    %v4254 = vmax.f32 %v4014, %v4126
    %v4255 = vmax.f32 %v4033, %v4127
    %v4256 = vmax.f32 %v4052, %v4128
    %v4257 = vmax.f32 %v4071, %v4129
    %v4258 = vmax.f32 %v4090, %v4130
    %v4259 = vmax.f32 %v3503, %v4131
    %v4260 = vmax.f32 %v3522, %v4132
    %v4261 = vmax.f32 %v3541, %v4133
    %v4262 = vmax.f32 %v3560, %v4134
    %v4263 = vmax.f32 %v3579, %v4135
    %v4264 = vmax.f32 %v3598, %v4136
    %v4265 = vmax.f32 %v3617, %v4137
    %v4266 = vmax.f32 %v3636, %v4138
    %v4267 = vmax.f32 %v3655, %v4139
    %v4268 = vmax.f32 %v3674, %v4140
    %v4269 = vmax.f32 %v3693, %v4141
    %v4270 = vmax.f32 %v3712, %v4142
    %v4271 = vmax.f32 %v3731, %v4143
    %v4272 = vmax.f32 %v3750, %v4144
    %v4273 = vmax.f32 %v3769, %v4145
    %v4274 = vmax.f32 %v3788, %v4146
    %v4275 = vmax.f32 %v3807, %v4147
    %v4276 = vmax.f32 %v3826, %v4148
    %v4277 = vmax.f32 %v3845, %v4149
    %v4278 = vmax.f32 %v3864, %v4150
    %v4279 = vmax.f32 %v3883, %v4151
    %v4280 = vmax.f32 %v3902, %v4152
    %v4281 = vmax.f32 %v3921, %v4153
    %v4282 = vmax.f32 %v3940, %v4154
    %v4283 = vmax.f32 %v3959, %v4155
    %v4284 = vmax.f32 %v3978, %v4156
    %v4285 = vmax.f32 %v3997, %v4157
    %v4286 = vmax.f32 %v4016, %v4158
    %v4287 = vmax.f32 %v4035, %v4159
    %v4288 = vmax.f32 %v4054, %v4160
    %v4289 = vmax.f32 %v4073, %v4161
    %v4290 = vmax.f32 %v4092, %v4162
    %v4291 = vmax.f32 %v3506, %v4163
    %v4292 = vmax.f32 %v3525, %v4164
    %v4293 = vmax.f32 %v3544, %v4165
    %v4294 = vmax.f32 %v3563, %v4166
    %v4295 = vmax.f32 %v3582, %v4167
    %v4296 = vmax.f32 %v3601, %v4168
    %v4297 = vmax.f32 %v3620, %v4169
    %v4298 = vmax.f32 %v3639, %v4170
    %v4299 = vmax.f32 %v3658, %v4171
    %v4300 = vmax.f32 %v3677, %v4172
    %v4301 = vmax.f32 %v3696, %v4173
    %v4302 = vmax.f32 %v3715, %v4174
    %v4303 = vmax.f32 %v3734, %v4175
    %v4304 = vmax.f32 %v3753, %v4176
    %v4305 = vmax.f32 %v3772, %v4177
    %v4306 = vmax.f32 %v3791, %v4178
    %v4307 = vmax.f32 %v3810, %v4179
    %v4308 = vmax.f32 %v3829, %v4180
    %v4309 = vmax.f32 %v3848, %v4181
    %v4310 = vmax.f32 %v3867, %v4182
    %v4311 = vmax.f32 %v3886, %v4183
    %v4312 = vmax.f32 %v3905, %v4184
    %v4313 = vmax.f32 %v3924, %v4185
    %v4314 = vmax.f32 %v3943, %v4186
    %v4315 = vmax.f32 %v3962, %v4187
    %v4316 = vmax.f32 %v3981, %v4188
    %v4317 = vmax.f32 %v4000, %v4189
    %v4318 = vmax.f32 %v4019, %v4190
    %v4319 = vmax.f32 %v4038, %v4191
    %v4320 = vmax.f32 %v4057, %v4192
    %v4321 = vmax.f32 %v4076, %v4193
    %v4322 = vmax.f32 %v4095, %v4194
    %v4323 = vmax.f32 %v3508, %v4195
    %v4324 = vmax.f32 %v3527, %v4196
    %v4325 = vmax.f32 %v3546, %v4197
    %v4326 = vmax.f32 %v3565, %v4198
    %v4327 = vmax.f32 %v3584, %v4199
    %v4328 = vmax.f32 %v3603, %v4200
    %v4329 = vmax.f32 %v3622, %v4201
    %v4330 = vmax.f32 %v3641, %v4202
    %v4331 = vmax.f32 %v3660, %v4203
    %v4332 = vmax.f32 %v3679, %v4204
    %v4333 = vmax.f32 %v3698, %v4205
    %v4334 = vmax.f32 %v3717, %v4206
    %v4335 = vmax.f32 %v3736, %v4207
    %v4336 = vmax.f32 %v3755, %v4208
    %v4337 = vmax.f32 %v3774, %v4209
    %v4338 = vmax.f32 %v3793, %v4210
    %v4339 = vmax.f32 %v3812, %v4211
    %v4340 = vmax.f32 %v3831, %v4212
    %v4341 = vmax.f32 %v3850, %v4213
    %v4342 = vmax.f32 %v3869, %v4214
    %v4343 = vmax.f32 %v3888, %v4215
    %v4344 = vmax.f32 %v3907, %v4216
    %v4345 = vmax.f32 %v3926, %v4217
    %v4346 = vmax.f32 %v3945, %v4218
    %v4347 = vmax.f32 %v3964, %v4219
    %v4348 = vmax.f32 %v3983, %v4220
    %v4349 = vmax.f32 %v4002, %v4221
    %v4350 = vmax.f32 %v4021, %v4222
    %v4351 = vmax.f32 %v4040, %v4223
    %v4352 = vmax.f32 %v4059, %v4224
    %v4353 = vmax.f32 %v4078, %v4225
    %v4354 = vmax.f32 %v4097, %v4226
    %s4355 = scalar_lea.vmem %s3, 32
    %v4356 = vld [vmem:[%s4355] sm:$0xf]
    %v4357 = vld [vmem:[%s4355 + $0x4] sm:$0xf]
    %v4358 = vld [vmem:[%s4355 + $0x8] sm:$0xf]
    %v4359 = vld [vmem:[%s4355 + $0xc] sm:$0xf]
    %v4360 = vpack.c.bf16 %v4259, %v4227
    %v4361 = vpack.c.bf16 %v4260, %v4228
    %v4362 = vpack.c.bf16 %v4261, %v4229
    %v4363 = vpack.c.bf16 %v4262, %v4230
    %v4364 = vpack.c.bf16 %v4263, %v4231
    %v4365 = vpack.c.bf16 %v4264, %v4232
    %v4366 = vpack.c.bf16 %v4265, %v4233
    %v4367 = vpack.c.bf16 %v4266, %v4234
    %v4368 = vpack.c.bf16 %v4267, %v4235
    %v4369 = vpack.c.bf16 %v4268, %v4236
    %v4370 = vpack.c.bf16 %v4269, %v4237
    %v4371 = vpack.c.bf16 %v4270, %v4238
    %v4372 = vpack.c.bf16 %v4271, %v4239
    %v4373 = vpack.c.bf16 %v4272, %v4240
    %v4374 = vpack.c.bf16 %v4273, %v4241
    %v4375 = vpack.c.bf16 %v4274, %v4242
    %v4376 = vpack.c.bf16 %v4275, %v4243
    %v4377 = vpack.c.bf16 %v4276, %v4244
    %v4378 = vpack.c.bf16 %v4277, %v4245
    %v4379 = vpack.c.bf16 %v4278, %v4246
    %v4380 = vpack.c.bf16 %v4279, %v4247
    %v4381 = vpack.c.bf16 %v4280, %v4248
    %v4382 = vpack.c.bf16 %v4281, %v4249
    %v4383 = vpack.c.bf16 %v4282, %v4250
    %v4384 = vpack.c.bf16 %v4283, %v4251
    %v4385 = vpack.c.bf16 %v4284, %v4252
    %v4386 = vpack.c.bf16 %v4285, %v4253
    %v4387 = vpack.c.bf16 %v4286, %v4254
    %v4388 = vpack.c.bf16 %v4287, %v4255
    %v4389 = vpack.c.bf16 %v4288, %v4256
    %v4390 = vpack.c.bf16 %v4289, %v4257
    %v4391 = vpack.c.bf16 %v4290, %v4258
    %v4392 = vpack.c.bf16 %v4323, %v4291
    %v4393 = vpack.c.bf16 %v4324, %v4292
    %v4394 = vpack.c.bf16 %v4325, %v4293
    %v4395 = vpack.c.bf16 %v4326, %v4294
    %v4396 = vpack.c.bf16 %v4327, %v4295
    %v4397 = vpack.c.bf16 %v4328, %v4296
    %v4398 = vpack.c.bf16 %v4329, %v4297
    %v4399 = vpack.c.bf16 %v4330, %v4298
    %v4400 = vpack.c.bf16 %v4331, %v4299
    %v4401 = vpack.c.bf16 %v4332, %v4300
    %v4402 = vpack.c.bf16 %v4333, %v4301
    %v4403 = vpack.c.bf16 %v4334, %v4302
    %v4404 = vpack.c.bf16 %v4335, %v4303
    %v4405 = vpack.c.bf16 %v4336, %v4304
    %v4406 = vpack.c.bf16 %v4337, %v4305
    %v4407 = vpack.c.bf16 %v4338, %v4306
    %v4408 = vpack.c.bf16 %v4339, %v4307
    %v4409 = vpack.c.bf16 %v4340, %v4308
    %v4410 = vpack.c.bf16 %v4341, %v4309
    %v4411 = vpack.c.bf16 %v4342, %v4310
    %v4412 = vpack.c.bf16 %v4343, %v4311
    %v4413 = vpack.c.bf16 %v4344, %v4312
    %v4414 = vpack.c.bf16 %v4345, %v4313
    %v4415 = vpack.c.bf16 %v4346, %v4314
    %v4416 = vpack.c.bf16 %v4347, %v4315
    %v4417 = vpack.c.bf16 %v4348, %v4316
    %v4418 = vpack.c.bf16 %v4349, %v4317
    %v4419 = vpack.c.bf16 %v4350, %v4318
    %v4420 = vpack.c.bf16 %v4351, %v4319
    %v4421 = vpack.c.bf16 %v4352, %v4320
    %v4422 = vpack.c.bf16 %v4353, %v4321
    %v4423 = vpack.c.bf16 %v4354, %v4322
    %v4428 = vunpack.c.l.b16 %v4356
    %v4429 = vunpack.c.l.b16 %v4357
    %v4430 = vunpack.c.l.b16 %v4358
    %v4431 = vunpack.c.l.b16 %v4359
    %v4432 = vpack.c.b16 %v4429, %v4428
    %v4433 = vpack.c.b16 %v4431, %v4430
    %v4435 = vsel %vm2535, %v4432, 0
    %v4438 = vsel %vm2535, %v4433, 0
    %4440 = vmatpush.bf16.msra.mxu0 0
    %4441 = vmatpush.bf16.msra.mxu0 0
    %4442 = vmatpush.bf16.msra.mxu0 0
    %4443 = vmatpush.bf16.msra.mxu0 0
    %4444 = vmatpush.bf16.msra.mxu0 0
    %4445 = vmatpush.bf16.msra.mxu0 0
    %4446 = vmatpush.bf16.msra.mxu0 %v4392
    %4447 = vmatpush.bf16.msra.mxu0 %v4360
    %4448 = vmatmul.bf16.gmra.mxu0 %v4435
    %v4449 = vpop.f32.mrf.mxu0
    %v4450 = vadd.f32 %v535, %v4449
    %v4451 = vpop.f32.mrf.mxu0
    %v4452 = vadd.f32 %v537, %v4451
    %4453 = vmatmul.bf16.gmra.mxu0 %v4438
    %v4454 = vpop.f32.mrf.mxu0
    %v4455 = vadd.f32 %v540, %v4454
    %v4456 = vpop.f32.mrf.mxu0
    %v4457 = vadd.f32 %v542, %v4456
    %4458 = vdwg.mxu0
    %4459 = vmatpush.bf16.msra.mxu0 0
    %4460 = vmatpush.bf16.msra.mxu0 0
    %4461 = vmatpush.bf16.msra.mxu0 0
    %4462 = vmatpush.bf16.msra.mxu0 0
    %4463 = vmatpush.bf16.msra.mxu0 0
    %4464 = vmatpush.bf16.msra.mxu0 0
    %4465 = vmatpush.bf16.msra.mxu0 %v4393
    %4466 = vmatpush.bf16.msra.mxu0 %v4361
    %4467 = vmatmul.bf16.gmra.mxu0 %v4435
    %v4468 = vpop.f32.mrf.mxu0
    %v4469 = vadd.f32 %v588, %v4468
    %v4470 = vpop.f32.mrf.mxu0
    %v4471 = vadd.f32 %v590, %v4470
    %4472 = vmatmul.bf16.gmra.mxu0 %v4438
    %v4473 = vpop.f32.mrf.mxu0
    %v4474 = vadd.f32 %v593, %v4473
    %v4475 = vpop.f32.mrf.mxu0
    %v4476 = vadd.f32 %v595, %v4475
    %4477 = vdwg.mxu0
    %4478 = vmatpush.bf16.msra.mxu0 0
    %4479 = vmatpush.bf16.msra.mxu0 0
    %4480 = vmatpush.bf16.msra.mxu0 0
    %4481 = vmatpush.bf16.msra.mxu0 0
    %4482 = vmatpush.bf16.msra.mxu0 0
    %4483 = vmatpush.bf16.msra.mxu0 0
    %4484 = vmatpush.bf16.msra.mxu0 %v4394
    %4485 = vmatpush.bf16.msra.mxu0 %v4362
    %4486 = vmatmul.bf16.gmra.mxu0 %v4435
    %v4487 = vpop.f32.mrf.mxu0
    %v4488 = vadd.f32 %v641, %v4487
    %v4489 = vpop.f32.mrf.mxu0
    %v4490 = vadd.f32 %v643, %v4489
    %4491 = vmatmul.bf16.gmra.mxu0 %v4438
    %v4492 = vpop.f32.mrf.mxu0
    %v4493 = vadd.f32 %v646, %v4492
    %v4494 = vpop.f32.mrf.mxu0
    %v4495 = vadd.f32 %v648, %v4494
    %4496 = vdwg.mxu0
    %4497 = vmatpush.bf16.msra.mxu0 0
    %4498 = vmatpush.bf16.msra.mxu0 0
    %4499 = vmatpush.bf16.msra.mxu0 0
    %4500 = vmatpush.bf16.msra.mxu0 0
    %4501 = vmatpush.bf16.msra.mxu0 0
    %4502 = vmatpush.bf16.msra.mxu0 0
    %4503 = vmatpush.bf16.msra.mxu0 %v4395
    %4504 = vmatpush.bf16.msra.mxu0 %v4363
    %4505 = vmatmul.bf16.gmra.mxu0 %v4435
    %v4506 = vpop.f32.mrf.mxu0
    %v4507 = vadd.f32 %v694, %v4506
    %v4508 = vpop.f32.mrf.mxu0
    %v4509 = vadd.f32 %v696, %v4508
    %4510 = vmatmul.bf16.gmra.mxu0 %v4438
    %v4511 = vpop.f32.mrf.mxu0
    %v4512 = vadd.f32 %v699, %v4511
    %v4513 = vpop.f32.mrf.mxu0
    %v4514 = vadd.f32 %v701, %v4513
    %4515 = vdwg.mxu0
    %4516 = vmatpush.bf16.msra.mxu0 0
    %4517 = vmatpush.bf16.msra.mxu0 0
    %4518 = vmatpush.bf16.msra.mxu0 0
    %4519 = vmatpush.bf16.msra.mxu0 0
    %4520 = vmatpush.bf16.msra.mxu0 0
    %4521 = vmatpush.bf16.msra.mxu0 0
    %4522 = vmatpush.bf16.msra.mxu0 %v4396
    %4523 = vmatpush.bf16.msra.mxu0 %v4364
    %4524 = vmatmul.bf16.gmra.mxu0 %v4435
    %v4525 = vpop.f32.mrf.mxu0
    %v4526 = vadd.f32 %v747, %v4525
    %v4527 = vpop.f32.mrf.mxu0
    %v4528 = vadd.f32 %v749, %v4527
    %4529 = vmatmul.bf16.gmra.mxu0 %v4438
    %v4530 = vpop.f32.mrf.mxu0
    %v4531 = vadd.f32 %v752, %v4530
    %v4532 = vpop.f32.mrf.mxu0
    %v4533 = vadd.f32 %v754, %v4532
    %4534 = vdwg.mxu0
    %4535 = vmatpush.bf16.msra.mxu0 0
    %4536 = vmatpush.bf16.msra.mxu0 0
    %4537 = vmatpush.bf16.msra.mxu0 0
    %4538 = vmatpush.bf16.msra.mxu0 0
    %4539 = vmatpush.bf16.msra.mxu0 0
    %4540 = vmatpush.bf16.msra.mxu0 0
    %4541 = vmatpush.bf16.msra.mxu0 %v4397
    %4542 = vmatpush.bf16.msra.mxu0 %v4365
    %4543 = vmatmul.bf16.gmra.mxu0 %v4435
    %v4544 = vpop.f32.mrf.mxu0
    %v4545 = vadd.f32 %v800, %v4544
    %v4546 = vpop.f32.mrf.mxu0
    %v4547 = vadd.f32 %v802, %v4546
    %4548 = vmatmul.bf16.gmra.mxu0 %v4438
    %v4549 = vpop.f32.mrf.mxu0
    %v4550 = vadd.f32 %v805, %v4549
    %v4551 = vpop.f32.mrf.mxu0
    %v4552 = vadd.f32 %v807, %v4551
    %4553 = vdwg.mxu0
    %4554 = vmatpush.bf16.msra.mxu0 0
    %4555 = vmatpush.bf16.msra.mxu0 0
    %4556 = vmatpush.bf16.msra.mxu0 0
    %4557 = vmatpush.bf16.msra.mxu0 0
    %4558 = vmatpush.bf16.msra.mxu0 0
    %4559 = vmatpush.bf16.msra.mxu0 0
    %4560 = vmatpush.bf16.msra.mxu0 %v4398
    %4561 = vmatpush.bf16.msra.mxu0 %v4366
    %4562 = vmatmul.bf16.gmra.mxu0 %v4435
    %v4563 = vpop.f32.mrf.mxu0
    %v4564 = vadd.f32 %v853, %v4563
    %v4565 = vpop.f32.mrf.mxu0
    %v4566 = vadd.f32 %v855, %v4565
    %4567 = vmatmul.bf16.gmra.mxu0 %v4438
    %v4568 = vpop.f32.mrf.mxu0
    %v4569 = vadd.f32 %v858, %v4568
    %v4570 = vpop.f32.mrf.mxu0
    %v4571 = vadd.f32 %v860, %v4570
    %4572 = vdwg.mxu0
    %4573 = vmatpush.bf16.msra.mxu0 0
    %4574 = vmatpush.bf16.msra.mxu0 0
    %4575 = vmatpush.bf16.msra.mxu0 0
    %4576 = vmatpush.bf16.msra.mxu0 0
    %4577 = vmatpush.bf16.msra.mxu0 0
    %4578 = vmatpush.bf16.msra.mxu0 0
    %4579 = vmatpush.bf16.msra.mxu0 %v4399
    %4580 = vmatpush.bf16.msra.mxu0 %v4367
    %4581 = vmatmul.bf16.gmra.mxu0 %v4435
    %v4582 = vpop.f32.mrf.mxu0
    %v4583 = vadd.f32 %v906, %v4582
    %v4584 = vpop.f32.mrf.mxu0
    %v4585 = vadd.f32 %v908, %v4584
    %4586 = vmatmul.bf16.gmra.mxu0 %v4438
    %v4587 = vpop.f32.mrf.mxu0
    %v4588 = vadd.f32 %v911, %v4587
    %v4589 = vpop.f32.mrf.mxu0
    %v4590 = vadd.f32 %v913, %v4589
    %4591 = vdwg.mxu0
    %4592 = vmatpush.bf16.msra.mxu0 0
    %4593 = vmatpush.bf16.msra.mxu0 0
    %4594 = vmatpush.bf16.msra.mxu0 0
    %4595 = vmatpush.bf16.msra.mxu0 0
    %4596 = vmatpush.bf16.msra.mxu0 0
    %4597 = vmatpush.bf16.msra.mxu0 0
    %4598 = vmatpush.bf16.msra.mxu0 %v4400
    %4599 = vmatpush.bf16.msra.mxu0 %v4368
    %4600 = vmatmul.bf16.gmra.mxu0 %v4435
    %v4601 = vpop.f32.mrf.mxu0
    %v4602 = vadd.f32 %v959, %v4601
    %v4603 = vpop.f32.mrf.mxu0
    %v4604 = vadd.f32 %v961, %v4603
    %4605 = vmatmul.bf16.gmra.mxu0 %v4438
    %v4606 = vpop.f32.mrf.mxu0
    %v4607 = vadd.f32 %v964, %v4606
    %v4608 = vpop.f32.mrf.mxu0
    %v4609 = vadd.f32 %v966, %v4608
    %4610 = vdwg.mxu0
    %4611 = vmatpush.bf16.msra.mxu0 0
    %4612 = vmatpush.bf16.msra.mxu0 0
    %4613 = vmatpush.bf16.msra.mxu0 0
    %4614 = vmatpush.bf16.msra.mxu0 0
    %4615 = vmatpush.bf16.msra.mxu0 0
    %4616 = vmatpush.bf16.msra.mxu0 0
    %4617 = vmatpush.bf16.msra.mxu0 %v4401
    %4618 = vmatpush.bf16.msra.mxu0 %v4369
    %4619 = vmatmul.bf16.gmra.mxu0 %v4435
    %v4620 = vpop.f32.mrf.mxu0
    %v4621 = vadd.f32 %v1012, %v4620
    %v4622 = vpop.f32.mrf.mxu0
    %v4623 = vadd.f32 %v1014, %v4622
    %4624 = vmatmul.bf16.gmra.mxu0 %v4438
    %v4625 = vpop.f32.mrf.mxu0
    %v4626 = vadd.f32 %v1017, %v4625
    %v4627 = vpop.f32.mrf.mxu0
    %v4628 = vadd.f32 %v1019, %v4627
    %4629 = vdwg.mxu0
    %4630 = vmatpush.bf16.msra.mxu0 0
    %4631 = vmatpush.bf16.msra.mxu0 0
    %4632 = vmatpush.bf16.msra.mxu0 0
    %4633 = vmatpush.bf16.msra.mxu0 0
    %4634 = vmatpush.bf16.msra.mxu0 0
    %4635 = vmatpush.bf16.msra.mxu0 0
    %4636 = vmatpush.bf16.msra.mxu0 %v4402
    %4637 = vmatpush.bf16.msra.mxu0 %v4370
    %4638 = vmatmul.bf16.gmra.mxu0 %v4435
    %v4639 = vpop.f32.mrf.mxu0
    %v4640 = vadd.f32 %v1065, %v4639
    %v4641 = vpop.f32.mrf.mxu0
    %v4642 = vadd.f32 %v1067, %v4641
    %4643 = vmatmul.bf16.gmra.mxu0 %v4438
    %v4644 = vpop.f32.mrf.mxu0
    %v4645 = vadd.f32 %v1070, %v4644
    %v4646 = vpop.f32.mrf.mxu0
    %v4647 = vadd.f32 %v1072, %v4646
    %4648 = vdwg.mxu0
    %4649 = vmatpush.bf16.msra.mxu0 0
    %4650 = vmatpush.bf16.msra.mxu0 0
    %4651 = vmatpush.bf16.msra.mxu0 0
    %4652 = vmatpush.bf16.msra.mxu0 0
    %4653 = vmatpush.bf16.msra.mxu0 0
    %4654 = vmatpush.bf16.msra.mxu0 0
    %4655 = vmatpush.bf16.msra.mxu0 %v4403
    %4656 = vmatpush.bf16.msra.mxu0 %v4371
    %4657 = vmatmul.bf16.gmra.mxu0 %v4435
    %v4658 = vpop.f32.mrf.mxu0
    %v4659 = vadd.f32 %v1118, %v4658
    %v4660 = vpop.f32.mrf.mxu0
    %v4661 = vadd.f32 %v1120, %v4660
    %4662 = vmatmul.bf16.gmra.mxu0 %v4438
    %v4663 = vpop.f32.mrf.mxu0
    %v4664 = vadd.f32 %v1123, %v4663
    %v4665 = vpop.f32.mrf.mxu0
    %v4666 = vadd.f32 %v1125, %v4665
    %4667 = vdwg.mxu0
    %4668 = vmatpush.bf16.msra.mxu0 0
    %4669 = vmatpush.bf16.msra.mxu0 0
    %4670 = vmatpush.bf16.msra.mxu0 0
    %4671 = vmatpush.bf16.msra.mxu0 0
    %4672 = vmatpush.bf16.msra.mxu0 0
    %4673 = vmatpush.bf16.msra.mxu0 0
    %4674 = vmatpush.bf16.msra.mxu0 %v4404
    %4675 = vmatpush.bf16.msra.mxu0 %v4372
    %4676 = vmatmul.bf16.gmra.mxu0 %v4435
    %v4677 = vpop.f32.mrf.mxu0
    %v4678 = vadd.f32 %v1171, %v4677
    %v4679 = vpop.f32.mrf.mxu0
    %v4680 = vadd.f32 %v1173, %v4679
    %4681 = vmatmul.bf16.gmra.mxu0 %v4438
    %v4682 = vpop.f32.mrf.mxu0
    %v4683 = vadd.f32 %v1176, %v4682
    %v4684 = vpop.f32.mrf.mxu0
    %v4685 = vadd.f32 %v1178, %v4684
    %4686 = vdwg.mxu0
    %4687 = vmatpush.bf16.msra.mxu0 0
    %4688 = vmatpush.bf16.msra.mxu0 0
    %4689 = vmatpush.bf16.msra.mxu0 0
    %4690 = vmatpush.bf16.msra.mxu0 0
    %4691 = vmatpush.bf16.msra.mxu0 0
    %4692 = vmatpush.bf16.msra.mxu0 0
    %4693 = vmatpush.bf16.msra.mxu0 %v4405
    %4694 = vmatpush.bf16.msra.mxu0 %v4373
    %4695 = vmatmul.bf16.gmra.mxu0 %v4435
    %v4696 = vpop.f32.mrf.mxu0
    %v4697 = vadd.f32 %v1224, %v4696
    %v4698 = vpop.f32.mrf.mxu0
    %v4699 = vadd.f32 %v1226, %v4698
    %4700 = vmatmul.bf16.gmra.mxu0 %v4438
    %v4701 = vpop.f32.mrf.mxu0
    %v4702 = vadd.f32 %v1229, %v4701
    %v4703 = vpop.f32.mrf.mxu0
    %v4704 = vadd.f32 %v1231, %v4703
    %4705 = vdwg.mxu0
    %4706 = vmatpush.bf16.msra.mxu0 0
    %4707 = vmatpush.bf16.msra.mxu0 0
    %4708 = vmatpush.bf16.msra.mxu0 0
    %4709 = vmatpush.bf16.msra.mxu0 0
    %4710 = vmatpush.bf16.msra.mxu0 0
    %4711 = vmatpush.bf16.msra.mxu0 0
    %4712 = vmatpush.bf16.msra.mxu0 %v4406
    %4713 = vmatpush.bf16.msra.mxu0 %v4374
    %4714 = vmatmul.bf16.gmra.mxu0 %v4435
    %v4715 = vpop.f32.mrf.mxu0
    %v4716 = vadd.f32 %v1277, %v4715
    %v4717 = vpop.f32.mrf.mxu0
    %v4718 = vadd.f32 %v1279, %v4717
    %4719 = vmatmul.bf16.gmra.mxu0 %v4438
    %v4720 = vpop.f32.mrf.mxu0
    %v4721 = vadd.f32 %v1282, %v4720
    %v4722 = vpop.f32.mrf.mxu0
    %v4723 = vadd.f32 %v1284, %v4722
    %4724 = vdwg.mxu0
    %4725 = vmatpush.bf16.msra.mxu0 0
    %4726 = vmatpush.bf16.msra.mxu0 0
    %4727 = vmatpush.bf16.msra.mxu0 0
    %4728 = vmatpush.bf16.msra.mxu0 0
    %4729 = vmatpush.bf16.msra.mxu0 0
    %4730 = vmatpush.bf16.msra.mxu0 0
    %4731 = vmatpush.bf16.msra.mxu0 %v4407
    %4732 = vmatpush.bf16.msra.mxu0 %v4375
    %4733 = vmatmul.bf16.gmra.mxu0 %v4435
    %v4734 = vpop.f32.mrf.mxu0
    %v4735 = vadd.f32 %v1330, %v4734
    %v4736 = vpop.f32.mrf.mxu0
    %v4737 = vadd.f32 %v1332, %v4736
    %4738 = vmatmul.bf16.gmra.mxu0 %v4438
    %v4739 = vpop.f32.mrf.mxu0
    %v4740 = vadd.f32 %v1335, %v4739
    %v4741 = vpop.f32.mrf.mxu0
    %v4742 = vadd.f32 %v1337, %v4741
    %4743 = vdwg.mxu0
    %4744 = vmatpush.bf16.msra.mxu0 0
    %4745 = vmatpush.bf16.msra.mxu0 0
    %4746 = vmatpush.bf16.msra.mxu0 0
    %4747 = vmatpush.bf16.msra.mxu0 0
    %4748 = vmatpush.bf16.msra.mxu0 0
    %4749 = vmatpush.bf16.msra.mxu0 0
    %4750 = vmatpush.bf16.msra.mxu0 %v4408
    %4751 = vmatpush.bf16.msra.mxu0 %v4376
    %4752 = vmatmul.bf16.gmra.mxu0 %v4435
    %v4753 = vpop.f32.mrf.mxu0
    %v4754 = vadd.f32 %v1383, %v4753
    %v4755 = vpop.f32.mrf.mxu0
    %v4756 = vadd.f32 %v1385, %v4755
    %4757 = vmatmul.bf16.gmra.mxu0 %v4438
    %v4758 = vpop.f32.mrf.mxu0
    %v4759 = vadd.f32 %v1388, %v4758
    %v4760 = vpop.f32.mrf.mxu0
    %v4761 = vadd.f32 %v1390, %v4760
    %4762 = vdwg.mxu0
    %4763 = vmatpush.bf16.msra.mxu0 0
    %4764 = vmatpush.bf16.msra.mxu0 0
    %4765 = vmatpush.bf16.msra.mxu0 0
    %4766 = vmatpush.bf16.msra.mxu0 0
    %4767 = vmatpush.bf16.msra.mxu0 0
    %4768 = vmatpush.bf16.msra.mxu0 0
    %4769 = vmatpush.bf16.msra.mxu0 %v4409
    %4770 = vmatpush.bf16.msra.mxu0 %v4377
    %4771 = vmatmul.bf16.gmra.mxu0 %v4435
    %v4772 = vpop.f32.mrf.mxu0
    %v4773 = vadd.f32 %v1436, %v4772
    %v4774 = vpop.f32.mrf.mxu0
    %v4775 = vadd.f32 %v1438, %v4774
    %4776 = vmatmul.bf16.gmra.mxu0 %v4438
    %v4777 = vpop.f32.mrf.mxu0
    %v4778 = vadd.f32 %v1441, %v4777
    %v4779 = vpop.f32.mrf.mxu0
    %v4780 = vadd.f32 %v1443, %v4779
    %4781 = vdwg.mxu0
    %4782 = vmatpush.bf16.msra.mxu0 0
    %4783 = vmatpush.bf16.msra.mxu0 0
    %4784 = vmatpush.bf16.msra.mxu0 0
    %4785 = vmatpush.bf16.msra.mxu0 0
    %4786 = vmatpush.bf16.msra.mxu0 0
    %4787 = vmatpush.bf16.msra.mxu0 0
    %4788 = vmatpush.bf16.msra.mxu0 %v4410
    %4789 = vmatpush.bf16.msra.mxu0 %v4378
    %4790 = vmatmul.bf16.gmra.mxu0 %v4435
    %v4791 = vpop.f32.mrf.mxu0
    %v4792 = vadd.f32 %v1489, %v4791
    %v4793 = vpop.f32.mrf.mxu0
    %v4794 = vadd.f32 %v1491, %v4793
    %4795 = vmatmul.bf16.gmra.mxu0 %v4438
    %v4796 = vpop.f32.mrf.mxu0
    %v4797 = vadd.f32 %v1494, %v4796
    %v4798 = vpop.f32.mrf.mxu0
    %v4799 = vadd.f32 %v1496, %v4798
    %4800 = vdwg.mxu0
    %4801 = vmatpush.bf16.msra.mxu0 0
    %4802 = vmatpush.bf16.msra.mxu0 0
    %4803 = vmatpush.bf16.msra.mxu0 0
    %4804 = vmatpush.bf16.msra.mxu0 0
    %4805 = vmatpush.bf16.msra.mxu0 0
    %4806 = vmatpush.bf16.msra.mxu0 0
    %4807 = vmatpush.bf16.msra.mxu0 %v4411
    %4808 = vmatpush.bf16.msra.mxu0 %v4379
    %4809 = vmatmul.bf16.gmra.mxu0 %v4435
    %v4810 = vpop.f32.mrf.mxu0
    %v4811 = vadd.f32 %v1542, %v4810
    %v4812 = vpop.f32.mrf.mxu0
    %v4813 = vadd.f32 %v1544, %v4812
    %4814 = vmatmul.bf16.gmra.mxu0 %v4438
    %v4815 = vpop.f32.mrf.mxu0
    %v4816 = vadd.f32 %v1547, %v4815
    %v4817 = vpop.f32.mrf.mxu0
    %v4818 = vadd.f32 %v1549, %v4817
    %4819 = vdwg.mxu0
    %4820 = vmatpush.bf16.msra.mxu0 0
    %4821 = vmatpush.bf16.msra.mxu0 0
    %4822 = vmatpush.bf16.msra.mxu0 0
    %4823 = vmatpush.bf16.msra.mxu0 0
    %4824 = vmatpush.bf16.msra.mxu0 0
    %4825 = vmatpush.bf16.msra.mxu0 0
    %4826 = vmatpush.bf16.msra.mxu0 %v4412
    %4827 = vmatpush.bf16.msra.mxu0 %v4380
    %4828 = vmatmul.bf16.gmra.mxu0 %v4435
    %v4829 = vpop.f32.mrf.mxu0
    %v4830 = vadd.f32 %v1595, %v4829
    %v4831 = vpop.f32.mrf.mxu0
    %v4832 = vadd.f32 %v1597, %v4831
    %4833 = vmatmul.bf16.gmra.mxu0 %v4438
    %v4834 = vpop.f32.mrf.mxu0
    %v4835 = vadd.f32 %v1600, %v4834
    %v4836 = vpop.f32.mrf.mxu0
    %v4837 = vadd.f32 %v1602, %v4836
    %4838 = vdwg.mxu0
    %4839 = vmatpush.bf16.msra.mxu0 0
    %4840 = vmatpush.bf16.msra.mxu0 0
    %4841 = vmatpush.bf16.msra.mxu0 0
    %4842 = vmatpush.bf16.msra.mxu0 0
    %4843 = vmatpush.bf16.msra.mxu0 0
    %4844 = vmatpush.bf16.msra.mxu0 0
    %4845 = vmatpush.bf16.msra.mxu0 %v4413
    %4846 = vmatpush.bf16.msra.mxu0 %v4381
    %4847 = vmatmul.bf16.gmra.mxu0 %v4435
    %v4848 = vpop.f32.mrf.mxu0
    %v4849 = vadd.f32 %v1648, %v4848
    %v4850 = vpop.f32.mrf.mxu0
    %v4851 = vadd.f32 %v1650, %v4850
    %4852 = vmatmul.bf16.gmra.mxu0 %v4438
    %v4853 = vpop.f32.mrf.mxu0
    %v4854 = vadd.f32 %v1653, %v4853
    %v4855 = vpop.f32.mrf.mxu0
    %v4856 = vadd.f32 %v1655, %v4855
    %4857 = vdwg.mxu0
    %4858 = vmatpush.bf16.msra.mxu0 0
    %4859 = vmatpush.bf16.msra.mxu0 0
    %4860 = vmatpush.bf16.msra.mxu0 0
    %4861 = vmatpush.bf16.msra.mxu0 0
    %4862 = vmatpush.bf16.msra.mxu0 0
    %4863 = vmatpush.bf16.msra.mxu0 0
    %4864 = vmatpush.bf16.msra.mxu0 %v4414
    %4865 = vmatpush.bf16.msra.mxu0 %v4382
    %4866 = vmatmul.bf16.gmra.mxu0 %v4435
    %v4867 = vpop.f32.mrf.mxu0
    %v4868 = vadd.f32 %v1701, %v4867
    %v4869 = vpop.f32.mrf.mxu0
    %v4870 = vadd.f32 %v1703, %v4869
    %4871 = vmatmul.bf16.gmra.mxu0 %v4438
    %v4872 = vpop.f32.mrf.mxu0
    %v4873 = vadd.f32 %v1706, %v4872
    %v4874 = vpop.f32.mrf.mxu0
    %v4875 = vadd.f32 %v1708, %v4874
    %4876 = vdwg.mxu0
    %4877 = vmatpush.bf16.msra.mxu0 0
    %4878 = vmatpush.bf16.msra.mxu0 0
    %4879 = vmatpush.bf16.msra.mxu0 0
    %4880 = vmatpush.bf16.msra.mxu0 0
    %4881 = vmatpush.bf16.msra.mxu0 0
    %4882 = vmatpush.bf16.msra.mxu0 0
    %4883 = vmatpush.bf16.msra.mxu0 %v4415
    %4884 = vmatpush.bf16.msra.mxu0 %v4383
    %4885 = vmatmul.bf16.gmra.mxu0 %v4435
    %v4886 = vpop.f32.mrf.mxu0
    %v4887 = vadd.f32 %v1754, %v4886
    %v4888 = vpop.f32.mrf.mxu0
    %v4889 = vadd.f32 %v1756, %v4888
    %4890 = vmatmul.bf16.gmra.mxu0 %v4438
    %v4891 = vpop.f32.mrf.mxu0
    %v4892 = vadd.f32 %v1759, %v4891
    %v4893 = vpop.f32.mrf.mxu0
    %v4894 = vadd.f32 %v1761, %v4893
    %4895 = vdwg.mxu0
    %4896 = vmatpush.bf16.msra.mxu0 0
    %4897 = vmatpush.bf16.msra.mxu0 0
    %4898 = vmatpush.bf16.msra.mxu0 0
    %4899 = vmatpush.bf16.msra.mxu0 0
    %4900 = vmatpush.bf16.msra.mxu0 0
    %4901 = vmatpush.bf16.msra.mxu0 0
    %4902 = vmatpush.bf16.msra.mxu0 %v4416
    %4903 = vmatpush.bf16.msra.mxu0 %v4384
    %4904 = vmatmul.bf16.gmra.mxu0 %v4435
    %v4905 = vpop.f32.mrf.mxu0
    %v4906 = vadd.f32 %v1807, %v4905
    %v4907 = vpop.f32.mrf.mxu0
    %v4908 = vadd.f32 %v1809, %v4907
    %4909 = vmatmul.bf16.gmra.mxu0 %v4438
    %v4910 = vpop.f32.mrf.mxu0
    %v4911 = vadd.f32 %v1812, %v4910
    %v4912 = vpop.f32.mrf.mxu0
    %v4913 = vadd.f32 %v1814, %v4912
    %4914 = vdwg.mxu0
    %4915 = vmatpush.bf16.msra.mxu0 0
    %4916 = vmatpush.bf16.msra.mxu0 0
    %4917 = vmatpush.bf16.msra.mxu0 0
    %4918 = vmatpush.bf16.msra.mxu0 0
    %4919 = vmatpush.bf16.msra.mxu0 0
    %4920 = vmatpush.bf16.msra.mxu0 0
    %4921 = vmatpush.bf16.msra.mxu0 %v4417
    %4922 = vmatpush.bf16.msra.mxu0 %v4385
    %4923 = vmatmul.bf16.gmra.mxu0 %v4435
    %v4924 = vpop.f32.mrf.mxu0
    %v4925 = vadd.f32 %v1860, %v4924
    %v4926 = vpop.f32.mrf.mxu0
    %v4927 = vadd.f32 %v1862, %v4926
    %4928 = vmatmul.bf16.gmra.mxu0 %v4438
    %v4929 = vpop.f32.mrf.mxu0
    %v4930 = vadd.f32 %v1865, %v4929
    %v4931 = vpop.f32.mrf.mxu0
    %v4932 = vadd.f32 %v1867, %v4931
    %4933 = vdwg.mxu0
    %4934 = vmatpush.bf16.msra.mxu0 0
    %4935 = vmatpush.bf16.msra.mxu0 0
    %4936 = vmatpush.bf16.msra.mxu0 0
    %4937 = vmatpush.bf16.msra.mxu0 0
    %4938 = vmatpush.bf16.msra.mxu0 0
    %4939 = vmatpush.bf16.msra.mxu0 0
    %4940 = vmatpush.bf16.msra.mxu0 %v4418
    %4941 = vmatpush.bf16.msra.mxu0 %v4386
    %4942 = vmatmul.bf16.gmra.mxu0 %v4435
    %v4943 = vpop.f32.mrf.mxu0
    %v4944 = vadd.f32 %v1913, %v4943
    %v4945 = vpop.f32.mrf.mxu0
    %v4946 = vadd.f32 %v1915, %v4945
    %4947 = vmatmul.bf16.gmra.mxu0 %v4438
    %v4948 = vpop.f32.mrf.mxu0
    %v4949 = vadd.f32 %v1918, %v4948
    %v4950 = vpop.f32.mrf.mxu0
    %v4951 = vadd.f32 %v1920, %v4950
    %4952 = vdwg.mxu0
    %4953 = vmatpush.bf16.msra.mxu0 0
    %4954 = vmatpush.bf16.msra.mxu0 0
    %4955 = vmatpush.bf16.msra.mxu0 0
    %4956 = vmatpush.bf16.msra.mxu0 0
    %4957 = vmatpush.bf16.msra.mxu0 0
    %4958 = vmatpush.bf16.msra.mxu0 0
    %4959 = vmatpush.bf16.msra.mxu0 %v4419
    %4960 = vmatpush.bf16.msra.mxu0 %v4387
    %4961 = vmatmul.bf16.gmra.mxu0 %v4435
    %v4962 = vpop.f32.mrf.mxu0
    %v4963 = vadd.f32 %v1966, %v4962
    %v4964 = vpop.f32.mrf.mxu0
    %v4965 = vadd.f32 %v1968, %v4964
    %4966 = vmatmul.bf16.gmra.mxu0 %v4438
    %v4967 = vpop.f32.mrf.mxu0
    %v4968 = vadd.f32 %v1971, %v4967
    %v4969 = vpop.f32.mrf.mxu0
    %v4970 = vadd.f32 %v1973, %v4969
    %4971 = vdwg.mxu0
    %4972 = vmatpush.bf16.msra.mxu0 0
    %4973 = vmatpush.bf16.msra.mxu0 0
    %4974 = vmatpush.bf16.msra.mxu0 0
    %4975 = vmatpush.bf16.msra.mxu0 0
    %4976 = vmatpush.bf16.msra.mxu0 0
    %4977 = vmatpush.bf16.msra.mxu0 0
    %4978 = vmatpush.bf16.msra.mxu0 %v4420
    %4979 = vmatpush.bf16.msra.mxu0 %v4388
    %4980 = vmatmul.bf16.gmra.mxu0 %v4435
    %v4981 = vpop.f32.mrf.mxu0
    %v4982 = vadd.f32 %v2019, %v4981
    %v4983 = vpop.f32.mrf.mxu0
    %v4984 = vadd.f32 %v2021, %v4983
    %4985 = vmatmul.bf16.gmra.mxu0 %v4438
    %v4986 = vpop.f32.mrf.mxu0
    %v4987 = vadd.f32 %v2024, %v4986
    %v4988 = vpop.f32.mrf.mxu0
    %v4989 = vadd.f32 %v2026, %v4988
    %4990 = vdwg.mxu0
    %4991 = vmatpush.bf16.msra.mxu0 0
    %4992 = vmatpush.bf16.msra.mxu0 0
    %4993 = vmatpush.bf16.msra.mxu0 0
    %4994 = vmatpush.bf16.msra.mxu0 0
    %4995 = vmatpush.bf16.msra.mxu0 0
    %4996 = vmatpush.bf16.msra.mxu0 0
    %4997 = vmatpush.bf16.msra.mxu0 %v4421
    %4998 = vmatpush.bf16.msra.mxu0 %v4389
    %4999 = vmatmul.bf16.gmra.mxu0 %v4435
    %v5000 = vpop.f32.mrf.mxu0
    %v5001 = vadd.f32 %v2072, %v5000
    %v5002 = vpop.f32.mrf.mxu0
    %v5003 = vadd.f32 %v2074, %v5002
    %5004 = vmatmul.bf16.gmra.mxu0 %v4438
    %v5005 = vpop.f32.mrf.mxu0
    %v5006 = vadd.f32 %v2077, %v5005
    %v5007 = vpop.f32.mrf.mxu0
    %v5008 = vadd.f32 %v2079, %v5007
    %5009 = vdwg.mxu0
    %5010 = vmatpush.bf16.msra.mxu0 0
    %5011 = vmatpush.bf16.msra.mxu0 0
    %5012 = vmatpush.bf16.msra.mxu0 0
    %5013 = vmatpush.bf16.msra.mxu0 0
    %5014 = vmatpush.bf16.msra.mxu0 0
    %5015 = vmatpush.bf16.msra.mxu0 0
    %5016 = vmatpush.bf16.msra.mxu0 %v4422
    %5017 = vmatpush.bf16.msra.mxu0 %v4390
    %5018 = vmatmul.bf16.gmra.mxu0 %v4435
    %v5019 = vpop.f32.mrf.mxu0
    %v5020 = vadd.f32 %v2125, %v5019
    %v5021 = vpop.f32.mrf.mxu0
    %v5022 = vadd.f32 %v2127, %v5021
    %5023 = vmatmul.bf16.gmra.mxu0 %v4438
    %v5024 = vpop.f32.mrf.mxu0
    %v5025 = vadd.f32 %v2130, %v5024
    %v5026 = vpop.f32.mrf.mxu0
    %v5027 = vadd.f32 %v2132, %v5026
    %5028 = vdwg.mxu0
    %5029 = vmatpush.bf16.msra.mxu0 0
    %5030 = vmatpush.bf16.msra.mxu0 0
    %5031 = vmatpush.bf16.msra.mxu0 0
    %5032 = vmatpush.bf16.msra.mxu0 0
    %5033 = vmatpush.bf16.msra.mxu0 0
    %5034 = vmatpush.bf16.msra.mxu0 0
    %5035 = vmatpush.bf16.msra.mxu0 %v4423
    %5036 = vmatpush.bf16.msra.mxu0 %v4391
    %5037 = vmatmul.bf16.gmra.mxu0 %v4435
    %v5038 = vpop.f32.mrf.mxu0
    %v5039 = vadd.f32 %v2178, %v5038
    %v5040 = vpop.f32.mrf.mxu0
    %v5041 = vadd.f32 %v2180, %v5040
    %5042 = vmatmul.bf16.gmra.mxu0 %v4438
    %v5043 = vpop.f32.mrf.mxu0
    %v5044 = vadd.f32 %v2183, %v5043
    %v5045 = vpop.f32.mrf.mxu0
    %v5046 = vadd.f32 %v2185, %v5045
    %5047 = vdwg.mxu0
    %v5048 = vmul.f32 %v4450, 0.01
    %v5049 = vmul.f32 %v4469, 0.01
    %v5050 = vmul.f32 %v4488, 0.01
    %v5051 = vmul.f32 %v4507, 0.01
    %v5052 = vmul.f32 %v4526, 0.01
    %v5053 = vmul.f32 %v4545, 0.01
    %v5054 = vmul.f32 %v4564, 0.01
    %v5055 = vmul.f32 %v4583, 0.01
    %v5056 = vmul.f32 %v4602, 0.01
    %v5057 = vmul.f32 %v4621, 0.01
    %v5058 = vmul.f32 %v4640, 0.01
    %v5059 = vmul.f32 %v4659, 0.01
    %v5060 = vmul.f32 %v4678, 0.01
    %v5061 = vmul.f32 %v4697, 0.01
    %v5062 = vmul.f32 %v4716, 0.01
    %v5063 = vmul.f32 %v4735, 0.01
    %v5064 = vmul.f32 %v4754, 0.01
    %v5065 = vmul.f32 %v4773, 0.01
    %v5066 = vmul.f32 %v4792, 0.01
    %v5067 = vmul.f32 %v4811, 0.01
    %v5068 = vmul.f32 %v4830, 0.01
    %v5069 = vmul.f32 %v4849, 0.01
    %v5070 = vmul.f32 %v4868, 0.01
    %v5071 = vmul.f32 %v4887, 0.01
    %v5072 = vmul.f32 %v4906, 0.01
    %v5073 = vmul.f32 %v4925, 0.01
    %v5074 = vmul.f32 %v4944, 0.01
    %v5075 = vmul.f32 %v4963, 0.01
    %v5076 = vmul.f32 %v4982, 0.01
    %v5077 = vmul.f32 %v5001, 0.01
    %v5078 = vmul.f32 %v5020, 0.01
    %v5079 = vmul.f32 %v5039, 0.01
    %v5080 = vmul.f32 %v4452, 0.01
    %v5081 = vmul.f32 %v4471, 0.01
    %v5082 = vmul.f32 %v4490, 0.01
    %v5083 = vmul.f32 %v4509, 0.01
    %v5084 = vmul.f32 %v4528, 0.01
    %v5085 = vmul.f32 %v4547, 0.01
    %v5086 = vmul.f32 %v4566, 0.01
    %v5087 = vmul.f32 %v4585, 0.01
    %v5088 = vmul.f32 %v4604, 0.01
    %v5089 = vmul.f32 %v4623, 0.01
    %v5090 = vmul.f32 %v4642, 0.01
    %v5091 = vmul.f32 %v4661, 0.01
    %v5092 = vmul.f32 %v4680, 0.01
    %v5093 = vmul.f32 %v4699, 0.01
    %v5094 = vmul.f32 %v4718, 0.01
    %v5095 = vmul.f32 %v4737, 0.01
    %v5096 = vmul.f32 %v4756, 0.01
    %v5097 = vmul.f32 %v4775, 0.01
    %v5098 = vmul.f32 %v4794, 0.01
    %v5099 = vmul.f32 %v4813, 0.01
    %v5100 = vmul.f32 %v4832, 0.01
    %v5101 = vmul.f32 %v4851, 0.01
    %v5102 = vmul.f32 %v4870, 0.01
    %v5103 = vmul.f32 %v4889, 0.01
    %v5104 = vmul.f32 %v4908, 0.01
    %v5105 = vmul.f32 %v4927, 0.01
    %v5106 = vmul.f32 %v4946, 0.01
    %v5107 = vmul.f32 %v4965, 0.01
    %v5108 = vmul.f32 %v4984, 0.01
    %v5109 = vmul.f32 %v5003, 0.01
    %v5110 = vmul.f32 %v5022, 0.01
    %v5111 = vmul.f32 %v5041, 0.01
    %v5112 = vmul.f32 %v4455, 0.01
    %v5113 = vmul.f32 %v4474, 0.01
    %v5114 = vmul.f32 %v4493, 0.01
    %v5115 = vmul.f32 %v4512, 0.01
    %v5116 = vmul.f32 %v4531, 0.01
    %v5117 = vmul.f32 %v4550, 0.01
    %v5118 = vmul.f32 %v4569, 0.01
    %v5119 = vmul.f32 %v4588, 0.01
    %v5120 = vmul.f32 %v4607, 0.01
    %v5121 = vmul.f32 %v4626, 0.01
    %v5122 = vmul.f32 %v4645, 0.01
    %v5123 = vmul.f32 %v4664, 0.01
    %v5124 = vmul.f32 %v4683, 0.01
    %v5125 = vmul.f32 %v4702, 0.01
    %v5126 = vmul.f32 %v4721, 0.01
    %v5127 = vmul.f32 %v4740, 0.01
    %v5128 = vmul.f32 %v4759, 0.01
    %v5129 = vmul.f32 %v4778, 0.01
    %v5130 = vmul.f32 %v4797, 0.01
    %v5131 = vmul.f32 %v4816, 0.01
    %v5132 = vmul.f32 %v4835, 0.01
    %v5133 = vmul.f32 %v4854, 0.01
    %v5134 = vmul.f32 %v4873, 0.01
    %v5135 = vmul.f32 %v4892, 0.01
    %v5136 = vmul.f32 %v4911, 0.01
    %v5137 = vmul.f32 %v4930, 0.01
    %v5138 = vmul.f32 %v4949, 0.01
    %v5139 = vmul.f32 %v4968, 0.01
    %v5140 = vmul.f32 %v4987, 0.01
    %v5141 = vmul.f32 %v5006, 0.01
    %v5142 = vmul.f32 %v5025, 0.01
    %v5143 = vmul.f32 %v5044, 0.01
    %v5144 = vmul.f32 %v4457, 0.01
    %v5145 = vmul.f32 %v4476, 0.01
    %v5146 = vmul.f32 %v4495, 0.01
    %v5147 = vmul.f32 %v4514, 0.01
    %v5148 = vmul.f32 %v4533, 0.01
    %v5149 = vmul.f32 %v4552, 0.01
    %v5150 = vmul.f32 %v4571, 0.01
    %v5151 = vmul.f32 %v4590, 0.01
    %v5152 = vmul.f32 %v4609, 0.01
    %v5153 = vmul.f32 %v4628, 0.01
    %v5154 = vmul.f32 %v4647, 0.01
    %v5155 = vmul.f32 %v4666, 0.01
    %v5156 = vmul.f32 %v4685, 0.01
    %v5157 = vmul.f32 %v4704, 0.01
    %v5158 = vmul.f32 %v4723, 0.01
    %v5159 = vmul.f32 %v4742, 0.01
    %v5160 = vmul.f32 %v4761, 0.01
    %v5161 = vmul.f32 %v4780, 0.01
    %v5162 = vmul.f32 %v4799, 0.01
    %v5163 = vmul.f32 %v4818, 0.01
    %v5164 = vmul.f32 %v4837, 0.01
    %v5165 = vmul.f32 %v4856, 0.01
    %v5166 = vmul.f32 %v4875, 0.01
    %v5167 = vmul.f32 %v4894, 0.01
    %v5168 = vmul.f32 %v4913, 0.01
    %v5169 = vmul.f32 %v4932, 0.01
    %v5170 = vmul.f32 %v4951, 0.01
    %v5171 = vmul.f32 %v4970, 0.01
    %v5172 = vmul.f32 %v4989, 0.01
    %v5173 = vmul.f32 %v5008, 0.01
    %v5174 = vmul.f32 %v5027, 0.01
    %v5175 = vmul.f32 %v5046, 0.01
    %v5176 = vmax.f32 %v4450, %v5048
    %v5177 = vmax.f32 %v4469, %v5049
    %v5178 = vmax.f32 %v4488, %v5050
    %v5179 = vmax.f32 %v4507, %v5051
    %v5180 = vmax.f32 %v4526, %v5052
    %v5181 = vmax.f32 %v4545, %v5053
    %v5182 = vmax.f32 %v4564, %v5054
    %v5183 = vmax.f32 %v4583, %v5055
    %v5184 = vmax.f32 %v4602, %v5056
    %v5185 = vmax.f32 %v4621, %v5057
    %v5186 = vmax.f32 %v4640, %v5058
    %v5187 = vmax.f32 %v4659, %v5059
    %v5188 = vmax.f32 %v4678, %v5060
    %v5189 = vmax.f32 %v4697, %v5061
    %v5190 = vmax.f32 %v4716, %v5062
    %v5191 = vmax.f32 %v4735, %v5063
    %v5192 = vmax.f32 %v4754, %v5064
    %v5193 = vmax.f32 %v4773, %v5065
    %v5194 = vmax.f32 %v4792, %v5066
    %v5195 = vmax.f32 %v4811, %v5067
    %v5196 = vmax.f32 %v4830, %v5068
    %v5197 = vmax.f32 %v4849, %v5069
    %v5198 = vmax.f32 %v4868, %v5070
    %v5199 = vmax.f32 %v4887, %v5071
    %v5200 = vmax.f32 %v4906, %v5072
    %v5201 = vmax.f32 %v4925, %v5073
    %v5202 = vmax.f32 %v4944, %v5074
    %v5203 = vmax.f32 %v4963, %v5075
    %v5204 = vmax.f32 %v4982, %v5076
    %v5205 = vmax.f32 %v5001, %v5077
    %v5206 = vmax.f32 %v5020, %v5078
    %v5207 = vmax.f32 %v5039, %v5079
    %v5208 = vmax.f32 %v4452, %v5080
    %v5209 = vmax.f32 %v4471, %v5081
    %v5210 = vmax.f32 %v4490, %v5082
    %v5211 = vmax.f32 %v4509, %v5083
    %v5212 = vmax.f32 %v4528, %v5084
    %v5213 = vmax.f32 %v4547, %v5085
    %v5214 = vmax.f32 %v4566, %v5086
    %v5215 = vmax.f32 %v4585, %v5087
    %v5216 = vmax.f32 %v4604, %v5088
    %v5217 = vmax.f32 %v4623, %v5089
    %v5218 = vmax.f32 %v4642, %v5090
    %v5219 = vmax.f32 %v4661, %v5091
    %v5220 = vmax.f32 %v4680, %v5092
    %v5221 = vmax.f32 %v4699, %v5093
    %v5222 = vmax.f32 %v4718, %v5094
    %v5223 = vmax.f32 %v4737, %v5095
    %v5224 = vmax.f32 %v4756, %v5096
    %v5225 = vmax.f32 %v4775, %v5097
    %v5226 = vmax.f32 %v4794, %v5098
    %v5227 = vmax.f32 %v4813, %v5099
    %v5228 = vmax.f32 %v4832, %v5100
    %v5229 = vmax.f32 %v4851, %v5101
    %v5230 = vmax.f32 %v4870, %v5102
    %v5231 = vmax.f32 %v4889, %v5103
    %v5232 = vmax.f32 %v4908, %v5104
    %v5233 = vmax.f32 %v4927, %v5105
    %v5234 = vmax.f32 %v4946, %v5106
    %v5235 = vmax.f32 %v4965, %v5107
    %v5236 = vmax.f32 %v4984, %v5108
    %v5237 = vmax.f32 %v5003, %v5109
    %v5238 = vmax.f32 %v5022, %v5110
    %v5239 = vmax.f32 %v5041, %v5111
    %v5240 = vmax.f32 %v4455, %v5112
    %v5241 = vmax.f32 %v4474, %v5113
    %v5242 = vmax.f32 %v4493, %v5114
    %v5243 = vmax.f32 %v4512, %v5115
    %v5244 = vmax.f32 %v4531, %v5116
    %v5245 = vmax.f32 %v4550, %v5117
    %v5246 = vmax.f32 %v4569, %v5118
    %v5247 = vmax.f32 %v4588, %v5119
    %v5248 = vmax.f32 %v4607, %v5120
    %v5249 = vmax.f32 %v4626, %v5121
    %v5250 = vmax.f32 %v4645, %v5122
    %v5251 = vmax.f32 %v4664, %v5123
    %v5252 = vmax.f32 %v4683, %v5124
    %v5253 = vmax.f32 %v4702, %v5125
    %v5254 = vmax.f32 %v4721, %v5126
    %v5255 = vmax.f32 %v4740, %v5127
    %v5256 = vmax.f32 %v4759, %v5128
    %v5257 = vmax.f32 %v4778, %v5129
    %v5258 = vmax.f32 %v4797, %v5130
    %v5259 = vmax.f32 %v4816, %v5131
    %v5260 = vmax.f32 %v4835, %v5132
    %v5261 = vmax.f32 %v4854, %v5133
    %v5262 = vmax.f32 %v4873, %v5134
    %v5263 = vmax.f32 %v4892, %v5135
    %v5264 = vmax.f32 %v4911, %v5136
    %v5265 = vmax.f32 %v4930, %v5137
    %v5266 = vmax.f32 %v4949, %v5138
    %v5267 = vmax.f32 %v4968, %v5139
    %v5268 = vmax.f32 %v4987, %v5140
    %v5269 = vmax.f32 %v5006, %v5141
    %v5270 = vmax.f32 %v5025, %v5142
    %v5271 = vmax.f32 %v5044, %v5143
    %v5272 = vmax.f32 %v4457, %v5144
    %v5273 = vmax.f32 %v4476, %v5145
    %v5274 = vmax.f32 %v4495, %v5146
    %v5275 = vmax.f32 %v4514, %v5147
    %v5276 = vmax.f32 %v4533, %v5148
    %v5277 = vmax.f32 %v4552, %v5149
    %v5278 = vmax.f32 %v4571, %v5150
    %v5279 = vmax.f32 %v4590, %v5151
    %v5280 = vmax.f32 %v4609, %v5152
    %v5281 = vmax.f32 %v4628, %v5153
    %v5282 = vmax.f32 %v4647, %v5154
    %v5283 = vmax.f32 %v4666, %v5155
    %v5284 = vmax.f32 %v4685, %v5156
    %v5285 = vmax.f32 %v4704, %v5157
    %v5286 = vmax.f32 %v4723, %v5158
    %v5287 = vmax.f32 %v4742, %v5159
    %v5288 = vmax.f32 %v4761, %v5160
    %v5289 = vmax.f32 %v4780, %v5161
    %v5290 = vmax.f32 %v4799, %v5162
    %v5291 = vmax.f32 %v4818, %v5163
    %v5292 = vmax.f32 %v4837, %v5164
    %v5293 = vmax.f32 %v4856, %v5165
    %v5294 = vmax.f32 %v4875, %v5166
    %v5295 = vmax.f32 %v4894, %v5167
    %v5296 = vmax.f32 %v4913, %v5168
    %v5297 = vmax.f32 %v4932, %v5169
    %v5298 = vmax.f32 %v4951, %v5170
    %v5299 = vmax.f32 %v4970, %v5171
    %v5300 = vmax.f32 %v4989, %v5172
    %v5301 = vmax.f32 %v5008, %v5173
    %v5302 = vmax.f32 %v5027, %v5174
    %v5303 = vmax.f32 %v5046, %v5175
    %s5304 = scalar_lea.vmem %s3, 48
    %v5305 = vld [vmem:[%s5304] sm:$0xf]
    %v5306 = vld [vmem:[%s5304 + $0x4] sm:$0xf]
    %v5307 = vld [vmem:[%s5304 + $0x8] sm:$0xf]
    %v5308 = vld [vmem:[%s5304 + $0xc] sm:$0xf]
    %v5309 = vpack.c.bf16 %v5208, %v5176
    %v5310 = vpack.c.bf16 %v5209, %v5177
    %v5311 = vpack.c.bf16 %v5210, %v5178
    %v5312 = vpack.c.bf16 %v5211, %v5179
    %v5313 = vpack.c.bf16 %v5212, %v5180
    %v5314 = vpack.c.bf16 %v5213, %v5181
    %v5315 = vpack.c.bf16 %v5214, %v5182
    %v5316 = vpack.c.bf16 %v5215, %v5183
    %v5317 = vpack.c.bf16 %v5216, %v5184
    %v5318 = vpack.c.bf16 %v5217, %v5185
    %v5319 = vpack.c.bf16 %v5218, %v5186
    %v5320 = vpack.c.bf16 %v5219, %v5187
    %v5321 = vpack.c.bf16 %v5220, %v5188
    %v5322 = vpack.c.bf16 %v5221, %v5189
    %v5323 = vpack.c.bf16 %v5222, %v5190
    %v5324 = vpack.c.bf16 %v5223, %v5191
    %v5325 = vpack.c.bf16 %v5224, %v5192
    %v5326 = vpack.c.bf16 %v5225, %v5193
    %v5327 = vpack.c.bf16 %v5226, %v5194
    %v5328 = vpack.c.bf16 %v5227, %v5195
    %v5329 = vpack.c.bf16 %v5228, %v5196
    %v5330 = vpack.c.bf16 %v5229, %v5197
    %v5331 = vpack.c.bf16 %v5230, %v5198
    %v5332 = vpack.c.bf16 %v5231, %v5199
    %v5333 = vpack.c.bf16 %v5232, %v5200
    %v5334 = vpack.c.bf16 %v5233, %v5201
    %v5335 = vpack.c.bf16 %v5234, %v5202
    %v5336 = vpack.c.bf16 %v5235, %v5203
    %v5337 = vpack.c.bf16 %v5236, %v5204
    %v5338 = vpack.c.bf16 %v5237, %v5205
    %v5339 = vpack.c.bf16 %v5238, %v5206
    %v5340 = vpack.c.bf16 %v5239, %v5207
    %v5341 = vpack.c.bf16 %v5272, %v5240
    %v5342 = vpack.c.bf16 %v5273, %v5241
    %v5343 = vpack.c.bf16 %v5274, %v5242
    %v5344 = vpack.c.bf16 %v5275, %v5243
    %v5345 = vpack.c.bf16 %v5276, %v5244
    %v5346 = vpack.c.bf16 %v5277, %v5245
    %v5347 = vpack.c.bf16 %v5278, %v5246
    %v5348 = vpack.c.bf16 %v5279, %v5247
    %v5349 = vpack.c.bf16 %v5280, %v5248
    %v5350 = vpack.c.bf16 %v5281, %v5249
    %v5351 = vpack.c.bf16 %v5282, %v5250
    %v5352 = vpack.c.bf16 %v5283, %v5251
    %v5353 = vpack.c.bf16 %v5284, %v5252
    %v5354 = vpack.c.bf16 %v5285, %v5253
    %v5355 = vpack.c.bf16 %v5286, %v5254
    %v5356 = vpack.c.bf16 %v5287, %v5255
    %v5357 = vpack.c.bf16 %v5288, %v5256
    %v5358 = vpack.c.bf16 %v5289, %v5257
    %v5359 = vpack.c.bf16 %v5290, %v5258
    %v5360 = vpack.c.bf16 %v5291, %v5259
    %v5361 = vpack.c.bf16 %v5292, %v5260
    %v5362 = vpack.c.bf16 %v5293, %v5261
    %v5363 = vpack.c.bf16 %v5294, %v5262
    %v5364 = vpack.c.bf16 %v5295, %v5263
    %v5365 = vpack.c.bf16 %v5296, %v5264
    %v5366 = vpack.c.bf16 %v5297, %v5265
    %v5367 = vpack.c.bf16 %v5298, %v5266
    %v5368 = vpack.c.bf16 %v5299, %v5267
    %v5369 = vpack.c.bf16 %v5300, %v5268
    %v5370 = vpack.c.bf16 %v5301, %v5269
    %v5371 = vpack.c.bf16 %v5302, %v5270
    %v5372 = vpack.c.bf16 %v5303, %v5271
    %v5377 = vunpack.c.l.b16 %v5305
    %v5378 = vunpack.c.l.b16 %v5306
    %v5379 = vunpack.c.l.b16 %v5307
    %v5380 = vunpack.c.l.b16 %v5308
    %v5381 = vpack.c.b16 %v5378, %v5377
    %v5382 = vpack.c.b16 %v5380, %v5379
    %v5384 = vsel %vm2535, %v5381, 0
    %v5387 = vsel %vm2535, %v5382, 0
    %5389 = vmatpush.bf16.msra.mxu0 0
    %5390 = vmatpush.bf16.msra.mxu0 0
    %5391 = vmatpush.bf16.msra.mxu0 0
    %5392 = vmatpush.bf16.msra.mxu0 0
    %5393 = vmatpush.bf16.msra.mxu0 0
    %5394 = vmatpush.bf16.msra.mxu0 0
    %5395 = vmatpush.bf16.msra.mxu0 %v5341
    %5396 = vmatpush.bf16.msra.mxu0 %v5309
    %5397 = vmatmul.bf16.gmra.mxu0 %v5384
    %v5398 = vpop.f32.mrf.mxu0
    %v5399 = vadd.f32 %v545, %v5398
    %v5400 = vpop.f32.mrf.mxu0
    %v5401 = vadd.f32 %v547, %v5400
    %5402 = vmatmul.bf16.gmra.mxu0 %v5387
    %v5403 = vpop.f32.mrf.mxu0
    %v5404 = vadd.f32 %v550, %v5403
    %v5405 = vpop.f32.mrf.mxu0
    %v5406 = vadd.f32 %v552, %v5405
    %5407 = vdwg.mxu0
    %5408 = vmatpush.bf16.msra.mxu0 0
    %5409 = vmatpush.bf16.msra.mxu0 0
    %5410 = vmatpush.bf16.msra.mxu0 0
    %5411 = vmatpush.bf16.msra.mxu0 0
    %5412 = vmatpush.bf16.msra.mxu0 0
    %5413 = vmatpush.bf16.msra.mxu0 0
    %5414 = vmatpush.bf16.msra.mxu0 %v5342
    %5415 = vmatpush.bf16.msra.mxu0 %v5310
    %5416 = vmatmul.bf16.gmra.mxu0 %v5384
    %v5417 = vpop.f32.mrf.mxu0
    %v5418 = vadd.f32 %v598, %v5417
    %v5419 = vpop.f32.mrf.mxu0
    %v5420 = vadd.f32 %v600, %v5419
    %5421 = vmatmul.bf16.gmra.mxu0 %v5387
    %v5422 = vpop.f32.mrf.mxu0
    %v5423 = vadd.f32 %v603, %v5422
    %v5424 = vpop.f32.mrf.mxu0
    %v5425 = vadd.f32 %v605, %v5424
    %5426 = vdwg.mxu0
    %5427 = vmatpush.bf16.msra.mxu0 0
    %5428 = vmatpush.bf16.msra.mxu0 0
    %5429 = vmatpush.bf16.msra.mxu0 0
    %5430 = vmatpush.bf16.msra.mxu0 0
    %5431 = vmatpush.bf16.msra.mxu0 0
    %5432 = vmatpush.bf16.msra.mxu0 0
    %5433 = vmatpush.bf16.msra.mxu0 %v5343
    %5434 = vmatpush.bf16.msra.mxu0 %v5311
    %5435 = vmatmul.bf16.gmra.mxu0 %v5384
    %v5436 = vpop.f32.mrf.mxu0
    %v5437 = vadd.f32 %v651, %v5436
    %v5438 = vpop.f32.mrf.mxu0
    %v5439 = vadd.f32 %v653, %v5438
    %5440 = vmatmul.bf16.gmra.mxu0 %v5387
    %v5441 = vpop.f32.mrf.mxu0
    %v5442 = vadd.f32 %v656, %v5441
    %v5443 = vpop.f32.mrf.mxu0
    %v5444 = vadd.f32 %v658, %v5443
    %5445 = vdwg.mxu0
    %5446 = vmatpush.bf16.msra.mxu0 0
    %5447 = vmatpush.bf16.msra.mxu0 0
    %5448 = vmatpush.bf16.msra.mxu0 0
    %5449 = vmatpush.bf16.msra.mxu0 0
    %5450 = vmatpush.bf16.msra.mxu0 0
    %5451 = vmatpush.bf16.msra.mxu0 0
    %5452 = vmatpush.bf16.msra.mxu0 %v5344
    %5453 = vmatpush.bf16.msra.mxu0 %v5312
    %5454 = vmatmul.bf16.gmra.mxu0 %v5384
    %v5455 = vpop.f32.mrf.mxu0
    %v5456 = vadd.f32 %v704, %v5455
    %v5457 = vpop.f32.mrf.mxu0
    %v5458 = vadd.f32 %v706, %v5457
    %5459 = vmatmul.bf16.gmra.mxu0 %v5387
    %v5460 = vpop.f32.mrf.mxu0
    %v5461 = vadd.f32 %v709, %v5460
    %v5462 = vpop.f32.mrf.mxu0
    %v5463 = vadd.f32 %v711, %v5462
    %5464 = vdwg.mxu0
    %5465 = vmatpush.bf16.msra.mxu0 0
    %5466 = vmatpush.bf16.msra.mxu0 0
    %5467 = vmatpush.bf16.msra.mxu0 0
    %5468 = vmatpush.bf16.msra.mxu0 0
    %5469 = vmatpush.bf16.msra.mxu0 0
    %5470 = vmatpush.bf16.msra.mxu0 0
    %5471 = vmatpush.bf16.msra.mxu0 %v5345
    %5472 = vmatpush.bf16.msra.mxu0 %v5313
    %5473 = vmatmul.bf16.gmra.mxu0 %v5384
    %v5474 = vpop.f32.mrf.mxu0
    %v5475 = vadd.f32 %v757, %v5474
    %v5476 = vpop.f32.mrf.mxu0
    %v5477 = vadd.f32 %v759, %v5476
    %5478 = vmatmul.bf16.gmra.mxu0 %v5387
    %v5479 = vpop.f32.mrf.mxu0
    %v5480 = vadd.f32 %v762, %v5479
    %v5481 = vpop.f32.mrf.mxu0
    %v5482 = vadd.f32 %v764, %v5481
    %5483 = vdwg.mxu0
    %5484 = vmatpush.bf16.msra.mxu0 0
    %5485 = vmatpush.bf16.msra.mxu0 0
    %5486 = vmatpush.bf16.msra.mxu0 0
    %5487 = vmatpush.bf16.msra.mxu0 0
    %5488 = vmatpush.bf16.msra.mxu0 0
    %5489 = vmatpush.bf16.msra.mxu0 0
    %5490 = vmatpush.bf16.msra.mxu0 %v5346
    %5491 = vmatpush.bf16.msra.mxu0 %v5314
    %5492 = vmatmul.bf16.gmra.mxu0 %v5384
    %v5493 = vpop.f32.mrf.mxu0
    %v5494 = vadd.f32 %v810, %v5493
    %v5495 = vpop.f32.mrf.mxu0
    %v5496 = vadd.f32 %v812, %v5495
    %5497 = vmatmul.bf16.gmra.mxu0 %v5387
    %v5498 = vpop.f32.mrf.mxu0
    %v5499 = vadd.f32 %v815, %v5498
    %v5500 = vpop.f32.mrf.mxu0
    %v5501 = vadd.f32 %v817, %v5500
    %5502 = vdwg.mxu0
    %5503 = vmatpush.bf16.msra.mxu0 0
    %5504 = vmatpush.bf16.msra.mxu0 0
    %5505 = vmatpush.bf16.msra.mxu0 0
    %5506 = vmatpush.bf16.msra.mxu0 0
    %5507 = vmatpush.bf16.msra.mxu0 0
    %5508 = vmatpush.bf16.msra.mxu0 0
    %5509 = vmatpush.bf16.msra.mxu0 %v5347
    %5510 = vmatpush.bf16.msra.mxu0 %v5315
    %5511 = vmatmul.bf16.gmra.mxu0 %v5384
    %v5512 = vpop.f32.mrf.mxu0
    %v5513 = vadd.f32 %v863, %v5512
    %v5514 = vpop.f32.mrf.mxu0
    %v5515 = vadd.f32 %v865, %v5514
    %5516 = vmatmul.bf16.gmra.mxu0 %v5387
    %v5517 = vpop.f32.mrf.mxu0
    %v5518 = vadd.f32 %v868, %v5517
    %v5519 = vpop.f32.mrf.mxu0
    %v5520 = vadd.f32 %v870, %v5519
    %5521 = vdwg.mxu0
    %5522 = vmatpush.bf16.msra.mxu0 0
    %5523 = vmatpush.bf16.msra.mxu0 0
    %5524 = vmatpush.bf16.msra.mxu0 0
    %5525 = vmatpush.bf16.msra.mxu0 0
    %5526 = vmatpush.bf16.msra.mxu0 0
    %5527 = vmatpush.bf16.msra.mxu0 0
    %5528 = vmatpush.bf16.msra.mxu0 %v5348
    %5529 = vmatpush.bf16.msra.mxu0 %v5316
    %5530 = vmatmul.bf16.gmra.mxu0 %v5384
    %v5531 = vpop.f32.mrf.mxu0
    %v5532 = vadd.f32 %v916, %v5531
    %v5533 = vpop.f32.mrf.mxu0
    %v5534 = vadd.f32 %v918, %v5533
    %5535 = vmatmul.bf16.gmra.mxu0 %v5387
    %v5536 = vpop.f32.mrf.mxu0
    %v5537 = vadd.f32 %v921, %v5536
    %v5538 = vpop.f32.mrf.mxu0
    %v5539 = vadd.f32 %v923, %v5538
    %5540 = vdwg.mxu0
    %5541 = vmatpush.bf16.msra.mxu0 0
    %5542 = vmatpush.bf16.msra.mxu0 0
    %5543 = vmatpush.bf16.msra.mxu0 0
    %5544 = vmatpush.bf16.msra.mxu0 0
    %5545 = vmatpush.bf16.msra.mxu0 0
    %5546 = vmatpush.bf16.msra.mxu0 0
    %5547 = vmatpush.bf16.msra.mxu0 %v5349
    %5548 = vmatpush.bf16.msra.mxu0 %v5317
    %5549 = vmatmul.bf16.gmra.mxu0 %v5384
    %v5550 = vpop.f32.mrf.mxu0
    %v5551 = vadd.f32 %v969, %v5550
    %v5552 = vpop.f32.mrf.mxu0
    %v5553 = vadd.f32 %v971, %v5552
    %5554 = vmatmul.bf16.gmra.mxu0 %v5387
    %v5555 = vpop.f32.mrf.mxu0
    %v5556 = vadd.f32 %v974, %v5555
    %v5557 = vpop.f32.mrf.mxu0
    %v5558 = vadd.f32 %v976, %v5557
    %5559 = vdwg.mxu0
    %5560 = vmatpush.bf16.msra.mxu0 0
    %5561 = vmatpush.bf16.msra.mxu0 0
    %5562 = vmatpush.bf16.msra.mxu0 0
    %5563 = vmatpush.bf16.msra.mxu0 0
    %5564 = vmatpush.bf16.msra.mxu0 0
    %5565 = vmatpush.bf16.msra.mxu0 0
    %5566 = vmatpush.bf16.msra.mxu0 %v5350
    %5567 = vmatpush.bf16.msra.mxu0 %v5318
    %5568 = vmatmul.bf16.gmra.mxu0 %v5384
    %v5569 = vpop.f32.mrf.mxu0
    %v5570 = vadd.f32 %v1022, %v5569
    %v5571 = vpop.f32.mrf.mxu0
    %v5572 = vadd.f32 %v1024, %v5571
    %5573 = vmatmul.bf16.gmra.mxu0 %v5387
    %v5574 = vpop.f32.mrf.mxu0
    %v5575 = vadd.f32 %v1027, %v5574
    %v5576 = vpop.f32.mrf.mxu0
    %v5577 = vadd.f32 %v1029, %v5576
    %5578 = vdwg.mxu0
    %5579 = vmatpush.bf16.msra.mxu0 0
    %5580 = vmatpush.bf16.msra.mxu0 0
    %5581 = vmatpush.bf16.msra.mxu0 0
    %5582 = vmatpush.bf16.msra.mxu0 0
    %5583 = vmatpush.bf16.msra.mxu0 0
    %5584 = vmatpush.bf16.msra.mxu0 0
    %5585 = vmatpush.bf16.msra.mxu0 %v5351
    %5586 = vmatpush.bf16.msra.mxu0 %v5319
    %5587 = vmatmul.bf16.gmra.mxu0 %v5384
    %v5588 = vpop.f32.mrf.mxu0
    %v5589 = vadd.f32 %v1075, %v5588
    %v5590 = vpop.f32.mrf.mxu0
    %v5591 = vadd.f32 %v1077, %v5590
    %5592 = vmatmul.bf16.gmra.mxu0 %v5387
    %v5593 = vpop.f32.mrf.mxu0
    %v5594 = vadd.f32 %v1080, %v5593
    %v5595 = vpop.f32.mrf.mxu0
    %v5596 = vadd.f32 %v1082, %v5595
    %5597 = vdwg.mxu0
    %5598 = vmatpush.bf16.msra.mxu0 0
    %5599 = vmatpush.bf16.msra.mxu0 0
    %5600 = vmatpush.bf16.msra.mxu0 0
    %5601 = vmatpush.bf16.msra.mxu0 0
    %5602 = vmatpush.bf16.msra.mxu0 0
    %5603 = vmatpush.bf16.msra.mxu0 0
    %5604 = vmatpush.bf16.msra.mxu0 %v5352
    %5605 = vmatpush.bf16.msra.mxu0 %v5320
    %5606 = vmatmul.bf16.gmra.mxu0 %v5384
    %v5607 = vpop.f32.mrf.mxu0
    %v5608 = vadd.f32 %v1128, %v5607
    %v5609 = vpop.f32.mrf.mxu0
    %v5610 = vadd.f32 %v1130, %v5609
    %5611 = vmatmul.bf16.gmra.mxu0 %v5387
    %v5612 = vpop.f32.mrf.mxu0
    %v5613 = vadd.f32 %v1133, %v5612
    %v5614 = vpop.f32.mrf.mxu0
    %v5615 = vadd.f32 %v1135, %v5614
    %5616 = vdwg.mxu0
    %5617 = vmatpush.bf16.msra.mxu0 0
    %5618 = vmatpush.bf16.msra.mxu0 0
    %5619 = vmatpush.bf16.msra.mxu0 0
    %5620 = vmatpush.bf16.msra.mxu0 0
    %5621 = vmatpush.bf16.msra.mxu0 0
    %5622 = vmatpush.bf16.msra.mxu0 0
    %5623 = vmatpush.bf16.msra.mxu0 %v5353
    %5624 = vmatpush.bf16.msra.mxu0 %v5321
    %5625 = vmatmul.bf16.gmra.mxu0 %v5384
    %v5626 = vpop.f32.mrf.mxu0
    %v5627 = vadd.f32 %v1181, %v5626
    %v5628 = vpop.f32.mrf.mxu0
    %v5629 = vadd.f32 %v1183, %v5628
    %5630 = vmatmul.bf16.gmra.mxu0 %v5387
    %v5631 = vpop.f32.mrf.mxu0
    %v5632 = vadd.f32 %v1186, %v5631
    %v5633 = vpop.f32.mrf.mxu0
    %v5634 = vadd.f32 %v1188, %v5633
    %5635 = vdwg.mxu0
    %5636 = vmatpush.bf16.msra.mxu0 0
    %5637 = vmatpush.bf16.msra.mxu0 0
    %5638 = vmatpush.bf16.msra.mxu0 0
    %5639 = vmatpush.bf16.msra.mxu0 0
    %5640 = vmatpush.bf16.msra.mxu0 0
    %5641 = vmatpush.bf16.msra.mxu0 0
    %5642 = vmatpush.bf16.msra.mxu0 %v5354
    %5643 = vmatpush.bf16.msra.mxu0 %v5322
    %5644 = vmatmul.bf16.gmra.mxu0 %v5384
    %v5645 = vpop.f32.mrf.mxu0
    %v5646 = vadd.f32 %v1234, %v5645
    %v5647 = vpop.f32.mrf.mxu0
    %v5648 = vadd.f32 %v1236, %v5647
    %5649 = vmatmul.bf16.gmra.mxu0 %v5387
    %v5650 = vpop.f32.mrf.mxu0
    %v5651 = vadd.f32 %v1239, %v5650
    %v5652 = vpop.f32.mrf.mxu0
    %v5653 = vadd.f32 %v1241, %v5652
    %5654 = vdwg.mxu0
    %5655 = vmatpush.bf16.msra.mxu0 0
    %5656 = vmatpush.bf16.msra.mxu0 0
    %5657 = vmatpush.bf16.msra.mxu0 0
    %5658 = vmatpush.bf16.msra.mxu0 0
    %5659 = vmatpush.bf16.msra.mxu0 0
    %5660 = vmatpush.bf16.msra.mxu0 0
    %5661 = vmatpush.bf16.msra.mxu0 %v5355
    %5662 = vmatpush.bf16.msra.mxu0 %v5323
    %5663 = vmatmul.bf16.gmra.mxu0 %v5384
    %v5664 = vpop.f32.mrf.mxu0
    %v5665 = vadd.f32 %v1287, %v5664
    %v5666 = vpop.f32.mrf.mxu0
    %v5667 = vadd.f32 %v1289, %v5666
    %5668 = vmatmul.bf16.gmra.mxu0 %v5387
    %v5669 = vpop.f32.mrf.mxu0
    %v5670 = vadd.f32 %v1292, %v5669
    %v5671 = vpop.f32.mrf.mxu0
    %v5672 = vadd.f32 %v1294, %v5671
    %5673 = vdwg.mxu0
    %5674 = vmatpush.bf16.msra.mxu0 0
    %5675 = vmatpush.bf16.msra.mxu0 0
    %5676 = vmatpush.bf16.msra.mxu0 0
    %5677 = vmatpush.bf16.msra.mxu0 0
    %5678 = vmatpush.bf16.msra.mxu0 0
    %5679 = vmatpush.bf16.msra.mxu0 0
    %5680 = vmatpush.bf16.msra.mxu0 %v5356
    %5681 = vmatpush.bf16.msra.mxu0 %v5324
    %5682 = vmatmul.bf16.gmra.mxu0 %v5384
    %v5683 = vpop.f32.mrf.mxu0
    %v5684 = vadd.f32 %v1340, %v5683
    %v5685 = vpop.f32.mrf.mxu0
    %v5686 = vadd.f32 %v1342, %v5685
    %5687 = vmatmul.bf16.gmra.mxu0 %v5387
    %v5688 = vpop.f32.mrf.mxu0
    %v5689 = vadd.f32 %v1345, %v5688
    %v5690 = vpop.f32.mrf.mxu0
    %v5691 = vadd.f32 %v1347, %v5690
    %5692 = vdwg.mxu0
    %5693 = vmatpush.bf16.msra.mxu0 0
    %5694 = vmatpush.bf16.msra.mxu0 0
    %5695 = vmatpush.bf16.msra.mxu0 0
    %5696 = vmatpush.bf16.msra.mxu0 0
    %5697 = vmatpush.bf16.msra.mxu0 0
    %5698 = vmatpush.bf16.msra.mxu0 0
    %5699 = vmatpush.bf16.msra.mxu0 %v5357
    %5700 = vmatpush.bf16.msra.mxu0 %v5325
    %5701 = vmatmul.bf16.gmra.mxu0 %v5384
    %v5702 = vpop.f32.mrf.mxu0
    %v5703 = vadd.f32 %v1393, %v5702
    %v5704 = vpop.f32.mrf.mxu0
    %v5705 = vadd.f32 %v1395, %v5704
    %5706 = vmatmul.bf16.gmra.mxu0 %v5387
    %v5707 = vpop.f32.mrf.mxu0
    %v5708 = vadd.f32 %v1398, %v5707
    %v5709 = vpop.f32.mrf.mxu0
    %v5710 = vadd.f32 %v1400, %v5709
    %5711 = vdwg.mxu0
    %5712 = vmatpush.bf16.msra.mxu0 0
    %5713 = vmatpush.bf16.msra.mxu0 0
    %5714 = vmatpush.bf16.msra.mxu0 0
    %5715 = vmatpush.bf16.msra.mxu0 0
    %5716 = vmatpush.bf16.msra.mxu0 0
    %5717 = vmatpush.bf16.msra.mxu0 0
    %5718 = vmatpush.bf16.msra.mxu0 %v5358
    %5719 = vmatpush.bf16.msra.mxu0 %v5326
    %5720 = vmatmul.bf16.gmra.mxu0 %v5384
    %v5721 = vpop.f32.mrf.mxu0
    %v5722 = vadd.f32 %v1446, %v5721
    %v5723 = vpop.f32.mrf.mxu0
    %v5724 = vadd.f32 %v1448, %v5723
    %5725 = vmatmul.bf16.gmra.mxu0 %v5387
    %v5726 = vpop.f32.mrf.mxu0
    %v5727 = vadd.f32 %v1451, %v5726
    %v5728 = vpop.f32.mrf.mxu0
    %v5729 = vadd.f32 %v1453, %v5728
    %5730 = vdwg.mxu0
    %5731 = vmatpush.bf16.msra.mxu0 0
    %5732 = vmatpush.bf16.msra.mxu0 0
    %5733 = vmatpush.bf16.msra.mxu0 0
    %5734 = vmatpush.bf16.msra.mxu0 0
    %5735 = vmatpush.bf16.msra.mxu0 0
    %5736 = vmatpush.bf16.msra.mxu0 0
    %5737 = vmatpush.bf16.msra.mxu0 %v5359
    %5738 = vmatpush.bf16.msra.mxu0 %v5327
    %5739 = vmatmul.bf16.gmra.mxu0 %v5384
    %v5740 = vpop.f32.mrf.mxu0
    %v5741 = vadd.f32 %v1499, %v5740
    %v5742 = vpop.f32.mrf.mxu0
    %v5743 = vadd.f32 %v1501, %v5742
    %5744 = vmatmul.bf16.gmra.mxu0 %v5387
    %v5745 = vpop.f32.mrf.mxu0
    %v5746 = vadd.f32 %v1504, %v5745
    %v5747 = vpop.f32.mrf.mxu0
    %v5748 = vadd.f32 %v1506, %v5747
    %5749 = vdwg.mxu0
    %5750 = vmatpush.bf16.msra.mxu0 0
    %5751 = vmatpush.bf16.msra.mxu0 0
    %5752 = vmatpush.bf16.msra.mxu0 0
    %5753 = vmatpush.bf16.msra.mxu0 0
    %5754 = vmatpush.bf16.msra.mxu0 0
    %5755 = vmatpush.bf16.msra.mxu0 0
    %5756 = vmatpush.bf16.msra.mxu0 %v5360
    %5757 = vmatpush.bf16.msra.mxu0 %v5328
    %5758 = vmatmul.bf16.gmra.mxu0 %v5384
    %v5759 = vpop.f32.mrf.mxu0
    %v5760 = vadd.f32 %v1552, %v5759
    %v5761 = vpop.f32.mrf.mxu0
    %v5762 = vadd.f32 %v1554, %v5761
    %5763 = vmatmul.bf16.gmra.mxu0 %v5387
    %v5764 = vpop.f32.mrf.mxu0
    %v5765 = vadd.f32 %v1557, %v5764
    %v5766 = vpop.f32.mrf.mxu0
    %v5767 = vadd.f32 %v1559, %v5766
    %5768 = vdwg.mxu0
    %5769 = vmatpush.bf16.msra.mxu0 0
    %5770 = vmatpush.bf16.msra.mxu0 0
    %5771 = vmatpush.bf16.msra.mxu0 0
    %5772 = vmatpush.bf16.msra.mxu0 0
    %5773 = vmatpush.bf16.msra.mxu0 0
    %5774 = vmatpush.bf16.msra.mxu0 0
    %5775 = vmatpush.bf16.msra.mxu0 %v5361
    %5776 = vmatpush.bf16.msra.mxu0 %v5329
    %5777 = vmatmul.bf16.gmra.mxu0 %v5384
    %v5778 = vpop.f32.mrf.mxu0
    %v5779 = vadd.f32 %v1605, %v5778
    %v5780 = vpop.f32.mrf.mxu0
    %v5781 = vadd.f32 %v1607, %v5780
    %5782 = vmatmul.bf16.gmra.mxu0 %v5387
    %v5783 = vpop.f32.mrf.mxu0
    %v5784 = vadd.f32 %v1610, %v5783
    %v5785 = vpop.f32.mrf.mxu0
    %v5786 = vadd.f32 %v1612, %v5785
    %5787 = vdwg.mxu0
    %5788 = vmatpush.bf16.msra.mxu0 0
    %5789 = vmatpush.bf16.msra.mxu0 0
    %5790 = vmatpush.bf16.msra.mxu0 0
    %5791 = vmatpush.bf16.msra.mxu0 0
    %5792 = vmatpush.bf16.msra.mxu0 0
    %5793 = vmatpush.bf16.msra.mxu0 0
    %5794 = vmatpush.bf16.msra.mxu0 %v5362
    %5795 = vmatpush.bf16.msra.mxu0 %v5330
    %5796 = vmatmul.bf16.gmra.mxu0 %v5384
    %v5797 = vpop.f32.mrf.mxu0
    %v5798 = vadd.f32 %v1658, %v5797
    %v5799 = vpop.f32.mrf.mxu0
    %v5800 = vadd.f32 %v1660, %v5799
    %5801 = vmatmul.bf16.gmra.mxu0 %v5387
    %v5802 = vpop.f32.mrf.mxu0
    %v5803 = vadd.f32 %v1663, %v5802
    %v5804 = vpop.f32.mrf.mxu0
    %v5805 = vadd.f32 %v1665, %v5804
    %5806 = vdwg.mxu0
    %5807 = vmatpush.bf16.msra.mxu0 0
    %5808 = vmatpush.bf16.msra.mxu0 0
    %5809 = vmatpush.bf16.msra.mxu0 0
    %5810 = vmatpush.bf16.msra.mxu0 0
    %5811 = vmatpush.bf16.msra.mxu0 0
    %5812 = vmatpush.bf16.msra.mxu0 0
    %5813 = vmatpush.bf16.msra.mxu0 %v5363
    %5814 = vmatpush.bf16.msra.mxu0 %v5331
    %5815 = vmatmul.bf16.gmra.mxu0 %v5384
    %v5816 = vpop.f32.mrf.mxu0
    %v5817 = vadd.f32 %v1711, %v5816
    %v5818 = vpop.f32.mrf.mxu0
    %v5819 = vadd.f32 %v1713, %v5818
    %5820 = vmatmul.bf16.gmra.mxu0 %v5387
    %v5821 = vpop.f32.mrf.mxu0
    %v5822 = vadd.f32 %v1716, %v5821
    %v5823 = vpop.f32.mrf.mxu0
    %v5824 = vadd.f32 %v1718, %v5823
    %5825 = vdwg.mxu0
    %5826 = vmatpush.bf16.msra.mxu0 0
    %5827 = vmatpush.bf16.msra.mxu0 0
    %5828 = vmatpush.bf16.msra.mxu0 0
    %5829 = vmatpush.bf16.msra.mxu0 0
    %5830 = vmatpush.bf16.msra.mxu0 0
    %5831 = vmatpush.bf16.msra.mxu0 0
    %5832 = vmatpush.bf16.msra.mxu0 %v5364
    %5833 = vmatpush.bf16.msra.mxu0 %v5332
    %5834 = vmatmul.bf16.gmra.mxu0 %v5384
    %v5835 = vpop.f32.mrf.mxu0
    %v5836 = vadd.f32 %v1764, %v5835
    %v5837 = vpop.f32.mrf.mxu0
    %v5838 = vadd.f32 %v1766, %v5837
    %5839 = vmatmul.bf16.gmra.mxu0 %v5387
    %v5840 = vpop.f32.mrf.mxu0
    %v5841 = vadd.f32 %v1769, %v5840
    %v5842 = vpop.f32.mrf.mxu0
    %v5843 = vadd.f32 %v1771, %v5842
    %5844 = vdwg.mxu0
    %5845 = vmatpush.bf16.msra.mxu0 0
    %5846 = vmatpush.bf16.msra.mxu0 0
    %5847 = vmatpush.bf16.msra.mxu0 0
    %5848 = vmatpush.bf16.msra.mxu0 0
    %5849 = vmatpush.bf16.msra.mxu0 0
    %5850 = vmatpush.bf16.msra.mxu0 0
    %5851 = vmatpush.bf16.msra.mxu0 %v5365
    %5852 = vmatpush.bf16.msra.mxu0 %v5333
    %5853 = vmatmul.bf16.gmra.mxu0 %v5384
    %v5854 = vpop.f32.mrf.mxu0
    %v5855 = vadd.f32 %v1817, %v5854
    %v5856 = vpop.f32.mrf.mxu0
    %v5857 = vadd.f32 %v1819, %v5856
    %5858 = vmatmul.bf16.gmra.mxu0 %v5387
    %v5859 = vpop.f32.mrf.mxu0
    %v5860 = vadd.f32 %v1822, %v5859
    %v5861 = vpop.f32.mrf.mxu0
    %v5862 = vadd.f32 %v1824, %v5861
    %5863 = vdwg.mxu0
    %5864 = vmatpush.bf16.msra.mxu0 0
    %5865 = vmatpush.bf16.msra.mxu0 0
    %5866 = vmatpush.bf16.msra.mxu0 0
    %5867 = vmatpush.bf16.msra.mxu0 0
    %5868 = vmatpush.bf16.msra.mxu0 0
    %5869 = vmatpush.bf16.msra.mxu0 0
    %5870 = vmatpush.bf16.msra.mxu0 %v5366
    %5871 = vmatpush.bf16.msra.mxu0 %v5334
    %5872 = vmatmul.bf16.gmra.mxu0 %v5384
    %v5873 = vpop.f32.mrf.mxu0
    %v5874 = vadd.f32 %v1870, %v5873
    %v5875 = vpop.f32.mrf.mxu0
    %v5876 = vadd.f32 %v1872, %v5875
    %5877 = vmatmul.bf16.gmra.mxu0 %v5387
    %v5878 = vpop.f32.mrf.mxu0
    %v5879 = vadd.f32 %v1875, %v5878
    %v5880 = vpop.f32.mrf.mxu0
    %v5881 = vadd.f32 %v1877, %v5880
    %5882 = vdwg.mxu0
    %5883 = vmatpush.bf16.msra.mxu0 0
    %5884 = vmatpush.bf16.msra.mxu0 0
    %5885 = vmatpush.bf16.msra.mxu0 0
    %5886 = vmatpush.bf16.msra.mxu0 0
    %5887 = vmatpush.bf16.msra.mxu0 0
    %5888 = vmatpush.bf16.msra.mxu0 0
    %5889 = vmatpush.bf16.msra.mxu0 %v5367
    %5890 = vmatpush.bf16.msra.mxu0 %v5335
    %5891 = vmatmul.bf16.gmra.mxu0 %v5384
    %v5892 = vpop.f32.mrf.mxu0
    %v5893 = vadd.f32 %v1923, %v5892
    %v5894 = vpop.f32.mrf.mxu0
    %v5895 = vadd.f32 %v1925, %v5894
    %5896 = vmatmul.bf16.gmra.mxu0 %v5387
    %v5897 = vpop.f32.mrf.mxu0
    %v5898 = vadd.f32 %v1928, %v5897
    %v5899 = vpop.f32.mrf.mxu0
    %v5900 = vadd.f32 %v1930, %v5899
    %5901 = vdwg.mxu0
    %5902 = vmatpush.bf16.msra.mxu0 0
    %5903 = vmatpush.bf16.msra.mxu0 0
    %5904 = vmatpush.bf16.msra.mxu0 0
    %5905 = vmatpush.bf16.msra.mxu0 0
    %5906 = vmatpush.bf16.msra.mxu0 0
    %5907 = vmatpush.bf16.msra.mxu0 0
    %5908 = vmatpush.bf16.msra.mxu0 %v5368
    %5909 = vmatpush.bf16.msra.mxu0 %v5336
    %5910 = vmatmul.bf16.gmra.mxu0 %v5384
    %v5911 = vpop.f32.mrf.mxu0
    %v5912 = vadd.f32 %v1976, %v5911
    %v5913 = vpop.f32.mrf.mxu0
    %v5914 = vadd.f32 %v1978, %v5913
    %5915 = vmatmul.bf16.gmra.mxu0 %v5387
    %v5916 = vpop.f32.mrf.mxu0
    %v5917 = vadd.f32 %v1981, %v5916
    %v5918 = vpop.f32.mrf.mxu0
    %v5919 = vadd.f32 %v1983, %v5918
    %5920 = vdwg.mxu0
    %5921 = vmatpush.bf16.msra.mxu0 0
    %5922 = vmatpush.bf16.msra.mxu0 0
    %5923 = vmatpush.bf16.msra.mxu0 0
    %5924 = vmatpush.bf16.msra.mxu0 0
    %5925 = vmatpush.bf16.msra.mxu0 0
    %5926 = vmatpush.bf16.msra.mxu0 0
    %5927 = vmatpush.bf16.msra.mxu0 %v5369
    %5928 = vmatpush.bf16.msra.mxu0 %v5337
    %5929 = vmatmul.bf16.gmra.mxu0 %v5384
    %v5930 = vpop.f32.mrf.mxu0
    %v5931 = vadd.f32 %v2029, %v5930
    %v5932 = vpop.f32.mrf.mxu0
    %v5933 = vadd.f32 %v2031, %v5932
    %5934 = vmatmul.bf16.gmra.mxu0 %v5387
    %v5935 = vpop.f32.mrf.mxu0
    %v5936 = vadd.f32 %v2034, %v5935
    %v5937 = vpop.f32.mrf.mxu0
    %v5938 = vadd.f32 %v2036, %v5937
    %5939 = vdwg.mxu0
    %5940 = vmatpush.bf16.msra.mxu0 0
    %5941 = vmatpush.bf16.msra.mxu0 0
    %5942 = vmatpush.bf16.msra.mxu0 0
    %5943 = vmatpush.bf16.msra.mxu0 0
    %5944 = vmatpush.bf16.msra.mxu0 0
    %5945 = vmatpush.bf16.msra.mxu0 0
    %5946 = vmatpush.bf16.msra.mxu0 %v5370
    %5947 = vmatpush.bf16.msra.mxu0 %v5338
    %5948 = vmatmul.bf16.gmra.mxu0 %v5384
    %v5949 = vpop.f32.mrf.mxu0
    %v5950 = vadd.f32 %v2082, %v5949
    %v5951 = vpop.f32.mrf.mxu0
    %v5952 = vadd.f32 %v2084, %v5951
    %5953 = vmatmul.bf16.gmra.mxu0 %v5387
    %v5954 = vpop.f32.mrf.mxu0
    %v5955 = vadd.f32 %v2087, %v5954
    %v5956 = vpop.f32.mrf.mxu0
    %v5957 = vadd.f32 %v2089, %v5956
    %5958 = vdwg.mxu0
    %5959 = vmatpush.bf16.msra.mxu0 0
    %5960 = vmatpush.bf16.msra.mxu0 0
    %5961 = vmatpush.bf16.msra.mxu0 0
    %5962 = vmatpush.bf16.msra.mxu0 0
    %5963 = vmatpush.bf16.msra.mxu0 0
    %5964 = vmatpush.bf16.msra.mxu0 0
    %5965 = vmatpush.bf16.msra.mxu0 %v5371
    %5966 = vmatpush.bf16.msra.mxu0 %v5339
    %5967 = vmatmul.bf16.gmra.mxu0 %v5384
    %v5968 = vpop.f32.mrf.mxu0
    %v5969 = vadd.f32 %v2135, %v5968
    %v5970 = vpop.f32.mrf.mxu0
    %v5971 = vadd.f32 %v2137, %v5970
    %5972 = vmatmul.bf16.gmra.mxu0 %v5387
    %v5973 = vpop.f32.mrf.mxu0
    %v5974 = vadd.f32 %v2140, %v5973
    %v5975 = vpop.f32.mrf.mxu0
    %v5976 = vadd.f32 %v2142, %v5975
    %5977 = vdwg.mxu0
    %5978 = vmatpush.bf16.msra.mxu0 0
    %5979 = vmatpush.bf16.msra.mxu0 0
    %5980 = vmatpush.bf16.msra.mxu0 0
    %5981 = vmatpush.bf16.msra.mxu0 0
    %5982 = vmatpush.bf16.msra.mxu0 0
    %5983 = vmatpush.bf16.msra.mxu0 0
    %5984 = vmatpush.bf16.msra.mxu0 %v5372
    %5985 = vmatpush.bf16.msra.mxu0 %v5340
    %5986 = vmatmul.bf16.gmra.mxu0 %v5384
    %v5987 = vpop.f32.mrf.mxu0
    %v5988 = vadd.f32 %v2188, %v5987
    %v5989 = vpop.f32.mrf.mxu0
    %v5990 = vadd.f32 %v2190, %v5989
    %5991 = vmatmul.bf16.gmra.mxu0 %v5387
    %v5992 = vpop.f32.mrf.mxu0
    %v5993 = vadd.f32 %v2193, %v5992
    %v5994 = vpop.f32.mrf.mxu0
    %v5995 = vadd.f32 %v2195, %v5994
    %5996 = vdwg.mxu0
    %v5997 = vmul.f32 %v5399, 0.01
    %v5998 = vmul.f32 %v5418, 0.01
    %v5999 = vmul.f32 %v5437, 0.01
    %v6000 = vmul.f32 %v5456, 0.01
    %v6001 = vmul.f32 %v5475, 0.01
    %v6002 = vmul.f32 %v5494, 0.01
    %v6003 = vmul.f32 %v5513, 0.01
    %v6004 = vmul.f32 %v5532, 0.01
    %v6005 = vmul.f32 %v5551, 0.01
    %v6006 = vmul.f32 %v5570, 0.01
    %v6007 = vmul.f32 %v5589, 0.01
    %v6008 = vmul.f32 %v5608, 0.01
    %v6009 = vmul.f32 %v5627, 0.01
    %v6010 = vmul.f32 %v5646, 0.01
    %v6011 = vmul.f32 %v5665, 0.01
    %v6012 = vmul.f32 %v5684, 0.01
    %v6013 = vmul.f32 %v5703, 0.01
    %v6014 = vmul.f32 %v5722, 0.01
    %v6015 = vmul.f32 %v5741, 0.01
    %v6016 = vmul.f32 %v5760, 0.01
    %v6017 = vmul.f32 %v5779, 0.01
    %v6018 = vmul.f32 %v5798, 0.01
    %v6019 = vmul.f32 %v5817, 0.01
    %v6020 = vmul.f32 %v5836, 0.01
    %v6021 = vmul.f32 %v5855, 0.01
    %v6022 = vmul.f32 %v5874, 0.01
    %v6023 = vmul.f32 %v5893, 0.01
    %v6024 = vmul.f32 %v5912, 0.01
    %v6025 = vmul.f32 %v5931, 0.01
    %v6026 = vmul.f32 %v5950, 0.01
    %v6027 = vmul.f32 %v5969, 0.01
    %v6028 = vmul.f32 %v5988, 0.01
    %v6029 = vmul.f32 %v5401, 0.01
    %v6030 = vmul.f32 %v5420, 0.01
    %v6031 = vmul.f32 %v5439, 0.01
    %v6032 = vmul.f32 %v5458, 0.01
    %v6033 = vmul.f32 %v5477, 0.01
    %v6034 = vmul.f32 %v5496, 0.01
    %v6035 = vmul.f32 %v5515, 0.01
    %v6036 = vmul.f32 %v5534, 0.01
    %v6037 = vmul.f32 %v5553, 0.01
    %v6038 = vmul.f32 %v5572, 0.01
    %v6039 = vmul.f32 %v5591, 0.01
    %v6040 = vmul.f32 %v5610, 0.01
    %v6041 = vmul.f32 %v5629, 0.01
    %v6042 = vmul.f32 %v5648, 0.01
    %v6043 = vmul.f32 %v5667, 0.01
    %v6044 = vmul.f32 %v5686, 0.01
    %v6045 = vmul.f32 %v5705, 0.01
    %v6046 = vmul.f32 %v5724, 0.01
    %v6047 = vmul.f32 %v5743, 0.01
    %v6048 = vmul.f32 %v5762, 0.01
    %v6049 = vmul.f32 %v5781, 0.01
    %v6050 = vmul.f32 %v5800, 0.01
    %v6051 = vmul.f32 %v5819, 0.01
    %v6052 = vmul.f32 %v5838, 0.01
    %v6053 = vmul.f32 %v5857, 0.01
    %v6054 = vmul.f32 %v5876, 0.01
    %v6055 = vmul.f32 %v5895, 0.01
    %v6056 = vmul.f32 %v5914, 0.01
    %v6057 = vmul.f32 %v5933, 0.01
    %v6058 = vmul.f32 %v5952, 0.01
    %v6059 = vmul.f32 %v5971, 0.01
    %v6060 = vmul.f32 %v5990, 0.01
    %v6061 = vmul.f32 %v5404, 0.01
    %v6062 = vmul.f32 %v5423, 0.01
    %v6063 = vmul.f32 %v5442, 0.01
    %v6064 = vmul.f32 %v5461, 0.01
    %v6065 = vmul.f32 %v5480, 0.01
    %v6066 = vmul.f32 %v5499, 0.01
    %v6067 = vmul.f32 %v5518, 0.01
    %v6068 = vmul.f32 %v5537, 0.01
    %v6069 = vmul.f32 %v5556, 0.01
    %v6070 = vmul.f32 %v5575, 0.01
    %v6071 = vmul.f32 %v5594, 0.01
    %v6072 = vmul.f32 %v5613, 0.01
    %v6073 = vmul.f32 %v5632, 0.01
    %v6074 = vmul.f32 %v5651, 0.01
    %v6075 = vmul.f32 %v5670, 0.01
    %v6076 = vmul.f32 %v5689, 0.01
    %v6077 = vmul.f32 %v5708, 0.01
    %v6078 = vmul.f32 %v5727, 0.01
    %v6079 = vmul.f32 %v5746, 0.01
    %v6080 = vmul.f32 %v5765, 0.01
    %v6081 = vmul.f32 %v5784, 0.01
    %v6082 = vmul.f32 %v5803, 0.01
    %v6083 = vmul.f32 %v5822, 0.01
    %v6084 = vmul.f32 %v5841, 0.01
    %v6085 = vmul.f32 %v5860, 0.01
    %v6086 = vmul.f32 %v5879, 0.01
    %v6087 = vmul.f32 %v5898, 0.01
    %v6088 = vmul.f32 %v5917, 0.01
    %v6089 = vmul.f32 %v5936, 0.01
    %v6090 = vmul.f32 %v5955, 0.01
    %v6091 = vmul.f32 %v5974, 0.01
    %v6092 = vmul.f32 %v5993, 0.01
    %v6093 = vmul.f32 %v5406, 0.01
    %v6094 = vmul.f32 %v5425, 0.01
    %v6095 = vmul.f32 %v5444, 0.01
    %v6096 = vmul.f32 %v5463, 0.01
    %v6097 = vmul.f32 %v5482, 0.01
    %v6098 = vmul.f32 %v5501, 0.01
    %v6099 = vmul.f32 %v5520, 0.01
    %v6100 = vmul.f32 %v5539, 0.01
    %v6101 = vmul.f32 %v5558, 0.01
    %v6102 = vmul.f32 %v5577, 0.01
    %v6103 = vmul.f32 %v5596, 0.01
    %v6104 = vmul.f32 %v5615, 0.01
    %v6105 = vmul.f32 %v5634, 0.01
    %v6106 = vmul.f32 %v5653, 0.01
    %v6107 = vmul.f32 %v5672, 0.01
    %v6108 = vmul.f32 %v5691, 0.01
    %v6109 = vmul.f32 %v5710, 0.01
    %v6110 = vmul.f32 %v5729, 0.01
    %v6111 = vmul.f32 %v5748, 0.01
    %v6112 = vmul.f32 %v5767, 0.01
    %v6113 = vmul.f32 %v5786, 0.01
    %v6114 = vmul.f32 %v5805, 0.01
    %v6115 = vmul.f32 %v5824, 0.01
    %v6116 = vmul.f32 %v5843, 0.01
    %v6117 = vmul.f32 %v5862, 0.01
    %v6118 = vmul.f32 %v5881, 0.01
    %v6119 = vmul.f32 %v5900, 0.01
    %v6120 = vmul.f32 %v5919, 0.01
    %v6121 = vmul.f32 %v5938, 0.01
    %v6122 = vmul.f32 %v5957, 0.01
    %v6123 = vmul.f32 %v5976, 0.01
    %v6124 = vmul.f32 %v5995, 0.01
    %v6125 = vmax.f32 %v5399, %v5997
    %v6126 = vmax.f32 %v5418, %v5998
    %v6127 = vmax.f32 %v5437, %v5999
    %v6128 = vmax.f32 %v5456, %v6000
    %v6129 = vmax.f32 %v5475, %v6001
    %v6130 = vmax.f32 %v5494, %v6002
    %v6131 = vmax.f32 %v5513, %v6003
    %v6132 = vmax.f32 %v5532, %v6004
    %v6133 = vmax.f32 %v5551, %v6005
    %v6134 = vmax.f32 %v5570, %v6006
    %v6135 = vmax.f32 %v5589, %v6007
    %v6136 = vmax.f32 %v5608, %v6008
    %v6137 = vmax.f32 %v5627, %v6009
    %v6138 = vmax.f32 %v5646, %v6010
    %v6139 = vmax.f32 %v5665, %v6011
    %v6140 = vmax.f32 %v5684, %v6012
    %v6141 = vmax.f32 %v5703, %v6013
    %v6142 = vmax.f32 %v5722, %v6014
    %v6143 = vmax.f32 %v5741, %v6015
    %v6144 = vmax.f32 %v5760, %v6016
    %v6145 = vmax.f32 %v5779, %v6017
    %v6146 = vmax.f32 %v5798, %v6018
    %v6147 = vmax.f32 %v5817, %v6019
    %v6148 = vmax.f32 %v5836, %v6020
    %v6149 = vmax.f32 %v5855, %v6021
    %v6150 = vmax.f32 %v5874, %v6022
    %v6151 = vmax.f32 %v5893, %v6023
    %v6152 = vmax.f32 %v5912, %v6024
    %v6153 = vmax.f32 %v5931, %v6025
    %v6154 = vmax.f32 %v5950, %v6026
    %v6155 = vmax.f32 %v5969, %v6027
    %v6156 = vmax.f32 %v5988, %v6028
    %v6157 = vmax.f32 %v5401, %v6029
    %v6158 = vmax.f32 %v5420, %v6030
    %v6159 = vmax.f32 %v5439, %v6031
    %v6160 = vmax.f32 %v5458, %v6032
    %v6161 = vmax.f32 %v5477, %v6033
    %v6162 = vmax.f32 %v5496, %v6034
    %v6163 = vmax.f32 %v5515, %v6035
    %v6164 = vmax.f32 %v5534, %v6036
    %v6165 = vmax.f32 %v5553, %v6037
    %v6166 = vmax.f32 %v5572, %v6038
    %v6167 = vmax.f32 %v5591, %v6039
    %v6168 = vmax.f32 %v5610, %v6040
    %v6169 = vmax.f32 %v5629, %v6041
    %v6170 = vmax.f32 %v5648, %v6042
    %v6171 = vmax.f32 %v5667, %v6043
    %v6172 = vmax.f32 %v5686, %v6044
    %v6173 = vmax.f32 %v5705, %v6045
    %v6174 = vmax.f32 %v5724, %v6046
    %v6175 = vmax.f32 %v5743, %v6047
    %v6176 = vmax.f32 %v5762, %v6048
    %v6177 = vmax.f32 %v5781, %v6049
    %v6178 = vmax.f32 %v5800, %v6050
    %v6179 = vmax.f32 %v5819, %v6051
    %v6180 = vmax.f32 %v5838, %v6052
    %v6181 = vmax.f32 %v5857, %v6053
    %v6182 = vmax.f32 %v5876, %v6054
    %v6183 = vmax.f32 %v5895, %v6055
    %v6184 = vmax.f32 %v5914, %v6056
    %v6185 = vmax.f32 %v5933, %v6057
    %v6186 = vmax.f32 %v5952, %v6058
    %v6187 = vmax.f32 %v5971, %v6059
    %v6188 = vmax.f32 %v5990, %v6060
    %v6189 = vmax.f32 %v5404, %v6061
    %v6190 = vmax.f32 %v5423, %v6062
    %v6191 = vmax.f32 %v5442, %v6063
    %v6192 = vmax.f32 %v5461, %v6064
    %v6193 = vmax.f32 %v5480, %v6065
    %v6194 = vmax.f32 %v5499, %v6066
    %v6195 = vmax.f32 %v5518, %v6067
    %v6196 = vmax.f32 %v5537, %v6068
    %v6197 = vmax.f32 %v5556, %v6069
    %v6198 = vmax.f32 %v5575, %v6070
    %v6199 = vmax.f32 %v5594, %v6071
    %v6200 = vmax.f32 %v5613, %v6072
    %v6201 = vmax.f32 %v5632, %v6073
    %v6202 = vmax.f32 %v5651, %v6074
    %v6203 = vmax.f32 %v5670, %v6075
    %v6204 = vmax.f32 %v5689, %v6076
    %v6205 = vmax.f32 %v5708, %v6077
    %v6206 = vmax.f32 %v5727, %v6078
    %v6207 = vmax.f32 %v5746, %v6079
    %v6208 = vmax.f32 %v5765, %v6080
    %v6209 = vmax.f32 %v5784, %v6081
    %v6210 = vmax.f32 %v5803, %v6082
    %v6211 = vmax.f32 %v5822, %v6083
    %v6212 = vmax.f32 %v5841, %v6084
    %v6213 = vmax.f32 %v5860, %v6085
    %v6214 = vmax.f32 %v5879, %v6086
    %v6215 = vmax.f32 %v5898, %v6087
    %v6216 = vmax.f32 %v5917, %v6088
    %v6217 = vmax.f32 %v5936, %v6089
    %v6218 = vmax.f32 %v5955, %v6090
    %v6219 = vmax.f32 %v5974, %v6091
    %v6220 = vmax.f32 %v5993, %v6092
    %v6221 = vmax.f32 %v5406, %v6093
    %v6222 = vmax.f32 %v5425, %v6094
    %v6223 = vmax.f32 %v5444, %v6095
    %v6224 = vmax.f32 %v5463, %v6096
    %v6225 = vmax.f32 %v5482, %v6097
    %v6226 = vmax.f32 %v5501, %v6098
    %v6227 = vmax.f32 %v5520, %v6099
    %v6228 = vmax.f32 %v5539, %v6100
    %v6229 = vmax.f32 %v5558, %v6101
    %v6230 = vmax.f32 %v5577, %v6102
    %v6231 = vmax.f32 %v5596, %v6103
    %v6232 = vmax.f32 %v5615, %v6104
    %v6233 = vmax.f32 %v5634, %v6105
    %v6234 = vmax.f32 %v5653, %v6106
    %v6235 = vmax.f32 %v5672, %v6107
    %v6236 = vmax.f32 %v5691, %v6108
    %v6237 = vmax.f32 %v5710, %v6109
    %v6238 = vmax.f32 %v5729, %v6110
    %v6239 = vmax.f32 %v5748, %v6111
    %v6240 = vmax.f32 %v5767, %v6112
    %v6241 = vmax.f32 %v5786, %v6113
    %v6242 = vmax.f32 %v5805, %v6114
    %v6243 = vmax.f32 %v5824, %v6115
    %v6244 = vmax.f32 %v5843, %v6116
    %v6245 = vmax.f32 %v5862, %v6117
    %v6246 = vmax.f32 %v5881, %v6118
    %v6247 = vmax.f32 %v5900, %v6119
    %v6248 = vmax.f32 %v5919, %v6120
    %v6249 = vmax.f32 %v5938, %v6121
    %v6250 = vmax.f32 %v5957, %v6122
    %v6251 = vmax.f32 %v5976, %v6123
    %v6252 = vmax.f32 %v5995, %v6124
    %v6253 = vld [vmem:[%s6] sm:$0x3]
    %v6254 = vpack.c.bf16 %v6157, %v6125
    %v6255 = vpack.c.bf16 %v6158, %v6126
    %v6256 = vpack.c.bf16 %v6159, %v6127
    %v6257 = vpack.c.bf16 %v6160, %v6128
    %v6258 = vpack.c.bf16 %v6161, %v6129
    %v6259 = vpack.c.bf16 %v6162, %v6130
    %v6260 = vpack.c.bf16 %v6163, %v6131
    %v6261 = vpack.c.bf16 %v6164, %v6132
    %v6262 = vpack.c.bf16 %v6165, %v6133
    %v6263 = vpack.c.bf16 %v6166, %v6134
    %v6264 = vpack.c.bf16 %v6167, %v6135
    %v6265 = vpack.c.bf16 %v6168, %v6136
    %v6266 = vpack.c.bf16 %v6169, %v6137
    %v6267 = vpack.c.bf16 %v6170, %v6138
    %v6268 = vpack.c.bf16 %v6171, %v6139
    %v6269 = vpack.c.bf16 %v6172, %v6140
    %v6270 = vpack.c.bf16 %v6173, %v6141
    %v6271 = vpack.c.bf16 %v6174, %v6142
    %v6272 = vpack.c.bf16 %v6175, %v6143
    %v6273 = vpack.c.bf16 %v6176, %v6144
    %v6274 = vpack.c.bf16 %v6177, %v6145
    %v6275 = vpack.c.bf16 %v6178, %v6146
    %v6276 = vpack.c.bf16 %v6179, %v6147
    %v6277 = vpack.c.bf16 %v6180, %v6148
    %v6278 = vpack.c.bf16 %v6181, %v6149
    %v6279 = vpack.c.bf16 %v6182, %v6150
    %v6280 = vpack.c.bf16 %v6183, %v6151
    %v6281 = vpack.c.bf16 %v6184, %v6152
    %v6282 = vpack.c.bf16 %v6185, %v6153
    %v6283 = vpack.c.bf16 %v6186, %v6154
    %v6284 = vpack.c.bf16 %v6187, %v6155
    %v6285 = vpack.c.bf16 %v6188, %v6156
    %v6286 = vpack.c.bf16 %v6221, %v6189
    %v6287 = vpack.c.bf16 %v6222, %v6190
    %v6288 = vpack.c.bf16 %v6223, %v6191
    %v6289 = vpack.c.bf16 %v6224, %v6192
    %v6290 = vpack.c.bf16 %v6225, %v6193
    %v6291 = vpack.c.bf16 %v6226, %v6194
    %v6292 = vpack.c.bf16 %v6227, %v6195
    %v6293 = vpack.c.bf16 %v6228, %v6196
    %v6294 = vpack.c.bf16 %v6229, %v6197
    %v6295 = vpack.c.bf16 %v6230, %v6198
    %v6296 = vpack.c.bf16 %v6231, %v6199
    %v6297 = vpack.c.bf16 %v6232, %v6200
    %v6298 = vpack.c.bf16 %v6233, %v6201
    %v6299 = vpack.c.bf16 %v6234, %v6202
    %v6300 = vpack.c.bf16 %v6235, %v6203
    %v6301 = vpack.c.bf16 %v6236, %v6204
    %v6302 = vpack.c.bf16 %v6237, %v6205
    %v6303 = vpack.c.bf16 %v6238, %v6206
    %v6304 = vpack.c.bf16 %v6239, %v6207
    %v6305 = vpack.c.bf16 %v6240, %v6208
    %v6306 = vpack.c.bf16 %v6241, %v6209
    %v6307 = vpack.c.bf16 %v6242, %v6210
    %v6308 = vpack.c.bf16 %v6243, %v6211
    %v6309 = vpack.c.bf16 %v6244, %v6212
    %v6310 = vpack.c.bf16 %v6245, %v6213
    %v6311 = vpack.c.bf16 %v6246, %v6214
    %v6312 = vpack.c.bf16 %v6247, %v6215
    %v6313 = vpack.c.bf16 %v6248, %v6216
    %v6314 = vpack.c.bf16 %v6249, %v6217
    %v6315 = vpack.c.bf16 %v6250, %v6218
    %v6316 = vpack.c.bf16 %v6251, %v6219
    %v6317 = vpack.c.bf16 %v6252, %v6220
    %v6319 = vsel %vm2535, %v6253, 0
    %6321 = vmatpush.bf16.msra.mxu0 0
    %6322 = vmatpush.bf16.msra.mxu0 0
    %6323 = vmatpush.bf16.msra.mxu0 0
    %6324 = vmatpush.bf16.msra.mxu0 0
    %6325 = vmatpush.bf16.msra.mxu0 0
    %6326 = vmatpush.bf16.msra.mxu0 0
    %6327 = vmatpush.bf16.msra.mxu0 %v6286
    %6328 = vmatpush.bf16.msra.mxu0 %v6254
    %6329 = vmatmul.bf16.gmra.mxu0 %v6319
    %v6330 = vpop.f32.mrf.mxu0
    %v6331 = vadd.f32 %v555, %v6330
    %v6332 = vpop.f32.mrf.mxu0
    %6333 = vdwg.mxu0
    %6334 = vmatpush.bf16.msra.mxu0 0
    %6335 = vmatpush.bf16.msra.mxu0 0
    %6336 = vmatpush.bf16.msra.mxu0 0
    %6337 = vmatpush.bf16.msra.mxu0 0
    %6338 = vmatpush.bf16.msra.mxu0 0
    %6339 = vmatpush.bf16.msra.mxu0 0
    %6340 = vmatpush.bf16.msra.mxu0 %v6287
    %6341 = vmatpush.bf16.msra.mxu0 %v6255
    %6342 = vmatmul.bf16.gmra.mxu0 %v6319
    %v6343 = vpop.f32.mrf.mxu0
    %v6344 = vadd.f32 %v608, %v6343
    %v6345 = vpop.f32.mrf.mxu0
    %6346 = vdwg.mxu0
    %6347 = vmatpush.bf16.msra.mxu0 0
    %6348 = vmatpush.bf16.msra.mxu0 0
    %6349 = vmatpush.bf16.msra.mxu0 0
    %6350 = vmatpush.bf16.msra.mxu0 0
    %6351 = vmatpush.bf16.msra.mxu0 0
    %6352 = vmatpush.bf16.msra.mxu0 0
    %6353 = vmatpush.bf16.msra.mxu0 %v6288
    %6354 = vmatpush.bf16.msra.mxu0 %v6256
    %6355 = vmatmul.bf16.gmra.mxu0 %v6319
    %v6356 = vpop.f32.mrf.mxu0
    %v6357 = vadd.f32 %v661, %v6356
    %v6358 = vpop.f32.mrf.mxu0
    %6359 = vdwg.mxu0
    %6360 = vmatpush.bf16.msra.mxu0 0
    %6361 = vmatpush.bf16.msra.mxu0 0
    %6362 = vmatpush.bf16.msra.mxu0 0
    %6363 = vmatpush.bf16.msra.mxu0 0
    %6364 = vmatpush.bf16.msra.mxu0 0
    %6365 = vmatpush.bf16.msra.mxu0 0
    %6366 = vmatpush.bf16.msra.mxu0 %v6289
    %6367 = vmatpush.bf16.msra.mxu0 %v6257
    %6368 = vmatmul.bf16.gmra.mxu0 %v6319
    %v6369 = vpop.f32.mrf.mxu0
    %v6370 = vadd.f32 %v714, %v6369
    %v6371 = vpop.f32.mrf.mxu0
    %6372 = vdwg.mxu0
    %6373 = vmatpush.bf16.msra.mxu0 0
    %6374 = vmatpush.bf16.msra.mxu0 0
    %6375 = vmatpush.bf16.msra.mxu0 0
    %6376 = vmatpush.bf16.msra.mxu0 0
    %6377 = vmatpush.bf16.msra.mxu0 0
    %6378 = vmatpush.bf16.msra.mxu0 0
    %6379 = vmatpush.bf16.msra.mxu0 %v6290
    %6380 = vmatpush.bf16.msra.mxu0 %v6258
    %6381 = vmatmul.bf16.gmra.mxu0 %v6319
    %v6382 = vpop.f32.mrf.mxu0
    %v6383 = vadd.f32 %v767, %v6382
    %v6384 = vpop.f32.mrf.mxu0
    %6385 = vdwg.mxu0
    %6386 = vmatpush.bf16.msra.mxu0 0
    %6387 = vmatpush.bf16.msra.mxu0 0
    %6388 = vmatpush.bf16.msra.mxu0 0
    %6389 = vmatpush.bf16.msra.mxu0 0
    %6390 = vmatpush.bf16.msra.mxu0 0
    %6391 = vmatpush.bf16.msra.mxu0 0
    %6392 = vmatpush.bf16.msra.mxu0 %v6291
    %6393 = vmatpush.bf16.msra.mxu0 %v6259
    %6394 = vmatmul.bf16.gmra.mxu0 %v6319
    %v6395 = vpop.f32.mrf.mxu0
    %v6396 = vadd.f32 %v820, %v6395
    %v6397 = vpop.f32.mrf.mxu0
    %6398 = vdwg.mxu0
    %6399 = vmatpush.bf16.msra.mxu0 0
    %6400 = vmatpush.bf16.msra.mxu0 0
    %6401 = vmatpush.bf16.msra.mxu0 0
    %6402 = vmatpush.bf16.msra.mxu0 0
    %6403 = vmatpush.bf16.msra.mxu0 0
    %6404 = vmatpush.bf16.msra.mxu0 0
    %6405 = vmatpush.bf16.msra.mxu0 %v6292
    %6406 = vmatpush.bf16.msra.mxu0 %v6260
    %6407 = vmatmul.bf16.gmra.mxu0 %v6319
    %v6408 = vpop.f32.mrf.mxu0
    %v6409 = vadd.f32 %v873, %v6408
    %v6410 = vpop.f32.mrf.mxu0
    %6411 = vdwg.mxu0
    %6412 = vmatpush.bf16.msra.mxu0 0
    %6413 = vmatpush.bf16.msra.mxu0 0
    %6414 = vmatpush.bf16.msra.mxu0 0
    %6415 = vmatpush.bf16.msra.mxu0 0
    %6416 = vmatpush.bf16.msra.mxu0 0
    %6417 = vmatpush.bf16.msra.mxu0 0
    %6418 = vmatpush.bf16.msra.mxu0 %v6293
    %6419 = vmatpush.bf16.msra.mxu0 %v6261
    %6420 = vmatmul.bf16.gmra.mxu0 %v6319
    %v6421 = vpop.f32.mrf.mxu0
    %v6422 = vadd.f32 %v926, %v6421
    %v6423 = vpop.f32.mrf.mxu0
    %6424 = vdwg.mxu0
    %6425 = vmatpush.bf16.msra.mxu0 0
    %6426 = vmatpush.bf16.msra.mxu0 0
    %6427 = vmatpush.bf16.msra.mxu0 0
    %6428 = vmatpush.bf16.msra.mxu0 0
    %6429 = vmatpush.bf16.msra.mxu0 0
    %6430 = vmatpush.bf16.msra.mxu0 0
    %6431 = vmatpush.bf16.msra.mxu0 %v6294
    %6432 = vmatpush.bf16.msra.mxu0 %v6262
    %6433 = vmatmul.bf16.gmra.mxu0 %v6319
    %v6434 = vpop.f32.mrf.mxu0
    %v6435 = vadd.f32 %v979, %v6434
    %v6436 = vpop.f32.mrf.mxu0
    %6437 = vdwg.mxu0
    %6438 = vmatpush.bf16.msra.mxu0 0
    %6439 = vmatpush.bf16.msra.mxu0 0
    %6440 = vmatpush.bf16.msra.mxu0 0
    %6441 = vmatpush.bf16.msra.mxu0 0
    %6442 = vmatpush.bf16.msra.mxu0 0
    %6443 = vmatpush.bf16.msra.mxu0 0
    %6444 = vmatpush.bf16.msra.mxu0 %v6295
    %6445 = vmatpush.bf16.msra.mxu0 %v6263
    %6446 = vmatmul.bf16.gmra.mxu0 %v6319
    %v6447 = vpop.f32.mrf.mxu0
    %v6448 = vadd.f32 %v1032, %v6447
    %v6449 = vpop.f32.mrf.mxu0
    %6450 = vdwg.mxu0
    %6451 = vmatpush.bf16.msra.mxu0 0
    %6452 = vmatpush.bf16.msra.mxu0 0
    %6453 = vmatpush.bf16.msra.mxu0 0
    %6454 = vmatpush.bf16.msra.mxu0 0
    %6455 = vmatpush.bf16.msra.mxu0 0
    %6456 = vmatpush.bf16.msra.mxu0 0
    %6457 = vmatpush.bf16.msra.mxu0 %v6296
    %6458 = vmatpush.bf16.msra.mxu0 %v6264
    %6459 = vmatmul.bf16.gmra.mxu0 %v6319
    %v6460 = vpop.f32.mrf.mxu0
    %v6461 = vadd.f32 %v1085, %v6460
    %v6462 = vpop.f32.mrf.mxu0
    %6463 = vdwg.mxu0
    %6464 = vmatpush.bf16.msra.mxu0 0
    %6465 = vmatpush.bf16.msra.mxu0 0
    %6466 = vmatpush.bf16.msra.mxu0 0
    %6467 = vmatpush.bf16.msra.mxu0 0
    %6468 = vmatpush.bf16.msra.mxu0 0
    %6469 = vmatpush.bf16.msra.mxu0 0
    %6470 = vmatpush.bf16.msra.mxu0 %v6297
    %6471 = vmatpush.bf16.msra.mxu0 %v6265
    %6472 = vmatmul.bf16.gmra.mxu0 %v6319
    %v6473 = vpop.f32.mrf.mxu0
    %v6474 = vadd.f32 %v1138, %v6473
    %v6475 = vpop.f32.mrf.mxu0
    %6476 = vdwg.mxu0
    %6477 = vmatpush.bf16.msra.mxu0 0
    %6478 = vmatpush.bf16.msra.mxu0 0
    %6479 = vmatpush.bf16.msra.mxu0 0
    %6480 = vmatpush.bf16.msra.mxu0 0
    %6481 = vmatpush.bf16.msra.mxu0 0
    %6482 = vmatpush.bf16.msra.mxu0 0
    %6483 = vmatpush.bf16.msra.mxu0 %v6298
    %6484 = vmatpush.bf16.msra.mxu0 %v6266
    %6485 = vmatmul.bf16.gmra.mxu0 %v6319
    %v6486 = vpop.f32.mrf.mxu0
    %v6487 = vadd.f32 %v1191, %v6486
    %v6488 = vpop.f32.mrf.mxu0
    %6489 = vdwg.mxu0
    %6490 = vmatpush.bf16.msra.mxu0 0
    %6491 = vmatpush.bf16.msra.mxu0 0
    %6492 = vmatpush.bf16.msra.mxu0 0
    %6493 = vmatpush.bf16.msra.mxu0 0
    %6494 = vmatpush.bf16.msra.mxu0 0
    %6495 = vmatpush.bf16.msra.mxu0 0
    %6496 = vmatpush.bf16.msra.mxu0 %v6299
    %6497 = vmatpush.bf16.msra.mxu0 %v6267
    %6498 = vmatmul.bf16.gmra.mxu0 %v6319
    %v6499 = vpop.f32.mrf.mxu0
    %v6500 = vadd.f32 %v1244, %v6499
    %v6501 = vpop.f32.mrf.mxu0
    %6502 = vdwg.mxu0
    %6503 = vmatpush.bf16.msra.mxu0 0
    %6504 = vmatpush.bf16.msra.mxu0 0
    %6505 = vmatpush.bf16.msra.mxu0 0
    %6506 = vmatpush.bf16.msra.mxu0 0
    %6507 = vmatpush.bf16.msra.mxu0 0
    %6508 = vmatpush.bf16.msra.mxu0 0
    %6509 = vmatpush.bf16.msra.mxu0 %v6300
    %6510 = vmatpush.bf16.msra.mxu0 %v6268
    %6511 = vmatmul.bf16.gmra.mxu0 %v6319
    %v6512 = vpop.f32.mrf.mxu0
    %v6513 = vadd.f32 %v1297, %v6512
    %v6514 = vpop.f32.mrf.mxu0
    %6515 = vdwg.mxu0
    %6516 = vmatpush.bf16.msra.mxu0 0
    %6517 = vmatpush.bf16.msra.mxu0 0
    %6518 = vmatpush.bf16.msra.mxu0 0
    %6519 = vmatpush.bf16.msra.mxu0 0
    %6520 = vmatpush.bf16.msra.mxu0 0
    %6521 = vmatpush.bf16.msra.mxu0 0
    %6522 = vmatpush.bf16.msra.mxu0 %v6301
    %6523 = vmatpush.bf16.msra.mxu0 %v6269
    %6524 = vmatmul.bf16.gmra.mxu0 %v6319
    %v6525 = vpop.f32.mrf.mxu0
    %v6526 = vadd.f32 %v1350, %v6525
    %v6527 = vpop.f32.mrf.mxu0
    %6528 = vdwg.mxu0
    %6529 = vmatpush.bf16.msra.mxu0 0
    %6530 = vmatpush.bf16.msra.mxu0 0
    %6531 = vmatpush.bf16.msra.mxu0 0
    %6532 = vmatpush.bf16.msra.mxu0 0
    %6533 = vmatpush.bf16.msra.mxu0 0
    %6534 = vmatpush.bf16.msra.mxu0 0
    %6535 = vmatpush.bf16.msra.mxu0 %v6302
    %6536 = vmatpush.bf16.msra.mxu0 %v6270
    %6537 = vmatmul.bf16.gmra.mxu0 %v6319
    %v6538 = vpop.f32.mrf.mxu0
    %v6539 = vadd.f32 %v1403, %v6538
    %v6540 = vpop.f32.mrf.mxu0
    %6541 = vdwg.mxu0
    %6542 = vmatpush.bf16.msra.mxu0 0
    %6543 = vmatpush.bf16.msra.mxu0 0
    %6544 = vmatpush.bf16.msra.mxu0 0
    %6545 = vmatpush.bf16.msra.mxu0 0
    %6546 = vmatpush.bf16.msra.mxu0 0
    %6547 = vmatpush.bf16.msra.mxu0 0
    %6548 = vmatpush.bf16.msra.mxu0 %v6303
    %6549 = vmatpush.bf16.msra.mxu0 %v6271
    %6550 = vmatmul.bf16.gmra.mxu0 %v6319
    %v6551 = vpop.f32.mrf.mxu0
    %v6552 = vadd.f32 %v1456, %v6551
    %v6553 = vpop.f32.mrf.mxu0
    %6554 = vdwg.mxu0
    %6555 = vmatpush.bf16.msra.mxu0 0
    %6556 = vmatpush.bf16.msra.mxu0 0
    %6557 = vmatpush.bf16.msra.mxu0 0
    %6558 = vmatpush.bf16.msra.mxu0 0
    %6559 = vmatpush.bf16.msra.mxu0 0
    %6560 = vmatpush.bf16.msra.mxu0 0
    %6561 = vmatpush.bf16.msra.mxu0 %v6304
    %6562 = vmatpush.bf16.msra.mxu0 %v6272
    %6563 = vmatmul.bf16.gmra.mxu0 %v6319
    %v6564 = vpop.f32.mrf.mxu0
    %v6565 = vadd.f32 %v1509, %v6564
    %v6566 = vpop.f32.mrf.mxu0
    %6567 = vdwg.mxu0
    %6568 = vmatpush.bf16.msra.mxu0 0
    %6569 = vmatpush.bf16.msra.mxu0 0
    %6570 = vmatpush.bf16.msra.mxu0 0
    %6571 = vmatpush.bf16.msra.mxu0 0
    %6572 = vmatpush.bf16.msra.mxu0 0
    %6573 = vmatpush.bf16.msra.mxu0 0
    %6574 = vmatpush.bf16.msra.mxu0 %v6305
    %6575 = vmatpush.bf16.msra.mxu0 %v6273
    %6576 = vmatmul.bf16.gmra.mxu0 %v6319
    %v6577 = vpop.f32.mrf.mxu0
    %v6578 = vadd.f32 %v1562, %v6577
    %v6579 = vpop.f32.mrf.mxu0
    %6580 = vdwg.mxu0
    %6581 = vmatpush.bf16.msra.mxu0 0
    %6582 = vmatpush.bf16.msra.mxu0 0
    %6583 = vmatpush.bf16.msra.mxu0 0
    %6584 = vmatpush.bf16.msra.mxu0 0
    %6585 = vmatpush.bf16.msra.mxu0 0
    %6586 = vmatpush.bf16.msra.mxu0 0
    %6587 = vmatpush.bf16.msra.mxu0 %v6306
    %6588 = vmatpush.bf16.msra.mxu0 %v6274
    %6589 = vmatmul.bf16.gmra.mxu0 %v6319
    %v6590 = vpop.f32.mrf.mxu0
    %v6591 = vadd.f32 %v1615, %v6590
    %v6592 = vpop.f32.mrf.mxu0
    %6593 = vdwg.mxu0
    %6594 = vmatpush.bf16.msra.mxu0 0
    %6595 = vmatpush.bf16.msra.mxu0 0
    %6596 = vmatpush.bf16.msra.mxu0 0
    %6597 = vmatpush.bf16.msra.mxu0 0
    %6598 = vmatpush.bf16.msra.mxu0 0
    %6599 = vmatpush.bf16.msra.mxu0 0
    %6600 = vmatpush.bf16.msra.mxu0 %v6307
    %6601 = vmatpush.bf16.msra.mxu0 %v6275
    %6602 = vmatmul.bf16.gmra.mxu0 %v6319
    %v6603 = vpop.f32.mrf.mxu0
    %v6604 = vadd.f32 %v1668, %v6603
    %v6605 = vpop.f32.mrf.mxu0
    %6606 = vdwg.mxu0
    %6607 = vmatpush.bf16.msra.mxu0 0
    %6608 = vmatpush.bf16.msra.mxu0 0
    %6609 = vmatpush.bf16.msra.mxu0 0
    %6610 = vmatpush.bf16.msra.mxu0 0
    %6611 = vmatpush.bf16.msra.mxu0 0
    %6612 = vmatpush.bf16.msra.mxu0 0
    %6613 = vmatpush.bf16.msra.mxu0 %v6308
    %6614 = vmatpush.bf16.msra.mxu0 %v6276
    %6615 = vmatmul.bf16.gmra.mxu0 %v6319
    %v6616 = vpop.f32.mrf.mxu0
    %v6617 = vadd.f32 %v1721, %v6616
    %v6618 = vpop.f32.mrf.mxu0
    %6619 = vdwg.mxu0
    %6620 = vmatpush.bf16.msra.mxu0 0
    %6621 = vmatpush.bf16.msra.mxu0 0
    %6622 = vmatpush.bf16.msra.mxu0 0
    %6623 = vmatpush.bf16.msra.mxu0 0
    %6624 = vmatpush.bf16.msra.mxu0 0
    %6625 = vmatpush.bf16.msra.mxu0 0
    %6626 = vmatpush.bf16.msra.mxu0 %v6309
    %6627 = vmatpush.bf16.msra.mxu0 %v6277
    %6628 = vmatmul.bf16.gmra.mxu0 %v6319
    %v6629 = vpop.f32.mrf.mxu0
    %v6630 = vadd.f32 %v1774, %v6629
    %v6631 = vpop.f32.mrf.mxu0
    %6632 = vdwg.mxu0
    %6633 = vmatpush.bf16.msra.mxu0 0
    %6634 = vmatpush.bf16.msra.mxu0 0
    %6635 = vmatpush.bf16.msra.mxu0 0
    %6636 = vmatpush.bf16.msra.mxu0 0
    %6637 = vmatpush.bf16.msra.mxu0 0
    %6638 = vmatpush.bf16.msra.mxu0 0
    %6639 = vmatpush.bf16.msra.mxu0 %v6310
    %6640 = vmatpush.bf16.msra.mxu0 %v6278
    %6641 = vmatmul.bf16.gmra.mxu0 %v6319
    %v6642 = vpop.f32.mrf.mxu0
    %v6643 = vadd.f32 %v1827, %v6642
    %v6644 = vpop.f32.mrf.mxu0
    %6645 = vdwg.mxu0
    %6646 = vmatpush.bf16.msra.mxu0 0
    %6647 = vmatpush.bf16.msra.mxu0 0
    %6648 = vmatpush.bf16.msra.mxu0 0
    %6649 = vmatpush.bf16.msra.mxu0 0
    %6650 = vmatpush.bf16.msra.mxu0 0
    %6651 = vmatpush.bf16.msra.mxu0 0
    %6652 = vmatpush.bf16.msra.mxu0 %v6311
    %6653 = vmatpush.bf16.msra.mxu0 %v6279
    %6654 = vmatmul.bf16.gmra.mxu0 %v6319
    %v6655 = vpop.f32.mrf.mxu0
    %v6656 = vadd.f32 %v1880, %v6655
    %v6657 = vpop.f32.mrf.mxu0
    %6658 = vdwg.mxu0
    %6659 = vmatpush.bf16.msra.mxu0 0
    %6660 = vmatpush.bf16.msra.mxu0 0
    %6661 = vmatpush.bf16.msra.mxu0 0
    %6662 = vmatpush.bf16.msra.mxu0 0
    %6663 = vmatpush.bf16.msra.mxu0 0
    %6664 = vmatpush.bf16.msra.mxu0 0
    %6665 = vmatpush.bf16.msra.mxu0 %v6312
    %6666 = vmatpush.bf16.msra.mxu0 %v6280
    %6667 = vmatmul.bf16.gmra.mxu0 %v6319
    %v6668 = vpop.f32.mrf.mxu0
    %v6669 = vadd.f32 %v1933, %v6668
    %v6670 = vpop.f32.mrf.mxu0
    %6671 = vdwg.mxu0
    %6672 = vmatpush.bf16.msra.mxu0 0
    %6673 = vmatpush.bf16.msra.mxu0 0
    %6674 = vmatpush.bf16.msra.mxu0 0
    %6675 = vmatpush.bf16.msra.mxu0 0
    %6676 = vmatpush.bf16.msra.mxu0 0
    %6677 = vmatpush.bf16.msra.mxu0 0
    %6678 = vmatpush.bf16.msra.mxu0 %v6313
    %6679 = vmatpush.bf16.msra.mxu0 %v6281
    %6680 = vmatmul.bf16.gmra.mxu0 %v6319
    %v6681 = vpop.f32.mrf.mxu0
    %v6682 = vadd.f32 %v1986, %v6681
    %v6683 = vpop.f32.mrf.mxu0
    %6684 = vdwg.mxu0
    %6685 = vmatpush.bf16.msra.mxu0 0
    %6686 = vmatpush.bf16.msra.mxu0 0
    %6687 = vmatpush.bf16.msra.mxu0 0
    %6688 = vmatpush.bf16.msra.mxu0 0
    %6689 = vmatpush.bf16.msra.mxu0 0
    %6690 = vmatpush.bf16.msra.mxu0 0
    %6691 = vmatpush.bf16.msra.mxu0 %v6314
    %6692 = vmatpush.bf16.msra.mxu0 %v6282
    %6693 = vmatmul.bf16.gmra.mxu0 %v6319
    %v6694 = vpop.f32.mrf.mxu0
    %v6695 = vadd.f32 %v2039, %v6694
    %v6696 = vpop.f32.mrf.mxu0
    %6697 = vdwg.mxu0
    %6698 = vmatpush.bf16.msra.mxu0 0
    %6699 = vmatpush.bf16.msra.mxu0 0
    %6700 = vmatpush.bf16.msra.mxu0 0
    %6701 = vmatpush.bf16.msra.mxu0 0
    %6702 = vmatpush.bf16.msra.mxu0 0
    %6703 = vmatpush.bf16.msra.mxu0 0
    %6704 = vmatpush.bf16.msra.mxu0 %v6315
    %6705 = vmatpush.bf16.msra.mxu0 %v6283
    %6706 = vmatmul.bf16.gmra.mxu0 %v6319
    %v6707 = vpop.f32.mrf.mxu0
    %v6708 = vadd.f32 %v2092, %v6707
    %v6709 = vpop.f32.mrf.mxu0
    %6710 = vdwg.mxu0
    %6711 = vmatpush.bf16.msra.mxu0 0
    %6712 = vmatpush.bf16.msra.mxu0 0
    %6713 = vmatpush.bf16.msra.mxu0 0
    %6714 = vmatpush.bf16.msra.mxu0 0
    %6715 = vmatpush.bf16.msra.mxu0 0
    %6716 = vmatpush.bf16.msra.mxu0 0
    %6717 = vmatpush.bf16.msra.mxu0 %v6316
    %6718 = vmatpush.bf16.msra.mxu0 %v6284
    %6719 = vmatmul.bf16.gmra.mxu0 %v6319
    %v6720 = vpop.f32.mrf.mxu0
    %v6721 = vadd.f32 %v2145, %v6720
    %v6722 = vpop.f32.mrf.mxu0
    %6723 = vdwg.mxu0
    %6724 = vmatpush.bf16.msra.mxu0 0
    %6725 = vmatpush.bf16.msra.mxu0 0
    %6726 = vmatpush.bf16.msra.mxu0 0
    %6727 = vmatpush.bf16.msra.mxu0 0
    %6728 = vmatpush.bf16.msra.mxu0 0
    %6729 = vmatpush.bf16.msra.mxu0 0
    %6730 = vmatpush.bf16.msra.mxu0 %v6317
    %6731 = vmatpush.bf16.msra.mxu0 %v6285
    %6732 = vmatmul.bf16.gmra.mxu0 %v6319
    %v6733 = vpop.f32.mrf.mxu0
    %v6734 = vadd.f32 %v2198, %v6733
    %v6735 = vpop.f32.mrf.mxu0
    %6736 = vdwg.mxu0
    %v6737 = vld [vmem:[%s0] sm:$0x77]
    %v6738 = vld [vmem:[%s0 + $0x8] sm:$0x77]
    %v6739 = vld [vmem:[%s0 + $0x10] sm:$0x77]
    %v6740 = vld [vmem:[%s0 + $0x18] sm:$0x77]
    %v6741 = vld [vmem:[%s0 + $0x20] sm:$0x77]
    %v6742 = vld [vmem:[%s0 + $0x28] sm:$0x77]
    %v6743 = vld [vmem:[%s0 + $0x30] sm:$0x77]
    %v6744 = vld [vmem:[%s0 + $0x38] sm:$0x77]
    %v6745 = vld [vmem:[%s0 + $0x40] sm:$0x77]
    %v6746 = vld [vmem:[%s0 + $0x48] sm:$0x77]
    %v6747 = vld [vmem:[%s0 + $0x50] sm:$0x77]
    %v6748 = vld [vmem:[%s0 + $0x58] sm:$0x77]
    %v6749 = vld [vmem:[%s0 + $0x60] sm:$0x77]
    %v6750 = vld [vmem:[%s0 + $0x68] sm:$0x77]
    %v6751 = vld [vmem:[%s0 + $0x70] sm:$0x77]
    %v6752 = vld [vmem:[%s0 + $0x78] sm:$0x77]
    %vm6753 = vcmp.gt.f32.partialorder %v6737, 1.0
    %vm6754 = vcmp.gt.f32.partialorder %v6738, 1.0
    %vm6755 = vcmp.gt.f32.partialorder %v6739, 1.0
    %vm6756 = vcmp.gt.f32.partialorder %v6740, 1.0
    %vm6757 = vcmp.gt.f32.partialorder %v6741, 1.0
    %vm6758 = vcmp.gt.f32.partialorder %v6742, 1.0
    %vm6759 = vcmp.gt.f32.partialorder %v6743, 1.0
    %vm6760 = vcmp.gt.f32.partialorder %v6744, 1.0
    %vm6761 = vcmp.gt.f32.partialorder %v6745, 1.0
    %vm6762 = vcmp.gt.f32.partialorder %v6746, 1.0
    %vm6763 = vcmp.gt.f32.partialorder %v6747, 1.0
    %vm6764 = vcmp.gt.f32.partialorder %v6748, 1.0
    %vm6765 = vcmp.gt.f32.partialorder %v6749, 1.0
    %vm6766 = vcmp.gt.f32.partialorder %v6750, 1.0
    %vm6767 = vcmp.gt.f32.partialorder %v6751, 1.0
    %vm6768 = vcmp.gt.f32.partialorder %v6752, 1.0
    %6785 = vst [vmem:[#allocation1] ss:$2 sm:$0xff] %v6737
    %s6786 = scalar_lea.vmem [#allocation1], 16
    %6787 = vst [vmem:[%s6786] ss:$2 sm:$0xff] %v6738
    %s6788 = scalar_lea.vmem [#allocation1], 32
    %6789 = vst [vmem:[%s6788] ss:$2 sm:$0xff] %v6739
    %s6790 = scalar_lea.vmem [#allocation1], 48
    %6791 = vst [vmem:[%s6790] ss:$2 sm:$0xff] %v6740
    %v6792 = vld.sshfl [vmem:[#allocation1] sm:$0xff pattern:$0x75316420]
    %v6793 = vld.sshfl [vmem:[#allocation1 + $0x8] sm:$0xff pattern:$0x75316420]
    %v6794 = vld.sshfl [vmem:[#allocation1 + $0x10] sm:$0xff pattern:$0x75316420]
    %v6795 = vld.sshfl [vmem:[#allocation1 + $0x18] sm:$0xff pattern:$0x75316420]
    %v6796 = vld.sshfl [vmem:[#allocation1 + $0x20] sm:$0xff pattern:$0x75316420]
    %v6797 = vld.sshfl [vmem:[#allocation1 + $0x28] sm:$0xff pattern:$0x75316420]
    %v6798 = vld.sshfl [vmem:[#allocation1 + $0x30] sm:$0xff pattern:$0x75316420]
    %v6799 = vld.sshfl [vmem:[#allocation1 + $0x38] sm:$0xff pattern:$0x75316420]
    %6800 = vst [vmem:[#allocation1] ss:$2 sm:$0xff] %v6741
    %6801 = vst [vmem:[%s6786] ss:$2 sm:$0xff] %v6742
    %6802 = vst [vmem:[%s6788] ss:$2 sm:$0xff] %v6743
    %6803 = vst [vmem:[%s6790] ss:$2 sm:$0xff] %v6744
    %v6804 = vld.sshfl [vmem:[#allocation1] sm:$0xff pattern:$0x75316420]
    %v6805 = vld.sshfl [vmem:[#allocation1 + $0x8] sm:$0xff pattern:$0x75316420]
    %v6806 = vld.sshfl [vmem:[#allocation1 + $0x10] sm:$0xff pattern:$0x75316420]
    %v6807 = vld.sshfl [vmem:[#allocation1 + $0x18] sm:$0xff pattern:$0x75316420]
    %v6808 = vld.sshfl [vmem:[#allocation1 + $0x20] sm:$0xff pattern:$0x75316420]
    %v6809 = vld.sshfl [vmem:[#allocation1 + $0x28] sm:$0xff pattern:$0x75316420]
    %v6810 = vld.sshfl [vmem:[#allocation1 + $0x30] sm:$0xff pattern:$0x75316420]
    %v6811 = vld.sshfl [vmem:[#allocation1 + $0x38] sm:$0xff pattern:$0x75316420]
    %6812 = vst [vmem:[#allocation1] ss:$2 sm:$0xff] %v6745
    %6813 = vst [vmem:[%s6786] ss:$2 sm:$0xff] %v6746
    %6814 = vst [vmem:[%s6788] ss:$2 sm:$0xff] %v6747
    %6815 = vst [vmem:[%s6790] ss:$2 sm:$0xff] %v6748
    %v6816 = vld.sshfl [vmem:[#allocation1] sm:$0xff pattern:$0x75316420]
    %v6817 = vld.sshfl [vmem:[#allocation1 + $0x8] sm:$0xff pattern:$0x75316420]
    %v6818 = vld.sshfl [vmem:[#allocation1 + $0x10] sm:$0xff pattern:$0x75316420]
    %v6819 = vld.sshfl [vmem:[#allocation1 + $0x18] sm:$0xff pattern:$0x75316420]
    %v6820 = vld.sshfl [vmem:[#allocation1 + $0x20] sm:$0xff pattern:$0x75316420]
    %v6821 = vld.sshfl [vmem:[#allocation1 + $0x28] sm:$0xff pattern:$0x75316420]
    %v6822 = vld.sshfl [vmem:[#allocation1 + $0x30] sm:$0xff pattern:$0x75316420]
    %v6823 = vld.sshfl [vmem:[#allocation1 + $0x38] sm:$0xff pattern:$0x75316420]
    %6824 = vst [vmem:[#allocation1] ss:$2 sm:$0xff] %v6749
    %6825 = vst [vmem:[%s6786] ss:$2 sm:$0xff] %v6750
    %6826 = vst [vmem:[%s6788] ss:$2 sm:$0xff] %v6751
    %6827 = vst [vmem:[%s6790] ss:$2 sm:$0xff] %v6752
    %v6828 = vld.sshfl [vmem:[#allocation1] sm:$0xff pattern:$0x75316420]
    %v6829 = vld.sshfl [vmem:[#allocation1 + $0x8] sm:$0xff pattern:$0x75316420]
    %v6830 = vld.sshfl [vmem:[#allocation1 + $0x10] sm:$0xff pattern:$0x75316420]
    %v6831 = vld.sshfl [vmem:[#allocation1 + $0x18] sm:$0xff pattern:$0x75316420]
    %v6832 = vld.sshfl [vmem:[#allocation1 + $0x20] sm:$0xff pattern:$0x75316420]
    %v6833 = vld.sshfl [vmem:[#allocation1 + $0x28] sm:$0xff pattern:$0x75316420]
    %v6834 = vld.sshfl [vmem:[#allocation1 + $0x30] sm:$0xff pattern:$0x75316420]
    %v6835 = vld.sshfl [vmem:[#allocation1 + $0x38] sm:$0xff pattern:$0x75316420]
    %v6868 = vadd.f32 %v6331, %v6792
    %v6869 = vadd.f32 %v6344, %v6793
    %v6870 = vadd.f32 %v6357, %v6794
    %v6871 = vadd.f32 %v6370, %v6795
    %v6872 = vadd.f32 %v6383, %v6796
    %v6873 = vadd.f32 %v6396, %v6797
    %v6874 = vadd.f32 %v6409, %v6798
    %v6875 = vadd.f32 %v6422, %v6799
    %v6876 = vadd.f32 %v6435, %v6804
    %v6877 = vadd.f32 %v6448, %v6805
    %v6878 = vadd.f32 %v6461, %v6806
    %v6879 = vadd.f32 %v6474, %v6807
    %v6880 = vadd.f32 %v6487, %v6808
    %v6881 = vadd.f32 %v6500, %v6809
    %v6882 = vadd.f32 %v6513, %v6810
    %v6883 = vadd.f32 %v6526, %v6811
    %v6884 = vadd.f32 %v6539, %v6816
    %v6885 = vadd.f32 %v6552, %v6817
    %v6886 = vadd.f32 %v6565, %v6818
    %v6887 = vadd.f32 %v6578, %v6819
    %v6888 = vadd.f32 %v6591, %v6820
    %v6889 = vadd.f32 %v6604, %v6821
    %v6890 = vadd.f32 %v6617, %v6822
    %v6891 = vadd.f32 %v6630, %v6823
    %v6892 = vadd.f32 %v6643, %v6828
    %v6893 = vadd.f32 %v6656, %v6829
    %v6894 = vadd.f32 %v6669, %v6830
    %v6895 = vadd.f32 %v6682, %v6831
    %v6896 = vadd.f32 %v6695, %v6832
    %v6897 = vadd.f32 %v6708, %v6833
    %v6898 = vadd.f32 %v6721, %v6834
    %v6899 = vadd.f32 %v6734, %v6835
    %v6932 = vrot.slane %v6869, 4
    %v6933 = vrot.slane %v6871, 4
    %v6934 = vrot.slane %v6873, 4
    %v6935 = vrot.slane %v6875, 4
    %v6936 = vrot.slane %v6877, 4
    %v6937 = vrot.slane %v6879, 4
    %v6938 = vrot.slane %v6881, 4
    %v6939 = vrot.slane %v6883, 4
    %v6940 = vrot.slane %v6885, 4
    %v6941 = vrot.slane %v6887, 4
    %v6942 = vrot.slane %v6889, 4
    %v6943 = vrot.slane %v6891, 4
    %v6944 = vrot.slane %v6893, 4
    %v6945 = vrot.slane %v6895, 4
    %v6946 = vrot.slane %v6897, 4
    %v6947 = vrot.slane %v6899, 4
    %v6948 = vsel %vm408, %v6868, %v6932
    %v6949 = vsel %vm408, %v6870, %v6933
    %v6950 = vsel %vm408, %v6872, %v6934
    %v6951 = vsel %vm408, %v6874, %v6935
    %v6952 = vsel %vm408, %v6876, %v6936
    %v6953 = vsel %vm408, %v6878, %v6937
    %v6954 = vsel %vm408, %v6880, %v6938
    %v6955 = vsel %vm408, %v6882, %v6939
    %v6956 = vsel %vm408, %v6884, %v6940
    %v6957 = vsel %vm408, %v6886, %v6941
    %v6958 = vsel %vm408, %v6888, %v6942
    %v6959 = vsel %vm408, %v6890, %v6943
    %v6960 = vsel %vm408, %v6892, %v6944
    %v6961 = vsel %vm408, %v6894, %v6945
    %v6962 = vsel %vm408, %v6896, %v6946
    %v6963 = vsel %vm408, %v6898, %v6947
    %v6980 = vsel %vm6753, %v6737, %v6948
    %v6981 = vsel %vm6754, %v6738, %v6949
    %v6982 = vsel %vm6755, %v6739, %v6950
    %v6983 = vsel %vm6756, %v6740, %v6951
    %v6984 = vsel %vm6757, %v6741, %v6952
    %v6985 = vsel %vm6758, %v6742, %v6953
    %v6986 = vsel %vm6759, %v6743, %v6954
    %v6987 = vsel %vm6760, %v6744, %v6955
    %v6988 = vsel %vm6761, %v6745, %v6956
    %v6989 = vsel %vm6762, %v6746, %v6957
    %v6990 = vsel %vm6763, %v6747, %v6958
    %v6991 = vsel %vm6764, %v6748, %v6959
    %v6992 = vsel %vm6765, %v6749, %v6960
    %v6993 = vsel %vm6766, %v6750, %v6961
    %v6994 = vsel %vm6767, %v6751, %v6962
    %v6995 = vsel %vm6768, %v6752, %v6963
    %6996 = vst [vmem:[#allocation7] sm:$0x77] %v6980
    %6997 = vst [vmem:[#allocation7 + $0x8] sm:$0x77] %v6981
    %6998 = vst [vmem:[#allocation7 + $0x10] sm:$0x77] %v6982
    %6999 = vst [vmem:[#allocation7 + $0x18] sm:$0x77] %v6983
    %7000 = vst [vmem:[#allocation7 + $0x20] sm:$0x77] %v6984
    %7001 = vst [vmem:[#allocation7 + $0x28] sm:$0x77] %v6985
    %7002 = vst [vmem:[#allocation7 + $0x30] sm:$0x77] %v6986
    %7003 = vst [vmem:[#allocation7 + $0x38] sm:$0x77] %v6987
    %7004 = vst [vmem:[#allocation7 + $0x40] sm:$0x77] %v6988
    %7005 = vst [vmem:[#allocation7 + $0x48] sm:$0x77] %v6989
    %7006 = vst [vmem:[#allocation7 + $0x50] sm:$0x77] %v6990
    %7007 = vst [vmem:[#allocation7 + $0x58] sm:$0x77] %v6991
    %7008 = vst [vmem:[#allocation7 + $0x60] sm:$0x77] %v6992
    %7009 = vst [vmem:[#allocation7 + $0x68] sm:$0x77] %v6993
    %7010 = vst [vmem:[#allocation7 + $0x70] sm:$0x77] %v6994
    %7011 = vst [vmem:[#allocation7 + $0x78] sm:$0x77] %v6995
    // Predicated region
    $region38: #{tpu_custom_call.1} parent=1 // pred_check
      _
    $region39: #{tpu_custom_call.1} parent=1 // pred_check_branch
      %7013 = sbr.rel (0) target = $region41
    $region40: #{tpu_custom_call.1} parent=1 // pred_region
      %7015 = vsyncadd [#allocation4], 0
      %s7017 = sshll.u32 [#allocation7], 4
      %s7018 = int_to_ptr.vmem [resolvable:$true] %s7017
      %s7019 = sshll.u32 %s7, 4
      %s7020 = int_to_ptr.hbm [resolvable:$true] %s7019
      %7022 = dma.vmem_to_hbm [thread:$0]  %s7018, 2048, %s7020, [#allocation4]
    $region41: #{tpu_custom_call.1} parent=1 // pred_fallthru
      _
    // Predicated region
    $region42: #{tpu_custom_call.1} parent=1 // pred_check
      _
    $region43: #{tpu_custom_call.1} parent=1 // pred_check_branch
      %7024 = sbr.rel (0) target = $region45
    $region44: #{tpu_custom_call.1} parent=1 // pred_region
      %7026 = dma.done [#allocation4], 2048
    $region45: #{tpu_custom_call.1} parent=1 // pred_fallthru
      _
    %7027 = vsyncpa [#allocation3], 1
    %7028 = vsyncpa [#allocation6], 1
    %7029 = vsyncpa [#allocation4], 1

</llo_original>
